<compile_context>
chip_gen: v6e
topology: v6e:2x2x1
jax: 0.10.0
libtpu: 0.0.40
codegen_flags: <defaults>
</compile_context>

<pallas_src>
import numpy as np
import jax
import jax.numpy as jnp
from jax import lax
from jax.experimental import pallas as pl
from jax.experimental.pallas import tpu as pltpu

BN_EPS = 1e-5
_HIGHEST = lax.Precision.HIGHEST


# -----------------------------------------------------------------------------
# Bilinear 2x interpolation matrix (align_corners=False, half-pixel centers,
# matches torch.nn.functional.interpolate(scale_factor=2, mode='bilinear')).
# -----------------------------------------------------------------------------
def _interp_matrix(in_size: int) -> jnp.ndarray:
    out_size = 2 * in_size
    j = np.arange(out_size, dtype=np.float64)
    src = np.clip((j + 0.5) / 2.0 - 0.5, 0.0, float(in_size - 1))
    i0 = np.floor(src).astype(np.int64)
    i1 = np.minimum(i0 + 1, in_size - 1)
    lam = src - i0
    a = np.zeros((out_size, in_size), np.float32)
    a[np.arange(out_size), i0] += (1.0 - lam)
    a[np.arange(out_size), i1] += lam
    return jnp.asarray(a)


def _fold_bn(gamma, beta, mean, var):
    s = gamma / jnp.sqrt(var + BN_EPS)
    return s, beta - mean * s


def _shift_matrix(n: int, dx: int) -> np.ndarray:
    """(n, n) column-shift matrix for a SAME 3-tap conv: m[j+dx-1, j] = 1."""
    m = np.zeros((n, n), np.float32)
    for j in range(n):
        s = j + dx - 1
        if 0 <= s < n:
            m[s, j] = 1.0
    return m


def _conv_kron_weights(w_hwio, out_w: int):
    """w_hwio (3,3,Cin,Cout) -> (3, out_w*Cin, out_w*Cout) per-dy lane-dense
    conv matrices: acc = sum_dy pad[dy:dy+2H, :] @ W[dy] (zero col-pad folded)."""
    kh, kw, cin, cout = w_hwio.shape
    mats = []
    for dy in range(kh):
        m = jnp.zeros((out_w * cin, out_w * cout), jnp.float32)
        for dx in range(kw):
            m = m + jnp.kron(jnp.asarray(_shift_matrix(out_w, dx)),
                             w_hwio[dy, dx].astype(jnp.float32))
        mats.append(m)
    return jnp.stack(mats, axis=0)


# -----------------------------------------------------------------------------
# Fully fused kernel: upsample + concat + conv1+bn1+relu + conv2+bn2+relu
# -----------------------------------------------------------------------------
def _fused_upsample_block_kernel(
        x_ref,       # (H, W*Cin)                low-res input, channels-fastest
        skip_ref,    # (2H, 2W*Cskip)            skip connection, lane-dense
        a_h_ref,     # (2H, H)                   row interpolation matrix
        a_wk_ref,    # (W*Cin, 2W*Cin)           kron(A_w^T, I_Cin)
        w1_ref,      # (3, 2W*(Cin+Cskip), 2W*Cout)  per-dy kron conv1 (BN1 folded)
        w2_ref,      # (3, 2W*Cout, 2W*Cout)         per-dy kron conv2 (BN2 folded)
        b1_ref,      # (1, 2W*Cout)              folded BN1 bias, pre-tiled
        b2_ref,      # (1, 2W*Cout)              folded BN2 bias, pre-tiled
        o_ref,       # (2H, 2W*Cout)             lane-dense output
        z_pad,       # VMEM (2H+2, 2W*(Cin+Cskip))   concat buffer, 1-row halo
        y1_pad,      # VMEM (2H+2, 2W*Cout)          conv1 output, 1-row halo
):
    oh = o_ref.shape[0]                 # 2H
    up_w = a_wk_ref.shape[1]            # 2W*Cin

    # ---- bilinear 2x upsample: two lane-dense MXU matmuls --------------------
    t = jnp.dot(a_h_ref[...], x_ref[...],
                preferred_element_type=jnp.float32, precision=_HIGHEST)
    up = jnp.dot(t, a_wk_ref[...],
                 preferred_element_type=jnp.float32, precision=_HIGHEST)

    # ---- zero only the halo rows (cols need no halo: folded into kron W) -----
    z_pad[0:1, :] = jnp.zeros((1, z_pad.shape[1]), jnp.float32)
    z_pad[oh + 1:oh + 2, :] = jnp.zeros((1, z_pad.shape[1]), jnp.float32)
    y1_pad[0:1, :] = jnp.zeros((1, y1_pad.shape[1]), jnp.float32)
    y1_pad[oh + 1:oh + 2, :] = jnp.zeros((1, y1_pad.shape[1]), jnp.float32)

    # ---- fused channel concat: two aligned lane-dense interior stores --------
    z_pad[1:oh + 1, 0:up_w] = up
    z_pad[1:oh + 1, up_w:] = skip_ref[...].astype(jnp.float32)

    # ---- conv1 (3x3, SAME) + folded BN1 + ReLU: 3 matmuls, (2H,2W*Ctot) lhs --
    acc1 = jnp.zeros_like(o_ref, dtype=jnp.float32)
    for dy in range(3):
        acc1 = acc1 + jnp.dot(z_pad[dy:dy + oh, :], w1_ref[dy],
                              preferred_element_type=jnp.float32,
                              precision=_HIGHEST)
    y1_pad[1:oh + 1, :] = jnp.maximum(acc1 + b1_ref[...], 0.0)   # stays in VMEM

    # ---- conv2 (3x3, SAME) + folded BN2 + ReLU: 3 matmuls --------------------
    acc2 = jnp.zeros_like(o_ref, dtype=jnp.float32)
    for dy in range(3):
        acc2 = acc2 + jnp.dot(y1_pad[dy:dy + oh, :], w2_ref[dy],
                              preferred_element_type=jnp.float32,
                              precision=_HIGHEST)
    o_ref[...] = jnp.maximum(acc2 + b2_ref[...], 0.0).astype(o_ref.dtype)


# -----------------------------------------------------------------------------
# UpsampleBlock forward (parametric=False, use_bn=True).  NCHW in/out.
# -----------------------------------------------------------------------------
def upsample_block_forward(x_nchw, skip_nchw, params):
    n, cin, h, w = x_nchw.shape
    _, cskip, h2, w2 = skip_nchw.shape
    cout = params["w1"].shape[0]
    assert (h2, w2) == (2 * h, 2 * w)
    ctot = cin + cskip
    oh, ow = 2 * h, 2 * w

    # NCHW <-> NHWC only at the API boundary; kernel is channels-last lane-dense.
    x_flat = jnp.transpose(x_nchw, (0, 2, 3, 1)).reshape(n, h, w * cin)
    skip_flat = jnp.transpose(skip_nchw, (0, 2, 3, 1)).reshape(n, oh, ow * cskip)

    a_h = _interp_matrix(h)                                        # (2H, H)
    a_wk = jnp.kron(_interp_matrix(w).T,
                    jnp.eye(cin, dtype=jnp.float32))               # (W*Cin, 2W*Cin)

    # Fold BN scale into conv weights; bias stays as a lane-dense epilogue add.
    s1, bb1 = _fold_bn(params["g1"], params["be1"], params["m1"], params["v1"])
    s2, bb2 = _fold_bn(params["g2"], params["be2"], params["m2"], params["v2"])
    w1_hwio = jnp.transpose(params["w1"], (2, 3, 1, 0)) * s1[None, None, None, :]
    w2_hwio = jnp.transpose(params["w2"], (2, 3, 1, 0)) * s2[None, None, None, :]

    # Per-dy kron conv matrices.  The conv1 skip-concat is fused by stacking the
    # up-branch rows above the skip-branch rows (matches z_pad lane layout).
    w1_up = _conv_kron_weights(w1_hwio[:, :, :cin, :], ow)   # (3, 2W*Cin,  2W*Cout)
    w1_sk = _conv_kron_weights(w1_hwio[:, :, cin:, :], ow)   # (3, 2W*Cskip,2W*Cout)
    w1_mat = jnp.concatenate([w1_up, w1_sk], axis=1)         # (3, 2W*Ctot, 2W*Cout)
    w2_mat = _conv_kron_weights(w2_hwio, ow)                 # (3, 2W*Cout, 2W*Cout)

    b1_t = jnp.tile(bb1, ow).reshape(1, ow * cout).astype(jnp.float32)
    b2_t = jnp.tile(bb2, ow).reshape(1, ow * cout).astype(jnp.float32)

    out_flat = pl.pallas_call(
        _fused_upsample_block_kernel,
        out_shape=jax.ShapeDtypeStruct((n, oh, ow * cout), x_nchw.dtype),
        grid=(n,),
        in_specs=[
            pl.BlockSpec((None, h, w * cin), lambda i: (i, 0, 0)),
            pl.BlockSpec((None, oh, ow * cskip), lambda i: (i, 0, 0)),
            pl.BlockSpec((oh, h), lambda i: (0, 0)),
            pl.BlockSpec((w * cin, ow * cin), lambda i: (0, 0)),
            pl.BlockSpec((3, ow * ctot, ow * cout), lambda i: (0, 0, 0)),
            pl.BlockSpec((3, ow * cout, ow * cout), lambda i: (0, 0, 0)),
            pl.BlockSpec((1, ow * cout), lambda i: (0, 0)),
            pl.BlockSpec((1, ow * cout), lambda i: (0, 0)),
        ],
        out_specs=pl.BlockSpec((None, oh, ow * cout), lambda i: (i, 0, 0)),
        scratch_shapes=[
            pltpu.VMEM((oh + 2, ow * ctot), jnp.float32),   # concat buffer
            pltpu.VMEM((oh + 2, ow * cout), jnp.float32),   # conv1 output
        ],
        compiler_params=pltpu.CompilerParams(
            dimension_semantics=("parallel",),          # batch axis across TCs
            vmem_limit_bytes=32 * 1024 * 1024),
    )(x_flat, skip_flat, a_h, a_wk, w1_mat, w2_mat, b1_t, b2_t)

    out = out_flat.reshape(n, oh, ow, cout)          # free reshape (contiguous)
    return jnp.transpose(out, (0, 3, 1, 2))          # back to NCHW at boundary


# -----------------------------------------------------------------------------
# Pure-JAX reference (sanity check against the Pallas kernel)
# -----------------------------------------------------------------------------
def reference_forward(x, skip, params):
    n, c, h, w = x.shape
    a_h, a_w = _interp_matrix(h), _interp_matrix(w)
    up = jnp.einsum("oh,nchw,pw->ncop", a_h, x, a_w, precision=_HIGHEST)
    z = jnp.concatenate([up, skip], axis=1)

    def conv_bn_relu(z, w_oihw, gamma, beta, mean, var):
        y = lax.conv_general_dilated(
            z, w_oihw, (1, 1), "SAME",
            dimension_numbers=("NCHW", "OIHW", "NCHW"), precision=_HIGHEST)
        s = gamma / jnp.sqrt(var + BN_EPS)
        y = y * s[None, :, None, None] + (beta - mean * s)[None, :, None, None]
        return jnp.maximum(y, 0.0)

    z = conv_bn_relu(z, params["w1"], params["g1"], params["be1"],
                     params["m1"], params["v1"])
    z = conv_bn_relu(z, params["w2"], params["g2"], params["be2"],
                     params["m2"], params["v2"])
    return z


# -----------------------------------------------------------------------------
if __name__ == "__main__":
    key = jax.random.PRNGKey(0)
    N, CH_IN, SKIP_IN, CH_OUT, H, W = 2, 4, 4, 4, 16, 16
    k = jax.random.split(key, 12)

    x = jax.random.normal(k[0], (N, CH_IN, H, W), jnp.float32)
    skip = jax.random.normal(k[1], (N, SKIP_IN, 2 * H, 2 * W), jnp.float32)

    c_in1 = CH_IN + SKIP_IN   # conv1 input channels (non-parametric path)
    params = {
        # conv1: (ch_out, ch_in+skip_in, 3, 3), no bias (use_bn=True)
        "w1": 0.1 * jax.random.normal(k[2], (CH_OUT, c_in1, 3, 3), jnp.float32),
        "g1": jax.random.uniform(k[3], (CH_OUT,), jnp.float32, 0.5, 1.5),
        "be1": 0.1 * jax.random.normal(k[4], (CH_OUT,), jnp.float32),
        "m1": 0.1 * jax.random.normal(k[5], (CH_OUT,), jnp.float32),
        "v1": jax.random.uniform(k[6], (CH_OUT,), jnp.float32, 0.5, 1.5),
        # conv2: (ch_out, ch_out, 3, 3), no bias
        "w2": 0.1 * jax.random.normal(k[7], (CH_OUT, CH_OUT, 3, 3), jnp.float32),
        "g2": jax.random.uniform(k[8], (CH_OUT,), jnp.float32, 0.5, 1.5),
        "be2": 0.1 * jax.random.normal(k[9], (CH_OUT,), jnp.float32),
        "m2": 0.1 * jax.random.normal(k[10], (CH_OUT,), jnp.float32),
        "v2": jax.random.uniform(k[11], (CH_OUT,), jnp.float32, 0.5, 1.5),
    }

    fwd = jax.jit(upsample_block_forward)
    out = jax.block_until_ready(fwd(x, skip, params))
    assert out.shape == (N, CH_OUT, 2 * H, 2 * W), out.shape

    ref = jax.block_until_ready(reference_forward(x, skip, params))
    max_err = float(jnp.max(jnp.abs(out - ref)))
    assert jnp.allclose(out, ref, atol=1e-4, rtol=1e-4), max_err

    print("KERNEL_OK")
</pallas_src>

<mosaic_0001>
module attributes {stable_mosaic.version = 11 : i64} {
  func.func @_fused_upsample_block_kernel(%arg0: i32, %arg1: memref<1x16x64xf32, #tpu.memory_space<vmem>>, %arg2: memref<1x32x128xf32, #tpu.memory_space<vmem>>, %arg3: memref<32x16xf32, #tpu.memory_space<vmem>>, %arg4: memref<64x128xf32, #tpu.memory_space<vmem>>, %arg5: memref<3x256x128xf32, #tpu.memory_space<vmem>>, %arg6: memref<3x128x128xf32, #tpu.memory_space<vmem>>, %arg7: memref<1x128xf32, #tpu.memory_space<vmem>>, %arg8: memref<1x128xf32, #tpu.memory_space<vmem>>, %arg9: memref<1x32x128xf32, #tpu.memory_space<vmem>>, %arg10: memref<34x256xf32, #tpu.memory_space<vmem>>, %arg11: memref<34x128xf32, #tpu.memory_space<vmem>>) attributes {dimension_semantics = [#tpu.dimension_semantics<parallel>], iteration_bounds = array<i64: 2>, scalar_prefetch = 0 : i64, scratch_operands = 2 : i64, tpu.core_type = #tpu.core_type<tc>, window_params = [{transform_indices = @transform_0, window_bounds = array<i64: 1, 16, 64>}, {transform_indices = @transform_1, window_bounds = array<i64: 1, 32, 128>}, {pipeline_mode = #tpu.pipeline_mode<synchronous>, transform_indices = @transform_2, window_bounds = array<i64: 32, 16>}, {pipeline_mode = #tpu.pipeline_mode<synchronous>, transform_indices = @transform_3, window_bounds = array<i64: 64, 128>}, {pipeline_mode = #tpu.pipeline_mode<synchronous>, transform_indices = @transform_4, window_bounds = array<i64: 3, 256, 128>}, {pipeline_mode = #tpu.pipeline_mode<synchronous>, transform_indices = @transform_5, window_bounds = array<i64: 3, 128, 128>}, {pipeline_mode = #tpu.pipeline_mode<synchronous>, transform_indices = @transform_6, window_bounds = array<i64: 1, 128>}, {pipeline_mode = #tpu.pipeline_mode<synchronous>, transform_indices = @transform_7, window_bounds = array<i64: 1, 128>}, {transform_indices = @transform_8, window_bounds = array<i64: 1, 32, 128>}]} {
    %c0 = arith.constant 0 : index
    %c0_0 = arith.constant 0 : index
    %0 = vector.load %arg3[%c0, %c0_0] : memref<32x16xf32, #tpu.memory_space<vmem>>, vector<32x16xf32>
    %c0_1 = arith.constant 0 : index
    %c0_2 = arith.constant 0 : index
    %c0_3 = arith.constant 0 : index
    %1 = vector.load %arg1[%c0_1, %c0_2, %c0_3] : memref<1x16x64xf32, #tpu.memory_space<vmem>>, vector<1x16x64xf32>
    %2 = vector.shape_cast %1 : vector<1x16x64xf32> to vector<16x64xf32>
    %cst = arith.constant dense<0.000000e+00> : vector<32x64xf32>
    %3 = tpu.matmul %0, %2, %cst {dimension_numbers = #tpu.dot_dimension_numbers<[1], [0], [0], [1], [0, 0, 1, 1], [], []>, precision = #tpu.contract_precision<fp32>} : vector<32x16xf32>, vector<16x64xf32>, vector<32x64xf32> -> vector<32x64xf32>
    %c0_4 = arith.constant 0 : index
    %c0_5 = arith.constant 0 : index
    %4 = vector.load %arg4[%c0_4, %c0_5] : memref<64x128xf32, #tpu.memory_space<vmem>>, vector<64x128xf32>
    %cst_6 = arith.constant dense<0.000000e+00> : vector<32x128xf32>
    %5 = tpu.matmul %3, %4, %cst_6 {dimension_numbers = #tpu.dot_dimension_numbers<[1], [0], [0], [1], [0, 0, 1, 1], [], []>, precision = #tpu.contract_precision<fp32>} : vector<32x64xf32>, vector<64x128xf32>, vector<32x128xf32> -> vector<32x128xf32>
    %cst_7 = arith.constant 0.000000e+00 : f32
    %6 = vector.broadcast %cst_7 : f32 to vector<1x256xf32>
    %c0_8 = arith.constant 0 : index
    %c0_9 = arith.constant 0 : index
    %7 = vector.load %arg10[%c0_8, %c0_9] : memref<34x256xf32, #tpu.memory_space<vmem>>, vector<1x256xf32>
    tpu.vector_store %arg10[%c0_8, %c0_9], %6 {strides = array<i32>} : memref<34x256xf32, #tpu.memory_space<vmem>>, vector<1x256xf32>,
    %cst_10 = arith.constant 0.000000e+00 : f32
    %8 = vector.broadcast %cst_10 : f32 to vector<1x256xf32>
    %c33 = arith.constant 33 : index
    %c0_11 = arith.constant 0 : index
    %9 = vector.load %arg10[%c33, %c0_11] : memref<34x256xf32, #tpu.memory_space<vmem>>, vector<1x256xf32>
    tpu.vector_store %arg10[%c33, %c0_11], %8 {strides = array<i32>} : memref<34x256xf32, #tpu.memory_space<vmem>>, vector<1x256xf32>,
    %cst_12 = arith.constant 0.000000e+00 : f32
    %10 = vector.broadcast %cst_12 : f32 to vector<1x128xf32>
    %c0_13 = arith.constant 0 : index
    %c0_14 = arith.constant 0 : index
    %11 = vector.load %arg11[%c0_13, %c0_14] : memref<34x128xf32, #tpu.memory_space<vmem>>, vector<1x128xf32>
    tpu.vector_store %arg11[%c0_13, %c0_14], %10 {strides = array<i32>} : memref<34x128xf32, #tpu.memory_space<vmem>>, vector<1x128xf32>,
    %cst_15 = arith.constant 0.000000e+00 : f32
    %12 = vector.broadcast %cst_15 : f32 to vector<1x128xf32>
    %c33_16 = arith.constant 33 : index
    %c0_17 = arith.constant 0 : index
    %13 = vector.load %arg11[%c33_16, %c0_17] : memref<34x128xf32, #tpu.memory_space<vmem>>, vector<1x128xf32>
    tpu.vector_store %arg11[%c33_16, %c0_17], %12 {strides = array<i32>} : memref<34x128xf32, #tpu.memory_space<vmem>>, vector<1x128xf32>,
    %c1 = arith.constant 1 : index
    %c0_18 = arith.constant 0 : index
    %14 = vector.load %arg10[%c1, %c0_18] : memref<34x256xf32, #tpu.memory_space<vmem>>, vector<32x128xf32>
    tpu.vector_store %arg10[%c1, %c0_18], %5 {strides = array<i32>} : memref<34x256xf32, #tpu.memory_space<vmem>>, vector<32x128xf32>,
    %c0_19 = arith.constant 0 : index
    %c0_20 = arith.constant 0 : index
    %c0_21 = arith.constant 0 : index
    %15 = vector.load %arg2[%c0_19, %c0_20, %c0_21] : memref<1x32x128xf32, #tpu.memory_space<vmem>>, vector<1x32x128xf32>
    %16 = vector.shape_cast %15 : vector<1x32x128xf32> to vector<32x128xf32>
    %c1_22 = arith.constant 1 : index
    %c128 = arith.constant 128 : index
    %17 = vector.load %arg10[%c1_22, %c128] : memref<34x256xf32, #tpu.memory_space<vmem>>, vector<32x128xf32>
    tpu.vector_store %arg10[%c1_22, %c128], %16 {strides = array<i32>} : memref<34x256xf32, #tpu.memory_space<vmem>>, vector<32x128xf32>,
    %cst_23 = arith.constant 0.000000e+00 : f32
    %18 = vector.broadcast %cst_23 : f32 to vector<32x128xf32>
    %c0_24 = arith.constant 0 : index
    %c0_25 = arith.constant 0 : index
    %19 = vector.load %arg10[%c0_24, %c0_25] : memref<34x256xf32, #tpu.memory_space<vmem>>, vector<32x256xf32>
    %c0_26 = arith.constant 0 : index
    %c0_27 = arith.constant 0 : index
    %c0_28 = arith.constant 0 : index
    %20 = vector.load %arg5[%c0_26, %c0_27, %c0_28] : memref<3x256x128xf32, #tpu.memory_space<vmem>>, vector<1x256x128xf32>
    %21 = vector.shape_cast %20 : vector<1x256x128xf32> to vector<256x128xf32>
    %cst_29 = arith.constant dense<0.000000e+00> : vector<32x128xf32>
    %22 = tpu.matmul %19, %21, %cst_29 {dimension_numbers = #tpu.dot_dimension_numbers<[1], [0], [0], [1], [0, 0, 1, 1], [], []>, precision = #tpu.contract_precision<fp32>} : vector<32x256xf32>, vector<256x128xf32>, vector<32x128xf32> -> vector<32x128xf32>
    %23 = arith.addf %18, %22 : vector<32x128xf32>
    %c1_30 = arith.constant 1 : index
    %c0_31 = arith.constant 0 : index
    %24 = vector.load %arg10[%c1_30, %c0_31] : memref<34x256xf32, #tpu.memory_space<vmem>>, vector<32x256xf32>
    %c1_32 = arith.constant 1 : index
    %c0_33 = arith.constant 0 : index
    %c0_34 = arith.constant 0 : index
    %25 = vector.load %arg5[%c1_32, %c0_33, %c0_34] : memref<3x256x128xf32, #tpu.memory_space<vmem>>, vector<1x256x128xf32>
    %26 = vector.shape_cast %25 : vector<1x256x128xf32> to vector<256x128xf32>
    %cst_35 = arith.constant dense<0.000000e+00> : vector<32x128xf32>
    %27 = tpu.matmul %24, %26, %cst_35 {dimension_numbers = #tpu.dot_dimension_numbers<[1], [0], [0], [1], [0, 0, 1, 1], [], []>, precision = #tpu.contract_precision<fp32>} : vector<32x256xf32>, vector<256x128xf32>, vector<32x128xf32> -> vector<32x128xf32>
    %28 = arith.addf %23, %27 : vector<32x128xf32>
    %c2 = arith.constant 2 : index
    %c0_36 = arith.constant 0 : index
    %29 = vector.load %arg10[%c2, %c0_36] : memref<34x256xf32, #tpu.memory_space<vmem>>, vector<32x256xf32>
    %c2_37 = arith.constant 2 : index
    %c0_38 = arith.constant 0 : index
    %c0_39 = arith.constant 0 : index
    %30 = vector.load %arg5[%c2_37, %c0_38, %c0_39] : memref<3x256x128xf32, #tpu.memory_space<vmem>>, vector<1x256x128xf32>
    %31 = vector.shape_cast %30 : vector<1x256x128xf32> to vector<256x128xf32>
    %cst_40 = arith.constant dense<0.000000e+00> : vector<32x128xf32>
    %32 = tpu.matmul %29, %31, %cst_40 {dimension_numbers = #tpu.dot_dimension_numbers<[1], [0], [0], [1], [0, 0, 1, 1], [], []>, precision = #tpu.contract_precision<fp32>} : vector<32x256xf32>, vector<256x128xf32>, vector<32x128xf32> -> vector<32x128xf32>
    %33 = arith.addf %28, %32 : vector<32x128xf32>
    %c0_41 = arith.constant 0 : index
    %c0_42 = arith.constant 0 : index
    %34 = vector.load %arg7[%c0_41, %c0_42] : memref<1x128xf32, #tpu.memory_space<vmem>>, vector<1x128xf32>
    %35 = vector.broadcast %34 : vector<1x128xf32> to vector<32x128xf32>
    %36 = arith.addf %33, %35 : vector<32x128xf32>
    %cst_43 = arith.constant 0.000000e+00 : f32
    %37 = vector.broadcast %cst_43 : f32 to vector<32x128xf32>
    %38 = arith.maximumf %36, %37 : vector<32x128xf32>
    %c1_44 = arith.constant 1 : index
    %c0_45 = arith.constant 0 : index
    %39 = vector.load %arg11[%c1_44, %c0_45] : memref<34x128xf32, #tpu.memory_space<vmem>>, vector<32x128xf32>
    tpu.vector_store %arg11[%c1_44, %c0_45], %38 {strides = array<i32>} : memref<34x128xf32, #tpu.memory_space<vmem>>, vector<32x128xf32>,
    %cst_46 = arith.constant 0.000000e+00 : f32
    %40 = vector.broadcast %cst_46 : f32 to vector<32x128xf32>
    %c0_47 = arith.constant 0 : index
    %c0_48 = arith.constant 0 : index
    %41 = vector.load %arg11[%c0_47, %c0_48] : memref<34x128xf32, #tpu.memory_space<vmem>>, vector<32x128xf32>
    %c0_49 = arith.constant 0 : index
    %c0_50 = arith.constant 0 : index
    %c0_51 = arith.constant 0 : index
    %42 = vector.load %arg6[%c0_49, %c0_50, %c0_51] : memref<3x128x128xf32, #tpu.memory_space<vmem>>, vector<1x128x128xf32>
    %43 = vector.shape_cast %42 : vector<1x128x128xf32> to vector<128x128xf32>
    %cst_52 = arith.constant dense<0.000000e+00> : vector<32x128xf32>
    %44 = tpu.matmul %41, %43, %cst_52 {dimension_numbers = #tpu.dot_dimension_numbers<[1], [0], [0], [1], [0, 0, 1, 1], [], []>, precision = #tpu.contract_precision<fp32>} : vector<32x128xf32>, vector<128x128xf32>, vector<32x128xf32> -> vector<32x128xf32>
    %45 = arith.addf %40, %44 : vector<32x128xf32>
    %c1_53 = arith.constant 1 : index
    %c0_54 = arith.constant 0 : index
    %46 = vector.load %arg11[%c1_53, %c0_54] : memref<34x128xf32, #tpu.memory_space<vmem>>, vector<32x128xf32>
    %c1_55 = arith.constant 1 : index
    %c0_56 = arith.constant 0 : index
    %c0_57 = arith.constant 0 : index
    %47 = vector.load %arg6[%c1_55, %c0_56, %c0_57] : memref<3x128x128xf32, #tpu.memory_space<vmem>>, vector<1x128x128xf32>
    %48 = vector.shape_cast %47 : vector<1x128x128xf32> to vector<128x128xf32>
    %cst_58 = arith.constant dense<0.000000e+00> : vector<32x128xf32>
    %49 = tpu.matmul %46, %48, %cst_58 {dimension_numbers = #tpu.dot_dimension_numbers<[1], [0], [0], [1], [0, 0, 1, 1], [], []>, precision = #tpu.contract_precision<fp32>} : vector<32x128xf32>, vector<128x128xf32>, vector<32x128xf32> -> vector<32x128xf32>
    %50 = arith.addf %45, %49 : vector<32x128xf32>
    %c2_59 = arith.constant 2 : index
    %c0_60 = arith.constant 0 : index
    %51 = vector.load %arg11[%c2_59, %c0_60] : memref<34x128xf32, #tpu.memory_space<vmem>>, vector<32x128xf32>
    %c2_61 = arith.constant 2 : index
    %c0_62 = arith.constant 0 : index
    %c0_63 = arith.constant 0 : index
    %52 = vector.load %arg6[%c2_61, %c0_62, %c0_63] : memref<3x128x128xf32, #tpu.memory_space<vmem>>, vector<1x128x128xf32>
    %53 = vector.shape_cast %52 : vector<1x128x128xf32> to vector<128x128xf32>
    %cst_64 = arith.constant dense<0.000000e+00> : vector<32x128xf32>
    %54 = tpu.matmul %51, %53, %cst_64 {dimension_numbers = #tpu.dot_dimension_numbers<[1], [0], [0], [1], [0, 0, 1, 1], [], []>, precision = #tpu.contract_precision<fp32>} : vector<32x128xf32>, vector<128x128xf32>, vector<32x128xf32> -> vector<32x128xf32>
    %55 = arith.addf %50, %54 : vector<32x128xf32>
    %c0_65 = arith.constant 0 : index
    %c0_66 = arith.constant 0 : index
    %56 = vector.load %arg8[%c0_65, %c0_66] : memref<1x128xf32, #tpu.memory_space<vmem>>, vector<1x128xf32>
    %57 = vector.broadcast %56 : vector<1x128xf32> to vector<32x128xf32>
    %58 = arith.addf %55, %57 : vector<32x128xf32>
    %cst_67 = arith.constant 0.000000e+00 : f32
    %59 = vector.broadcast %cst_67 : f32 to vector<32x128xf32>
    %60 = arith.maximumf %58, %59 : vector<32x128xf32>
    %c0_68 = arith.constant 0 : index
    %c0_69 = arith.constant 0 : index
    %c0_70 = arith.constant 0 : index
    %61 = vector.load %arg9[%c0_68, %c0_69, %c0_70] : memref<1x32x128xf32, #tpu.memory_space<vmem>>, vector<1x32x128xf32>
    %62 = vector.shape_cast %61 : vector<1x32x128xf32> to vector<32x128xf32>
    %63 = vector.shape_cast %60 : vector<32x128xf32> to vector<1x32x128xf32>
    tpu.vector_store %arg9[%c0_68, %c0_69, %c0_70], %63 {strides = array<i32>} : memref<1x32x128xf32, #tpu.memory_space<vmem>>, vector<1x32x128xf32>,
    return
  }
  func.func @transform_0(%arg0: i32) -> (i32, i32, i32) {
    %c0_i32 = arith.constant 0 : i32
    %c0_i32_0 = arith.constant 0 : i32
    %c0_i32_1 = arith.constant 0 : i32
    return %arg0, %c0_i32, %c0_i32_0 : i32, i32, i32
  }
  func.func @transform_1(%arg0: i32) -> (i32, i32, i32) {
    %c0_i32 = arith.constant 0 : i32
    %c0_i32_0 = arith.constant 0 : i32
    %c0_i32_1 = arith.constant 0 : i32
    return %arg0, %c0_i32, %c0_i32_0 : i32, i32, i32
  }
  func.func @transform_2(%arg0: i32) -> (i32, i32) {
    %c0_i32 = arith.constant 0 : i32
    %c0_i32_0 = arith.constant 0 : i32
    %c0_i32_1 = arith.constant 0 : i32
    return %c0_i32, %c0_i32_0 : i32, i32
  }
  func.func @transform_3(%arg0: i32) -> (i32, i32) {
    %c0_i32 = arith.constant 0 : i32
    %c0_i32_0 = arith.constant 0 : i32
    %c0_i32_1 = arith.constant 0 : i32
    return %c0_i32, %c0_i32_0 : i32, i32
  }
  func.func @transform_4(%arg0: i32) -> (i32, i32, i32) {
    %c0_i32 = arith.constant 0 : i32
    %c0_i32_0 = arith.constant 0 : i32
    %c0_i32_1 = arith.constant 0 : i32
    %c0_i32_2 = arith.constant 0 : i32
    return %c0_i32, %c0_i32_0, %c0_i32_1 : i32, i32, i32
  }
  func.func @transform_5(%arg0: i32) -> (i32, i32, i32) {
    %c0_i32 = arith.constant 0 : i32
    %c0_i32_0 = arith.constant 0 : i32
    %c0_i32_1 = arith.constant 0 : i32
    %c0_i32_2 = arith.constant 0 : i32
    return %c0_i32, %c0_i32_0, %c0_i32_1 : i32, i32, i32
  }
  func.func @transform_6(%arg0: i32) -> (i32, i32) {
    %c0_i32 = arith.constant 0 : i32
    %c0_i32_0 = arith.constant 0 : i32
    %c0_i32_1 = arith.constant 0 : i32
    return %c0_i32, %c0_i32_0 : i32, i32
  }
  func.func @transform_7(%arg0: i32) -> (i32, i32) {
    %c0_i32 = arith.constant 0 : i32
    %c0_i32_0 = arith.constant 0 : i32
    %c0_i32_1 = arith.constant 0 : i32
    return %c0_i32, %c0_i32_0 : i32, i32
  }
  func.func @transform_8(%arg0: i32) -> (i32, i32, i32) {
    %c0_i32 = arith.constant 0 : i32
    %c0_i32_0 = arith.constant 0 : i32
    %c0_i32_1 = arith.constant 0 : i32
    return %arg0, %c0_i32, %c0_i32_0 : i32, i32, i32
  }
}

</mosaic_0001>

<llo_original>
// kernel: tile.18
$region0: #{tile.18}
  #allocation0 [shape = 's32[1]{0}', space=sflag, size = 0x4, scoped, tag = 'scoped memory for tile.18']
  %s0 = inlined_call_operand.vmem [shape: f32[4], index: 0, kind: input, shape index: {}]
  %s1 = inlined_call_operand.vmem [shape: f32[32,4], index: 1, kind: output, shape index: {}]
  // Predicated region
  $region2: #{tile.18} parent=0 // pred_check
    _
  $region3: #{tile.18} parent=0 // pred_check_branch
    %3 = sbr.rel (0) target = $region5
  $region4: #{tile.18} parent=0 // pred_region
    _
  $region5: #{tile.18} parent=0 // pred_fallthru
    _
  %v4 = vld [vmem:[%s0] ss:$0 sm:$0xff]
  %5 = vst [vmem:[%s1] sm:$0xff] %v4
  %s6 = scalar_lea.vmem %s1, 8
  %7 = vst [vmem:[%s6] sm:$0xff] %v4
  %s8 = scalar_lea.vmem %s1, 16
  %9 = vst [vmem:[%s8] sm:$0xff] %v4
  %s10 = scalar_lea.vmem %s1, 24
  %11 = vst [vmem:[%s10] sm:$0xff] %v4

// kernel: tile.19
$region0: #{tile.19}
  %s0 = inlined_call_operand.vmem [shape: f32[32,4], index: 0, kind: input, shape index: {}]
  %s1 = inlined_call_operand.vmem [shape: f32[1,128], index: 1, kind: output, shape index: {}]
  $region1: #{tile.19} parent=0
    #allocation0 [shape = 'u8[4096]{0}', space=vmem, size = 0x1000, scoped, tag = 'scoped mem for output reshape']
    %v2 = vld [vmem:[%s0] sm:$0x1]
    %vm3 = vcmask 31744
    %4 = vst.msk [vmem:[#allocation0] sm:$0x1] %vm3, %v2
    %s5 = scalar_lea.vmem %s0, 31
    %v6 = vld [vmem:[%s5] sm:$0x1]
    %7 = vrot.lane.b32.xlu0 %v6, 124
    %v8 = vpop.permute.xlu0 %7
    %vm9 = vcmask 1048544
    %10 = vst.msk [vmem:[#allocation0] sm:$0x1] %vm9, %v8
    %s11 = scalar_lea.vmem %s0, 30
    %v12 = vld [vmem:[%s11] sm:$0x1]
    %13 = vrot.lane.b32.xlu0 %v12, 120
    %v14 = vpop.permute.xlu0 %13
    %vm15 = vcmask 1015744
    %16 = vst.msk [vmem:[#allocation0] sm:$0x1] %vm15, %v14
    %s17 = scalar_lea.vmem %s0, 29
    %v18 = vld [vmem:[%s17] sm:$0x1]
    %19 = vrot.lane.b32.xlu0 %v18, 116
    %v20 = vpop.permute.xlu0 %19
    %vm21 = vcmask 982944
    %22 = vst.msk [vmem:[#allocation0] sm:$0x1] %vm21, %v20
    %s23 = scalar_lea.vmem %s0, 28
    %v24 = vld [vmem:[%s23] sm:$0x1]
    %25 = vrot.lane.b32.xlu0 %v24, 112
    %v26 = vpop.permute.xlu0 %25
    %vm27 = vcmask 950144
    %28 = vst.msk [vmem:[#allocation0] sm:$0x1] %vm27, %v26
    %s29 = scalar_lea.vmem %s0, 27
    %v30 = vld [vmem:[%s29] sm:$0x1]
    %31 = vrot.lane.b32.xlu0 %v30, 108
    %v32 = vpop.permute.xlu0 %31
    %vm33 = vcmask 917344
    %34 = vst.msk [vmem:[#allocation0] sm:$0x1] %vm33, %v32
    %s35 = scalar_lea.vmem %s0, 26
    %v36 = vld [vmem:[%s35] sm:$0x1]
    %37 = vrot.lane.b32.xlu0 %v36, 104
    %v38 = vpop.permute.xlu0 %37
    %vm39 = vcmask 884544
    %40 = vst.msk [vmem:[#allocation0] sm:$0x1] %vm39, %v38
    %s41 = scalar_lea.vmem %s0, 25
    %v42 = vld [vmem:[%s41] sm:$0x1]
    %43 = vrot.lane.b32.xlu0 %v42, 100
    %v44 = vpop.permute.xlu0 %43
    %vm45 = vcmask 851744
    %46 = vst.msk [vmem:[#allocation0] sm:$0x1] %vm45, %v44
    %s47 = scalar_lea.vmem %s0, 24
    %v48 = vld [vmem:[%s47] sm:$0x1]
    %49 = vrot.lane.b32.xlu0 %v48, 96
    %v50 = vpop.permute.xlu0 %49
    %vm51 = vcmask 818944
    %52 = vst.msk [vmem:[#allocation0] sm:$0x1] %vm51, %v50
    %s53 = scalar_lea.vmem %s0, 23
    %v54 = vld [vmem:[%s53] sm:$0x1]
    %55 = vrot.lane.b32.xlu0 %v54, 92
    %v56 = vpop.permute.xlu0 %55
    %vm57 = vcmask 786144
    %58 = vst.msk [vmem:[#allocation0] sm:$0x1] %vm57, %v56
    %s59 = scalar_lea.vmem %s0, 22
    %v60 = vld [vmem:[%s59] sm:$0x1]
    %61 = vrot.lane.b32.xlu0 %v60, 88
    %v62 = vpop.permute.xlu0 %61
    %vm63 = vcmask 753344
    %64 = vst.msk [vmem:[#allocation0] sm:$0x1] %vm63, %v62
    %s65 = scalar_lea.vmem %s0, 21
    %v66 = vld [vmem:[%s65] sm:$0x1]
    %67 = vrot.lane.b32.xlu0 %v66, 84
    %v68 = vpop.permute.xlu0 %67
    %vm69 = vcmask 720544
    %70 = vst.msk [vmem:[#allocation0] sm:$0x1] %vm69, %v68
    %s71 = scalar_lea.vmem %s0, 20
    %v72 = vld [vmem:[%s71] sm:$0x1]
    %73 = vrot.lane.b32.xlu0 %v72, 80
    %v74 = vpop.permute.xlu0 %73
    %vm75 = vcmask 687744
    %76 = vst.msk [vmem:[#allocation0] sm:$0x1] %vm75, %v74
    %s77 = scalar_lea.vmem %s0, 19
    %v78 = vld [vmem:[%s77] sm:$0x1]
    %79 = vrot.lane.b32.xlu0 %v78, 76
    %v80 = vpop.permute.xlu0 %79
    %vm81 = vcmask 654944
    %82 = vst.msk [vmem:[#allocation0] sm:$0x1] %vm81, %v80
    %s83 = scalar_lea.vmem %s0, 18
    %v84 = vld [vmem:[%s83] sm:$0x1]
    %85 = vrot.lane.b32.xlu0 %v84, 72
    %v86 = vpop.permute.xlu0 %85
    %vm87 = vcmask 622144
    %88 = vst.msk [vmem:[#allocation0] sm:$0x1] %vm87, %v86
    %s89 = scalar_lea.vmem %s0, 17
    %v90 = vld [vmem:[%s89] sm:$0x1]
    %91 = vrot.lane.b32.xlu0 %v90, 68
    %v92 = vpop.permute.xlu0 %91
    %vm93 = vcmask 589344
    %94 = vst.msk [vmem:[#allocation0] sm:$0x1] %vm93, %v92
    %s95 = scalar_lea.vmem %s0, 16
    %v96 = vld [vmem:[%s95] sm:$0x1]
    %97 = vrot.lane.b32.xlu0 %v96, 64
    %v98 = vpop.permute.xlu0 %97
    %vm99 = vcmask 556544
    %100 = vst.msk [vmem:[#allocation0] sm:$0x1] %vm99, %v98
    %s101 = scalar_lea.vmem %s0, 15
    %v102 = vld [vmem:[%s101] sm:$0x1]
    %103 = vrot.lane.b32.xlu0 %v102, 60
    %v104 = vpop.permute.xlu0 %103
    %vm105 = vcmask 523744
    %106 = vst.msk [vmem:[#allocation0] sm:$0x1] %vm105, %v104
    %s107 = scalar_lea.vmem %s0, 14
    %v108 = vld [vmem:[%s107] sm:$0x1]
    %109 = vrot.lane.b32.xlu0 %v108, 56
    %v110 = vpop.permute.xlu0 %109
    %vm111 = vcmask 490944
    %112 = vst.msk [vmem:[#allocation0] sm:$0x1] %vm111, %v110
    %s113 = scalar_lea.vmem %s0, 13
    %v114 = vld [vmem:[%s113] sm:$0x1]
    %115 = vrot.lane.b32.xlu0 %v114, 52
    %v116 = vpop.permute.xlu0 %115
    %vm117 = vcmask 458144
    %118 = vst.msk [vmem:[#allocation0] sm:$0x1] %vm117, %v116
    %s119 = scalar_lea.vmem %s0, 12
    %v120 = vld [vmem:[%s119] sm:$0x1]
    %121 = vrot.lane.b32.xlu0 %v120, 48
    %v122 = vpop.permute.xlu0 %121
    %vm123 = vcmask 425344
    %124 = vst.msk [vmem:[#allocation0] sm:$0x1] %vm123, %v122
    %s125 = scalar_lea.vmem %s0, 11
    %v126 = vld [vmem:[%s125] sm:$0x1]
    %127 = vrot.lane.b32.xlu0 %v126, 44
    %v128 = vpop.permute.xlu0 %127
    %vm129 = vcmask 392544
    %130 = vst.msk [vmem:[#allocation0] sm:$0x1] %vm129, %v128
    %s131 = scalar_lea.vmem %s0, 10
    %v132 = vld [vmem:[%s131] sm:$0x1]
    %133 = vrot.lane.b32.xlu0 %v132, 40
    %v134 = vpop.permute.xlu0 %133
    %vm135 = vcmask 359744
    %136 = vst.msk [vmem:[#allocation0] sm:$0x1] %vm135, %v134
    %s137 = scalar_lea.vmem %s0, 9
    %v138 = vld [vmem:[%s137] sm:$0x1]
    %139 = vrot.lane.b32.xlu0 %v138, 36
    %v140 = vpop.permute.xlu0 %139
    %vm141 = vcmask 326944
    %142 = vst.msk [vmem:[#allocation0] sm:$0x1] %vm141, %v140
    %s143 = scalar_lea.vmem %s0, 8
    %v144 = vld [vmem:[%s143] sm:$0x1]
    %145 = vrot.lane.b32.xlu0 %v144, 32
    %v146 = vpop.permute.xlu0 %145
    %vm147 = vcmask 294144
    %148 = vst.msk [vmem:[#allocation0] sm:$0x1] %vm147, %v146
    %s149 = scalar_lea.vmem %s0, 7
    %v150 = vld [vmem:[%s149] sm:$0x1]
    %151 = vrot.lane.b32.xlu0 %v150, 28
    %v152 = vpop.permute.xlu0 %151
    %vm153 = vcmask 261344
    %154 = vst.msk [vmem:[#allocation0] sm:$0x1] %vm153, %v152
    %s155 = scalar_lea.vmem %s0, 6
    %v156 = vld [vmem:[%s155] sm:$0x1]
    %157 = vrot.lane.b32.xlu0 %v156, 24
    %v158 = vpop.permute.xlu0 %157
    %vm159 = vcmask 228544
    %160 = vst.msk [vmem:[#allocation0] sm:$0x1] %vm159, %v158
    %s161 = scalar_lea.vmem %s0, 5
    %v162 = vld [vmem:[%s161] sm:$0x1]
    %163 = vrot.lane.b32.xlu0 %v162, 20
    %v164 = vpop.permute.xlu0 %163
    %vm165 = vcmask 195744
    %166 = vst.msk [vmem:[#allocation0] sm:$0x1] %vm165, %v164
    %s167 = scalar_lea.vmem %s0, 4
    %v168 = vld [vmem:[%s167] sm:$0x1]
    %169 = vrot.lane.b32.xlu0 %v168, 16
    %v170 = vpop.permute.xlu0 %169
    %vm171 = vcmask 162944
    %172 = vst.msk [vmem:[#allocation0] sm:$0x1] %vm171, %v170
    %s173 = scalar_lea.vmem %s0, 3
    %v174 = vld [vmem:[%s173] sm:$0x1]
    %175 = vrot.lane.b32.xlu0 %v174, 12
    %v176 = vpop.permute.xlu0 %175
    %vm177 = vcmask 130144
    %178 = vst.msk [vmem:[#allocation0] sm:$0x1] %vm177, %v176
    %s179 = scalar_lea.vmem %s0, 2
    %v180 = vld [vmem:[%s179] sm:$0x1]
    %181 = vrot.lane.b32.xlu0 %v180, 8
    %v182 = vpop.permute.xlu0 %181
    %vm183 = vcmask 97344
    %184 = vst.msk [vmem:[#allocation0] sm:$0x1] %vm183, %v182
    %s185 = scalar_lea.vmem %s0, 1
    %v186 = vld [vmem:[%s185] sm:$0x1]
    %187 = vrot.lane.b32.xlu0 %v186, 4
    %v188 = vpop.permute.xlu0 %187
    %vm189 = vcmask 64544
    %190 = vst.msk [vmem:[#allocation0] sm:$0x1] %vm189, %v188
    %s192 = sshll.u32 1, 1
    %s193 = ssub.s32 %s192, 1
    %v195 = vld [vmem:[#allocation0] sm:%s193]
    %s196 = sshll.u32 1, 1
    %s197 = ssub.s32 %s196, 1
    %198 = vst [vmem:[%s1] sm:%s197] %v195

// kernel: upsample_block_forward.1
$region0: #{upsample_block_forward.1}
  #allocation0 [shape = 'u32[]', space=smem, size = 0x4, offset = 0x4, fixed_abs, tag = 'smem constant byte address 0x4 - core index']
  #allocation1 [shape = 'u32[144,128]{1,0:T(1,128)}', space=vmem, size = 0x12000, scoped, tag = 'internal scratch']
  #allocation2 [shape = 'f32[34,256]{1,0:T(8,128)}', space=vmem, size = 0xa000, scoped, tag = 'scratch operand']
  #allocation3 [shape = 'f32[34,128]{1,0:T(8,128)}', space=vmem, size = 0x5000, scoped, tag = 'scratch operand']
  %s0 = inlined_call_operand.vmem [shape: f32[2,16,64], index: 0, kind: input, shape index: {}]
  %s1 = inlined_call_operand.vmem [shape: f32[2,32,128], index: 1, kind: input, shape index: {}]
  %s2 = inlined_call_operand.vmem [shape: f32[32,16], index: 2, kind: input, shape index: {}]
  %s3 = inlined_call_operand.vmem [shape: f32[64,128], index: 3, kind: input, shape index: {}]
  %s4 = inlined_call_operand.vmem [shape: f32[3,256,128], index: 4, kind: input, shape index: {}]
  %s5 = inlined_call_operand.vmem [shape: f32[3,128,128], index: 5, kind: input, shape index: {}]
  %s6 = inlined_call_operand.vmem [shape: f32[1,128], index: 6, kind: input, shape index: {}]
  %s7 = inlined_call_operand.vmem [shape: f32[1,128], index: 7, kind: input, shape index: {}]
  %s8 = inlined_call_operand.vmem [shape: f32[2,32,128], index: 8, kind: output, shape index: {}]
  %s9 = sld [smem:[#allocation0]]
  $region65: #{upsample_block_forward.1} parent=0
    _
  %s11 = ssub.s32 1, %s9
  %s12 = scalar_select 0, %s11, %s9
  loop: start=0, step=1, limit=4
  $region2: #{upsample_block_forward.1} parent=0 // loop_pre_header
    _
  $region3: #{upsample_block_forward.1} parent=0 // loop_header
    %s14 = sphi 0, %s18
    %p15 = scmp.ge.s32.totalorder %s14, 4
    %s24 = sphi 0, %s26
    %s27 = sphi 0, %s24
    %s28 = sphi 0, %s27
    %s44 = sphi 0, %s28
    %s50 = sphi 0, %s52
    %s53 = sphi 0, %s50
    %s54 = sphi 0, %s53
    %s70 = sphi 0, %s54
    %s74 = sphi 0, %s74
    %s76 = sphi 0, %s74
    %s77 = sphi 0, %s76
    %s91 = sphi 0, %s77
    %s95 = sphi 0, %s95
    %s97 = sphi 0, %s95
    %s98 = sphi 0, %s97
    %s112 = sphi 0, %s98
    %s116 = sphi 0, %s116
    %s118 = sphi 0, %s116
    %s119 = sphi 0, %s118
    %s133 = sphi 0, %s119
    %s137 = sphi 0, %s137
    %s139 = sphi 0, %s137
    %s140 = sphi 0, %s139
    %s154 = sphi 0, %s140
    %s158 = sphi 0, %s158
    %s160 = sphi 0, %s158
    %s161 = sphi 0, %s160
    %s175 = sphi 0, %s161
    %s179 = sphi 0, %s179
    %s181 = sphi 0, %s179
    %s182 = sphi 0, %s181
    %s196 = sphi 0, %s182
    %s202 = sphi 0, %s204
    %s205 = sphi 0, %s202
    %s206 = sphi 0, %s205
    %s222 = sphi 0, %s206
  $region4: #{upsample_block_forward.1} parent=0 // loop_header_branch
    %17 = sbr.rel (%p15) target = $region8
  $region5: #{upsample_block_forward.1} parent=0 // loop_body
    %s19 = ssub.s32 %s14, 1
    %s20 = ssub.s32 %s14, 2
    %s21 = sadd.s32 %s14, 1
    %s22 = ssub.s32 %s14, %s21
    %p23 = scmp.eq.s32.totalorder %s22, 0
    %s25 = sadd.s32 %s24, 1
    %s26 = scalar_select %p23, %s24, %s25
    %p29 = pneg %p23
    %p30 = scmp.eq.s32.totalorder %s14, 1
    %p31 = por %p29, %p30
    %p32 = scmp.ne.s32.totalorder %s24, %s27
    %p33 = scmp.eq.s32.totalorder %s14, 0
    %p34 = por %p32, %p33
    %p35 = scmp.ne.s32.totalorder %s24, %s27
    %p36 = scmp.eq.s32.totalorder %s19, 1
    %p37 = por %p35, %p36
    %p38 = scmp.ne.s32.totalorder %s27, %s28
    %p39 = scmp.eq.s32.totalorder %s19, 0
    %p40 = por %p38, %p39
    %p41 = scmp.ne.s32.totalorder %s27, %s28
    %p42 = scmp.eq.s32.totalorder %s20, 1
    %p43 = por %p41, %p42
    %p45 = scmp.ne.s32.totalorder %s28, %s44
    %p46 = scmp.eq.s32.totalorder %s20, 0
    %p47 = por %p45, %p46
    %s48 = ssub.s32 %s14, %s21
    %p49 = scmp.eq.s32.totalorder %s48, 0
    %s51 = sadd.s32 %s50, 1
    %s52 = scalar_select %p49, %s50, %s51
    %p55 = pneg %p49
    %p56 = scmp.eq.s32.totalorder %s14, 1
    %p57 = por %p55, %p56
    %p58 = scmp.ne.s32.totalorder %s50, %s53
    %p59 = scmp.eq.s32.totalorder %s14, 0
    %p60 = por %p58, %p59
    %p61 = scmp.ne.s32.totalorder %s50, %s53
    %p62 = scmp.eq.s32.totalorder %s19, 1
    %p63 = por %p61, %p62
    %p64 = scmp.ne.s32.totalorder %s53, %s54
    %p65 = scmp.eq.s32.totalorder %s19, 0
    %p66 = por %p64, %p65
    %p67 = scmp.ne.s32.totalorder %s53, %s54
    %p68 = scmp.eq.s32.totalorder %s20, 1
    %p69 = por %p67, %p68
    %p71 = scmp.ne.s32.totalorder %s54, %s70
    %p72 = scmp.eq.s32.totalorder %s20, 0
    %p73 = por %p71, %p72
    %s75 = sadd.s32 %s74, 1
    %p78 = scmp.eq.s32.totalorder %s14, 1
    %p79 = scmp.ne.s32.totalorder %s74, %s76
    %p80 = scmp.eq.s32.totalorder %s14, 0
    %p81 = por %p79, %p80
    %p82 = scmp.ne.s32.totalorder %s74, %s76
    %p83 = scmp.eq.s32.totalorder %s19, 1
    %p84 = por %p82, %p83
    %p85 = scmp.ne.s32.totalorder %s76, %s77
    %p86 = scmp.eq.s32.totalorder %s19, 0
    %p87 = por %p85, %p86
    %p88 = scmp.ne.s32.totalorder %s76, %s77
    %p89 = scmp.eq.s32.totalorder %s20, 1
    %p90 = por %p88, %p89
    %p92 = scmp.ne.s32.totalorder %s77, %s91
    %p93 = scmp.eq.s32.totalorder %s20, 0
    %p94 = por %p92, %p93
    %s96 = sadd.s32 %s95, 1
    %p99 = scmp.eq.s32.totalorder %s14, 1
    %p100 = scmp.ne.s32.totalorder %s95, %s97
    %p101 = scmp.eq.s32.totalorder %s14, 0
    %p102 = por %p100, %p101
    %p103 = scmp.ne.s32.totalorder %s95, %s97
    %p104 = scmp.eq.s32.totalorder %s19, 1
    %p105 = por %p103, %p104
    %p106 = scmp.ne.s32.totalorder %s97, %s98
    %p107 = scmp.eq.s32.totalorder %s19, 0
    %p108 = por %p106, %p107
    %p109 = scmp.ne.s32.totalorder %s97, %s98
    %p110 = scmp.eq.s32.totalorder %s20, 1
    %p111 = por %p109, %p110
    %p113 = scmp.ne.s32.totalorder %s98, %s112
    %p114 = scmp.eq.s32.totalorder %s20, 0
    %p115 = por %p113, %p114
    %s117 = sadd.s32 %s116, 1
    %p120 = scmp.eq.s32.totalorder %s14, 1
    %p121 = scmp.ne.s32.totalorder %s116, %s118
    %p122 = scmp.eq.s32.totalorder %s14, 0
    %p123 = por %p121, %p122
    %p124 = scmp.ne.s32.totalorder %s116, %s118
    %p125 = scmp.eq.s32.totalorder %s19, 1
    %p126 = por %p124, %p125
    %p127 = scmp.ne.s32.totalorder %s118, %s119
    %p128 = scmp.eq.s32.totalorder %s19, 0
    %p129 = por %p127, %p128
    %p130 = scmp.ne.s32.totalorder %s118, %s119
    %p131 = scmp.eq.s32.totalorder %s20, 1
    %p132 = por %p130, %p131
    %p134 = scmp.ne.s32.totalorder %s119, %s133
    %p135 = scmp.eq.s32.totalorder %s20, 0
    %p136 = por %p134, %p135
    %s138 = sadd.s32 %s137, 1
    %p141 = scmp.eq.s32.totalorder %s14, 1
    %p142 = scmp.ne.s32.totalorder %s137, %s139
    %p143 = scmp.eq.s32.totalorder %s14, 0
    %p144 = por %p142, %p143
    %p145 = scmp.ne.s32.totalorder %s137, %s139
    %p146 = scmp.eq.s32.totalorder %s19, 1
    %p147 = por %p145, %p146
    %p148 = scmp.ne.s32.totalorder %s139, %s140
    %p149 = scmp.eq.s32.totalorder %s19, 0
    %p150 = por %p148, %p149
    %p151 = scmp.ne.s32.totalorder %s139, %s140
    %p152 = scmp.eq.s32.totalorder %s20, 1
    %p153 = por %p151, %p152
    %p155 = scmp.ne.s32.totalorder %s140, %s154
    %p156 = scmp.eq.s32.totalorder %s20, 0
    %p157 = por %p155, %p156
    %s159 = sadd.s32 %s158, 1
    %p162 = scmp.eq.s32.totalorder %s14, 1
    %p163 = scmp.ne.s32.totalorder %s158, %s160
    %p164 = scmp.eq.s32.totalorder %s14, 0
    %p165 = por %p163, %p164
    %p166 = scmp.ne.s32.totalorder %s158, %s160
    %p167 = scmp.eq.s32.totalorder %s19, 1
    %p168 = por %p166, %p167
    %p169 = scmp.ne.s32.totalorder %s160, %s161
    %p170 = scmp.eq.s32.totalorder %s19, 0
    %p171 = por %p169, %p170
    %p172 = scmp.ne.s32.totalorder %s160, %s161
    %p173 = scmp.eq.s32.totalorder %s20, 1
    %p174 = por %p172, %p173
    %p176 = scmp.ne.s32.totalorder %s161, %s175
    %p177 = scmp.eq.s32.totalorder %s20, 0
    %p178 = por %p176, %p177
    %s180 = sadd.s32 %s179, 1
    %p183 = scmp.eq.s32.totalorder %s14, 1
    %p184 = scmp.ne.s32.totalorder %s179, %s181
    %p185 = scmp.eq.s32.totalorder %s14, 0
    %p186 = por %p184, %p185
    %p187 = scmp.ne.s32.totalorder %s179, %s181
    %p188 = scmp.eq.s32.totalorder %s19, 1
    %p189 = por %p187, %p188
    %p190 = scmp.ne.s32.totalorder %s181, %s182
    %p191 = scmp.eq.s32.totalorder %s19, 0
    %p192 = por %p190, %p191
    %p193 = scmp.ne.s32.totalorder %s181, %s182
    %p194 = scmp.eq.s32.totalorder %s20, 1
    %p195 = por %p193, %p194
    %p197 = scmp.ne.s32.totalorder %s182, %s196
    %p198 = scmp.eq.s32.totalorder %s20, 0
    %p199 = por %p197, %p198
    %s200 = ssub.s32 %s14, %s21
    %p201 = scmp.eq.s32.totalorder %s200, 0
    %s203 = sadd.s32 %s202, 1
    %s204 = scalar_select %p201, %s202, %s203
    %p207 = pneg %p201
    %p208 = scmp.eq.s32.totalorder %s14, 1
    %p209 = por %p207, %p208
    %p210 = scmp.ne.s32.totalorder %s202, %s205
    %p211 = scmp.eq.s32.totalorder %s14, 0
    %p212 = por %p210, %p211
    %p213 = scmp.ne.s32.totalorder %s202, %s205
    %p214 = scmp.eq.s32.totalorder %s19, 1
    %p215 = por %p213, %p214
    %p216 = scmp.ne.s32.totalorder %s205, %s206
    %p217 = scmp.eq.s32.totalorder %s19, 0
    %p218 = por %p216, %p217
    %p219 = scmp.ne.s32.totalorder %s205, %s206
    %p220 = scmp.eq.s32.totalorder %s20, 1
    %p221 = por %p219, %p220
    %p223 = scmp.ne.s32.totalorder %s206, %s222
    %p224 = scmp.eq.s32.totalorder %s20, 0
    %p225 = por %p223, %p224
    %p226 = scmp.le.s32.totalorder 1, %s14
    %p227 = scmp.lt.s32.totalorder %s14, 3
    %p228 = pnand %p226, %p227
    %p229 = pneg %p228
    // Predicated region
    $region9: #{upsample_block_forward.1} parent=5 // pred_check
      _
    $region10: #{upsample_block_forward.1} parent=5 // pred_check_branch
      %231 = sbr.rel (%p228) target = $region12
    $region11: #{upsample_block_forward.1} parent=5 // pred_region
      %s232 = ssub.s32 %s14, 1
      // Predicated region
      $region13: #{upsample_block_forward.1} parent=11 // pred_check
        %p233 = pneg %p87
      $region14: #{upsample_block_forward.1} parent=11 // pred_check_branch
        %235 = sbr.rel (%p233) target = $region16
      $region15: #{upsample_block_forward.1} parent=11 // pred_region
        _
      $region16: #{upsample_block_forward.1} parent=11 // pred_fallthru
        _
      // Predicated region
      $region17: #{upsample_block_forward.1} parent=11 // pred_check
        %p236 = pneg %p108
      $region18: #{upsample_block_forward.1} parent=11 // pred_check_branch
        %238 = sbr.rel (%p236) target = $region20
      $region19: #{upsample_block_forward.1} parent=11 // pred_region
        _
      $region20: #{upsample_block_forward.1} parent=11 // pred_fallthru
        _
      // Predicated region
      $region21: #{upsample_block_forward.1} parent=11 // pred_check
        %p239 = pneg %p129
      $region22: #{upsample_block_forward.1} parent=11 // pred_check_branch
        %241 = sbr.rel (%p239) target = $region24
      $region23: #{upsample_block_forward.1} parent=11 // pred_region
        _
      $region24: #{upsample_block_forward.1} parent=11 // pred_fallthru
        _
      // Predicated region
      $region25: #{upsample_block_forward.1} parent=11 // pred_check
        %p242 = pneg %p150
      $region26: #{upsample_block_forward.1} parent=11 // pred_check_branch
        %244 = sbr.rel (%p242) target = $region28
      $region27: #{upsample_block_forward.1} parent=11 // pred_region
        _
      $region28: #{upsample_block_forward.1} parent=11 // pred_fallthru
        _
      // Predicated region
      $region29: #{upsample_block_forward.1} parent=11 // pred_check
        %p245 = pneg %p171
      $region30: #{upsample_block_forward.1} parent=11 // pred_check_branch
        %247 = sbr.rel (%p245) target = $region32
      $region31: #{upsample_block_forward.1} parent=11 // pred_region
        _
      $region32: #{upsample_block_forward.1} parent=11 // pred_fallthru
        _
      // Predicated region
      $region33: #{upsample_block_forward.1} parent=11 // pred_check
        %p248 = pneg %p192
      $region34: #{upsample_block_forward.1} parent=11 // pred_check_branch
        %250 = sbr.rel (%p248) target = $region36
      $region35: #{upsample_block_forward.1} parent=11 // pred_region
        _
      $region36: #{upsample_block_forward.1} parent=11 // pred_fallthru
        _
    $region12: #{upsample_block_forward.1} parent=5 // pred_fallthru
      _
    %p251 = scmp.lt.s32.totalorder %s14, 2
    // Predicated region
    $region37: #{upsample_block_forward.1} parent=5 // pred_check
      %p252 = pneg %p251
    $region38: #{upsample_block_forward.1} parent=5 // pred_check_branch
      %254 = sbr.rel (%p252) target = $region40
    $region39: #{upsample_block_forward.1} parent=5 // pred_region
      // Predicated region
      $region41: #{upsample_block_forward.1} parent=39 // pred_check
        %p255 = pneg %p34
      $region42: #{upsample_block_forward.1} parent=39 // pred_check_branch
        %257 = sbr.rel (%p255) target = $region44
      $region43: #{upsample_block_forward.1} parent=39 // pred_region
        %p258 = scmp.lt.s32.totalorder %s14, 1
        %s259 = scalar_select %p258, %s14, 1
        %s260 = smul.addr %s259, 2
        %s261 = smul.addr %s260, 8
        %s262 = scalar_lea.vmem %s0, %s261
      $region44: #{upsample_block_forward.1} parent=39 // pred_fallthru
        _
      // Predicated region
      $region45: #{upsample_block_forward.1} parent=39 // pred_check
        %p263 = pneg %p60
      $region46: #{upsample_block_forward.1} parent=39 // pred_check_branch
        %265 = sbr.rel (%p263) target = $region48
      $region47: #{upsample_block_forward.1} parent=39 // pred_region
        %p266 = scmp.lt.s32.totalorder %s14, 1
        %s267 = scalar_select %p266, %s14, 1
        %s268 = smul.addr %s267, 4
        %s269 = smul.addr %s268, 8
        %s270 = scalar_lea.vmem %s1, %s269
      $region48: #{upsample_block_forward.1} parent=39 // pred_fallthru
        _
    $region40: #{upsample_block_forward.1} parent=5 // pred_fallthru
      _
    %p271 = scmp.le.s32.totalorder 1, %s14
    %p272 = scmp.lt.s32.totalorder %s14, 3
    %p273 = pnand %p271, %p272
    %p274 = pneg %p273
    // Predicated region
    $region49: #{upsample_block_forward.1} parent=5 // pred_check
      _
    $region50: #{upsample_block_forward.1} parent=5 // pred_check_branch
      %276 = sbr.rel (%p273) target = $region52
    $region51: #{upsample_block_forward.1} parent=5 // pred_region
      %s277 = ssub.s32 %s14, 1
      %p278 = scmp.lt.s32.totalorder %s19, 1
      %s279 = scalar_select %p278, %s19, 1
      %s280 = smul.addr %s279, 2
      %s281 = smul.addr %s280, 8
      %s282 = scalar_lea.vmem %s0, %s281
      %p283 = pneg %p40
      %p284 = pneg %p37
      %p285 = scmp.lt.s32.totalorder %s19, 1
      %s286 = scalar_select %p285, %s19, 1
      %s287 = smul.addr %s286, 4
      %s288 = smul.addr %s287, 8
      %s289 = scalar_lea.vmem %s1, %s288
      %p290 = pneg %p66
      %p291 = pneg %p63
      %p292 = pneg %p87
      %p293 = pneg %p84
      %p294 = pneg %p108
      %p295 = pneg %p105
      %p296 = pneg %p129
      %p297 = pneg %p126
      %p298 = pneg %p150
      %p299 = pneg %p147
      %p300 = pneg %p171
      %p301 = pneg %p168
      %p302 = pneg %p192
      %p303 = pneg %p189
      %p304 = pneg %p218
      %p305 = pneg %p215
      %p306 = scmp.lt.s32.totalorder %s19, 1
      %s307 = scalar_select %p306, %s19, 1
      %s308 = smul.addr %s307, 4
      %s309 = smul.addr %s308, 8
      %s310 = scalar_lea.vmem %s8, %s309
      %p311 = scmp.lt.s32.totalorder %s19, 1
      %s312 = scalar_select %p311, %s19, 1
      %s313 = smul.addr %s312, 2
      %s314 = smul.addr %s313, 8
      %s315 = scalar_lea.vmem %s0, %s314
      %p316 = scmp.lt.s32.totalorder %s19, 1
      %s317 = scalar_select %p316, %s19, 1
      %s318 = smul.addr %s317, 4
      %s319 = smul.addr %s318, 8
      %s320 = scalar_lea.vmem %s1, %s319
      %p321 = scmp.lt.s32.totalorder %s19, 1
      %s322 = scalar_select %p321, %s19, 1
      %s323 = smul.addr %s322, 4
      %s324 = smul.addr %s323, 8
      %s325 = scalar_lea.vmem %s8, %s324
      %v326 = vld [vmem:[%s2] sm:$0xff]
      %v327 = vld [vmem:[%s2 + $0x8] sm:$0xff]
      %v328 = vld [vmem:[%s2 + $0x10] sm:$0xff]
      %v329 = vld [vmem:[%s2 + $0x18] sm:$0xff]
      %v330 = vld [vmem:[%s315] sm:$0xff]
      %v331 = vld [vmem:[%s315 + $0x8] sm:$0xff]
      %vm332 = vcmask 130048
      %v334 = vsel %vm332, %v326, 0
      %v337 = vsel %vm332, %v327, 0
      %v340 = vsel %vm332, %v328, 0
      %v343 = vsel %vm332, %v329, 0
      %345 = vmatprep.subr.mxu0 0.0
      %346 = vmatpush1.msra.mxu0 0.0
      %347 = vmatprep.subr.mxu0 0.0
      %348 = vmatpush1.msra.mxu0 0.0
      %349 = vmatprep.subr.mxu0 0.0
      %350 = vmatpush1.msra.mxu0 0.0
      %351 = vmatprep.subr.mxu0 0.0
      %352 = vmatpush1.msra.mxu0 0.0
      %353 = vmatprep.subr.mxu0 0.0
      %354 = vmatpush1.msra.mxu0 0.0
      %355 = vmatprep.subr.mxu0 0.0
      %356 = vmatpush1.msra.mxu0 0.0
      %357 = vmatprep.subr.mxu0 0.0
      %358 = vmatpush1.msra.mxu0 0.0
      %359 = vmatprep.subr.mxu0 0.0
      %360 = vmatpush1.msra.mxu0 0.0
      %361 = vmatprep.subr.mxu0 0.0
      %362 = vmatpush1.msra.mxu0 0.0
      %363 = vmatprep.subr.mxu0 0.0
      %364 = vmatpush1.msra.mxu0 0.0
      %365 = vmatprep.subr.mxu0 0.0
      %366 = vmatpush1.msra.mxu0 0.0
      %367 = vmatprep.subr.mxu0 0.0
      %368 = vmatpush1.msra.mxu0 0.0
      %369 = vmatprep.subr.mxu0 0.0
      %370 = vmatpush1.msra.mxu0 0.0
      %371 = vmatprep.subr.mxu0 0.0
      %372 = vmatpush1.msra.mxu0 0.0
      %373 = vmatprep.subr.mxu0 0.0
      %v374 = vand.u32 %v331, 4294901760
      %375 = vmatpush1.msra.mxu0 %v374
      %376 = vmatprep.subr.mxu0 0.0
      %v377 = vand.u32 %v330, 4294901760
      %378 = vmatpush1.msra.mxu0 %v377
      %379 = vmatprep.subr.mxu0 0.0
      %380 = vmatpush2.msra.mxu0 0.0
      %381 = vmatprep.subr.mxu0 0.0
      %382 = vmatpush2.msra.mxu0 0.0
      %383 = vmatprep.subr.mxu0 0.0
      %384 = vmatpush2.msra.mxu0 0.0
      %385 = vmatprep.subr.mxu0 0.0
      %386 = vmatpush2.msra.mxu0 0.0
      %387 = vmatprep.subr.mxu0 0.0
      %388 = vmatpush2.msra.mxu0 0.0
      %389 = vmatprep.subr.mxu0 0.0
      %390 = vmatpush2.msra.mxu0 0.0
      %391 = vmatprep.subr.mxu0 0.0
      %392 = vmatpush2.msra.mxu0 0.0
      %393 = vmatprep.subr.mxu0 0.0
      %394 = vmatpush2.msra.mxu0 0.0
      %395 = vmatprep.subr.mxu0 0.0
      %396 = vmatpush2.msra.mxu0 0.0
      %397 = vmatprep.subr.mxu0 0.0
      %398 = vmatpush2.msra.mxu0 0.0
      %399 = vmatprep.subr.mxu0 0.0
      %400 = vmatpush2.msra.mxu0 0.0
      %401 = vmatprep.subr.mxu0 0.0
      %402 = vmatpush2.msra.mxu0 0.0
      %403 = vmatprep.subr.mxu0 0.0
      %404 = vmatpush2.msra.mxu0 0.0
      %405 = vmatprep.subr.mxu0 0.0
      %406 = vmatpush2.msra.mxu0 0.0
      %407 = vmatprep.subr.mxu0 0.0
      %408 = vmatpush2.msra.mxu0 0.0
      %409 = vmatprep.subr.mxu0 0.0
      %410 = vmatpush2.msra.mxu0 0.0
      %411 = vmatprep.mubr.f32.mxu0 0.0
      %v412 = vand.u32 %v334, 4294901760
      %v413 = vsub.f32 %v334, %v412
      %v414 = vand.u32 %v413, 4294901760
      %v415 = vsub.f32 %v413, %v414
      %v416 = vand.u32 %v415, 4294901760
      %417 = vmatmul.mubr.f32.gmra.mxu0 %v416
      %v418 = vpop.f32.mrf.mxu0
      %v419 = vadd.f32 0.0, %v418
      %v420 = vpop.f32.mrf.mxu0
      %421 = vmatprep.mubr.f32.mxu0 0.0
      %v422 = vand.u32 %v337, 4294901760
      %v423 = vsub.f32 %v337, %v422
      %v424 = vand.u32 %v423, 4294901760
      %v425 = vsub.f32 %v423, %v424
      %v426 = vand.u32 %v425, 4294901760
      %427 = vmatmul.mubr.f32.gmra.mxu0 %v426
      %v428 = vpop.f32.mrf.mxu0
      %v429 = vadd.f32 0.0, %v428
      %v430 = vpop.f32.mrf.mxu0
      %431 = vmatprep.mubr.f32.mxu0 0.0
      %v432 = vand.u32 %v340, 4294901760
      %v433 = vsub.f32 %v340, %v432
      %v434 = vand.u32 %v433, 4294901760
      %v435 = vsub.f32 %v433, %v434
      %v436 = vand.u32 %v435, 4294901760
      %437 = vmatmul.mubr.f32.gmra.mxu0 %v436
      %v438 = vpop.f32.mrf.mxu0
      %v439 = vadd.f32 0.0, %v438
      %v440 = vpop.f32.mrf.mxu0
      %441 = vmatprep.mubr.f32.mxu0 0.0
      %v442 = vand.u32 %v343, 4294901760
      %v443 = vsub.f32 %v343, %v442
      %v444 = vand.u32 %v443, 4294901760
      %v445 = vsub.f32 %v443, %v444
      %v446 = vand.u32 %v445, 4294901760
      %447 = vmatmul.mubr.f32.gmra.mxu0 %v446
      %v448 = vpop.f32.mrf.mxu0
      %v449 = vadd.f32 0.0, %v448
      %v450 = vpop.f32.mrf.mxu0
      %451 = vdwg.mxu0
      %452 = vmatprep.subr.mxu0 0.0
      %453 = vmatpush1.msra.mxu0 0.0
      %454 = vmatprep.subr.mxu0 0.0
      %455 = vmatpush1.msra.mxu0 0.0
      %456 = vmatprep.subr.mxu0 0.0
      %457 = vmatpush1.msra.mxu0 0.0
      %458 = vmatprep.subr.mxu0 0.0
      %459 = vmatpush1.msra.mxu0 0.0
      %460 = vmatprep.subr.mxu0 0.0
      %461 = vmatpush1.msra.mxu0 0.0
      %462 = vmatprep.subr.mxu0 0.0
      %463 = vmatpush1.msra.mxu0 0.0
      %464 = vmatprep.subr.mxu0 0.0
      %465 = vmatpush1.msra.mxu0 0.0
      %466 = vmatprep.subr.mxu0 0.0
      %467 = vmatpush1.msra.mxu0 0.0
      %468 = vmatprep.subr.mxu0 0.0
      %469 = vmatpush1.msra.mxu0 0.0
      %470 = vmatprep.subr.mxu0 0.0
      %471 = vmatpush1.msra.mxu0 0.0
      %472 = vmatprep.subr.mxu0 0.0
      %473 = vmatpush1.msra.mxu0 0.0
      %474 = vmatprep.subr.mxu0 0.0
      %475 = vmatpush1.msra.mxu0 0.0
      %476 = vmatprep.subr.mxu0 0.0
      %477 = vmatpush1.msra.mxu0 0.0
      %478 = vmatprep.subr.mxu0 0.0
      %479 = vmatpush1.msra.mxu0 0.0
      %480 = vmatprep.subr.mxu0 0.0
      %v481 = vand.u32 %v331, 4294901760
      %v482 = vsub.f32 %v331, %v481
      %v483 = vand.u32 %v482, 4294901760
      %v484 = vsub.f32 %v482, %v483
      %v485 = vand.u32 %v484, 4294901760
      %486 = vmatpush1.msra.mxu0 %v485
      %487 = vmatprep.subr.mxu0 0.0
      %v488 = vand.u32 %v330, 4294901760
      %v489 = vsub.f32 %v330, %v488
      %v490 = vand.u32 %v489, 4294901760
      %v491 = vsub.f32 %v489, %v490
      %v492 = vand.u32 %v491, 4294901760
      %493 = vmatpush1.msra.mxu0 %v492
      %494 = vmatprep.subr.mxu0 0.0
      %495 = vmatpush2.msra.mxu0 0.0
      %496 = vmatprep.subr.mxu0 0.0
      %497 = vmatpush2.msra.mxu0 0.0
      %498 = vmatprep.subr.mxu0 0.0
      %499 = vmatpush2.msra.mxu0 0.0
      %500 = vmatprep.subr.mxu0 0.0
      %501 = vmatpush2.msra.mxu0 0.0
      %502 = vmatprep.subr.mxu0 0.0
      %503 = vmatpush2.msra.mxu0 0.0
      %504 = vmatprep.subr.mxu0 0.0
      %505 = vmatpush2.msra.mxu0 0.0
      %506 = vmatprep.subr.mxu0 0.0
      %507 = vmatpush2.msra.mxu0 0.0
      %508 = vmatprep.subr.mxu0 0.0
      %509 = vmatpush2.msra.mxu0 0.0
      %510 = vmatprep.subr.mxu0 0.0
      %511 = vmatpush2.msra.mxu0 0.0
      %512 = vmatprep.subr.mxu0 0.0
      %513 = vmatpush2.msra.mxu0 0.0
      %514 = vmatprep.subr.mxu0 0.0
      %515 = vmatpush2.msra.mxu0 0.0
      %516 = vmatprep.subr.mxu0 0.0
      %517 = vmatpush2.msra.mxu0 0.0
      %518 = vmatprep.subr.mxu0 0.0
      %519 = vmatpush2.msra.mxu0 0.0
      %520 = vmatprep.subr.mxu0 0.0
      %521 = vmatpush2.msra.mxu0 0.0
      %522 = vmatprep.subr.mxu0 0.0
      %523 = vmatpush2.msra.mxu0 0.0
      %524 = vmatprep.subr.mxu0 0.0
      %525 = vmatpush2.msra.mxu0 0.0
      %526 = vmatprep.mubr.f32.mxu0 0.0
      %v527 = vand.u32 %v334, 4294901760
      %528 = vmatmul.mubr.f32.gmra.mxu0 %v527
      %v529 = vpop.f32.mrf.mxu0
      %v530 = vadd.f32 %v419, %v529
      %v531 = vpop.f32.mrf.mxu0
      %532 = vmatprep.mubr.f32.mxu0 0.0
      %v533 = vand.u32 %v337, 4294901760
      %534 = vmatmul.mubr.f32.gmra.mxu0 %v533
      %v535 = vpop.f32.mrf.mxu0
      %v536 = vadd.f32 %v429, %v535
      %v537 = vpop.f32.mrf.mxu0
      %538 = vmatprep.mubr.f32.mxu0 0.0
      %v539 = vand.u32 %v340, 4294901760
      %540 = vmatmul.mubr.f32.gmra.mxu0 %v539
      %v541 = vpop.f32.mrf.mxu0
      %v542 = vadd.f32 %v439, %v541
      %v543 = vpop.f32.mrf.mxu0
      %544 = vmatprep.mubr.f32.mxu0 0.0
      %v545 = vand.u32 %v343, 4294901760
      %546 = vmatmul.mubr.f32.gmra.mxu0 %v545
      %v547 = vpop.f32.mrf.mxu0
      %v548 = vadd.f32 %v449, %v547
      %v549 = vpop.f32.mrf.mxu0
      %550 = vdwg.mxu0
      %551 = vmatprep.subr.mxu0 0.0
      %552 = vmatpush1.msra.mxu0 0.0
      %553 = vmatprep.subr.mxu0 0.0
      %554 = vmatpush1.msra.mxu0 0.0
      %555 = vmatprep.subr.mxu0 0.0
      %556 = vmatpush1.msra.mxu0 0.0
      %557 = vmatprep.subr.mxu0 0.0
      %558 = vmatpush1.msra.mxu0 0.0
      %559 = vmatprep.subr.mxu0 0.0
      %560 = vmatpush1.msra.mxu0 0.0
      %561 = vmatprep.subr.mxu0 0.0
      %562 = vmatpush1.msra.mxu0 0.0
      %563 = vmatprep.subr.mxu0 0.0
      %564 = vmatpush1.msra.mxu0 0.0
      %565 = vmatprep.subr.mxu0 0.0
      %566 = vmatpush1.msra.mxu0 0.0
      %567 = vmatprep.subr.mxu0 0.0
      %568 = vmatpush1.msra.mxu0 0.0
      %569 = vmatprep.subr.mxu0 0.0
      %570 = vmatpush1.msra.mxu0 0.0
      %571 = vmatprep.subr.mxu0 0.0
      %572 = vmatpush1.msra.mxu0 0.0
      %573 = vmatprep.subr.mxu0 0.0
      %574 = vmatpush1.msra.mxu0 0.0
      %575 = vmatprep.subr.mxu0 0.0
      %576 = vmatpush1.msra.mxu0 0.0
      %577 = vmatprep.subr.mxu0 0.0
      %578 = vmatpush1.msra.mxu0 0.0
      %579 = vmatprep.subr.mxu0 0.0
      %v580 = vand.u32 %v331, 4294901760
      %v581 = vsub.f32 %v331, %v580
      %582 = vmatpush1.msra.mxu0 %v581
      %583 = vmatprep.subr.mxu0 0.0
      %v584 = vand.u32 %v330, 4294901760
      %v585 = vsub.f32 %v330, %v584
      %586 = vmatpush1.msra.mxu0 %v585
      %587 = vmatprep.subr.mxu0 0.0
      %588 = vmatpush2.msra.mxu0 0.0
      %589 = vmatprep.subr.mxu0 0.0
      %590 = vmatpush2.msra.mxu0 0.0
      %591 = vmatprep.subr.mxu0 0.0
      %592 = vmatpush2.msra.mxu0 0.0
      %593 = vmatprep.subr.mxu0 0.0
      %594 = vmatpush2.msra.mxu0 0.0
      %595 = vmatprep.subr.mxu0 0.0
      %596 = vmatpush2.msra.mxu0 0.0
      %597 = vmatprep.subr.mxu0 0.0
      %598 = vmatpush2.msra.mxu0 0.0
      %599 = vmatprep.subr.mxu0 0.0
      %600 = vmatpush2.msra.mxu0 0.0
      %601 = vmatprep.subr.mxu0 0.0
      %602 = vmatpush2.msra.mxu0 0.0
      %603 = vmatprep.subr.mxu0 0.0
      %604 = vmatpush2.msra.mxu0 0.0
      %605 = vmatprep.subr.mxu0 0.0
      %606 = vmatpush2.msra.mxu0 0.0
      %607 = vmatprep.subr.mxu0 0.0
      %608 = vmatpush2.msra.mxu0 0.0
      %609 = vmatprep.subr.mxu0 0.0
      %610 = vmatpush2.msra.mxu0 0.0
      %611 = vmatprep.subr.mxu0 0.0
      %612 = vmatpush2.msra.mxu0 0.0
      %613 = vmatprep.subr.mxu0 0.0
      %614 = vmatpush2.msra.mxu0 0.0
      %615 = vmatprep.subr.mxu0 0.0
      %616 = vmatpush2.msra.mxu0 0.0
      %617 = vmatprep.subr.mxu0 0.0
      %618 = vmatpush2.msra.mxu0 0.0
      %619 = vmatprep.mubr.f32.mxu0 0.0
      %v620 = vand.u32 %v334, 4294901760
      %v621 = vsub.f32 %v334, %v620
      %622 = vmatmul.mubr.f32.gmra.mxu0 %v621
      %v623 = vpop.f32.mrf.mxu0
      %v624 = vadd.f32 %v530, %v623
      %v625 = vpop.f32.mrf.mxu0
      %626 = vmatprep.mubr.f32.mxu0 0.0
      %v627 = vand.u32 %v337, 4294901760
      %v628 = vsub.f32 %v337, %v627
      %629 = vmatmul.mubr.f32.gmra.mxu0 %v628
      %v630 = vpop.f32.mrf.mxu0
      %v631 = vadd.f32 %v536, %v630
      %v632 = vpop.f32.mrf.mxu0
      %633 = vmatprep.mubr.f32.mxu0 0.0
      %v634 = vand.u32 %v340, 4294901760
      %v635 = vsub.f32 %v340, %v634
      %636 = vmatmul.mubr.f32.gmra.mxu0 %v635
      %v637 = vpop.f32.mrf.mxu0
      %v638 = vadd.f32 %v542, %v637
      %v639 = vpop.f32.mrf.mxu0
      %640 = vmatprep.mubr.f32.mxu0 0.0
      %v641 = vand.u32 %v343, 4294901760
      %v642 = vsub.f32 %v343, %v641
      %643 = vmatmul.mubr.f32.gmra.mxu0 %v642
      %v644 = vpop.f32.mrf.mxu0
      %v645 = vadd.f32 %v548, %v644
      %v646 = vpop.f32.mrf.mxu0
      %647 = vdwg.mxu0
      %648 = vmatprep.subr.mxu0 0.0
      %649 = vmatpush1.msra.mxu0 0.0
      %650 = vmatprep.subr.mxu0 0.0
      %651 = vmatpush1.msra.mxu0 0.0
      %652 = vmatprep.subr.mxu0 0.0
      %653 = vmatpush1.msra.mxu0 0.0
      %654 = vmatprep.subr.mxu0 0.0
      %655 = vmatpush1.msra.mxu0 0.0
      %656 = vmatprep.subr.mxu0 0.0
      %657 = vmatpush1.msra.mxu0 0.0
      %658 = vmatprep.subr.mxu0 0.0
      %659 = vmatpush1.msra.mxu0 0.0
      %660 = vmatprep.subr.mxu0 0.0
      %661 = vmatpush1.msra.mxu0 0.0
      %662 = vmatprep.subr.mxu0 0.0
      %663 = vmatpush1.msra.mxu0 0.0
      %664 = vmatprep.subr.mxu0 0.0
      %665 = vmatpush1.msra.mxu0 0.0
      %666 = vmatprep.subr.mxu0 0.0
      %667 = vmatpush1.msra.mxu0 0.0
      %668 = vmatprep.subr.mxu0 0.0
      %669 = vmatpush1.msra.mxu0 0.0
      %670 = vmatprep.subr.mxu0 0.0
      %671 = vmatpush1.msra.mxu0 0.0
      %672 = vmatprep.subr.mxu0 0.0
      %673 = vmatpush1.msra.mxu0 0.0
      %674 = vmatprep.subr.mxu0 0.0
      %675 = vmatpush1.msra.mxu0 0.0
      %676 = vmatprep.subr.mxu0 0.0
      %v677 = vand.u32 %v331, 4294901760
      %678 = vmatpush1.msra.mxu0 %v677
      %679 = vmatprep.subr.mxu0 0.0
      %v680 = vand.u32 %v330, 4294901760
      %681 = vmatpush1.msra.mxu0 %v680
      %682 = vmatprep.subr.mxu0 0.0
      %683 = vmatpush2.msra.mxu0 0.0
      %684 = vmatprep.subr.mxu0 0.0
      %685 = vmatpush2.msra.mxu0 0.0
      %686 = vmatprep.subr.mxu0 0.0
      %687 = vmatpush2.msra.mxu0 0.0
      %688 = vmatprep.subr.mxu0 0.0
      %689 = vmatpush2.msra.mxu0 0.0
      %690 = vmatprep.subr.mxu0 0.0
      %691 = vmatpush2.msra.mxu0 0.0
      %692 = vmatprep.subr.mxu0 0.0
      %693 = vmatpush2.msra.mxu0 0.0
      %694 = vmatprep.subr.mxu0 0.0
      %695 = vmatpush2.msra.mxu0 0.0
      %696 = vmatprep.subr.mxu0 0.0
      %697 = vmatpush2.msra.mxu0 0.0
      %698 = vmatprep.subr.mxu0 0.0
      %699 = vmatpush2.msra.mxu0 0.0
      %700 = vmatprep.subr.mxu0 0.0
      %701 = vmatpush2.msra.mxu0 0.0
      %702 = vmatprep.subr.mxu0 0.0
      %703 = vmatpush2.msra.mxu0 0.0
      %704 = vmatprep.subr.mxu0 0.0
      %705 = vmatpush2.msra.mxu0 0.0
      %706 = vmatprep.subr.mxu0 0.0
      %707 = vmatpush2.msra.mxu0 0.0
      %708 = vmatprep.subr.mxu0 0.0
      %709 = vmatpush2.msra.mxu0 0.0
      %710 = vmatprep.subr.mxu0 0.0
      %711 = vmatpush2.msra.mxu0 0.0
      %712 = vmatprep.subr.mxu0 0.0
      %713 = vmatpush2.msra.mxu0 0.0
      %714 = vmatprep.mubr.f32.mxu0 0.0
      %v715 = vand.u32 %v334, 4294901760
      %v716 = vsub.f32 %v334, %v715
      %v717 = vand.u32 %v716, 4294901760
      %718 = vmatmul.mubr.f32.gmra.mxu0 %v717
      %v719 = vpop.f32.mrf.mxu0
      %v720 = vadd.f32 %v624, %v719
      %v721 = vpop.f32.mrf.mxu0
      %722 = vmatprep.mubr.f32.mxu0 0.0
      %v723 = vand.u32 %v337, 4294901760
      %v724 = vsub.f32 %v337, %v723
      %v725 = vand.u32 %v724, 4294901760
      %726 = vmatmul.mubr.f32.gmra.mxu0 %v725
      %v727 = vpop.f32.mrf.mxu0
      %v728 = vadd.f32 %v631, %v727
      %v729 = vpop.f32.mrf.mxu0
      %730 = vmatprep.mubr.f32.mxu0 0.0
      %v731 = vand.u32 %v340, 4294901760
      %v732 = vsub.f32 %v340, %v731
      %v733 = vand.u32 %v732, 4294901760
      %734 = vmatmul.mubr.f32.gmra.mxu0 %v733
      %v735 = vpop.f32.mrf.mxu0
      %v736 = vadd.f32 %v638, %v735
      %v737 = vpop.f32.mrf.mxu0
      %738 = vmatprep.mubr.f32.mxu0 0.0
      %v739 = vand.u32 %v343, 4294901760
      %v740 = vsub.f32 %v343, %v739
      %v741 = vand.u32 %v740, 4294901760
      %742 = vmatmul.mubr.f32.gmra.mxu0 %v741
      %v743 = vpop.f32.mrf.mxu0
      %v744 = vadd.f32 %v645, %v743
      %v745 = vpop.f32.mrf.mxu0
      %746 = vdwg.mxu0
      %747 = vmatprep.subr.mxu0 0.0
      %748 = vmatpush1.msra.mxu0 0.0
      %749 = vmatprep.subr.mxu0 0.0
      %750 = vmatpush1.msra.mxu0 0.0
      %751 = vmatprep.subr.mxu0 0.0
      %752 = vmatpush1.msra.mxu0 0.0
      %753 = vmatprep.subr.mxu0 0.0
      %754 = vmatpush1.msra.mxu0 0.0
      %755 = vmatprep.subr.mxu0 0.0
      %756 = vmatpush1.msra.mxu0 0.0
      %757 = vmatprep.subr.mxu0 0.0
      %758 = vmatpush1.msra.mxu0 0.0
      %759 = vmatprep.subr.mxu0 0.0
      %760 = vmatpush1.msra.mxu0 0.0
      %761 = vmatprep.subr.mxu0 0.0
      %762 = vmatpush1.msra.mxu0 0.0
      %763 = vmatprep.subr.mxu0 0.0
      %764 = vmatpush1.msra.mxu0 0.0
      %765 = vmatprep.subr.mxu0 0.0
      %766 = vmatpush1.msra.mxu0 0.0
      %767 = vmatprep.subr.mxu0 0.0
      %768 = vmatpush1.msra.mxu0 0.0
      %769 = vmatprep.subr.mxu0 0.0
      %770 = vmatpush1.msra.mxu0 0.0
      %771 = vmatprep.subr.mxu0 0.0
      %772 = vmatpush1.msra.mxu0 0.0
      %773 = vmatprep.subr.mxu0 0.0
      %774 = vmatpush1.msra.mxu0 0.0
      %775 = vmatprep.subr.mxu0 0.0
      %v776 = vand.u32 %v331, 4294901760
      %v777 = vsub.f32 %v331, %v776
      %v778 = vand.u32 %v777, 4294901760
      %779 = vmatpush1.msra.mxu0 %v778
      %780 = vmatprep.subr.mxu0 0.0
      %v781 = vand.u32 %v330, 4294901760
      %v782 = vsub.f32 %v330, %v781
      %v783 = vand.u32 %v782, 4294901760
      %784 = vmatpush1.msra.mxu0 %v783
      %785 = vmatprep.subr.mxu0 0.0
      %786 = vmatpush2.msra.mxu0 0.0
      %787 = vmatprep.subr.mxu0 0.0
      %788 = vmatpush2.msra.mxu0 0.0
      %789 = vmatprep.subr.mxu0 0.0
      %790 = vmatpush2.msra.mxu0 0.0
      %791 = vmatprep.subr.mxu0 0.0
      %792 = vmatpush2.msra.mxu0 0.0
      %793 = vmatprep.subr.mxu0 0.0
      %794 = vmatpush2.msra.mxu0 0.0
      %795 = vmatprep.subr.mxu0 0.0
      %796 = vmatpush2.msra.mxu0 0.0
      %797 = vmatprep.subr.mxu0 0.0
      %798 = vmatpush2.msra.mxu0 0.0
      %799 = vmatprep.subr.mxu0 0.0
      %800 = vmatpush2.msra.mxu0 0.0
      %801 = vmatprep.subr.mxu0 0.0
      %802 = vmatpush2.msra.mxu0 0.0
      %803 = vmatprep.subr.mxu0 0.0
      %804 = vmatpush2.msra.mxu0 0.0
      %805 = vmatprep.subr.mxu0 0.0
      %806 = vmatpush2.msra.mxu0 0.0
      %807 = vmatprep.subr.mxu0 0.0
      %808 = vmatpush2.msra.mxu0 0.0
      %809 = vmatprep.subr.mxu0 0.0
      %810 = vmatpush2.msra.mxu0 0.0
      %811 = vmatprep.subr.mxu0 0.0
      %812 = vmatpush2.msra.mxu0 0.0
      %813 = vmatprep.subr.mxu0 0.0
      %814 = vmatpush2.msra.mxu0 0.0
      %815 = vmatprep.subr.mxu0 0.0
      %816 = vmatpush2.msra.mxu0 0.0
      %817 = vmatprep.mubr.f32.mxu0 0.0
      %v818 = vand.u32 %v334, 4294901760
      %819 = vmatmul.mubr.f32.gmra.mxu0 %v818
      %v820 = vpop.f32.mrf.mxu0
      %v821 = vadd.f32 %v720, %v820
      %v822 = vpop.f32.mrf.mxu0
      %823 = vmatprep.mubr.f32.mxu0 0.0
      %v824 = vand.u32 %v337, 4294901760
      %825 = vmatmul.mubr.f32.gmra.mxu0 %v824
      %v826 = vpop.f32.mrf.mxu0
      %v827 = vadd.f32 %v728, %v826
      %v828 = vpop.f32.mrf.mxu0
      %829 = vmatprep.mubr.f32.mxu0 0.0
      %v830 = vand.u32 %v340, 4294901760
      %831 = vmatmul.mubr.f32.gmra.mxu0 %v830
      %v832 = vpop.f32.mrf.mxu0
      %v833 = vadd.f32 %v736, %v832
      %v834 = vpop.f32.mrf.mxu0
      %835 = vmatprep.mubr.f32.mxu0 0.0
      %v836 = vand.u32 %v343, 4294901760
      %837 = vmatmul.mubr.f32.gmra.mxu0 %v836
      %v838 = vpop.f32.mrf.mxu0
      %v839 = vadd.f32 %v744, %v838
      %v840 = vpop.f32.mrf.mxu0
      %841 = vdwg.mxu0
      %842 = vmatprep.subr.mxu0 0.0
      %843 = vmatpush1.msra.mxu0 0.0
      %844 = vmatprep.subr.mxu0 0.0
      %845 = vmatpush1.msra.mxu0 0.0
      %846 = vmatprep.subr.mxu0 0.0
      %847 = vmatpush1.msra.mxu0 0.0
      %848 = vmatprep.subr.mxu0 0.0
      %849 = vmatpush1.msra.mxu0 0.0
      %850 = vmatprep.subr.mxu0 0.0
      %851 = vmatpush1.msra.mxu0 0.0
      %852 = vmatprep.subr.mxu0 0.0
      %853 = vmatpush1.msra.mxu0 0.0
      %854 = vmatprep.subr.mxu0 0.0
      %855 = vmatpush1.msra.mxu0 0.0
      %856 = vmatprep.subr.mxu0 0.0
      %857 = vmatpush1.msra.mxu0 0.0
      %858 = vmatprep.subr.mxu0 0.0
      %859 = vmatpush1.msra.mxu0 0.0
      %860 = vmatprep.subr.mxu0 0.0
      %861 = vmatpush1.msra.mxu0 0.0
      %862 = vmatprep.subr.mxu0 0.0
      %863 = vmatpush1.msra.mxu0 0.0
      %864 = vmatprep.subr.mxu0 0.0
      %865 = vmatpush1.msra.mxu0 0.0
      %866 = vmatprep.subr.mxu0 0.0
      %867 = vmatpush1.msra.mxu0 0.0
      %868 = vmatprep.subr.mxu0 0.0
      %869 = vmatpush1.msra.mxu0 0.0
      %870 = vmatprep.subr.mxu0 0.0
      %v871 = vand.u32 %v331, 4294901760
      %872 = vmatpush1.msra.mxu0 %v871
      %873 = vmatprep.subr.mxu0 0.0
      %v874 = vand.u32 %v330, 4294901760
      %875 = vmatpush1.msra.mxu0 %v874
      %876 = vmatprep.subr.mxu0 0.0
      %877 = vmatpush2.msra.mxu0 0.0
      %878 = vmatprep.subr.mxu0 0.0
      %879 = vmatpush2.msra.mxu0 0.0
      %880 = vmatprep.subr.mxu0 0.0
      %881 = vmatpush2.msra.mxu0 0.0
      %882 = vmatprep.subr.mxu0 0.0
      %883 = vmatpush2.msra.mxu0 0.0
      %884 = vmatprep.subr.mxu0 0.0
      %885 = vmatpush2.msra.mxu0 0.0
      %886 = vmatprep.subr.mxu0 0.0
      %887 = vmatpush2.msra.mxu0 0.0
      %888 = vmatprep.subr.mxu0 0.0
      %889 = vmatpush2.msra.mxu0 0.0
      %890 = vmatprep.subr.mxu0 0.0
      %891 = vmatpush2.msra.mxu0 0.0
      %892 = vmatprep.subr.mxu0 0.0
      %893 = vmatpush2.msra.mxu0 0.0
      %894 = vmatprep.subr.mxu0 0.0
      %895 = vmatpush2.msra.mxu0 0.0
      %896 = vmatprep.subr.mxu0 0.0
      %897 = vmatpush2.msra.mxu0 0.0
      %898 = vmatprep.subr.mxu0 0.0
      %899 = vmatpush2.msra.mxu0 0.0
      %900 = vmatprep.subr.mxu0 0.0
      %901 = vmatpush2.msra.mxu0 0.0
      %902 = vmatprep.subr.mxu0 0.0
      %903 = vmatpush2.msra.mxu0 0.0
      %904 = vmatprep.subr.mxu0 0.0
      %905 = vmatpush2.msra.mxu0 0.0
      %906 = vmatprep.subr.mxu0 0.0
      %907 = vmatpush2.msra.mxu0 0.0
      %908 = vmatprep.mubr.f32.mxu0 0.0
      %v909 = vand.u32 %v334, 4294901760
      %910 = vmatmul.mubr.f32.gmra.mxu0 %v909
      %v911 = vpop.f32.mrf.mxu0
      %v912 = vadd.f32 %v821, %v911
      %v913 = vpop.f32.mrf.mxu0
      %914 = vmatprep.mubr.f32.mxu0 0.0
      %v915 = vand.u32 %v337, 4294901760
      %916 = vmatmul.mubr.f32.gmra.mxu0 %v915
      %v917 = vpop.f32.mrf.mxu0
      %v918 = vadd.f32 %v827, %v917
      %v919 = vpop.f32.mrf.mxu0
      %920 = vmatprep.mubr.f32.mxu0 0.0
      %v921 = vand.u32 %v340, 4294901760
      %922 = vmatmul.mubr.f32.gmra.mxu0 %v921
      %v923 = vpop.f32.mrf.mxu0
      %v924 = vadd.f32 %v833, %v923
      %v925 = vpop.f32.mrf.mxu0
      %926 = vmatprep.mubr.f32.mxu0 0.0
      %v927 = vand.u32 %v343, 4294901760
      %928 = vmatmul.mubr.f32.gmra.mxu0 %v927
      %v929 = vpop.f32.mrf.mxu0
      %v930 = vadd.f32 %v839, %v929
      %v931 = vpop.f32.mrf.mxu0
      %932 = vdwg.mxu0
      %v933 = vld [vmem:[%s3] sm:$0xff]
      %v934 = vld [vmem:[%s3 + $0x8] sm:$0xff]
      %v935 = vld [vmem:[%s3 + $0x10] sm:$0xff]
      %v936 = vld [vmem:[%s3 + $0x18] sm:$0xff]
      %v937 = vld [vmem:[%s3 + $0x20] sm:$0xff]
      %v938 = vld [vmem:[%s3 + $0x28] sm:$0xff]
      %v939 = vld [vmem:[%s3 + $0x30] sm:$0xff]
      %v940 = vld [vmem:[%s3 + $0x38] sm:$0xff]
      %vm941 = vcmask 523264
      %v943 = vsel %vm941, %v912, 0
      %v946 = vsel %vm941, %v918, 0
      %v949 = vsel %vm941, %v924, 0
      %v952 = vsel %vm941, %v930, 0
      %954 = vmatprep.subr.mxu0 0.0
      %955 = vmatpush1.msra.mxu0 0.0
      %956 = vmatprep.subr.mxu0 0.0
      %957 = vmatpush1.msra.mxu0 0.0
      %958 = vmatprep.subr.mxu0 0.0
      %959 = vmatpush1.msra.mxu0 0.0
      %960 = vmatprep.subr.mxu0 0.0
      %961 = vmatpush1.msra.mxu0 0.0
      %962 = vmatprep.subr.mxu0 0.0
      %963 = vmatpush1.msra.mxu0 0.0
      %964 = vmatprep.subr.mxu0 0.0
      %965 = vmatpush1.msra.mxu0 0.0
      %966 = vmatprep.subr.mxu0 0.0
      %967 = vmatpush1.msra.mxu0 0.0
      %968 = vmatprep.subr.mxu0 0.0
      %969 = vmatpush1.msra.mxu0 0.0
      %970 = vmatprep.subr.mxu0 0.0
      %v971 = vand.u32 %v940, 4294901760
      %972 = vmatpush1.msra.mxu0 %v971
      %973 = vmatprep.subr.mxu0 0.0
      %v974 = vand.u32 %v939, 4294901760
      %975 = vmatpush1.msra.mxu0 %v974
      %976 = vmatprep.subr.mxu0 0.0
      %v977 = vand.u32 %v938, 4294901760
      %978 = vmatpush1.msra.mxu0 %v977
      %979 = vmatprep.subr.mxu0 0.0
      %v980 = vand.u32 %v937, 4294901760
      %981 = vmatpush1.msra.mxu0 %v980
      %982 = vmatprep.subr.mxu0 0.0
      %v983 = vand.u32 %v936, 4294901760
      %984 = vmatpush1.msra.mxu0 %v983
      %985 = vmatprep.subr.mxu0 0.0
      %v986 = vand.u32 %v935, 4294901760
      %987 = vmatpush1.msra.mxu0 %v986
      %988 = vmatprep.subr.mxu0 0.0
      %v989 = vand.u32 %v934, 4294901760
      %990 = vmatpush1.msra.mxu0 %v989
      %991 = vmatprep.subr.mxu0 0.0
      %v992 = vand.u32 %v933, 4294901760
      %993 = vmatpush1.msra.mxu0 %v992
      %994 = vmatprep.subr.mxu0 0.0
      %995 = vmatpush2.msra.mxu0 0.0
      %996 = vmatprep.subr.mxu0 0.0
      %997 = vmatpush2.msra.mxu0 0.0
      %998 = vmatprep.subr.mxu0 0.0
      %999 = vmatpush2.msra.mxu0 0.0
      %1000 = vmatprep.subr.mxu0 0.0
      %1001 = vmatpush2.msra.mxu0 0.0
      %1002 = vmatprep.subr.mxu0 0.0
      %1003 = vmatpush2.msra.mxu0 0.0
      %1004 = vmatprep.subr.mxu0 0.0
      %1005 = vmatpush2.msra.mxu0 0.0
      %1006 = vmatprep.subr.mxu0 0.0
      %1007 = vmatpush2.msra.mxu0 0.0
      %1008 = vmatprep.subr.mxu0 0.0
      %1009 = vmatpush2.msra.mxu0 0.0
      %1010 = vmatprep.subr.mxu0 0.0
      %1011 = vmatpush2.msra.mxu0 0.0
      %1012 = vmatprep.subr.mxu0 0.0
      %1013 = vmatpush2.msra.mxu0 0.0
      %1014 = vmatprep.subr.mxu0 0.0
      %1015 = vmatpush2.msra.mxu0 0.0
      %1016 = vmatprep.subr.mxu0 0.0
      %1017 = vmatpush2.msra.mxu0 0.0
      %1018 = vmatprep.subr.mxu0 0.0
      %1019 = vmatpush2.msra.mxu0 0.0
      %1020 = vmatprep.subr.mxu0 0.0
      %1021 = vmatpush2.msra.mxu0 0.0
      %1022 = vmatprep.subr.mxu0 0.0
      %1023 = vmatpush2.msra.mxu0 0.0
      %1024 = vmatprep.subr.mxu0 0.0
      %1025 = vmatpush2.msra.mxu0 0.0
      %1026 = vmatprep.mubr.f32.mxu0 0.0
      %v1027 = vand.u32 %v943, 4294901760
      %v1028 = vsub.f32 %v943, %v1027
      %v1029 = vand.u32 %v1028, 4294901760
      %v1030 = vsub.f32 %v1028, %v1029
      %v1031 = vand.u32 %v1030, 4294901760
      %1032 = vmatmul.mubr.f32.gmra.mxu0 %v1031
      %v1033 = vpop.f32.mrf.mxu0
      %v1034 = vadd.f32 0.0, %v1033
      %v1035 = vpop.f32.mrf.mxu0
      %1036 = vmatprep.mubr.f32.mxu0 0.0
      %v1037 = vand.u32 %v946, 4294901760
      %v1038 = vsub.f32 %v946, %v1037
      %v1039 = vand.u32 %v1038, 4294901760
      %v1040 = vsub.f32 %v1038, %v1039
      %v1041 = vand.u32 %v1040, 4294901760
      %1042 = vmatmul.mubr.f32.gmra.mxu0 %v1041
      %v1043 = vpop.f32.mrf.mxu0
      %v1044 = vadd.f32 0.0, %v1043
      %v1045 = vpop.f32.mrf.mxu0
      %1046 = vmatprep.mubr.f32.mxu0 0.0
      %v1047 = vand.u32 %v949, 4294901760
      %v1048 = vsub.f32 %v949, %v1047
      %v1049 = vand.u32 %v1048, 4294901760
      %v1050 = vsub.f32 %v1048, %v1049
      %v1051 = vand.u32 %v1050, 4294901760
      %1052 = vmatmul.mubr.f32.gmra.mxu0 %v1051
      %v1053 = vpop.f32.mrf.mxu0
      %v1054 = vadd.f32 0.0, %v1053
      %v1055 = vpop.f32.mrf.mxu0
      %1056 = vmatprep.mubr.f32.mxu0 0.0
      %v1057 = vand.u32 %v952, 4294901760
      %v1058 = vsub.f32 %v952, %v1057
      %v1059 = vand.u32 %v1058, 4294901760
      %v1060 = vsub.f32 %v1058, %v1059
      %v1061 = vand.u32 %v1060, 4294901760
      %1062 = vmatmul.mubr.f32.gmra.mxu0 %v1061
      %v1063 = vpop.f32.mrf.mxu0
      %v1064 = vadd.f32 0.0, %v1063
      %v1065 = vpop.f32.mrf.mxu0
      %1066 = vdwg.mxu0
      %1067 = vmatprep.subr.mxu0 0.0
      %1068 = vmatpush1.msra.mxu0 0.0
      %1069 = vmatprep.subr.mxu0 0.0
      %1070 = vmatpush1.msra.mxu0 0.0
      %1071 = vmatprep.subr.mxu0 0.0
      %1072 = vmatpush1.msra.mxu0 0.0
      %1073 = vmatprep.subr.mxu0 0.0
      %1074 = vmatpush1.msra.mxu0 0.0
      %1075 = vmatprep.subr.mxu0 0.0
      %1076 = vmatpush1.msra.mxu0 0.0
      %1077 = vmatprep.subr.mxu0 0.0
      %1078 = vmatpush1.msra.mxu0 0.0
      %1079 = vmatprep.subr.mxu0 0.0
      %1080 = vmatpush1.msra.mxu0 0.0
      %1081 = vmatprep.subr.mxu0 0.0
      %1082 = vmatpush1.msra.mxu0 0.0
      %1083 = vmatprep.subr.mxu0 0.0
      %v1084 = vand.u32 %v940, 4294901760
      %v1085 = vsub.f32 %v940, %v1084
      %v1086 = vand.u32 %v1085, 4294901760
      %v1087 = vsub.f32 %v1085, %v1086
      %v1088 = vand.u32 %v1087, 4294901760
      %1089 = vmatpush1.msra.mxu0 %v1088
      %1090 = vmatprep.subr.mxu0 0.0
      %v1091 = vand.u32 %v939, 4294901760
      %v1092 = vsub.f32 %v939, %v1091
      %v1093 = vand.u32 %v1092, 4294901760
      %v1094 = vsub.f32 %v1092, %v1093
      %v1095 = vand.u32 %v1094, 4294901760
      %1096 = vmatpush1.msra.mxu0 %v1095
      %1097 = vmatprep.subr.mxu0 0.0
      %v1098 = vand.u32 %v938, 4294901760
      %v1099 = vsub.f32 %v938, %v1098
      %v1100 = vand.u32 %v1099, 4294901760
      %v1101 = vsub.f32 %v1099, %v1100
      %v1102 = vand.u32 %v1101, 4294901760
      %1103 = vmatpush1.msra.mxu0 %v1102
      %1104 = vmatprep.subr.mxu0 0.0
      %v1105 = vand.u32 %v937, 4294901760
      %v1106 = vsub.f32 %v937, %v1105
      %v1107 = vand.u32 %v1106, 4294901760
      %v1108 = vsub.f32 %v1106, %v1107
      %v1109 = vand.u32 %v1108, 4294901760
      %1110 = vmatpush1.msra.mxu0 %v1109
      %1111 = vmatprep.subr.mxu0 0.0
      %v1112 = vand.u32 %v936, 4294901760
      %v1113 = vsub.f32 %v936, %v1112
      %v1114 = vand.u32 %v1113, 4294901760
      %v1115 = vsub.f32 %v1113, %v1114
      %v1116 = vand.u32 %v1115, 4294901760
      %1117 = vmatpush1.msra.mxu0 %v1116
      %1118 = vmatprep.subr.mxu0 0.0
      %v1119 = vand.u32 %v935, 4294901760
      %v1120 = vsub.f32 %v935, %v1119
      %v1121 = vand.u32 %v1120, 4294901760
      %v1122 = vsub.f32 %v1120, %v1121
      %v1123 = vand.u32 %v1122, 4294901760
      %1124 = vmatpush1.msra.mxu0 %v1123
      %1125 = vmatprep.subr.mxu0 0.0
      %v1126 = vand.u32 %v934, 4294901760
      %v1127 = vsub.f32 %v934, %v1126
      %v1128 = vand.u32 %v1127, 4294901760
      %v1129 = vsub.f32 %v1127, %v1128
      %v1130 = vand.u32 %v1129, 4294901760
      %1131 = vmatpush1.msra.mxu0 %v1130
      %1132 = vmatprep.subr.mxu0 0.0
      %v1133 = vand.u32 %v933, 4294901760
      %v1134 = vsub.f32 %v933, %v1133
      %v1135 = vand.u32 %v1134, 4294901760
      %v1136 = vsub.f32 %v1134, %v1135
      %v1137 = vand.u32 %v1136, 4294901760
      %1138 = vmatpush1.msra.mxu0 %v1137
      %1139 = vmatprep.subr.mxu0 0.0
      %1140 = vmatpush2.msra.mxu0 0.0
      %1141 = vmatprep.subr.mxu0 0.0
      %1142 = vmatpush2.msra.mxu0 0.0
      %1143 = vmatprep.subr.mxu0 0.0
      %1144 = vmatpush2.msra.mxu0 0.0
      %1145 = vmatprep.subr.mxu0 0.0
      %1146 = vmatpush2.msra.mxu0 0.0
      %1147 = vmatprep.subr.mxu0 0.0
      %1148 = vmatpush2.msra.mxu0 0.0
      %1149 = vmatprep.subr.mxu0 0.0
      %1150 = vmatpush2.msra.mxu0 0.0
      %1151 = vmatprep.subr.mxu0 0.0
      %1152 = vmatpush2.msra.mxu0 0.0
      %1153 = vmatprep.subr.mxu0 0.0
      %1154 = vmatpush2.msra.mxu0 0.0
      %1155 = vmatprep.subr.mxu0 0.0
      %1156 = vmatpush2.msra.mxu0 0.0
      %1157 = vmatprep.subr.mxu0 0.0
      %1158 = vmatpush2.msra.mxu0 0.0
      %1159 = vmatprep.subr.mxu0 0.0
      %1160 = vmatpush2.msra.mxu0 0.0
      %1161 = vmatprep.subr.mxu0 0.0
      %1162 = vmatpush2.msra.mxu0 0.0
      %1163 = vmatprep.subr.mxu0 0.0
      %1164 = vmatpush2.msra.mxu0 0.0
      %1165 = vmatprep.subr.mxu0 0.0
      %1166 = vmatpush2.msra.mxu0 0.0
      %1167 = vmatprep.subr.mxu0 0.0
      %1168 = vmatpush2.msra.mxu0 0.0
      %1169 = vmatprep.subr.mxu0 0.0
      %1170 = vmatpush2.msra.mxu0 0.0
      %1171 = vmatprep.mubr.f32.mxu0 0.0
      %v1172 = vand.u32 %v943, 4294901760
      %1173 = vmatmul.mubr.f32.gmra.mxu0 %v1172
      %v1174 = vpop.f32.mrf.mxu0
      %v1175 = vadd.f32 %v1034, %v1174
      %v1176 = vpop.f32.mrf.mxu0
      %1177 = vmatprep.mubr.f32.mxu0 0.0
      %v1178 = vand.u32 %v946, 4294901760
      %1179 = vmatmul.mubr.f32.gmra.mxu0 %v1178
      %v1180 = vpop.f32.mrf.mxu0
      %v1181 = vadd.f32 %v1044, %v1180
      %v1182 = vpop.f32.mrf.mxu0
      %1183 = vmatprep.mubr.f32.mxu0 0.0
      %v1184 = vand.u32 %v949, 4294901760
      %1185 = vmatmul.mubr.f32.gmra.mxu0 %v1184
      %v1186 = vpop.f32.mrf.mxu0
      %v1187 = vadd.f32 %v1054, %v1186
      %v1188 = vpop.f32.mrf.mxu0
      %1189 = vmatprep.mubr.f32.mxu0 0.0
      %v1190 = vand.u32 %v952, 4294901760
      %1191 = vmatmul.mubr.f32.gmra.mxu0 %v1190
      %v1192 = vpop.f32.mrf.mxu0
      %v1193 = vadd.f32 %v1064, %v1192
      %v1194 = vpop.f32.mrf.mxu0
      %1195 = vdwg.mxu0
      %1196 = vmatprep.subr.mxu0 0.0
      %1197 = vmatpush1.msra.mxu0 0.0
      %1198 = vmatprep.subr.mxu0 0.0
      %1199 = vmatpush1.msra.mxu0 0.0
      %1200 = vmatprep.subr.mxu0 0.0
      %1201 = vmatpush1.msra.mxu0 0.0
      %1202 = vmatprep.subr.mxu0 0.0
      %1203 = vmatpush1.msra.mxu0 0.0
      %1204 = vmatprep.subr.mxu0 0.0
      %1205 = vmatpush1.msra.mxu0 0.0
      %1206 = vmatprep.subr.mxu0 0.0
      %1207 = vmatpush1.msra.mxu0 0.0
      %1208 = vmatprep.subr.mxu0 0.0
      %1209 = vmatpush1.msra.mxu0 0.0
      %1210 = vmatprep.subr.mxu0 0.0
      %1211 = vmatpush1.msra.mxu0 0.0
      %1212 = vmatprep.subr.mxu0 0.0
      %v1213 = vand.u32 %v940, 4294901760
      %v1214 = vsub.f32 %v940, %v1213
      %1215 = vmatpush1.msra.mxu0 %v1214
      %1216 = vmatprep.subr.mxu0 0.0
      %v1217 = vand.u32 %v939, 4294901760
      %v1218 = vsub.f32 %v939, %v1217
      %1219 = vmatpush1.msra.mxu0 %v1218
      %1220 = vmatprep.subr.mxu0 0.0
      %v1221 = vand.u32 %v938, 4294901760
      %v1222 = vsub.f32 %v938, %v1221
      %1223 = vmatpush1.msra.mxu0 %v1222
      %1224 = vmatprep.subr.mxu0 0.0
      %v1225 = vand.u32 %v937, 4294901760
      %v1226 = vsub.f32 %v937, %v1225
      %1227 = vmatpush1.msra.mxu0 %v1226
      %1228 = vmatprep.subr.mxu0 0.0
      %v1229 = vand.u32 %v936, 4294901760
      %v1230 = vsub.f32 %v936, %v1229
      %1231 = vmatpush1.msra.mxu0 %v1230
      %1232 = vmatprep.subr.mxu0 0.0
      %v1233 = vand.u32 %v935, 4294901760
      %v1234 = vsub.f32 %v935, %v1233
      %1235 = vmatpush1.msra.mxu0 %v1234
      %1236 = vmatprep.subr.mxu0 0.0
      %v1237 = vand.u32 %v934, 4294901760
      %v1238 = vsub.f32 %v934, %v1237
      %1239 = vmatpush1.msra.mxu0 %v1238
      %1240 = vmatprep.subr.mxu0 0.0
      %v1241 = vand.u32 %v933, 4294901760
      %v1242 = vsub.f32 %v933, %v1241
      %1243 = vmatpush1.msra.mxu0 %v1242
      %1244 = vmatprep.subr.mxu0 0.0
      %1245 = vmatpush2.msra.mxu0 0.0
      %1246 = vmatprep.subr.mxu0 0.0
      %1247 = vmatpush2.msra.mxu0 0.0
      %1248 = vmatprep.subr.mxu0 0.0
      %1249 = vmatpush2.msra.mxu0 0.0
      %1250 = vmatprep.subr.mxu0 0.0
      %1251 = vmatpush2.msra.mxu0 0.0
      %1252 = vmatprep.subr.mxu0 0.0
      %1253 = vmatpush2.msra.mxu0 0.0
      %1254 = vmatprep.subr.mxu0 0.0
      %1255 = vmatpush2.msra.mxu0 0.0
      %1256 = vmatprep.subr.mxu0 0.0
      %1257 = vmatpush2.msra.mxu0 0.0
      %1258 = vmatprep.subr.mxu0 0.0
      %1259 = vmatpush2.msra.mxu0 0.0
      %1260 = vmatprep.subr.mxu0 0.0
      %1261 = vmatpush2.msra.mxu0 0.0
      %1262 = vmatprep.subr.mxu0 0.0
      %1263 = vmatpush2.msra.mxu0 0.0
      %1264 = vmatprep.subr.mxu0 0.0
      %1265 = vmatpush2.msra.mxu0 0.0
      %1266 = vmatprep.subr.mxu0 0.0
      %1267 = vmatpush2.msra.mxu0 0.0
      %1268 = vmatprep.subr.mxu0 0.0
      %1269 = vmatpush2.msra.mxu0 0.0
      %1270 = vmatprep.subr.mxu0 0.0
      %1271 = vmatpush2.msra.mxu0 0.0
      %1272 = vmatprep.subr.mxu0 0.0
      %1273 = vmatpush2.msra.mxu0 0.0
      %1274 = vmatprep.subr.mxu0 0.0
      %1275 = vmatpush2.msra.mxu0 0.0
      %1276 = vmatprep.mubr.f32.mxu0 0.0
      %v1277 = vand.u32 %v943, 4294901760
      %v1278 = vsub.f32 %v943, %v1277
      %1279 = vmatmul.mubr.f32.gmra.mxu0 %v1278
      %v1280 = vpop.f32.mrf.mxu0
      %v1281 = vadd.f32 %v1175, %v1280
      %v1282 = vpop.f32.mrf.mxu0
      %1283 = vmatprep.mubr.f32.mxu0 0.0
      %v1284 = vand.u32 %v946, 4294901760
      %v1285 = vsub.f32 %v946, %v1284
      %1286 = vmatmul.mubr.f32.gmra.mxu0 %v1285
      %v1287 = vpop.f32.mrf.mxu0
      %v1288 = vadd.f32 %v1181, %v1287
      %v1289 = vpop.f32.mrf.mxu0
      %1290 = vmatprep.mubr.f32.mxu0 0.0
      %v1291 = vand.u32 %v949, 4294901760
      %v1292 = vsub.f32 %v949, %v1291
      %1293 = vmatmul.mubr.f32.gmra.mxu0 %v1292
      %v1294 = vpop.f32.mrf.mxu0
      %v1295 = vadd.f32 %v1187, %v1294
      %v1296 = vpop.f32.mrf.mxu0
      %1297 = vmatprep.mubr.f32.mxu0 0.0
      %v1298 = vand.u32 %v952, 4294901760
      %v1299 = vsub.f32 %v952, %v1298
      %1300 = vmatmul.mubr.f32.gmra.mxu0 %v1299
      %v1301 = vpop.f32.mrf.mxu0
      %v1302 = vadd.f32 %v1193, %v1301
      %v1303 = vpop.f32.mrf.mxu0
      %1304 = vdwg.mxu0
      %1305 = vmatprep.subr.mxu0 0.0
      %1306 = vmatpush1.msra.mxu0 0.0
      %1307 = vmatprep.subr.mxu0 0.0
      %1308 = vmatpush1.msra.mxu0 0.0
      %1309 = vmatprep.subr.mxu0 0.0
      %1310 = vmatpush1.msra.mxu0 0.0
      %1311 = vmatprep.subr.mxu0 0.0
      %1312 = vmatpush1.msra.mxu0 0.0
      %1313 = vmatprep.subr.mxu0 0.0
      %1314 = vmatpush1.msra.mxu0 0.0
      %1315 = vmatprep.subr.mxu0 0.0
      %1316 = vmatpush1.msra.mxu0 0.0
      %1317 = vmatprep.subr.mxu0 0.0
      %1318 = vmatpush1.msra.mxu0 0.0
      %1319 = vmatprep.subr.mxu0 0.0
      %1320 = vmatpush1.msra.mxu0 0.0
      %1321 = vmatprep.subr.mxu0 0.0
      %v1322 = vand.u32 %v940, 4294901760
      %1323 = vmatpush1.msra.mxu0 %v1322
      %1324 = vmatprep.subr.mxu0 0.0
      %v1325 = vand.u32 %v939, 4294901760
      %1326 = vmatpush1.msra.mxu0 %v1325
      %1327 = vmatprep.subr.mxu0 0.0
      %v1328 = vand.u32 %v938, 4294901760
      %1329 = vmatpush1.msra.mxu0 %v1328
      %1330 = vmatprep.subr.mxu0 0.0
      %v1331 = vand.u32 %v937, 4294901760
      %1332 = vmatpush1.msra.mxu0 %v1331
      %1333 = vmatprep.subr.mxu0 0.0
      %v1334 = vand.u32 %v936, 4294901760
      %1335 = vmatpush1.msra.mxu0 %v1334
      %1336 = vmatprep.subr.mxu0 0.0
      %v1337 = vand.u32 %v935, 4294901760
      %1338 = vmatpush1.msra.mxu0 %v1337
      %1339 = vmatprep.subr.mxu0 0.0
      %v1340 = vand.u32 %v934, 4294901760
      %1341 = vmatpush1.msra.mxu0 %v1340
      %1342 = vmatprep.subr.mxu0 0.0
      %v1343 = vand.u32 %v933, 4294901760
      %1344 = vmatpush1.msra.mxu0 %v1343
      %1345 = vmatprep.subr.mxu0 0.0
      %1346 = vmatpush2.msra.mxu0 0.0
      %1347 = vmatprep.subr.mxu0 0.0
      %1348 = vmatpush2.msra.mxu0 0.0
      %1349 = vmatprep.subr.mxu0 0.0
      %1350 = vmatpush2.msra.mxu0 0.0
      %1351 = vmatprep.subr.mxu0 0.0
      %1352 = vmatpush2.msra.mxu0 0.0
      %1353 = vmatprep.subr.mxu0 0.0
      %1354 = vmatpush2.msra.mxu0 0.0
      %1355 = vmatprep.subr.mxu0 0.0
      %1356 = vmatpush2.msra.mxu0 0.0
      %1357 = vmatprep.subr.mxu0 0.0
      %1358 = vmatpush2.msra.mxu0 0.0
      %1359 = vmatprep.subr.mxu0 0.0
      %1360 = vmatpush2.msra.mxu0 0.0
      %1361 = vmatprep.subr.mxu0 0.0
      %1362 = vmatpush2.msra.mxu0 0.0
      %1363 = vmatprep.subr.mxu0 0.0
      %1364 = vmatpush2.msra.mxu0 0.0
      %1365 = vmatprep.subr.mxu0 0.0
      %1366 = vmatpush2.msra.mxu0 0.0
      %1367 = vmatprep.subr.mxu0 0.0
      %1368 = vmatpush2.msra.mxu0 0.0
      %1369 = vmatprep.subr.mxu0 0.0
      %1370 = vmatpush2.msra.mxu0 0.0
      %1371 = vmatprep.subr.mxu0 0.0
      %1372 = vmatpush2.msra.mxu0 0.0
      %1373 = vmatprep.subr.mxu0 0.0
      %1374 = vmatpush2.msra.mxu0 0.0
      %1375 = vmatprep.subr.mxu0 0.0
      %1376 = vmatpush2.msra.mxu0 0.0
      %1377 = vmatprep.mubr.f32.mxu0 0.0
      %v1378 = vand.u32 %v943, 4294901760
      %v1379 = vsub.f32 %v943, %v1378
      %v1380 = vand.u32 %v1379, 4294901760
      %1381 = vmatmul.mubr.f32.gmra.mxu0 %v1380
      %v1382 = vpop.f32.mrf.mxu0
      %v1383 = vadd.f32 %v1281, %v1382
      %v1384 = vpop.f32.mrf.mxu0
      %1385 = vmatprep.mubr.f32.mxu0 0.0
      %v1386 = vand.u32 %v946, 4294901760
      %v1387 = vsub.f32 %v946, %v1386
      %v1388 = vand.u32 %v1387, 4294901760
      %1389 = vmatmul.mubr.f32.gmra.mxu0 %v1388
      %v1390 = vpop.f32.mrf.mxu0
      %v1391 = vadd.f32 %v1288, %v1390
      %v1392 = vpop.f32.mrf.mxu0
      %1393 = vmatprep.mubr.f32.mxu0 0.0
      %v1394 = vand.u32 %v949, 4294901760
      %v1395 = vsub.f32 %v949, %v1394
      %v1396 = vand.u32 %v1395, 4294901760
      %1397 = vmatmul.mubr.f32.gmra.mxu0 %v1396
      %v1398 = vpop.f32.mrf.mxu0
      %v1399 = vadd.f32 %v1295, %v1398
      %v1400 = vpop.f32.mrf.mxu0
      %1401 = vmatprep.mubr.f32.mxu0 0.0
      %v1402 = vand.u32 %v952, 4294901760
      %v1403 = vsub.f32 %v952, %v1402
      %v1404 = vand.u32 %v1403, 4294901760
      %1405 = vmatmul.mubr.f32.gmra.mxu0 %v1404
      %v1406 = vpop.f32.mrf.mxu0
      %v1407 = vadd.f32 %v1302, %v1406
      %v1408 = vpop.f32.mrf.mxu0
      %1409 = vdwg.mxu0
      %1410 = vmatprep.subr.mxu0 0.0
      %1411 = vmatpush1.msra.mxu0 0.0
      %1412 = vmatprep.subr.mxu0 0.0
      %1413 = vmatpush1.msra.mxu0 0.0
      %1414 = vmatprep.subr.mxu0 0.0
      %1415 = vmatpush1.msra.mxu0 0.0
      %1416 = vmatprep.subr.mxu0 0.0
      %1417 = vmatpush1.msra.mxu0 0.0
      %1418 = vmatprep.subr.mxu0 0.0
      %1419 = vmatpush1.msra.mxu0 0.0
      %1420 = vmatprep.subr.mxu0 0.0
      %1421 = vmatpush1.msra.mxu0 0.0
      %1422 = vmatprep.subr.mxu0 0.0
      %1423 = vmatpush1.msra.mxu0 0.0
      %1424 = vmatprep.subr.mxu0 0.0
      %1425 = vmatpush1.msra.mxu0 0.0
      %1426 = vmatprep.subr.mxu0 0.0
      %v1427 = vand.u32 %v940, 4294901760
      %v1428 = vsub.f32 %v940, %v1427
      %v1429 = vand.u32 %v1428, 4294901760
      %1430 = vmatpush1.msra.mxu0 %v1429
      %1431 = vmatprep.subr.mxu0 0.0
      %v1432 = vand.u32 %v939, 4294901760
      %v1433 = vsub.f32 %v939, %v1432
      %v1434 = vand.u32 %v1433, 4294901760
      %1435 = vmatpush1.msra.mxu0 %v1434
      %1436 = vmatprep.subr.mxu0 0.0
      %v1437 = vand.u32 %v938, 4294901760
      %v1438 = vsub.f32 %v938, %v1437
      %v1439 = vand.u32 %v1438, 4294901760
      %1440 = vmatpush1.msra.mxu0 %v1439
      %1441 = vmatprep.subr.mxu0 0.0
      %v1442 = vand.u32 %v937, 4294901760
      %v1443 = vsub.f32 %v937, %v1442
      %v1444 = vand.u32 %v1443, 4294901760
      %1445 = vmatpush1.msra.mxu0 %v1444
      %1446 = vmatprep.subr.mxu0 0.0
      %v1447 = vand.u32 %v936, 4294901760
      %v1448 = vsub.f32 %v936, %v1447
      %v1449 = vand.u32 %v1448, 4294901760
      %1450 = vmatpush1.msra.mxu0 %v1449
      %1451 = vmatprep.subr.mxu0 0.0
      %v1452 = vand.u32 %v935, 4294901760
      %v1453 = vsub.f32 %v935, %v1452
      %v1454 = vand.u32 %v1453, 4294901760
      %1455 = vmatpush1.msra.mxu0 %v1454
      %1456 = vmatprep.subr.mxu0 0.0
      %v1457 = vand.u32 %v934, 4294901760
      %v1458 = vsub.f32 %v934, %v1457
      %v1459 = vand.u32 %v1458, 4294901760
      %1460 = vmatpush1.msra.mxu0 %v1459
      %1461 = vmatprep.subr.mxu0 0.0
      %v1462 = vand.u32 %v933, 4294901760
      %v1463 = vsub.f32 %v933, %v1462
      %v1464 = vand.u32 %v1463, 4294901760
      %1465 = vmatpush1.msra.mxu0 %v1464
      %1466 = vmatprep.subr.mxu0 0.0
      %1467 = vmatpush2.msra.mxu0 0.0
      %1468 = vmatprep.subr.mxu0 0.0
      %1469 = vmatpush2.msra.mxu0 0.0
      %1470 = vmatprep.subr.mxu0 0.0
      %1471 = vmatpush2.msra.mxu0 0.0
      %1472 = vmatprep.subr.mxu0 0.0
      %1473 = vmatpush2.msra.mxu0 0.0
      %1474 = vmatprep.subr.mxu0 0.0
      %1475 = vmatpush2.msra.mxu0 0.0
      %1476 = vmatprep.subr.mxu0 0.0
      %1477 = vmatpush2.msra.mxu0 0.0
      %1478 = vmatprep.subr.mxu0 0.0
      %1479 = vmatpush2.msra.mxu0 0.0
      %1480 = vmatprep.subr.mxu0 0.0
      %1481 = vmatpush2.msra.mxu0 0.0
      %1482 = vmatprep.subr.mxu0 0.0
      %1483 = vmatpush2.msra.mxu0 0.0
      %1484 = vmatprep.subr.mxu0 0.0
      %1485 = vmatpush2.msra.mxu0 0.0
      %1486 = vmatprep.subr.mxu0 0.0
      %1487 = vmatpush2.msra.mxu0 0.0
      %1488 = vmatprep.subr.mxu0 0.0
      %1489 = vmatpush2.msra.mxu0 0.0
      %1490 = vmatprep.subr.mxu0 0.0
      %1491 = vmatpush2.msra.mxu0 0.0
      %1492 = vmatprep.subr.mxu0 0.0
      %1493 = vmatpush2.msra.mxu0 0.0
      %1494 = vmatprep.subr.mxu0 0.0
      %1495 = vmatpush2.msra.mxu0 0.0
      %1496 = vmatprep.subr.mxu0 0.0
      %1497 = vmatpush2.msra.mxu0 0.0
      %1498 = vmatprep.mubr.f32.mxu0 0.0
      %v1499 = vand.u32 %v943, 4294901760
      %1500 = vmatmul.mubr.f32.gmra.mxu0 %v1499
      %v1501 = vpop.f32.mrf.mxu0
      %v1502 = vadd.f32 %v1383, %v1501
      %v1503 = vpop.f32.mrf.mxu0
      %1504 = vmatprep.mubr.f32.mxu0 0.0
      %v1505 = vand.u32 %v946, 4294901760
      %1506 = vmatmul.mubr.f32.gmra.mxu0 %v1505
      %v1507 = vpop.f32.mrf.mxu0
      %v1508 = vadd.f32 %v1391, %v1507
      %v1509 = vpop.f32.mrf.mxu0
      %1510 = vmatprep.mubr.f32.mxu0 0.0
      %v1511 = vand.u32 %v949, 4294901760
      %1512 = vmatmul.mubr.f32.gmra.mxu0 %v1511
      %v1513 = vpop.f32.mrf.mxu0
      %v1514 = vadd.f32 %v1399, %v1513
      %v1515 = vpop.f32.mrf.mxu0
      %1516 = vmatprep.mubr.f32.mxu0 0.0
      %v1517 = vand.u32 %v952, 4294901760
      %1518 = vmatmul.mubr.f32.gmra.mxu0 %v1517
      %v1519 = vpop.f32.mrf.mxu0
      %v1520 = vadd.f32 %v1407, %v1519
      %v1521 = vpop.f32.mrf.mxu0
      %1522 = vdwg.mxu0
      %1523 = vmatprep.subr.mxu0 0.0
      %1524 = vmatpush1.msra.mxu0 0.0
      %1525 = vmatprep.subr.mxu0 0.0
      %1526 = vmatpush1.msra.mxu0 0.0
      %1527 = vmatprep.subr.mxu0 0.0
      %1528 = vmatpush1.msra.mxu0 0.0
      %1529 = vmatprep.subr.mxu0 0.0
      %1530 = vmatpush1.msra.mxu0 0.0
      %1531 = vmatprep.subr.mxu0 0.0
      %1532 = vmatpush1.msra.mxu0 0.0
      %1533 = vmatprep.subr.mxu0 0.0
      %1534 = vmatpush1.msra.mxu0 0.0
      %1535 = vmatprep.subr.mxu0 0.0
      %1536 = vmatpush1.msra.mxu0 0.0
      %1537 = vmatprep.subr.mxu0 0.0
      %1538 = vmatpush1.msra.mxu0 0.0
      %1539 = vmatprep.subr.mxu0 0.0
      %v1540 = vand.u32 %v940, 4294901760
      %1541 = vmatpush1.msra.mxu0 %v1540
      %1542 = vmatprep.subr.mxu0 0.0
      %v1543 = vand.u32 %v939, 4294901760
      %1544 = vmatpush1.msra.mxu0 %v1543
      %1545 = vmatprep.subr.mxu0 0.0
      %v1546 = vand.u32 %v938, 4294901760
      %1547 = vmatpush1.msra.mxu0 %v1546
      %1548 = vmatprep.subr.mxu0 0.0
      %v1549 = vand.u32 %v937, 4294901760
      %1550 = vmatpush1.msra.mxu0 %v1549
      %1551 = vmatprep.subr.mxu0 0.0
      %v1552 = vand.u32 %v936, 4294901760
      %1553 = vmatpush1.msra.mxu0 %v1552
      %1554 = vmatprep.subr.mxu0 0.0
      %v1555 = vand.u32 %v935, 4294901760
      %1556 = vmatpush1.msra.mxu0 %v1555
      %1557 = vmatprep.subr.mxu0 0.0
      %v1558 = vand.u32 %v934, 4294901760
      %1559 = vmatpush1.msra.mxu0 %v1558
      %1560 = vmatprep.subr.mxu0 0.0
      %v1561 = vand.u32 %v933, 4294901760
      %1562 = vmatpush1.msra.mxu0 %v1561
      %1563 = vmatprep.subr.mxu0 0.0
      %1564 = vmatpush2.msra.mxu0 0.0
      %1565 = vmatprep.subr.mxu0 0.0
      %1566 = vmatpush2.msra.mxu0 0.0
      %1567 = vmatprep.subr.mxu0 0.0
      %1568 = vmatpush2.msra.mxu0 0.0
      %1569 = vmatprep.subr.mxu0 0.0
      %1570 = vmatpush2.msra.mxu0 0.0
      %1571 = vmatprep.subr.mxu0 0.0
      %1572 = vmatpush2.msra.mxu0 0.0
      %1573 = vmatprep.subr.mxu0 0.0
      %1574 = vmatpush2.msra.mxu0 0.0
      %1575 = vmatprep.subr.mxu0 0.0
      %1576 = vmatpush2.msra.mxu0 0.0
      %1577 = vmatprep.subr.mxu0 0.0
      %1578 = vmatpush2.msra.mxu0 0.0
      %1579 = vmatprep.subr.mxu0 0.0
      %1580 = vmatpush2.msra.mxu0 0.0
      %1581 = vmatprep.subr.mxu0 0.0
      %1582 = vmatpush2.msra.mxu0 0.0
      %1583 = vmatprep.subr.mxu0 0.0
      %1584 = vmatpush2.msra.mxu0 0.0
      %1585 = vmatprep.subr.mxu0 0.0
      %1586 = vmatpush2.msra.mxu0 0.0
      %1587 = vmatprep.subr.mxu0 0.0
      %1588 = vmatpush2.msra.mxu0 0.0
      %1589 = vmatprep.subr.mxu0 0.0
      %1590 = vmatpush2.msra.mxu0 0.0
      %1591 = vmatprep.subr.mxu0 0.0
      %1592 = vmatpush2.msra.mxu0 0.0
      %1593 = vmatprep.subr.mxu0 0.0
      %1594 = vmatpush2.msra.mxu0 0.0
      %1595 = vmatprep.mubr.f32.mxu0 0.0
      %v1596 = vand.u32 %v943, 4294901760
      %1597 = vmatmul.mubr.f32.gmra.mxu0 %v1596
      %v1598 = vpop.f32.mrf.mxu0
      %v1599 = vadd.f32 %v1502, %v1598
      %v1600 = vpop.f32.mrf.mxu0
      %1601 = vmatprep.mubr.f32.mxu0 0.0
      %v1602 = vand.u32 %v946, 4294901760
      %1603 = vmatmul.mubr.f32.gmra.mxu0 %v1602
      %v1604 = vpop.f32.mrf.mxu0
      %v1605 = vadd.f32 %v1508, %v1604
      %v1606 = vpop.f32.mrf.mxu0
      %1607 = vmatprep.mubr.f32.mxu0 0.0
      %v1608 = vand.u32 %v949, 4294901760
      %1609 = vmatmul.mubr.f32.gmra.mxu0 %v1608
      %v1610 = vpop.f32.mrf.mxu0
      %v1611 = vadd.f32 %v1514, %v1610
      %v1612 = vpop.f32.mrf.mxu0
      %1613 = vmatprep.mubr.f32.mxu0 0.0
      %v1614 = vand.u32 %v952, 4294901760
      %1615 = vmatmul.mubr.f32.gmra.mxu0 %v1614
      %v1616 = vpop.f32.mrf.mxu0
      %v1617 = vadd.f32 %v1520, %v1616
      %v1618 = vpop.f32.mrf.mxu0
      %1619 = vdwg.mxu0
      %v1620 = vlaneseq
      %vm1621 = vcmp.ge.s32.totalorder %v1620, 0
      %vm1622 = vcmp.lt.s32.totalorder %v1620, 256
      %vm1623 = vmand %vm1621, %vm1622
      %1624 = vst.msk [vmem:[#allocation2] ss:$8 sm:$0x3] %vm1623, 0.0
      %1625 = vst.msk [vmem:[#allocation2] ss:$8 sm:$0x0] %vm1623, 0.0
      %s1626 = scalar_lea.vmem [#allocation2], 65
      %1627 = vst.msk [vmem:[%s1626] ss:$8 sm:$0x3] %vm1623, 0.0
      %1628 = vst.msk [vmem:[%s1626] ss:$8 sm:$0x0] %vm1623, 0.0
      %1629 = vst [vmem:[#allocation3] sm:$0x1] 0.0
      %1630 = vst [vmem:[#allocation3 + $0x21] sm:$0x1] 0.0
      %vm1635 = vcmask 1040384
      %v1636 = vrot.slane %v1599, 7
      %v1637 = vrot.slane %v1605, 7
      %v1638 = vsel %vm1635, %v1636, %v1637
      %v1639 = vrot.slane %v1611, 7
      %v1640 = vsel %vm1635, %v1637, %v1639
      %v1641 = vrot.slane %v1617, 7
      %v1642 = vsel %vm1635, %v1639, %v1641
      %1648 = vst [vmem:[#allocation2] sm:$0xfe] %v1636
      %1649 = vst [vmem:[#allocation2 + $0x10] sm:$0xff] %v1638
      %1650 = vst [vmem:[#allocation2 + $0x20] sm:$0xff] %v1640
      %1651 = vst [vmem:[#allocation2 + $0x30] sm:$0xff] %v1642
      %1652 = vst [vmem:[#allocation2 + $0x40] sm:$0x1] %v1641
      %v1653 = vld [vmem:[%s320] sm:$0xff]
      %v1654 = vld [vmem:[%s320 + $0x8] sm:$0xff]
      %v1655 = vld [vmem:[%s320 + $0x10] sm:$0xff]
      %v1656 = vld [vmem:[%s320 + $0x18] sm:$0xff]
      %v1661 = vrot.slane %v1653, 7
      %v1662 = vrot.slane %v1654, 7
      %v1663 = vsel %vm1635, %v1661, %v1662
      %v1664 = vrot.slane %v1655, 7
      %v1665 = vsel %vm1635, %v1662, %v1664
      %v1666 = vrot.slane %v1656, 7
      %v1667 = vsel %vm1635, %v1664, %v1666
      %1673 = vst [vmem:[#allocation2 + $0x8] sm:$0xfe] %v1661
      %1674 = vst [vmem:[#allocation2 + $0x18] sm:$0xff] %v1663
      %1675 = vst [vmem:[#allocation2 + $0x28] sm:$0xff] %v1665
      %1676 = vst [vmem:[#allocation2 + $0x38] sm:$0xff] %v1667
      %1677 = vst [vmem:[#allocation2 + $0x48] sm:$0x1] %v1666
      %v1678 = vld [vmem:[#allocation2] sm:$0xff]
      %v1679 = vld [vmem:[#allocation2 + $0x8] sm:$0xff]
      %v1680 = vld [vmem:[#allocation2 + $0x10] sm:$0xff]
      %v1681 = vld [vmem:[#allocation2 + $0x18] sm:$0xff]
      %v1682 = vld [vmem:[#allocation2 + $0x20] sm:$0xff]
      %v1683 = vld [vmem:[#allocation2 + $0x28] sm:$0xff]
      %v1684 = vld [vmem:[#allocation2 + $0x30] sm:$0xff]
      %v1685 = vld [vmem:[#allocation2 + $0x38] sm:$0xff]
      %v1686 = vld [vmem:[%s4] sm:$0xff]
      %v1687 = vld [vmem:[%s4 + $0x8] sm:$0xff]
      %v1688 = vld [vmem:[%s4 + $0x10] sm:$0xff]
      %v1689 = vld [vmem:[%s4 + $0x18] sm:$0xff]
      %v1690 = vld [vmem:[%s4 + $0x20] sm:$0xff]
      %v1691 = vld [vmem:[%s4 + $0x28] sm:$0xff]
      %v1692 = vld [vmem:[%s4 + $0x30] sm:$0xff]
      %v1693 = vld [vmem:[%s4 + $0x38] sm:$0xff]
      %v1694 = vld [vmem:[%s4 + $0x40] sm:$0xff]
      %v1695 = vld [vmem:[%s4 + $0x48] sm:$0xff]
      %v1696 = vld [vmem:[%s4 + $0x50] sm:$0xff]
      %v1697 = vld [vmem:[%s4 + $0x58] sm:$0xff]
      %v1698 = vld [vmem:[%s4 + $0x60] sm:$0xff]
      %v1699 = vld [vmem:[%s4 + $0x68] sm:$0xff]
      %v1700 = vld [vmem:[%s4 + $0x70] sm:$0xff]
      %v1701 = vld [vmem:[%s4 + $0x78] sm:$0xff]
      %v1702 = vld [vmem:[%s4 + $0x80] sm:$0xff]
      %v1703 = vld [vmem:[%s4 + $0x88] sm:$0xff]
      %v1704 = vld [vmem:[%s4 + $0x90] sm:$0xff]
      %v1705 = vld [vmem:[%s4 + $0x98] sm:$0xff]
      %v1706 = vld [vmem:[%s4 + $0xa0] sm:$0xff]
      %v1707 = vld [vmem:[%s4 + $0xa8] sm:$0xff]
      %v1708 = vld [vmem:[%s4 + $0xb0] sm:$0xff]
      %v1709 = vld [vmem:[%s4 + $0xb8] sm:$0xff]
      %v1710 = vld [vmem:[%s4 + $0xc0] sm:$0xff]
      %v1711 = vld [vmem:[%s4 + $0xc8] sm:$0xff]
      %v1712 = vld [vmem:[%s4 + $0xd0] sm:$0xff]
      %v1713 = vld [vmem:[%s4 + $0xd8] sm:$0xff]
      %v1714 = vld [vmem:[%s4 + $0xe0] sm:$0xff]
      %v1715 = vld [vmem:[%s4 + $0xe8] sm:$0xff]
      %v1716 = vld [vmem:[%s4 + $0xf0] sm:$0xff]
      %v1717 = vld [vmem:[%s4 + $0xf8] sm:$0xff]
      %v1718 = vld [vmem:[#allocation2] sm:$0xfe]
      %v1719 = vld [vmem:[#allocation2 + $0x8] sm:$0xfe]
      %v1720 = vld [vmem:[#allocation2 + $0x40] sm:$0x1]
      %v1721 = vld [vmem:[#allocation2 + $0x48] sm:$0x1]
      %s1722 = scalar_lea.vmem %s4, 256
      %v1723 = vld [vmem:[%s1722] sm:$0xff]
      %v1724 = vld [vmem:[%s1722 + $0x8] sm:$0xff]
      %v1725 = vld [vmem:[%s1722 + $0x10] sm:$0xff]
      %v1726 = vld [vmem:[%s1722 + $0x18] sm:$0xff]
      %v1727 = vld [vmem:[%s1722 + $0x20] sm:$0xff]
      %v1728 = vld [vmem:[%s1722 + $0x28] sm:$0xff]
      %v1729 = vld [vmem:[%s1722 + $0x30] sm:$0xff]
      %v1730 = vld [vmem:[%s1722 + $0x38] sm:$0xff]
      %v1731 = vld [vmem:[%s1722 + $0x40] sm:$0xff]
      %v1732 = vld [vmem:[%s1722 + $0x48] sm:$0xff]
      %v1733 = vld [vmem:[%s1722 + $0x50] sm:$0xff]
      %v1734 = vld [vmem:[%s1722 + $0x58] sm:$0xff]
      %v1735 = vld [vmem:[%s1722 + $0x60] sm:$0xff]
      %v1736 = vld [vmem:[%s1722 + $0x68] sm:$0xff]
      %v1737 = vld [vmem:[%s1722 + $0x70] sm:$0xff]
      %v1738 = vld [vmem:[%s1722 + $0x78] sm:$0xff]
      %v1739 = vld [vmem:[%s1722 + $0x80] sm:$0xff]
      %v1740 = vld [vmem:[%s1722 + $0x88] sm:$0xff]
      %v1741 = vld [vmem:[%s1722 + $0x90] sm:$0xff]
      %v1742 = vld [vmem:[%s1722 + $0x98] sm:$0xff]
      %v1743 = vld [vmem:[%s1722 + $0xa0] sm:$0xff]
      %v1744 = vld [vmem:[%s1722 + $0xa8] sm:$0xff]
      %v1745 = vld [vmem:[%s1722 + $0xb0] sm:$0xff]
      %v1746 = vld [vmem:[%s1722 + $0xb8] sm:$0xff]
      %v1747 = vld [vmem:[%s1722 + $0xc0] sm:$0xff]
      %v1748 = vld [vmem:[%s1722 + $0xc8] sm:$0xff]
      %v1749 = vld [vmem:[%s1722 + $0xd0] sm:$0xff]
      %v1750 = vld [vmem:[%s1722 + $0xd8] sm:$0xff]
      %v1751 = vld [vmem:[%s1722 + $0xe0] sm:$0xff]
      %v1752 = vld [vmem:[%s1722 + $0xe8] sm:$0xff]
      %v1753 = vld [vmem:[%s1722 + $0xf0] sm:$0xff]
      %v1754 = vld [vmem:[%s1722 + $0xf8] sm:$0xff]
      %vm1765 = vcmask 1046528
      %v1766 = vrot.slane %v1718, 1
      %v1767 = vrot.slane %v1680, 1
      %v1768 = vsel %vm1765, %v1766, %v1767
      %v1769 = vrot.slane %v1719, 1
      %v1770 = vrot.slane %v1681, 1
      %v1771 = vsel %vm1765, %v1769, %v1770
      %v1772 = vrot.slane %v1682, 1
      %v1773 = vsel %vm1765, %v1767, %v1772
      %v1774 = vrot.slane %v1683, 1
      %v1775 = vsel %vm1765, %v1770, %v1774
      %v1776 = vrot.slane %v1684, 1
      %v1777 = vsel %vm1765, %v1772, %v1776
      %v1778 = vrot.slane %v1685, 1
      %v1779 = vsel %vm1765, %v1774, %v1778
      %v1780 = vrot.slane %v1720, 1
      %v1781 = vsel %vm1765, %v1776, %v1780
      %v1782 = vrot.slane %v1721, 1
      %v1783 = vsel %vm1765, %v1778, %v1782
      %1792 = vmatprep.subr.mxu0 0.0
      %v1793 = vand.u32 %v1738, 4294901760
      %1794 = vmatpush1.msra.mxu0 %v1793
      %1795 = vmatprep.subr.mxu0 0.0
      %v1796 = vand.u32 %v1737, 4294901760
      %1797 = vmatpush1.msra.mxu0 %v1796
      %1798 = vmatprep.subr.mxu0 0.0
      %v1799 = vand.u32 %v1736, 4294901760
      %1800 = vmatpush1.msra.mxu0 %v1799
      %1801 = vmatprep.subr.mxu0 0.0
      %v1802 = vand.u32 %v1735, 4294901760
      %1803 = vmatpush1.msra.mxu0 %v1802
      %1804 = vmatprep.subr.mxu0 0.0
      %v1805 = vand.u32 %v1734, 4294901760
      %1806 = vmatpush1.msra.mxu0 %v1805
      %1807 = vmatprep.subr.mxu0 0.0
      %v1808 = vand.u32 %v1733, 4294901760
      %1809 = vmatpush1.msra.mxu0 %v1808
      %1810 = vmatprep.subr.mxu0 0.0
      %v1811 = vand.u32 %v1732, 4294901760
      %1812 = vmatpush1.msra.mxu0 %v1811
      %1813 = vmatprep.subr.mxu0 0.0
      %v1814 = vand.u32 %v1731, 4294901760
      %1815 = vmatpush1.msra.mxu0 %v1814
      %1816 = vmatprep.subr.mxu0 0.0
      %v1817 = vand.u32 %v1730, 4294901760
      %1818 = vmatpush1.msra.mxu0 %v1817
      %1819 = vmatprep.subr.mxu0 0.0
      %v1820 = vand.u32 %v1729, 4294901760
      %1821 = vmatpush1.msra.mxu0 %v1820
      %1822 = vmatprep.subr.mxu0 0.0
      %v1823 = vand.u32 %v1728, 4294901760
      %1824 = vmatpush1.msra.mxu0 %v1823
      %1825 = vmatprep.subr.mxu0 0.0
      %v1826 = vand.u32 %v1727, 4294901760
      %1827 = vmatpush1.msra.mxu0 %v1826
      %1828 = vmatprep.subr.mxu0 0.0
      %v1829 = vand.u32 %v1726, 4294901760
      %1830 = vmatpush1.msra.mxu0 %v1829
      %1831 = vmatprep.subr.mxu0 0.0
      %v1832 = vand.u32 %v1725, 4294901760
      %1833 = vmatpush1.msra.mxu0 %v1832
      %1834 = vmatprep.subr.mxu0 0.0
      %v1835 = vand.u32 %v1724, 4294901760
      %1836 = vmatpush1.msra.mxu0 %v1835
      %1837 = vmatprep.subr.mxu0 0.0
      %v1838 = vand.u32 %v1723, 4294901760
      %1839 = vmatpush1.msra.mxu0 %v1838
      %1840 = vmatprep.subr.mxu0 0.0
      %v1841 = vand.u32 %v1754, 4294901760
      %1842 = vmatpush2.msra.mxu0 %v1841
      %1843 = vmatprep.subr.mxu0 0.0
      %v1844 = vand.u32 %v1753, 4294901760
      %1845 = vmatpush2.msra.mxu0 %v1844
      %1846 = vmatprep.subr.mxu0 0.0
      %v1847 = vand.u32 %v1752, 4294901760
      %1848 = vmatpush2.msra.mxu0 %v1847
      %1849 = vmatprep.subr.mxu0 0.0
      %v1850 = vand.u32 %v1751, 4294901760
      %1851 = vmatpush2.msra.mxu0 %v1850
      %1852 = vmatprep.subr.mxu0 0.0
      %v1853 = vand.u32 %v1750, 4294901760
      %1854 = vmatpush2.msra.mxu0 %v1853
      %1855 = vmatprep.subr.mxu0 0.0
      %v1856 = vand.u32 %v1749, 4294901760
      %1857 = vmatpush2.msra.mxu0 %v1856
      %1858 = vmatprep.subr.mxu0 0.0
      %v1859 = vand.u32 %v1748, 4294901760
      %1860 = vmatpush2.msra.mxu0 %v1859
      %1861 = vmatprep.subr.mxu0 0.0
      %v1862 = vand.u32 %v1747, 4294901760
      %1863 = vmatpush2.msra.mxu0 %v1862
      %1864 = vmatprep.subr.mxu0 0.0
      %v1865 = vand.u32 %v1746, 4294901760
      %1866 = vmatpush2.msra.mxu0 %v1865
      %1867 = vmatprep.subr.mxu0 0.0
      %v1868 = vand.u32 %v1745, 4294901760
      %1869 = vmatpush2.msra.mxu0 %v1868
      %1870 = vmatprep.subr.mxu0 0.0
      %v1871 = vand.u32 %v1744, 4294901760
      %1872 = vmatpush2.msra.mxu0 %v1871
      %1873 = vmatprep.subr.mxu0 0.0
      %v1874 = vand.u32 %v1743, 4294901760
      %1875 = vmatpush2.msra.mxu0 %v1874
      %1876 = vmatprep.subr.mxu0 0.0
      %v1877 = vand.u32 %v1742, 4294901760
      %1878 = vmatpush2.msra.mxu0 %v1877
      %1879 = vmatprep.subr.mxu0 0.0
      %v1880 = vand.u32 %v1741, 4294901760
      %1881 = vmatpush2.msra.mxu0 %v1880
      %1882 = vmatprep.subr.mxu0 0.0
      %v1883 = vand.u32 %v1740, 4294901760
      %1884 = vmatpush2.msra.mxu0 %v1883
      %1885 = vmatprep.subr.mxu0 0.0
      %v1886 = vand.u32 %v1739, 4294901760
      %1887 = vmatpush2.msra.mxu0 %v1886
      %v1888 = vand.u32 %v1771, 4294901760
      %v1889 = vsub.f32 %v1771, %v1888
      %v1890 = vand.u32 %v1889, 4294901760
      %v1891 = vsub.f32 %v1889, %v1890
      %v1892 = vand.u32 %v1891, 4294901760
      %1893 = vmatprep.mubr.f32.mxu0 %v1892
      %v1894 = vand.u32 %v1768, 4294901760
      %v1895 = vsub.f32 %v1768, %v1894
      %v1896 = vand.u32 %v1895, 4294901760
      %v1897 = vsub.f32 %v1895, %v1896
      %v1898 = vand.u32 %v1897, 4294901760
      %1899 = vmatmul.mubr.f32.gmra.mxu0 %v1898
      %v1900 = vpop.f32.mrf.mxu0
      %v1901 = vadd.f32 0.0, %v1900
      %v1902 = vpop.f32.mrf.mxu0
      %v1903 = vand.u32 %v1775, 4294901760
      %v1904 = vsub.f32 %v1775, %v1903
      %v1905 = vand.u32 %v1904, 4294901760
      %v1906 = vsub.f32 %v1904, %v1905
      %v1907 = vand.u32 %v1906, 4294901760
      %1908 = vmatprep.mubr.f32.mxu0 %v1907
      %v1909 = vand.u32 %v1773, 4294901760
      %v1910 = vsub.f32 %v1773, %v1909
      %v1911 = vand.u32 %v1910, 4294901760
      %v1912 = vsub.f32 %v1910, %v1911
      %v1913 = vand.u32 %v1912, 4294901760
      %1914 = vmatmul.mubr.f32.gmra.mxu0 %v1913
      %v1915 = vpop.f32.mrf.mxu0
      %v1916 = vadd.f32 0.0, %v1915
      %v1917 = vpop.f32.mrf.mxu0
      %v1918 = vand.u32 %v1779, 4294901760
      %v1919 = vsub.f32 %v1779, %v1918
      %v1920 = vand.u32 %v1919, 4294901760
      %v1921 = vsub.f32 %v1919, %v1920
      %v1922 = vand.u32 %v1921, 4294901760
      %1923 = vmatprep.mubr.f32.mxu0 %v1922
      %v1924 = vand.u32 %v1777, 4294901760
      %v1925 = vsub.f32 %v1777, %v1924
      %v1926 = vand.u32 %v1925, 4294901760
      %v1927 = vsub.f32 %v1925, %v1926
      %v1928 = vand.u32 %v1927, 4294901760
      %1929 = vmatmul.mubr.f32.gmra.mxu0 %v1928
      %v1930 = vpop.f32.mrf.mxu0
      %v1931 = vadd.f32 0.0, %v1930
      %v1932 = vpop.f32.mrf.mxu0
      %v1933 = vand.u32 %v1783, 4294901760
      %v1934 = vsub.f32 %v1783, %v1933
      %v1935 = vand.u32 %v1934, 4294901760
      %v1936 = vsub.f32 %v1934, %v1935
      %v1937 = vand.u32 %v1936, 4294901760
      %1938 = vmatprep.mubr.f32.mxu0 %v1937
      %v1939 = vand.u32 %v1781, 4294901760
      %v1940 = vsub.f32 %v1781, %v1939
      %v1941 = vand.u32 %v1940, 4294901760
      %v1942 = vsub.f32 %v1940, %v1941
      %v1943 = vand.u32 %v1942, 4294901760
      %1944 = vmatmul.mubr.f32.gmra.mxu0 %v1943
      %v1945 = vpop.f32.mrf.mxu0
      %v1946 = vadd.f32 0.0, %v1945
      %v1947 = vpop.f32.mrf.mxu0
      %1948 = vdwg.mxu0
      %1949 = vmatprep.subr.mxu0 0.0
      %v1950 = vand.u32 %v1738, 4294901760
      %v1951 = vsub.f32 %v1738, %v1950
      %v1952 = vand.u32 %v1951, 4294901760
      %v1953 = vsub.f32 %v1951, %v1952
      %v1954 = vand.u32 %v1953, 4294901760
      %1955 = vmatpush1.msra.mxu0 %v1954
      %1956 = vmatprep.subr.mxu0 0.0
      %v1957 = vand.u32 %v1737, 4294901760
      %v1958 = vsub.f32 %v1737, %v1957
      %v1959 = vand.u32 %v1958, 4294901760
      %v1960 = vsub.f32 %v1958, %v1959
      %v1961 = vand.u32 %v1960, 4294901760
      %1962 = vmatpush1.msra.mxu0 %v1961
      %1963 = vmatprep.subr.mxu0 0.0
      %v1964 = vand.u32 %v1736, 4294901760
      %v1965 = vsub.f32 %v1736, %v1964
      %v1966 = vand.u32 %v1965, 4294901760
      %v1967 = vsub.f32 %v1965, %v1966
      %v1968 = vand.u32 %v1967, 4294901760
      %1969 = vmatpush1.msra.mxu0 %v1968
      %1970 = vmatprep.subr.mxu0 0.0
      %v1971 = vand.u32 %v1735, 4294901760
      %v1972 = vsub.f32 %v1735, %v1971
      %v1973 = vand.u32 %v1972, 4294901760
      %v1974 = vsub.f32 %v1972, %v1973
      %v1975 = vand.u32 %v1974, 4294901760
      %1976 = vmatpush1.msra.mxu0 %v1975
      %1977 = vmatprep.subr.mxu0 0.0
      %v1978 = vand.u32 %v1734, 4294901760
      %v1979 = vsub.f32 %v1734, %v1978
      %v1980 = vand.u32 %v1979, 4294901760
      %v1981 = vsub.f32 %v1979, %v1980
      %v1982 = vand.u32 %v1981, 4294901760
      %1983 = vmatpush1.msra.mxu0 %v1982
      %1984 = vmatprep.subr.mxu0 0.0
      %v1985 = vand.u32 %v1733, 4294901760
      %v1986 = vsub.f32 %v1733, %v1985
      %v1987 = vand.u32 %v1986, 4294901760
      %v1988 = vsub.f32 %v1986, %v1987
      %v1989 = vand.u32 %v1988, 4294901760
      %1990 = vmatpush1.msra.mxu0 %v1989
      %1991 = vmatprep.subr.mxu0 0.0
      %v1992 = vand.u32 %v1732, 4294901760
      %v1993 = vsub.f32 %v1732, %v1992
      %v1994 = vand.u32 %v1993, 4294901760
      %v1995 = vsub.f32 %v1993, %v1994
      %v1996 = vand.u32 %v1995, 4294901760
      %1997 = vmatpush1.msra.mxu0 %v1996
      %1998 = vmatprep.subr.mxu0 0.0
      %v1999 = vand.u32 %v1731, 4294901760
      %v2000 = vsub.f32 %v1731, %v1999
      %v2001 = vand.u32 %v2000, 4294901760
      %v2002 = vsub.f32 %v2000, %v2001
      %v2003 = vand.u32 %v2002, 4294901760
      %2004 = vmatpush1.msra.mxu0 %v2003
      %2005 = vmatprep.subr.mxu0 0.0
      %v2006 = vand.u32 %v1730, 4294901760
      %v2007 = vsub.f32 %v1730, %v2006
      %v2008 = vand.u32 %v2007, 4294901760
      %v2009 = vsub.f32 %v2007, %v2008
      %v2010 = vand.u32 %v2009, 4294901760
      %2011 = vmatpush1.msra.mxu0 %v2010
      %2012 = vmatprep.subr.mxu0 0.0
      %v2013 = vand.u32 %v1729, 4294901760
      %v2014 = vsub.f32 %v1729, %v2013
      %v2015 = vand.u32 %v2014, 4294901760
      %v2016 = vsub.f32 %v2014, %v2015
      %v2017 = vand.u32 %v2016, 4294901760
      %2018 = vmatpush1.msra.mxu0 %v2017
      %2019 = vmatprep.subr.mxu0 0.0
      %v2020 = vand.u32 %v1728, 4294901760
      %v2021 = vsub.f32 %v1728, %v2020
      %v2022 = vand.u32 %v2021, 4294901760
      %v2023 = vsub.f32 %v2021, %v2022
      %v2024 = vand.u32 %v2023, 4294901760
      %2025 = vmatpush1.msra.mxu0 %v2024
      %2026 = vmatprep.subr.mxu0 0.0
      %v2027 = vand.u32 %v1727, 4294901760
      %v2028 = vsub.f32 %v1727, %v2027
      %v2029 = vand.u32 %v2028, 4294901760
      %v2030 = vsub.f32 %v2028, %v2029
      %v2031 = vand.u32 %v2030, 4294901760
      %2032 = vmatpush1.msra.mxu0 %v2031
      %2033 = vmatprep.subr.mxu0 0.0
      %v2034 = vand.u32 %v1726, 4294901760
      %v2035 = vsub.f32 %v1726, %v2034
      %v2036 = vand.u32 %v2035, 4294901760
      %v2037 = vsub.f32 %v2035, %v2036
      %v2038 = vand.u32 %v2037, 4294901760
      %2039 = vmatpush1.msra.mxu0 %v2038
      %2040 = vmatprep.subr.mxu0 0.0
      %v2041 = vand.u32 %v1725, 4294901760
      %v2042 = vsub.f32 %v1725, %v2041
      %v2043 = vand.u32 %v2042, 4294901760
      %v2044 = vsub.f32 %v2042, %v2043
      %v2045 = vand.u32 %v2044, 4294901760
      %2046 = vmatpush1.msra.mxu0 %v2045
      %2047 = vmatprep.subr.mxu0 0.0
      %v2048 = vand.u32 %v1724, 4294901760
      %v2049 = vsub.f32 %v1724, %v2048
      %v2050 = vand.u32 %v2049, 4294901760
      %v2051 = vsub.f32 %v2049, %v2050
      %v2052 = vand.u32 %v2051, 4294901760
      %2053 = vmatpush1.msra.mxu0 %v2052
      %2054 = vmatprep.subr.mxu0 0.0
      %v2055 = vand.u32 %v1723, 4294901760
      %v2056 = vsub.f32 %v1723, %v2055
      %v2057 = vand.u32 %v2056, 4294901760
      %v2058 = vsub.f32 %v2056, %v2057
      %v2059 = vand.u32 %v2058, 4294901760
      %2060 = vmatpush1.msra.mxu0 %v2059
      %2061 = vmatprep.subr.mxu0 0.0
      %v2062 = vand.u32 %v1754, 4294901760
      %v2063 = vsub.f32 %v1754, %v2062
      %v2064 = vand.u32 %v2063, 4294901760
      %v2065 = vsub.f32 %v2063, %v2064
      %v2066 = vand.u32 %v2065, 4294901760
      %2067 = vmatpush2.msra.mxu0 %v2066
      %2068 = vmatprep.subr.mxu0 0.0
      %v2069 = vand.u32 %v1753, 4294901760
      %v2070 = vsub.f32 %v1753, %v2069
      %v2071 = vand.u32 %v2070, 4294901760
      %v2072 = vsub.f32 %v2070, %v2071
      %v2073 = vand.u32 %v2072, 4294901760
      %2074 = vmatpush2.msra.mxu0 %v2073
      %2075 = vmatprep.subr.mxu0 0.0
      %v2076 = vand.u32 %v1752, 4294901760
      %v2077 = vsub.f32 %v1752, %v2076
      %v2078 = vand.u32 %v2077, 4294901760
      %v2079 = vsub.f32 %v2077, %v2078
      %v2080 = vand.u32 %v2079, 4294901760
      %2081 = vmatpush2.msra.mxu0 %v2080
      %2082 = vmatprep.subr.mxu0 0.0
      %v2083 = vand.u32 %v1751, 4294901760
      %v2084 = vsub.f32 %v1751, %v2083
      %v2085 = vand.u32 %v2084, 4294901760
      %v2086 = vsub.f32 %v2084, %v2085
      %v2087 = vand.u32 %v2086, 4294901760
      %2088 = vmatpush2.msra.mxu0 %v2087
      %2089 = vmatprep.subr.mxu0 0.0
      %v2090 = vand.u32 %v1750, 4294901760
      %v2091 = vsub.f32 %v1750, %v2090
      %v2092 = vand.u32 %v2091, 4294901760
      %v2093 = vsub.f32 %v2091, %v2092
      %v2094 = vand.u32 %v2093, 4294901760
      %2095 = vmatpush2.msra.mxu0 %v2094
      %2096 = vmatprep.subr.mxu0 0.0
      %v2097 = vand.u32 %v1749, 4294901760
      %v2098 = vsub.f32 %v1749, %v2097
      %v2099 = vand.u32 %v2098, 4294901760
      %v2100 = vsub.f32 %v2098, %v2099
      %v2101 = vand.u32 %v2100, 4294901760
      %2102 = vmatpush2.msra.mxu0 %v2101
      %2103 = vmatprep.subr.mxu0 0.0
      %v2104 = vand.u32 %v1748, 4294901760
      %v2105 = vsub.f32 %v1748, %v2104
      %v2106 = vand.u32 %v2105, 4294901760
      %v2107 = vsub.f32 %v2105, %v2106
      %v2108 = vand.u32 %v2107, 4294901760
      %2109 = vmatpush2.msra.mxu0 %v2108
      %2110 = vmatprep.subr.mxu0 0.0
      %v2111 = vand.u32 %v1747, 4294901760
      %v2112 = vsub.f32 %v1747, %v2111
      %v2113 = vand.u32 %v2112, 4294901760
      %v2114 = vsub.f32 %v2112, %v2113
      %v2115 = vand.u32 %v2114, 4294901760
      %2116 = vmatpush2.msra.mxu0 %v2115
      %2117 = vmatprep.subr.mxu0 0.0
      %v2118 = vand.u32 %v1746, 4294901760
      %v2119 = vsub.f32 %v1746, %v2118
      %v2120 = vand.u32 %v2119, 4294901760
      %v2121 = vsub.f32 %v2119, %v2120
      %v2122 = vand.u32 %v2121, 4294901760
      %2123 = vmatpush2.msra.mxu0 %v2122
      %2124 = vmatprep.subr.mxu0 0.0
      %v2125 = vand.u32 %v1745, 4294901760
      %v2126 = vsub.f32 %v1745, %v2125
      %v2127 = vand.u32 %v2126, 4294901760
      %v2128 = vsub.f32 %v2126, %v2127
      %v2129 = vand.u32 %v2128, 4294901760
      %2130 = vmatpush2.msra.mxu0 %v2129
      %2131 = vmatprep.subr.mxu0 0.0
      %v2132 = vand.u32 %v1744, 4294901760
      %v2133 = vsub.f32 %v1744, %v2132
      %v2134 = vand.u32 %v2133, 4294901760
      %v2135 = vsub.f32 %v2133, %v2134
      %v2136 = vand.u32 %v2135, 4294901760
      %2137 = vmatpush2.msra.mxu0 %v2136
      %2138 = vmatprep.subr.mxu0 0.0
      %v2139 = vand.u32 %v1743, 4294901760
      %v2140 = vsub.f32 %v1743, %v2139
      %v2141 = vand.u32 %v2140, 4294901760
      %v2142 = vsub.f32 %v2140, %v2141
      %v2143 = vand.u32 %v2142, 4294901760
      %2144 = vmatpush2.msra.mxu0 %v2143
      %2145 = vmatprep.subr.mxu0 0.0
      %v2146 = vand.u32 %v1742, 4294901760
      %v2147 = vsub.f32 %v1742, %v2146
      %v2148 = vand.u32 %v2147, 4294901760
      %v2149 = vsub.f32 %v2147, %v2148
      %v2150 = vand.u32 %v2149, 4294901760
      %2151 = vmatpush2.msra.mxu0 %v2150
      %2152 = vmatprep.subr.mxu0 0.0
      %v2153 = vand.u32 %v1741, 4294901760
      %v2154 = vsub.f32 %v1741, %v2153
      %v2155 = vand.u32 %v2154, 4294901760
      %v2156 = vsub.f32 %v2154, %v2155
      %v2157 = vand.u32 %v2156, 4294901760
      %2158 = vmatpush2.msra.mxu0 %v2157
      %2159 = vmatprep.subr.mxu0 0.0
      %v2160 = vand.u32 %v1740, 4294901760
      %v2161 = vsub.f32 %v1740, %v2160
      %v2162 = vand.u32 %v2161, 4294901760
      %v2163 = vsub.f32 %v2161, %v2162
      %v2164 = vand.u32 %v2163, 4294901760
      %2165 = vmatpush2.msra.mxu0 %v2164
      %2166 = vmatprep.subr.mxu0 0.0
      %v2167 = vand.u32 %v1739, 4294901760
      %v2168 = vsub.f32 %v1739, %v2167
      %v2169 = vand.u32 %v2168, 4294901760
      %v2170 = vsub.f32 %v2168, %v2169
      %v2171 = vand.u32 %v2170, 4294901760
      %2172 = vmatpush2.msra.mxu0 %v2171
      %v2173 = vand.u32 %v1771, 4294901760
      %2174 = vmatprep.mubr.f32.mxu0 %v2173
      %v2175 = vand.u32 %v1768, 4294901760
      %2176 = vmatmul.mubr.f32.gmra.mxu0 %v2175
      %v2177 = vpop.f32.mrf.mxu0
      %v2178 = vadd.f32 %v1901, %v2177
      %v2179 = vpop.f32.mrf.mxu0
      %v2180 = vand.u32 %v1775, 4294901760
      %2181 = vmatprep.mubr.f32.mxu0 %v2180
      %v2182 = vand.u32 %v1773, 4294901760
      %2183 = vmatmul.mubr.f32.gmra.mxu0 %v2182
      %v2184 = vpop.f32.mrf.mxu0
      %v2185 = vadd.f32 %v1916, %v2184
      %v2186 = vpop.f32.mrf.mxu0
      %v2187 = vand.u32 %v1779, 4294901760
      %2188 = vmatprep.mubr.f32.mxu0 %v2187
      %v2189 = vand.u32 %v1777, 4294901760
      %2190 = vmatmul.mubr.f32.gmra.mxu0 %v2189
      %v2191 = vpop.f32.mrf.mxu0
      %v2192 = vadd.f32 %v1931, %v2191
      %v2193 = vpop.f32.mrf.mxu0
      %v2194 = vand.u32 %v1783, 4294901760
      %2195 = vmatprep.mubr.f32.mxu0 %v2194
      %v2196 = vand.u32 %v1781, 4294901760
      %2197 = vmatmul.mubr.f32.gmra.mxu0 %v2196
      %v2198 = vpop.f32.mrf.mxu0
      %v2199 = vadd.f32 %v1946, %v2198
      %v2200 = vpop.f32.mrf.mxu0
      %2201 = vdwg.mxu0
      %2202 = vmatprep.subr.mxu0 0.0
      %v2203 = vand.u32 %v1738, 4294901760
      %v2204 = vsub.f32 %v1738, %v2203
      %2205 = vmatpush1.msra.mxu0 %v2204
      %2206 = vmatprep.subr.mxu0 0.0
      %v2207 = vand.u32 %v1737, 4294901760
      %v2208 = vsub.f32 %v1737, %v2207
      %2209 = vmatpush1.msra.mxu0 %v2208
      %2210 = vmatprep.subr.mxu0 0.0
      %v2211 = vand.u32 %v1736, 4294901760
      %v2212 = vsub.f32 %v1736, %v2211
      %2213 = vmatpush1.msra.mxu0 %v2212
      %2214 = vmatprep.subr.mxu0 0.0
      %v2215 = vand.u32 %v1735, 4294901760
      %v2216 = vsub.f32 %v1735, %v2215
      %2217 = vmatpush1.msra.mxu0 %v2216
      %2218 = vmatprep.subr.mxu0 0.0
      %v2219 = vand.u32 %v1734, 4294901760
      %v2220 = vsub.f32 %v1734, %v2219
      %2221 = vmatpush1.msra.mxu0 %v2220
      %2222 = vmatprep.subr.mxu0 0.0
      %v2223 = vand.u32 %v1733, 4294901760
      %v2224 = vsub.f32 %v1733, %v2223
      %2225 = vmatpush1.msra.mxu0 %v2224
      %2226 = vmatprep.subr.mxu0 0.0
      %v2227 = vand.u32 %v1732, 4294901760
      %v2228 = vsub.f32 %v1732, %v2227
      %2229 = vmatpush1.msra.mxu0 %v2228
      %2230 = vmatprep.subr.mxu0 0.0
      %v2231 = vand.u32 %v1731, 4294901760
      %v2232 = vsub.f32 %v1731, %v2231
      %2233 = vmatpush1.msra.mxu0 %v2232
      %2234 = vmatprep.subr.mxu0 0.0
      %v2235 = vand.u32 %v1730, 4294901760
      %v2236 = vsub.f32 %v1730, %v2235
      %2237 = vmatpush1.msra.mxu0 %v2236
      %2238 = vmatprep.subr.mxu0 0.0
      %v2239 = vand.u32 %v1729, 4294901760
      %v2240 = vsub.f32 %v1729, %v2239
      %2241 = vmatpush1.msra.mxu0 %v2240
      %2242 = vmatprep.subr.mxu0 0.0
      %v2243 = vand.u32 %v1728, 4294901760
      %v2244 = vsub.f32 %v1728, %v2243
      %2245 = vmatpush1.msra.mxu0 %v2244
      %2246 = vmatprep.subr.mxu0 0.0
      %v2247 = vand.u32 %v1727, 4294901760
      %v2248 = vsub.f32 %v1727, %v2247
      %2249 = vmatpush1.msra.mxu0 %v2248
      %2250 = vmatprep.subr.mxu0 0.0
      %v2251 = vand.u32 %v1726, 4294901760
      %v2252 = vsub.f32 %v1726, %v2251
      %2253 = vmatpush1.msra.mxu0 %v2252
      %2254 = vmatprep.subr.mxu0 0.0
      %v2255 = vand.u32 %v1725, 4294901760
      %v2256 = vsub.f32 %v1725, %v2255
      %2257 = vmatpush1.msra.mxu0 %v2256
      %2258 = vmatprep.subr.mxu0 0.0
      %v2259 = vand.u32 %v1724, 4294901760
      %v2260 = vsub.f32 %v1724, %v2259
      %2261 = vmatpush1.msra.mxu0 %v2260
      %2262 = vmatprep.subr.mxu0 0.0
      %v2263 = vand.u32 %v1723, 4294901760
      %v2264 = vsub.f32 %v1723, %v2263
      %2265 = vmatpush1.msra.mxu0 %v2264
      %2266 = vmatprep.subr.mxu0 0.0
      %v2267 = vand.u32 %v1754, 4294901760
      %v2268 = vsub.f32 %v1754, %v2267
      %2269 = vmatpush2.msra.mxu0 %v2268
      %2270 = vmatprep.subr.mxu0 0.0
      %v2271 = vand.u32 %v1753, 4294901760
      %v2272 = vsub.f32 %v1753, %v2271
      %2273 = vmatpush2.msra.mxu0 %v2272
      %2274 = vmatprep.subr.mxu0 0.0
      %v2275 = vand.u32 %v1752, 4294901760
      %v2276 = vsub.f32 %v1752, %v2275
      %2277 = vmatpush2.msra.mxu0 %v2276
      %2278 = vmatprep.subr.mxu0 0.0
      %v2279 = vand.u32 %v1751, 4294901760
      %v2280 = vsub.f32 %v1751, %v2279
      %2281 = vmatpush2.msra.mxu0 %v2280
      %2282 = vmatprep.subr.mxu0 0.0
      %v2283 = vand.u32 %v1750, 4294901760
      %v2284 = vsub.f32 %v1750, %v2283
      %2285 = vmatpush2.msra.mxu0 %v2284
      %2286 = vmatprep.subr.mxu0 0.0
      %v2287 = vand.u32 %v1749, 4294901760
      %v2288 = vsub.f32 %v1749, %v2287
      %2289 = vmatpush2.msra.mxu0 %v2288
      %2290 = vmatprep.subr.mxu0 0.0
      %v2291 = vand.u32 %v1748, 4294901760
      %v2292 = vsub.f32 %v1748, %v2291
      %2293 = vmatpush2.msra.mxu0 %v2292
      %2294 = vmatprep.subr.mxu0 0.0
      %v2295 = vand.u32 %v1747, 4294901760
      %v2296 = vsub.f32 %v1747, %v2295
      %2297 = vmatpush2.msra.mxu0 %v2296
      %2298 = vmatprep.subr.mxu0 0.0
      %v2299 = vand.u32 %v1746, 4294901760
      %v2300 = vsub.f32 %v1746, %v2299
      %2301 = vmatpush2.msra.mxu0 %v2300
      %2302 = vmatprep.subr.mxu0 0.0
      %v2303 = vand.u32 %v1745, 4294901760
      %v2304 = vsub.f32 %v1745, %v2303
      %2305 = vmatpush2.msra.mxu0 %v2304
      %2306 = vmatprep.subr.mxu0 0.0
      %v2307 = vand.u32 %v1744, 4294901760
      %v2308 = vsub.f32 %v1744, %v2307
      %2309 = vmatpush2.msra.mxu0 %v2308
      %2310 = vmatprep.subr.mxu0 0.0
      %v2311 = vand.u32 %v1743, 4294901760
      %v2312 = vsub.f32 %v1743, %v2311
      %2313 = vmatpush2.msra.mxu0 %v2312
      %2314 = vmatprep.subr.mxu0 0.0
      %v2315 = vand.u32 %v1742, 4294901760
      %v2316 = vsub.f32 %v1742, %v2315
      %2317 = vmatpush2.msra.mxu0 %v2316
      %2318 = vmatprep.subr.mxu0 0.0
      %v2319 = vand.u32 %v1741, 4294901760
      %v2320 = vsub.f32 %v1741, %v2319
      %2321 = vmatpush2.msra.mxu0 %v2320
      %2322 = vmatprep.subr.mxu0 0.0
      %v2323 = vand.u32 %v1740, 4294901760
      %v2324 = vsub.f32 %v1740, %v2323
      %2325 = vmatpush2.msra.mxu0 %v2324
      %2326 = vmatprep.subr.mxu0 0.0
      %v2327 = vand.u32 %v1739, 4294901760
      %v2328 = vsub.f32 %v1739, %v2327
      %2329 = vmatpush2.msra.mxu0 %v2328
      %v2330 = vand.u32 %v1771, 4294901760
      %v2331 = vsub.f32 %v1771, %v2330
      %2332 = vmatprep.mubr.f32.mxu0 %v2331
      %v2333 = vand.u32 %v1768, 4294901760
      %v2334 = vsub.f32 %v1768, %v2333
      %2335 = vmatmul.mubr.f32.gmra.mxu0 %v2334
      %v2336 = vpop.f32.mrf.mxu0
      %v2337 = vadd.f32 %v2178, %v2336
      %v2338 = vpop.f32.mrf.mxu0
      %v2339 = vand.u32 %v1775, 4294901760
      %v2340 = vsub.f32 %v1775, %v2339
      %2341 = vmatprep.mubr.f32.mxu0 %v2340
      %v2342 = vand.u32 %v1773, 4294901760
      %v2343 = vsub.f32 %v1773, %v2342
      %2344 = vmatmul.mubr.f32.gmra.mxu0 %v2343
      %v2345 = vpop.f32.mrf.mxu0
      %v2346 = vadd.f32 %v2185, %v2345
      %v2347 = vpop.f32.mrf.mxu0
      %v2348 = vand.u32 %v1779, 4294901760
      %v2349 = vsub.f32 %v1779, %v2348
      %2350 = vmatprep.mubr.f32.mxu0 %v2349
      %v2351 = vand.u32 %v1777, 4294901760
      %v2352 = vsub.f32 %v1777, %v2351
      %2353 = vmatmul.mubr.f32.gmra.mxu0 %v2352
      %v2354 = vpop.f32.mrf.mxu0
      %v2355 = vadd.f32 %v2192, %v2354
      %v2356 = vpop.f32.mrf.mxu0
      %v2357 = vand.u32 %v1783, 4294901760
      %v2358 = vsub.f32 %v1783, %v2357
      %2359 = vmatprep.mubr.f32.mxu0 %v2358
      %v2360 = vand.u32 %v1781, 4294901760
      %v2361 = vsub.f32 %v1781, %v2360
      %2362 = vmatmul.mubr.f32.gmra.mxu0 %v2361
      %v2363 = vpop.f32.mrf.mxu0
      %v2364 = vadd.f32 %v2199, %v2363
      %v2365 = vpop.f32.mrf.mxu0
      %2366 = vdwg.mxu0
      %2367 = vmatprep.subr.mxu0 0.0
      %v2368 = vand.u32 %v1738, 4294901760
      %2369 = vmatpush1.msra.mxu0 %v2368
      %2370 = vmatprep.subr.mxu0 0.0
      %v2371 = vand.u32 %v1737, 4294901760
      %2372 = vmatpush1.msra.mxu0 %v2371
      %2373 = vmatprep.subr.mxu0 0.0
      %v2374 = vand.u32 %v1736, 4294901760
      %2375 = vmatpush1.msra.mxu0 %v2374
      %2376 = vmatprep.subr.mxu0 0.0
      %v2377 = vand.u32 %v1735, 4294901760
      %2378 = vmatpush1.msra.mxu0 %v2377
      %2379 = vmatprep.subr.mxu0 0.0
      %v2380 = vand.u32 %v1734, 4294901760
      %2381 = vmatpush1.msra.mxu0 %v2380
      %2382 = vmatprep.subr.mxu0 0.0
      %v2383 = vand.u32 %v1733, 4294901760
      %2384 = vmatpush1.msra.mxu0 %v2383
      %2385 = vmatprep.subr.mxu0 0.0
      %v2386 = vand.u32 %v1732, 4294901760
      %2387 = vmatpush1.msra.mxu0 %v2386
      %2388 = vmatprep.subr.mxu0 0.0
      %v2389 = vand.u32 %v1731, 4294901760
      %2390 = vmatpush1.msra.mxu0 %v2389
      %2391 = vmatprep.subr.mxu0 0.0
      %v2392 = vand.u32 %v1730, 4294901760
      %2393 = vmatpush1.msra.mxu0 %v2392
      %2394 = vmatprep.subr.mxu0 0.0
      %v2395 = vand.u32 %v1729, 4294901760
      %2396 = vmatpush1.msra.mxu0 %v2395
      %2397 = vmatprep.subr.mxu0 0.0
      %v2398 = vand.u32 %v1728, 4294901760
      %2399 = vmatpush1.msra.mxu0 %v2398
      %2400 = vmatprep.subr.mxu0 0.0
      %v2401 = vand.u32 %v1727, 4294901760
      %2402 = vmatpush1.msra.mxu0 %v2401
      %2403 = vmatprep.subr.mxu0 0.0
      %v2404 = vand.u32 %v1726, 4294901760
      %2405 = vmatpush1.msra.mxu0 %v2404
      %2406 = vmatprep.subr.mxu0 0.0
      %v2407 = vand.u32 %v1725, 4294901760
      %2408 = vmatpush1.msra.mxu0 %v2407
      %2409 = vmatprep.subr.mxu0 0.0
      %v2410 = vand.u32 %v1724, 4294901760
      %2411 = vmatpush1.msra.mxu0 %v2410
      %2412 = vmatprep.subr.mxu0 0.0
      %v2413 = vand.u32 %v1723, 4294901760
      %2414 = vmatpush1.msra.mxu0 %v2413
      %2415 = vmatprep.subr.mxu0 0.0
      %v2416 = vand.u32 %v1754, 4294901760
      %2417 = vmatpush2.msra.mxu0 %v2416
      %2418 = vmatprep.subr.mxu0 0.0
      %v2419 = vand.u32 %v1753, 4294901760
      %2420 = vmatpush2.msra.mxu0 %v2419
      %2421 = vmatprep.subr.mxu0 0.0
      %v2422 = vand.u32 %v1752, 4294901760
      %2423 = vmatpush2.msra.mxu0 %v2422
      %2424 = vmatprep.subr.mxu0 0.0
      %v2425 = vand.u32 %v1751, 4294901760
      %2426 = vmatpush2.msra.mxu0 %v2425
      %2427 = vmatprep.subr.mxu0 0.0
      %v2428 = vand.u32 %v1750, 4294901760
      %2429 = vmatpush2.msra.mxu0 %v2428
      %2430 = vmatprep.subr.mxu0 0.0
      %v2431 = vand.u32 %v1749, 4294901760
      %2432 = vmatpush2.msra.mxu0 %v2431
      %2433 = vmatprep.subr.mxu0 0.0
      %v2434 = vand.u32 %v1748, 4294901760
      %2435 = vmatpush2.msra.mxu0 %v2434
      %2436 = vmatprep.subr.mxu0 0.0
      %v2437 = vand.u32 %v1747, 4294901760
      %2438 = vmatpush2.msra.mxu0 %v2437
      %2439 = vmatprep.subr.mxu0 0.0
      %v2440 = vand.u32 %v1746, 4294901760
      %2441 = vmatpush2.msra.mxu0 %v2440
      %2442 = vmatprep.subr.mxu0 0.0
      %v2443 = vand.u32 %v1745, 4294901760
      %2444 = vmatpush2.msra.mxu0 %v2443
      %2445 = vmatprep.subr.mxu0 0.0
      %v2446 = vand.u32 %v1744, 4294901760
      %2447 = vmatpush2.msra.mxu0 %v2446
      %2448 = vmatprep.subr.mxu0 0.0
      %v2449 = vand.u32 %v1743, 4294901760
      %2450 = vmatpush2.msra.mxu0 %v2449
      %2451 = vmatprep.subr.mxu0 0.0
      %v2452 = vand.u32 %v1742, 4294901760
      %2453 = vmatpush2.msra.mxu0 %v2452
      %2454 = vmatprep.subr.mxu0 0.0
      %v2455 = vand.u32 %v1741, 4294901760
      %2456 = vmatpush2.msra.mxu0 %v2455
      %2457 = vmatprep.subr.mxu0 0.0
      %v2458 = vand.u32 %v1740, 4294901760
      %2459 = vmatpush2.msra.mxu0 %v2458
      %2460 = vmatprep.subr.mxu0 0.0
      %v2461 = vand.u32 %v1739, 4294901760
      %2462 = vmatpush2.msra.mxu0 %v2461
      %v2463 = vand.u32 %v1771, 4294901760
      %v2464 = vsub.f32 %v1771, %v2463
      %v2465 = vand.u32 %v2464, 4294901760
      %2466 = vmatprep.mubr.f32.mxu0 %v2465
      %v2467 = vand.u32 %v1768, 4294901760
      %v2468 = vsub.f32 %v1768, %v2467
      %v2469 = vand.u32 %v2468, 4294901760
      %2470 = vmatmul.mubr.f32.gmra.mxu0 %v2469
      %v2471 = vpop.f32.mrf.mxu0
      %v2472 = vadd.f32 %v2337, %v2471
      %v2473 = vpop.f32.mrf.mxu0
      %v2474 = vand.u32 %v1775, 4294901760
      %v2475 = vsub.f32 %v1775, %v2474
      %v2476 = vand.u32 %v2475, 4294901760
      %2477 = vmatprep.mubr.f32.mxu0 %v2476
      %v2478 = vand.u32 %v1773, 4294901760
      %v2479 = vsub.f32 %v1773, %v2478
      %v2480 = vand.u32 %v2479, 4294901760
      %2481 = vmatmul.mubr.f32.gmra.mxu0 %v2480
      %v2482 = vpop.f32.mrf.mxu0
      %v2483 = vadd.f32 %v2346, %v2482
      %v2484 = vpop.f32.mrf.mxu0
      %v2485 = vand.u32 %v1779, 4294901760
      %v2486 = vsub.f32 %v1779, %v2485
      %v2487 = vand.u32 %v2486, 4294901760
      %2488 = vmatprep.mubr.f32.mxu0 %v2487
      %v2489 = vand.u32 %v1777, 4294901760
      %v2490 = vsub.f32 %v1777, %v2489
      %v2491 = vand.u32 %v2490, 4294901760
      %2492 = vmatmul.mubr.f32.gmra.mxu0 %v2491
      %v2493 = vpop.f32.mrf.mxu0
      %v2494 = vadd.f32 %v2355, %v2493
      %v2495 = vpop.f32.mrf.mxu0
      %v2496 = vand.u32 %v1783, 4294901760
      %v2497 = vsub.f32 %v1783, %v2496
      %v2498 = vand.u32 %v2497, 4294901760
      %2499 = vmatprep.mubr.f32.mxu0 %v2498
      %v2500 = vand.u32 %v1781, 4294901760
      %v2501 = vsub.f32 %v1781, %v2500
      %v2502 = vand.u32 %v2501, 4294901760
      %2503 = vmatmul.mubr.f32.gmra.mxu0 %v2502
      %v2504 = vpop.f32.mrf.mxu0
      %v2505 = vadd.f32 %v2364, %v2504
      %v2506 = vpop.f32.mrf.mxu0
      %2507 = vdwg.mxu0
      %2508 = vmatprep.subr.mxu0 0.0
      %v2509 = vand.u32 %v1738, 4294901760
      %v2510 = vsub.f32 %v1738, %v2509
      %v2511 = vand.u32 %v2510, 4294901760
      %2512 = vmatpush1.msra.mxu0 %v2511
      %2513 = vmatprep.subr.mxu0 0.0
      %v2514 = vand.u32 %v1737, 4294901760
      %v2515 = vsub.f32 %v1737, %v2514
      %v2516 = vand.u32 %v2515, 4294901760
      %2517 = vmatpush1.msra.mxu0 %v2516
      %2518 = vmatprep.subr.mxu0 0.0
      %v2519 = vand.u32 %v1736, 4294901760
      %v2520 = vsub.f32 %v1736, %v2519
      %v2521 = vand.u32 %v2520, 4294901760
      %2522 = vmatpush1.msra.mxu0 %v2521
      %2523 = vmatprep.subr.mxu0 0.0
      %v2524 = vand.u32 %v1735, 4294901760
      %v2525 = vsub.f32 %v1735, %v2524
      %v2526 = vand.u32 %v2525, 4294901760
      %2527 = vmatpush1.msra.mxu0 %v2526
      %2528 = vmatprep.subr.mxu0 0.0
      %v2529 = vand.u32 %v1734, 4294901760
      %v2530 = vsub.f32 %v1734, %v2529
      %v2531 = vand.u32 %v2530, 4294901760
      %2532 = vmatpush1.msra.mxu0 %v2531
      %2533 = vmatprep.subr.mxu0 0.0
      %v2534 = vand.u32 %v1733, 4294901760
      %v2535 = vsub.f32 %v1733, %v2534
      %v2536 = vand.u32 %v2535, 4294901760
      %2537 = vmatpush1.msra.mxu0 %v2536
      %2538 = vmatprep.subr.mxu0 0.0
      %v2539 = vand.u32 %v1732, 4294901760
      %v2540 = vsub.f32 %v1732, %v2539
      %v2541 = vand.u32 %v2540, 4294901760
      %2542 = vmatpush1.msra.mxu0 %v2541
      %2543 = vmatprep.subr.mxu0 0.0
      %v2544 = vand.u32 %v1731, 4294901760
      %v2545 = vsub.f32 %v1731, %v2544
      %v2546 = vand.u32 %v2545, 4294901760
      %2547 = vmatpush1.msra.mxu0 %v2546
      %2548 = vmatprep.subr.mxu0 0.0
      %v2549 = vand.u32 %v1730, 4294901760
      %v2550 = vsub.f32 %v1730, %v2549
      %v2551 = vand.u32 %v2550, 4294901760
      %2552 = vmatpush1.msra.mxu0 %v2551
      %2553 = vmatprep.subr.mxu0 0.0
      %v2554 = vand.u32 %v1729, 4294901760
      %v2555 = vsub.f32 %v1729, %v2554
      %v2556 = vand.u32 %v2555, 4294901760
      %2557 = vmatpush1.msra.mxu0 %v2556
      %2558 = vmatprep.subr.mxu0 0.0
      %v2559 = vand.u32 %v1728, 4294901760
      %v2560 = vsub.f32 %v1728, %v2559
      %v2561 = vand.u32 %v2560, 4294901760
      %2562 = vmatpush1.msra.mxu0 %v2561
      %2563 = vmatprep.subr.mxu0 0.0
      %v2564 = vand.u32 %v1727, 4294901760
      %v2565 = vsub.f32 %v1727, %v2564
      %v2566 = vand.u32 %v2565, 4294901760
      %2567 = vmatpush1.msra.mxu0 %v2566
      %2568 = vmatprep.subr.mxu0 0.0
      %v2569 = vand.u32 %v1726, 4294901760
      %v2570 = vsub.f32 %v1726, %v2569
      %v2571 = vand.u32 %v2570, 4294901760
      %2572 = vmatpush1.msra.mxu0 %v2571
      %2573 = vmatprep.subr.mxu0 0.0
      %v2574 = vand.u32 %v1725, 4294901760
      %v2575 = vsub.f32 %v1725, %v2574
      %v2576 = vand.u32 %v2575, 4294901760
      %2577 = vmatpush1.msra.mxu0 %v2576
      %2578 = vmatprep.subr.mxu0 0.0
      %v2579 = vand.u32 %v1724, 4294901760
      %v2580 = vsub.f32 %v1724, %v2579
      %v2581 = vand.u32 %v2580, 4294901760
      %2582 = vmatpush1.msra.mxu0 %v2581
      %2583 = vmatprep.subr.mxu0 0.0
      %v2584 = vand.u32 %v1723, 4294901760
      %v2585 = vsub.f32 %v1723, %v2584
      %v2586 = vand.u32 %v2585, 4294901760
      %2587 = vmatpush1.msra.mxu0 %v2586
      %2588 = vmatprep.subr.mxu0 0.0
      %v2589 = vand.u32 %v1754, 4294901760
      %v2590 = vsub.f32 %v1754, %v2589
      %v2591 = vand.u32 %v2590, 4294901760
      %2592 = vmatpush2.msra.mxu0 %v2591
      %2593 = vmatprep.subr.mxu0 0.0
      %v2594 = vand.u32 %v1753, 4294901760
      %v2595 = vsub.f32 %v1753, %v2594
      %v2596 = vand.u32 %v2595, 4294901760
      %2597 = vmatpush2.msra.mxu0 %v2596
      %2598 = vmatprep.subr.mxu0 0.0
      %v2599 = vand.u32 %v1752, 4294901760
      %v2600 = vsub.f32 %v1752, %v2599
      %v2601 = vand.u32 %v2600, 4294901760
      %2602 = vmatpush2.msra.mxu0 %v2601
      %2603 = vmatprep.subr.mxu0 0.0
      %v2604 = vand.u32 %v1751, 4294901760
      %v2605 = vsub.f32 %v1751, %v2604
      %v2606 = vand.u32 %v2605, 4294901760
      %2607 = vmatpush2.msra.mxu0 %v2606
      %2608 = vmatprep.subr.mxu0 0.0
      %v2609 = vand.u32 %v1750, 4294901760
      %v2610 = vsub.f32 %v1750, %v2609
      %v2611 = vand.u32 %v2610, 4294901760
      %2612 = vmatpush2.msra.mxu0 %v2611
      %2613 = vmatprep.subr.mxu0 0.0
      %v2614 = vand.u32 %v1749, 4294901760
      %v2615 = vsub.f32 %v1749, %v2614
      %v2616 = vand.u32 %v2615, 4294901760
      %2617 = vmatpush2.msra.mxu0 %v2616
      %2618 = vmatprep.subr.mxu0 0.0
      %v2619 = vand.u32 %v1748, 4294901760
      %v2620 = vsub.f32 %v1748, %v2619
      %v2621 = vand.u32 %v2620, 4294901760
      %2622 = vmatpush2.msra.mxu0 %v2621
      %2623 = vmatprep.subr.mxu0 0.0
      %v2624 = vand.u32 %v1747, 4294901760
      %v2625 = vsub.f32 %v1747, %v2624
      %v2626 = vand.u32 %v2625, 4294901760
      %2627 = vmatpush2.msra.mxu0 %v2626
      %2628 = vmatprep.subr.mxu0 0.0
      %v2629 = vand.u32 %v1746, 4294901760
      %v2630 = vsub.f32 %v1746, %v2629
      %v2631 = vand.u32 %v2630, 4294901760
      %2632 = vmatpush2.msra.mxu0 %v2631
      %2633 = vmatprep.subr.mxu0 0.0
      %v2634 = vand.u32 %v1745, 4294901760
      %v2635 = vsub.f32 %v1745, %v2634
      %v2636 = vand.u32 %v2635, 4294901760
      %2637 = vmatpush2.msra.mxu0 %v2636
      %2638 = vmatprep.subr.mxu0 0.0
      %v2639 = vand.u32 %v1744, 4294901760
      %v2640 = vsub.f32 %v1744, %v2639
      %v2641 = vand.u32 %v2640, 4294901760
      %2642 = vmatpush2.msra.mxu0 %v2641
      %2643 = vmatprep.subr.mxu0 0.0
      %v2644 = vand.u32 %v1743, 4294901760
      %v2645 = vsub.f32 %v1743, %v2644
      %v2646 = vand.u32 %v2645, 4294901760
      %2647 = vmatpush2.msra.mxu0 %v2646
      %2648 = vmatprep.subr.mxu0 0.0
      %v2649 = vand.u32 %v1742, 4294901760
      %v2650 = vsub.f32 %v1742, %v2649
      %v2651 = vand.u32 %v2650, 4294901760
      %2652 = vmatpush2.msra.mxu0 %v2651
      %2653 = vmatprep.subr.mxu0 0.0
      %v2654 = vand.u32 %v1741, 4294901760
      %v2655 = vsub.f32 %v1741, %v2654
      %v2656 = vand.u32 %v2655, 4294901760
      %2657 = vmatpush2.msra.mxu0 %v2656
      %2658 = vmatprep.subr.mxu0 0.0
      %v2659 = vand.u32 %v1740, 4294901760
      %v2660 = vsub.f32 %v1740, %v2659
      %v2661 = vand.u32 %v2660, 4294901760
      %2662 = vmatpush2.msra.mxu0 %v2661
      %2663 = vmatprep.subr.mxu0 0.0
      %v2664 = vand.u32 %v1739, 4294901760
      %v2665 = vsub.f32 %v1739, %v2664
      %v2666 = vand.u32 %v2665, 4294901760
      %2667 = vmatpush2.msra.mxu0 %v2666
      %v2668 = vand.u32 %v1771, 4294901760
      %2669 = vmatprep.mubr.f32.mxu0 %v2668
      %v2670 = vand.u32 %v1768, 4294901760
      %2671 = vmatmul.mubr.f32.gmra.mxu0 %v2670
      %v2672 = vpop.f32.mrf.mxu0
      %v2673 = vadd.f32 %v2472, %v2672
      %v2674 = vpop.f32.mrf.mxu0
      %v2675 = vand.u32 %v1775, 4294901760
      %2676 = vmatprep.mubr.f32.mxu0 %v2675
      %v2677 = vand.u32 %v1773, 4294901760
      %2678 = vmatmul.mubr.f32.gmra.mxu0 %v2677
      %v2679 = vpop.f32.mrf.mxu0
      %v2680 = vadd.f32 %v2483, %v2679
      %v2681 = vpop.f32.mrf.mxu0
      %v2682 = vand.u32 %v1779, 4294901760
      %2683 = vmatprep.mubr.f32.mxu0 %v2682
      %v2684 = vand.u32 %v1777, 4294901760
      %2685 = vmatmul.mubr.f32.gmra.mxu0 %v2684
      %v2686 = vpop.f32.mrf.mxu0
      %v2687 = vadd.f32 %v2494, %v2686
      %v2688 = vpop.f32.mrf.mxu0
      %v2689 = vand.u32 %v1783, 4294901760
      %2690 = vmatprep.mubr.f32.mxu0 %v2689
      %v2691 = vand.u32 %v1781, 4294901760
      %2692 = vmatmul.mubr.f32.gmra.mxu0 %v2691
      %v2693 = vpop.f32.mrf.mxu0
      %v2694 = vadd.f32 %v2505, %v2693
      %v2695 = vpop.f32.mrf.mxu0
      %2696 = vdwg.mxu0
      %2697 = vmatprep.subr.mxu0 0.0
      %v2698 = vand.u32 %v1738, 4294901760
      %2699 = vmatpush1.msra.mxu0 %v2698
      %2700 = vmatprep.subr.mxu0 0.0
      %v2701 = vand.u32 %v1737, 4294901760
      %2702 = vmatpush1.msra.mxu0 %v2701
      %2703 = vmatprep.subr.mxu0 0.0
      %v2704 = vand.u32 %v1736, 4294901760
      %2705 = vmatpush1.msra.mxu0 %v2704
      %2706 = vmatprep.subr.mxu0 0.0
      %v2707 = vand.u32 %v1735, 4294901760
      %2708 = vmatpush1.msra.mxu0 %v2707
      %2709 = vmatprep.subr.mxu0 0.0
      %v2710 = vand.u32 %v1734, 4294901760
      %2711 = vmatpush1.msra.mxu0 %v2710
      %2712 = vmatprep.subr.mxu0 0.0
      %v2713 = vand.u32 %v1733, 4294901760
      %2714 = vmatpush1.msra.mxu0 %v2713
      %2715 = vmatprep.subr.mxu0 0.0
      %v2716 = vand.u32 %v1732, 4294901760
      %2717 = vmatpush1.msra.mxu0 %v2716
      %2718 = vmatprep.subr.mxu0 0.0
      %v2719 = vand.u32 %v1731, 4294901760
      %2720 = vmatpush1.msra.mxu0 %v2719
      %2721 = vmatprep.subr.mxu0 0.0
      %v2722 = vand.u32 %v1730, 4294901760
      %2723 = vmatpush1.msra.mxu0 %v2722
      %2724 = vmatprep.subr.mxu0 0.0
      %v2725 = vand.u32 %v1729, 4294901760
      %2726 = vmatpush1.msra.mxu0 %v2725
      %2727 = vmatprep.subr.mxu0 0.0
      %v2728 = vand.u32 %v1728, 4294901760
      %2729 = vmatpush1.msra.mxu0 %v2728
      %2730 = vmatprep.subr.mxu0 0.0
      %v2731 = vand.u32 %v1727, 4294901760
      %2732 = vmatpush1.msra.mxu0 %v2731
      %2733 = vmatprep.subr.mxu0 0.0
      %v2734 = vand.u32 %v1726, 4294901760
      %2735 = vmatpush1.msra.mxu0 %v2734
      %2736 = vmatprep.subr.mxu0 0.0
      %v2737 = vand.u32 %v1725, 4294901760
      %2738 = vmatpush1.msra.mxu0 %v2737
      %2739 = vmatprep.subr.mxu0 0.0
      %v2740 = vand.u32 %v1724, 4294901760
      %2741 = vmatpush1.msra.mxu0 %v2740
      %2742 = vmatprep.subr.mxu0 0.0
      %v2743 = vand.u32 %v1723, 4294901760
      %2744 = vmatpush1.msra.mxu0 %v2743
      %2745 = vmatprep.subr.mxu0 0.0
      %v2746 = vand.u32 %v1754, 4294901760
      %2747 = vmatpush2.msra.mxu0 %v2746
      %2748 = vmatprep.subr.mxu0 0.0
      %v2749 = vand.u32 %v1753, 4294901760
      %2750 = vmatpush2.msra.mxu0 %v2749
      %2751 = vmatprep.subr.mxu0 0.0
      %v2752 = vand.u32 %v1752, 4294901760
      %2753 = vmatpush2.msra.mxu0 %v2752
      %2754 = vmatprep.subr.mxu0 0.0
      %v2755 = vand.u32 %v1751, 4294901760
      %2756 = vmatpush2.msra.mxu0 %v2755
      %2757 = vmatprep.subr.mxu0 0.0
      %v2758 = vand.u32 %v1750, 4294901760
      %2759 = vmatpush2.msra.mxu0 %v2758
      %2760 = vmatprep.subr.mxu0 0.0
      %v2761 = vand.u32 %v1749, 4294901760
      %2762 = vmatpush2.msra.mxu0 %v2761
      %2763 = vmatprep.subr.mxu0 0.0
      %v2764 = vand.u32 %v1748, 4294901760
      %2765 = vmatpush2.msra.mxu0 %v2764
      %2766 = vmatprep.subr.mxu0 0.0
      %v2767 = vand.u32 %v1747, 4294901760
      %2768 = vmatpush2.msra.mxu0 %v2767
      %2769 = vmatprep.subr.mxu0 0.0
      %v2770 = vand.u32 %v1746, 4294901760
      %2771 = vmatpush2.msra.mxu0 %v2770
      %2772 = vmatprep.subr.mxu0 0.0
      %v2773 = vand.u32 %v1745, 4294901760
      %2774 = vmatpush2.msra.mxu0 %v2773
      %2775 = vmatprep.subr.mxu0 0.0
      %v2776 = vand.u32 %v1744, 4294901760
      %2777 = vmatpush2.msra.mxu0 %v2776
      %2778 = vmatprep.subr.mxu0 0.0
      %v2779 = vand.u32 %v1743, 4294901760
      %2780 = vmatpush2.msra.mxu0 %v2779
      %2781 = vmatprep.subr.mxu0 0.0
      %v2782 = vand.u32 %v1742, 4294901760
      %2783 = vmatpush2.msra.mxu0 %v2782
      %2784 = vmatprep.subr.mxu0 0.0
      %v2785 = vand.u32 %v1741, 4294901760
      %2786 = vmatpush2.msra.mxu0 %v2785
      %2787 = vmatprep.subr.mxu0 0.0
      %v2788 = vand.u32 %v1740, 4294901760
      %2789 = vmatpush2.msra.mxu0 %v2788
      %2790 = vmatprep.subr.mxu0 0.0
      %v2791 = vand.u32 %v1739, 4294901760
      %2792 = vmatpush2.msra.mxu0 %v2791
      %v2793 = vand.u32 %v1771, 4294901760
      %2794 = vmatprep.mubr.f32.mxu0 %v2793
      %v2795 = vand.u32 %v1768, 4294901760
      %2796 = vmatmul.mubr.f32.gmra.mxu0 %v2795
      %v2797 = vpop.f32.mrf.mxu0
      %v2798 = vadd.f32 %v2673, %v2797
      %v2799 = vpop.f32.mrf.mxu0
      %v2800 = vand.u32 %v1775, 4294901760
      %2801 = vmatprep.mubr.f32.mxu0 %v2800
      %v2802 = vand.u32 %v1773, 4294901760
      %2803 = vmatmul.mubr.f32.gmra.mxu0 %v2802
      %v2804 = vpop.f32.mrf.mxu0
      %v2805 = vadd.f32 %v2680, %v2804
      %v2806 = vpop.f32.mrf.mxu0
      %v2807 = vand.u32 %v1779, 4294901760
      %2808 = vmatprep.mubr.f32.mxu0 %v2807
      %v2809 = vand.u32 %v1777, 4294901760
      %2810 = vmatmul.mubr.f32.gmra.mxu0 %v2809
      %v2811 = vpop.f32.mrf.mxu0
      %v2812 = vadd.f32 %v2687, %v2811
      %v2813 = vpop.f32.mrf.mxu0
      %v2814 = vand.u32 %v1783, 4294901760
      %2815 = vmatprep.mubr.f32.mxu0 %v2814
      %v2816 = vand.u32 %v1781, 4294901760
      %2817 = vmatmul.mubr.f32.gmra.mxu0 %v2816
      %v2818 = vpop.f32.mrf.mxu0
      %v2819 = vadd.f32 %v2694, %v2818
      %v2820 = vpop.f32.mrf.mxu0
      %2821 = vdwg.mxu0
      %2822 = vmatprep.subr.mxu0 0.0
      %v2823 = vand.u32 %v1701, 4294901760
      %2824 = vmatpush1.msra.mxu0 %v2823
      %2825 = vmatprep.subr.mxu0 0.0
      %v2826 = vand.u32 %v1700, 4294901760
      %2827 = vmatpush1.msra.mxu0 %v2826
      %2828 = vmatprep.subr.mxu0 0.0
      %v2829 = vand.u32 %v1699, 4294901760
      %2830 = vmatpush1.msra.mxu0 %v2829
      %2831 = vmatprep.subr.mxu0 0.0
      %v2832 = vand.u32 %v1698, 4294901760
      %2833 = vmatpush1.msra.mxu0 %v2832
      %2834 = vmatprep.subr.mxu0 0.0
      %v2835 = vand.u32 %v1697, 4294901760
      %2836 = vmatpush1.msra.mxu0 %v2835
      %2837 = vmatprep.subr.mxu0 0.0
      %v2838 = vand.u32 %v1696, 4294901760
      %2839 = vmatpush1.msra.mxu0 %v2838
      %2840 = vmatprep.subr.mxu0 0.0
      %v2841 = vand.u32 %v1695, 4294901760
      %2842 = vmatpush1.msra.mxu0 %v2841
      %2843 = vmatprep.subr.mxu0 0.0
      %v2844 = vand.u32 %v1694, 4294901760
      %2845 = vmatpush1.msra.mxu0 %v2844
      %2846 = vmatprep.subr.mxu0 0.0
      %v2847 = vand.u32 %v1693, 4294901760
      %2848 = vmatpush1.msra.mxu0 %v2847
      %2849 = vmatprep.subr.mxu0 0.0
      %v2850 = vand.u32 %v1692, 4294901760
      %2851 = vmatpush1.msra.mxu0 %v2850
      %2852 = vmatprep.subr.mxu0 0.0
      %v2853 = vand.u32 %v1691, 4294901760
      %2854 = vmatpush1.msra.mxu0 %v2853
      %2855 = vmatprep.subr.mxu0 0.0
      %v2856 = vand.u32 %v1690, 4294901760
      %2857 = vmatpush1.msra.mxu0 %v2856
      %2858 = vmatprep.subr.mxu0 0.0
      %v2859 = vand.u32 %v1689, 4294901760
      %2860 = vmatpush1.msra.mxu0 %v2859
      %2861 = vmatprep.subr.mxu0 0.0
      %v2862 = vand.u32 %v1688, 4294901760
      %2863 = vmatpush1.msra.mxu0 %v2862
      %2864 = vmatprep.subr.mxu0 0.0
      %v2865 = vand.u32 %v1687, 4294901760
      %2866 = vmatpush1.msra.mxu0 %v2865
      %2867 = vmatprep.subr.mxu0 0.0
      %v2868 = vand.u32 %v1686, 4294901760
      %2869 = vmatpush1.msra.mxu0 %v2868
      %2870 = vmatprep.subr.mxu0 0.0
      %v2871 = vand.u32 %v1717, 4294901760
      %2872 = vmatpush2.msra.mxu0 %v2871
      %2873 = vmatprep.subr.mxu0 0.0
      %v2874 = vand.u32 %v1716, 4294901760
      %2875 = vmatpush2.msra.mxu0 %v2874
      %2876 = vmatprep.subr.mxu0 0.0
      %v2877 = vand.u32 %v1715, 4294901760
      %2878 = vmatpush2.msra.mxu0 %v2877
      %2879 = vmatprep.subr.mxu0 0.0
      %v2880 = vand.u32 %v1714, 4294901760
      %2881 = vmatpush2.msra.mxu0 %v2880
      %2882 = vmatprep.subr.mxu0 0.0
      %v2883 = vand.u32 %v1713, 4294901760
      %2884 = vmatpush2.msra.mxu0 %v2883
      %2885 = vmatprep.subr.mxu0 0.0
      %v2886 = vand.u32 %v1712, 4294901760
      %2887 = vmatpush2.msra.mxu0 %v2886
      %2888 = vmatprep.subr.mxu0 0.0
      %v2889 = vand.u32 %v1711, 4294901760
      %2890 = vmatpush2.msra.mxu0 %v2889
      %2891 = vmatprep.subr.mxu0 0.0
      %v2892 = vand.u32 %v1710, 4294901760
      %2893 = vmatpush2.msra.mxu0 %v2892
      %2894 = vmatprep.subr.mxu0 0.0
      %v2895 = vand.u32 %v1709, 4294901760
      %2896 = vmatpush2.msra.mxu0 %v2895
      %2897 = vmatprep.subr.mxu0 0.0
      %v2898 = vand.u32 %v1708, 4294901760
      %2899 = vmatpush2.msra.mxu0 %v2898
      %2900 = vmatprep.subr.mxu0 0.0
      %v2901 = vand.u32 %v1707, 4294901760
      %2902 = vmatpush2.msra.mxu0 %v2901
      %2903 = vmatprep.subr.mxu0 0.0
      %v2904 = vand.u32 %v1706, 4294901760
      %2905 = vmatpush2.msra.mxu0 %v2904
      %2906 = vmatprep.subr.mxu0 0.0
      %v2907 = vand.u32 %v1705, 4294901760
      %2908 = vmatpush2.msra.mxu0 %v2907
      %2909 = vmatprep.subr.mxu0 0.0
      %v2910 = vand.u32 %v1704, 4294901760
      %2911 = vmatpush2.msra.mxu0 %v2910
      %2912 = vmatprep.subr.mxu0 0.0
      %v2913 = vand.u32 %v1703, 4294901760
      %2914 = vmatpush2.msra.mxu0 %v2913
      %2915 = vmatprep.subr.mxu0 0.0
      %v2916 = vand.u32 %v1702, 4294901760
      %2917 = vmatpush2.msra.mxu0 %v2916
      %v2918 = vand.u32 %v1679, 4294901760
      %v2919 = vsub.f32 %v1679, %v2918
      %v2920 = vand.u32 %v2919, 4294901760
      %v2921 = vsub.f32 %v2919, %v2920
      %v2922 = vand.u32 %v2921, 4294901760
      %2923 = vmatprep.mubr.f32.mxu0 %v2922
      %v2924 = vand.u32 %v1678, 4294901760
      %v2925 = vsub.f32 %v1678, %v2924
      %v2926 = vand.u32 %v2925, 4294901760
      %v2927 = vsub.f32 %v2925, %v2926
      %v2928 = vand.u32 %v2927, 4294901760
      %2929 = vmatmul.mubr.f32.gmra.mxu0 %v2928
      %v2930 = vpop.f32.mrf.mxu0
      %v2931 = vadd.f32 %v2798, %v2930
      %v2932 = vpop.f32.mrf.mxu0
      %v2933 = vand.u32 %v1681, 4294901760
      %v2934 = vsub.f32 %v1681, %v2933
      %v2935 = vand.u32 %v2934, 4294901760
      %v2936 = vsub.f32 %v2934, %v2935
      %v2937 = vand.u32 %v2936, 4294901760
      %2938 = vmatprep.mubr.f32.mxu0 %v2937
      %v2939 = vand.u32 %v1680, 4294901760
      %v2940 = vsub.f32 %v1680, %v2939
      %v2941 = vand.u32 %v2940, 4294901760
      %v2942 = vsub.f32 %v2940, %v2941
      %v2943 = vand.u32 %v2942, 4294901760
      %2944 = vmatmul.mubr.f32.gmra.mxu0 %v2943
      %v2945 = vpop.f32.mrf.mxu0
      %v2946 = vadd.f32 %v2805, %v2945
      %v2947 = vpop.f32.mrf.mxu0
      %v2948 = vand.u32 %v1683, 4294901760
      %v2949 = vsub.f32 %v1683, %v2948
      %v2950 = vand.u32 %v2949, 4294901760
      %v2951 = vsub.f32 %v2949, %v2950
      %v2952 = vand.u32 %v2951, 4294901760
      %2953 = vmatprep.mubr.f32.mxu0 %v2952
      %v2954 = vand.u32 %v1682, 4294901760
      %v2955 = vsub.f32 %v1682, %v2954
      %v2956 = vand.u32 %v2955, 4294901760
      %v2957 = vsub.f32 %v2955, %v2956
      %v2958 = vand.u32 %v2957, 4294901760
      %2959 = vmatmul.mubr.f32.gmra.mxu0 %v2958
      %v2960 = vpop.f32.mrf.mxu0
      %v2961 = vadd.f32 %v2812, %v2960
      %v2962 = vpop.f32.mrf.mxu0
      %v2963 = vand.u32 %v1685, 4294901760
      %v2964 = vsub.f32 %v1685, %v2963
      %v2965 = vand.u32 %v2964, 4294901760
      %v2966 = vsub.f32 %v2964, %v2965
      %v2967 = vand.u32 %v2966, 4294901760
      %2968 = vmatprep.mubr.f32.mxu0 %v2967
      %v2969 = vand.u32 %v1684, 4294901760
      %v2970 = vsub.f32 %v1684, %v2969
      %v2971 = vand.u32 %v2970, 4294901760
      %v2972 = vsub.f32 %v2970, %v2971
      %v2973 = vand.u32 %v2972, 4294901760
      %2974 = vmatmul.mubr.f32.gmra.mxu0 %v2973
      %v2975 = vpop.f32.mrf.mxu0
      %v2976 = vadd.f32 %v2819, %v2975
      %v2977 = vpop.f32.mrf.mxu0
      %2978 = vdwg.mxu0
      %2979 = vmatprep.subr.mxu0 0.0
      %v2980 = vand.u32 %v1701, 4294901760
      %v2981 = vsub.f32 %v1701, %v2980
      %v2982 = vand.u32 %v2981, 4294901760
      %v2983 = vsub.f32 %v2981, %v2982
      %v2984 = vand.u32 %v2983, 4294901760
      %2985 = vmatpush1.msra.mxu0 %v2984
      %2986 = vmatprep.subr.mxu0 0.0
      %v2987 = vand.u32 %v1700, 4294901760
      %v2988 = vsub.f32 %v1700, %v2987
      %v2989 = vand.u32 %v2988, 4294901760
      %v2990 = vsub.f32 %v2988, %v2989
      %v2991 = vand.u32 %v2990, 4294901760
      %2992 = vmatpush1.msra.mxu0 %v2991
      %2993 = vmatprep.subr.mxu0 0.0
      %v2994 = vand.u32 %v1699, 4294901760
      %v2995 = vsub.f32 %v1699, %v2994
      %v2996 = vand.u32 %v2995, 4294901760
      %v2997 = vsub.f32 %v2995, %v2996
      %v2998 = vand.u32 %v2997, 4294901760
      %2999 = vmatpush1.msra.mxu0 %v2998
      %3000 = vmatprep.subr.mxu0 0.0
      %v3001 = vand.u32 %v1698, 4294901760
      %v3002 = vsub.f32 %v1698, %v3001
      %v3003 = vand.u32 %v3002, 4294901760
      %v3004 = vsub.f32 %v3002, %v3003
      %v3005 = vand.u32 %v3004, 4294901760
      %3006 = vmatpush1.msra.mxu0 %v3005
      %3007 = vmatprep.subr.mxu0 0.0
      %v3008 = vand.u32 %v1697, 4294901760
      %v3009 = vsub.f32 %v1697, %v3008
      %v3010 = vand.u32 %v3009, 4294901760
      %v3011 = vsub.f32 %v3009, %v3010
      %v3012 = vand.u32 %v3011, 4294901760
      %3013 = vmatpush1.msra.mxu0 %v3012
      %3014 = vmatprep.subr.mxu0 0.0
      %v3015 = vand.u32 %v1696, 4294901760
      %v3016 = vsub.f32 %v1696, %v3015
      %v3017 = vand.u32 %v3016, 4294901760
      %v3018 = vsub.f32 %v3016, %v3017
      %v3019 = vand.u32 %v3018, 4294901760
      %3020 = vmatpush1.msra.mxu0 %v3019
      %3021 = vmatprep.subr.mxu0 0.0
      %v3022 = vand.u32 %v1695, 4294901760
      %v3023 = vsub.f32 %v1695, %v3022
      %v3024 = vand.u32 %v3023, 4294901760
      %v3025 = vsub.f32 %v3023, %v3024
      %v3026 = vand.u32 %v3025, 4294901760
      %3027 = vmatpush1.msra.mxu0 %v3026
      %3028 = vmatprep.subr.mxu0 0.0
      %v3029 = vand.u32 %v1694, 4294901760
      %v3030 = vsub.f32 %v1694, %v3029
      %v3031 = vand.u32 %v3030, 4294901760
      %v3032 = vsub.f32 %v3030, %v3031
      %v3033 = vand.u32 %v3032, 4294901760
      %3034 = vmatpush1.msra.mxu0 %v3033
      %3035 = vmatprep.subr.mxu0 0.0
      %v3036 = vand.u32 %v1693, 4294901760
      %v3037 = vsub.f32 %v1693, %v3036
      %v3038 = vand.u32 %v3037, 4294901760
      %v3039 = vsub.f32 %v3037, %v3038
      %v3040 = vand.u32 %v3039, 4294901760
      %3041 = vmatpush1.msra.mxu0 %v3040
      %3042 = vmatprep.subr.mxu0 0.0
      %v3043 = vand.u32 %v1692, 4294901760
      %v3044 = vsub.f32 %v1692, %v3043
      %v3045 = vand.u32 %v3044, 4294901760
      %v3046 = vsub.f32 %v3044, %v3045
      %v3047 = vand.u32 %v3046, 4294901760
      %3048 = vmatpush1.msra.mxu0 %v3047
      %3049 = vmatprep.subr.mxu0 0.0
      %v3050 = vand.u32 %v1691, 4294901760
      %v3051 = vsub.f32 %v1691, %v3050
      %v3052 = vand.u32 %v3051, 4294901760
      %v3053 = vsub.f32 %v3051, %v3052
      %v3054 = vand.u32 %v3053, 4294901760
      %3055 = vmatpush1.msra.mxu0 %v3054
      %3056 = vmatprep.subr.mxu0 0.0
      %v3057 = vand.u32 %v1690, 4294901760
      %v3058 = vsub.f32 %v1690, %v3057
      %v3059 = vand.u32 %v3058, 4294901760
      %v3060 = vsub.f32 %v3058, %v3059
      %v3061 = vand.u32 %v3060, 4294901760
      %3062 = vmatpush1.msra.mxu0 %v3061
      %3063 = vmatprep.subr.mxu0 0.0
      %v3064 = vand.u32 %v1689, 4294901760
      %v3065 = vsub.f32 %v1689, %v3064
      %v3066 = vand.u32 %v3065, 4294901760
      %v3067 = vsub.f32 %v3065, %v3066
      %v3068 = vand.u32 %v3067, 4294901760
      %3069 = vmatpush1.msra.mxu0 %v3068
      %3070 = vmatprep.subr.mxu0 0.0
      %v3071 = vand.u32 %v1688, 4294901760
      %v3072 = vsub.f32 %v1688, %v3071
      %v3073 = vand.u32 %v3072, 4294901760
      %v3074 = vsub.f32 %v3072, %v3073
      %v3075 = vand.u32 %v3074, 4294901760
      %3076 = vmatpush1.msra.mxu0 %v3075
      %3077 = vmatprep.subr.mxu0 0.0
      %v3078 = vand.u32 %v1687, 4294901760
      %v3079 = vsub.f32 %v1687, %v3078
      %v3080 = vand.u32 %v3079, 4294901760
      %v3081 = vsub.f32 %v3079, %v3080
      %v3082 = vand.u32 %v3081, 4294901760
      %3083 = vmatpush1.msra.mxu0 %v3082
      %3084 = vmatprep.subr.mxu0 0.0
      %v3085 = vand.u32 %v1686, 4294901760
      %v3086 = vsub.f32 %v1686, %v3085
      %v3087 = vand.u32 %v3086, 4294901760
      %v3088 = vsub.f32 %v3086, %v3087
      %v3089 = vand.u32 %v3088, 4294901760
      %3090 = vmatpush1.msra.mxu0 %v3089
      %3091 = vmatprep.subr.mxu0 0.0
      %v3092 = vand.u32 %v1717, 4294901760
      %v3093 = vsub.f32 %v1717, %v3092
      %v3094 = vand.u32 %v3093, 4294901760
      %v3095 = vsub.f32 %v3093, %v3094
      %v3096 = vand.u32 %v3095, 4294901760
      %3097 = vmatpush2.msra.mxu0 %v3096
      %3098 = vmatprep.subr.mxu0 0.0
      %v3099 = vand.u32 %v1716, 4294901760
      %v3100 = vsub.f32 %v1716, %v3099
      %v3101 = vand.u32 %v3100, 4294901760
      %v3102 = vsub.f32 %v3100, %v3101
      %v3103 = vand.u32 %v3102, 4294901760
      %3104 = vmatpush2.msra.mxu0 %v3103
      %3105 = vmatprep.subr.mxu0 0.0
      %v3106 = vand.u32 %v1715, 4294901760
      %v3107 = vsub.f32 %v1715, %v3106
      %v3108 = vand.u32 %v3107, 4294901760
      %v3109 = vsub.f32 %v3107, %v3108
      %v3110 = vand.u32 %v3109, 4294901760
      %3111 = vmatpush2.msra.mxu0 %v3110
      %3112 = vmatprep.subr.mxu0 0.0
      %v3113 = vand.u32 %v1714, 4294901760
      %v3114 = vsub.f32 %v1714, %v3113
      %v3115 = vand.u32 %v3114, 4294901760
      %v3116 = vsub.f32 %v3114, %v3115
      %v3117 = vand.u32 %v3116, 4294901760
      %3118 = vmatpush2.msra.mxu0 %v3117
      %3119 = vmatprep.subr.mxu0 0.0
      %v3120 = vand.u32 %v1713, 4294901760
      %v3121 = vsub.f32 %v1713, %v3120
      %v3122 = vand.u32 %v3121, 4294901760
      %v3123 = vsub.f32 %v3121, %v3122
      %v3124 = vand.u32 %v3123, 4294901760
      %3125 = vmatpush2.msra.mxu0 %v3124
      %3126 = vmatprep.subr.mxu0 0.0
      %v3127 = vand.u32 %v1712, 4294901760
      %v3128 = vsub.f32 %v1712, %v3127
      %v3129 = vand.u32 %v3128, 4294901760
      %v3130 = vsub.f32 %v3128, %v3129
      %v3131 = vand.u32 %v3130, 4294901760
      %3132 = vmatpush2.msra.mxu0 %v3131
      %3133 = vmatprep.subr.mxu0 0.0
      %v3134 = vand.u32 %v1711, 4294901760
      %v3135 = vsub.f32 %v1711, %v3134
      %v3136 = vand.u32 %v3135, 4294901760
      %v3137 = vsub.f32 %v3135, %v3136
      %v3138 = vand.u32 %v3137, 4294901760
      %3139 = vmatpush2.msra.mxu0 %v3138
      %3140 = vmatprep.subr.mxu0 0.0
      %v3141 = vand.u32 %v1710, 4294901760
      %v3142 = vsub.f32 %v1710, %v3141
      %v3143 = vand.u32 %v3142, 4294901760
      %v3144 = vsub.f32 %v3142, %v3143
      %v3145 = vand.u32 %v3144, 4294901760
      %3146 = vmatpush2.msra.mxu0 %v3145
      %3147 = vmatprep.subr.mxu0 0.0
      %v3148 = vand.u32 %v1709, 4294901760
      %v3149 = vsub.f32 %v1709, %v3148
      %v3150 = vand.u32 %v3149, 4294901760
      %v3151 = vsub.f32 %v3149, %v3150
      %v3152 = vand.u32 %v3151, 4294901760
      %3153 = vmatpush2.msra.mxu0 %v3152
      %3154 = vmatprep.subr.mxu0 0.0
      %v3155 = vand.u32 %v1708, 4294901760
      %v3156 = vsub.f32 %v1708, %v3155
      %v3157 = vand.u32 %v3156, 4294901760
      %v3158 = vsub.f32 %v3156, %v3157
      %v3159 = vand.u32 %v3158, 4294901760
      %3160 = vmatpush2.msra.mxu0 %v3159
      %3161 = vmatprep.subr.mxu0 0.0
      %v3162 = vand.u32 %v1707, 4294901760
      %v3163 = vsub.f32 %v1707, %v3162
      %v3164 = vand.u32 %v3163, 4294901760
      %v3165 = vsub.f32 %v3163, %v3164
      %v3166 = vand.u32 %v3165, 4294901760
      %3167 = vmatpush2.msra.mxu0 %v3166
      %3168 = vmatprep.subr.mxu0 0.0
      %v3169 = vand.u32 %v1706, 4294901760
      %v3170 = vsub.f32 %v1706, %v3169
      %v3171 = vand.u32 %v3170, 4294901760
      %v3172 = vsub.f32 %v3170, %v3171
      %v3173 = vand.u32 %v3172, 4294901760
      %3174 = vmatpush2.msra.mxu0 %v3173
      %3175 = vmatprep.subr.mxu0 0.0
      %v3176 = vand.u32 %v1705, 4294901760
      %v3177 = vsub.f32 %v1705, %v3176
      %v3178 = vand.u32 %v3177, 4294901760
      %v3179 = vsub.f32 %v3177, %v3178
      %v3180 = vand.u32 %v3179, 4294901760
      %3181 = vmatpush2.msra.mxu0 %v3180
      %3182 = vmatprep.subr.mxu0 0.0
      %v3183 = vand.u32 %v1704, 4294901760
      %v3184 = vsub.f32 %v1704, %v3183
      %v3185 = vand.u32 %v3184, 4294901760
      %v3186 = vsub.f32 %v3184, %v3185
      %v3187 = vand.u32 %v3186, 4294901760
      %3188 = vmatpush2.msra.mxu0 %v3187
      %3189 = vmatprep.subr.mxu0 0.0
      %v3190 = vand.u32 %v1703, 4294901760
      %v3191 = vsub.f32 %v1703, %v3190
      %v3192 = vand.u32 %v3191, 4294901760
      %v3193 = vsub.f32 %v3191, %v3192
      %v3194 = vand.u32 %v3193, 4294901760
      %3195 = vmatpush2.msra.mxu0 %v3194
      %3196 = vmatprep.subr.mxu0 0.0
      %v3197 = vand.u32 %v1702, 4294901760
      %v3198 = vsub.f32 %v1702, %v3197
      %v3199 = vand.u32 %v3198, 4294901760
      %v3200 = vsub.f32 %v3198, %v3199
      %v3201 = vand.u32 %v3200, 4294901760
      %3202 = vmatpush2.msra.mxu0 %v3201
      %v3203 = vand.u32 %v1679, 4294901760
      %3204 = vmatprep.mubr.f32.mxu0 %v3203
      %v3205 = vand.u32 %v1678, 4294901760
      %3206 = vmatmul.mubr.f32.gmra.mxu0 %v3205
      %v3207 = vpop.f32.mrf.mxu0
      %v3208 = vadd.f32 %v2931, %v3207
      %v3209 = vpop.f32.mrf.mxu0
      %v3210 = vand.u32 %v1681, 4294901760
      %3211 = vmatprep.mubr.f32.mxu0 %v3210
      %v3212 = vand.u32 %v1680, 4294901760
      %3213 = vmatmul.mubr.f32.gmra.mxu0 %v3212
      %v3214 = vpop.f32.mrf.mxu0
      %v3215 = vadd.f32 %v2946, %v3214
      %v3216 = vpop.f32.mrf.mxu0
      %v3217 = vand.u32 %v1683, 4294901760
      %3218 = vmatprep.mubr.f32.mxu0 %v3217
      %v3219 = vand.u32 %v1682, 4294901760
      %3220 = vmatmul.mubr.f32.gmra.mxu0 %v3219
      %v3221 = vpop.f32.mrf.mxu0
      %v3222 = vadd.f32 %v2961, %v3221
      %v3223 = vpop.f32.mrf.mxu0
      %v3224 = vand.u32 %v1685, 4294901760
      %3225 = vmatprep.mubr.f32.mxu0 %v3224
      %v3226 = vand.u32 %v1684, 4294901760
      %3227 = vmatmul.mubr.f32.gmra.mxu0 %v3226
      %v3228 = vpop.f32.mrf.mxu0
      %v3229 = vadd.f32 %v2976, %v3228
      %v3230 = vpop.f32.mrf.mxu0
      %3231 = vdwg.mxu0
      %3232 = vmatprep.subr.mxu0 0.0
      %v3233 = vand.u32 %v1701, 4294901760
      %v3234 = vsub.f32 %v1701, %v3233
      %3235 = vmatpush1.msra.mxu0 %v3234
      %3236 = vmatprep.subr.mxu0 0.0
      %v3237 = vand.u32 %v1700, 4294901760
      %v3238 = vsub.f32 %v1700, %v3237
      %3239 = vmatpush1.msra.mxu0 %v3238
      %3240 = vmatprep.subr.mxu0 0.0
      %v3241 = vand.u32 %v1699, 4294901760
      %v3242 = vsub.f32 %v1699, %v3241
      %3243 = vmatpush1.msra.mxu0 %v3242
      %3244 = vmatprep.subr.mxu0 0.0
      %v3245 = vand.u32 %v1698, 4294901760
      %v3246 = vsub.f32 %v1698, %v3245
      %3247 = vmatpush1.msra.mxu0 %v3246
      %3248 = vmatprep.subr.mxu0 0.0
      %v3249 = vand.u32 %v1697, 4294901760
      %v3250 = vsub.f32 %v1697, %v3249
      %3251 = vmatpush1.msra.mxu0 %v3250
      %3252 = vmatprep.subr.mxu0 0.0
      %v3253 = vand.u32 %v1696, 4294901760
      %v3254 = vsub.f32 %v1696, %v3253
      %3255 = vmatpush1.msra.mxu0 %v3254
      %3256 = vmatprep.subr.mxu0 0.0
      %v3257 = vand.u32 %v1695, 4294901760
      %v3258 = vsub.f32 %v1695, %v3257
      %3259 = vmatpush1.msra.mxu0 %v3258
      %3260 = vmatprep.subr.mxu0 0.0
      %v3261 = vand.u32 %v1694, 4294901760
      %v3262 = vsub.f32 %v1694, %v3261
      %3263 = vmatpush1.msra.mxu0 %v3262
      %3264 = vmatprep.subr.mxu0 0.0
      %v3265 = vand.u32 %v1693, 4294901760
      %v3266 = vsub.f32 %v1693, %v3265
      %3267 = vmatpush1.msra.mxu0 %v3266
      %3268 = vmatprep.subr.mxu0 0.0
      %v3269 = vand.u32 %v1692, 4294901760
      %v3270 = vsub.f32 %v1692, %v3269
      %3271 = vmatpush1.msra.mxu0 %v3270
      %3272 = vmatprep.subr.mxu0 0.0
      %v3273 = vand.u32 %v1691, 4294901760
      %v3274 = vsub.f32 %v1691, %v3273
      %3275 = vmatpush1.msra.mxu0 %v3274
      %3276 = vmatprep.subr.mxu0 0.0
      %v3277 = vand.u32 %v1690, 4294901760
      %v3278 = vsub.f32 %v1690, %v3277
      %3279 = vmatpush1.msra.mxu0 %v3278
      %3280 = vmatprep.subr.mxu0 0.0
      %v3281 = vand.u32 %v1689, 4294901760
      %v3282 = vsub.f32 %v1689, %v3281
      %3283 = vmatpush1.msra.mxu0 %v3282
      %3284 = vmatprep.subr.mxu0 0.0
      %v3285 = vand.u32 %v1688, 4294901760
      %v3286 = vsub.f32 %v1688, %v3285
      %3287 = vmatpush1.msra.mxu0 %v3286
      %3288 = vmatprep.subr.mxu0 0.0
      %v3289 = vand.u32 %v1687, 4294901760
      %v3290 = vsub.f32 %v1687, %v3289
      %3291 = vmatpush1.msra.mxu0 %v3290
      %3292 = vmatprep.subr.mxu0 0.0
      %v3293 = vand.u32 %v1686, 4294901760
      %v3294 = vsub.f32 %v1686, %v3293
      %3295 = vmatpush1.msra.mxu0 %v3294
      %3296 = vmatprep.subr.mxu0 0.0
      %v3297 = vand.u32 %v1717, 4294901760
      %v3298 = vsub.f32 %v1717, %v3297
      %3299 = vmatpush2.msra.mxu0 %v3298
      %3300 = vmatprep.subr.mxu0 0.0
      %v3301 = vand.u32 %v1716, 4294901760
      %v3302 = vsub.f32 %v1716, %v3301
      %3303 = vmatpush2.msra.mxu0 %v3302
      %3304 = vmatprep.subr.mxu0 0.0
      %v3305 = vand.u32 %v1715, 4294901760
      %v3306 = vsub.f32 %v1715, %v3305
      %3307 = vmatpush2.msra.mxu0 %v3306
      %3308 = vmatprep.subr.mxu0 0.0
      %v3309 = vand.u32 %v1714, 4294901760
      %v3310 = vsub.f32 %v1714, %v3309
      %3311 = vmatpush2.msra.mxu0 %v3310
      %3312 = vmatprep.subr.mxu0 0.0
      %v3313 = vand.u32 %v1713, 4294901760
      %v3314 = vsub.f32 %v1713, %v3313
      %3315 = vmatpush2.msra.mxu0 %v3314
      %3316 = vmatprep.subr.mxu0 0.0
      %v3317 = vand.u32 %v1712, 4294901760
      %v3318 = vsub.f32 %v1712, %v3317
      %3319 = vmatpush2.msra.mxu0 %v3318
      %3320 = vmatprep.subr.mxu0 0.0
      %v3321 = vand.u32 %v1711, 4294901760
      %v3322 = vsub.f32 %v1711, %v3321
      %3323 = vmatpush2.msra.mxu0 %v3322
      %3324 = vmatprep.subr.mxu0 0.0
      %v3325 = vand.u32 %v1710, 4294901760
      %v3326 = vsub.f32 %v1710, %v3325
      %3327 = vmatpush2.msra.mxu0 %v3326
      %3328 = vmatprep.subr.mxu0 0.0
      %v3329 = vand.u32 %v1709, 4294901760
      %v3330 = vsub.f32 %v1709, %v3329
      %3331 = vmatpush2.msra.mxu0 %v3330
      %3332 = vmatprep.subr.mxu0 0.0
      %v3333 = vand.u32 %v1708, 4294901760
      %v3334 = vsub.f32 %v1708, %v3333
      %3335 = vmatpush2.msra.mxu0 %v3334
      %3336 = vmatprep.subr.mxu0 0.0
      %v3337 = vand.u32 %v1707, 4294901760
      %v3338 = vsub.f32 %v1707, %v3337
      %3339 = vmatpush2.msra.mxu0 %v3338
      %3340 = vmatprep.subr.mxu0 0.0
      %v3341 = vand.u32 %v1706, 4294901760
      %v3342 = vsub.f32 %v1706, %v3341
      %3343 = vmatpush2.msra.mxu0 %v3342
      %3344 = vmatprep.subr.mxu0 0.0
      %v3345 = vand.u32 %v1705, 4294901760
      %v3346 = vsub.f32 %v1705, %v3345
      %3347 = vmatpush2.msra.mxu0 %v3346
      %3348 = vmatprep.subr.mxu0 0.0
      %v3349 = vand.u32 %v1704, 4294901760
      %v3350 = vsub.f32 %v1704, %v3349
      %3351 = vmatpush2.msra.mxu0 %v3350
      %3352 = vmatprep.subr.mxu0 0.0
      %v3353 = vand.u32 %v1703, 4294901760
      %v3354 = vsub.f32 %v1703, %v3353
      %3355 = vmatpush2.msra.mxu0 %v3354
      %3356 = vmatprep.subr.mxu0 0.0
      %v3357 = vand.u32 %v1702, 4294901760
      %v3358 = vsub.f32 %v1702, %v3357
      %3359 = vmatpush2.msra.mxu0 %v3358
      %v3360 = vand.u32 %v1679, 4294901760
      %v3361 = vsub.f32 %v1679, %v3360
      %3362 = vmatprep.mubr.f32.mxu0 %v3361
      %v3363 = vand.u32 %v1678, 4294901760
      %v3364 = vsub.f32 %v1678, %v3363
      %3365 = vmatmul.mubr.f32.gmra.mxu0 %v3364
      %v3366 = vpop.f32.mrf.mxu0
      %v3367 = vadd.f32 %v3208, %v3366
      %v3368 = vpop.f32.mrf.mxu0
      %v3369 = vand.u32 %v1681, 4294901760
      %v3370 = vsub.f32 %v1681, %v3369
      %3371 = vmatprep.mubr.f32.mxu0 %v3370
      %v3372 = vand.u32 %v1680, 4294901760
      %v3373 = vsub.f32 %v1680, %v3372
      %3374 = vmatmul.mubr.f32.gmra.mxu0 %v3373
      %v3375 = vpop.f32.mrf.mxu0
      %v3376 = vadd.f32 %v3215, %v3375
      %v3377 = vpop.f32.mrf.mxu0
      %v3378 = vand.u32 %v1683, 4294901760
      %v3379 = vsub.f32 %v1683, %v3378
      %3380 = vmatprep.mubr.f32.mxu0 %v3379
      %v3381 = vand.u32 %v1682, 4294901760
      %v3382 = vsub.f32 %v1682, %v3381
      %3383 = vmatmul.mubr.f32.gmra.mxu0 %v3382
      %v3384 = vpop.f32.mrf.mxu0
      %v3385 = vadd.f32 %v3222, %v3384
      %v3386 = vpop.f32.mrf.mxu0
      %v3387 = vand.u32 %v1685, 4294901760
      %v3388 = vsub.f32 %v1685, %v3387
      %3389 = vmatprep.mubr.f32.mxu0 %v3388
      %v3390 = vand.u32 %v1684, 4294901760
      %v3391 = vsub.f32 %v1684, %v3390
      %3392 = vmatmul.mubr.f32.gmra.mxu0 %v3391
      %v3393 = vpop.f32.mrf.mxu0
      %v3394 = vadd.f32 %v3229, %v3393
      %v3395 = vpop.f32.mrf.mxu0
      %3396 = vdwg.mxu0
      %3397 = vmatprep.subr.mxu0 0.0
      %v3398 = vand.u32 %v1701, 4294901760
      %3399 = vmatpush1.msra.mxu0 %v3398
      %3400 = vmatprep.subr.mxu0 0.0
      %v3401 = vand.u32 %v1700, 4294901760
      %3402 = vmatpush1.msra.mxu0 %v3401
      %3403 = vmatprep.subr.mxu0 0.0
      %v3404 = vand.u32 %v1699, 4294901760
      %3405 = vmatpush1.msra.mxu0 %v3404
      %3406 = vmatprep.subr.mxu0 0.0
      %v3407 = vand.u32 %v1698, 4294901760
      %3408 = vmatpush1.msra.mxu0 %v3407
      %3409 = vmatprep.subr.mxu0 0.0
      %v3410 = vand.u32 %v1697, 4294901760
      %3411 = vmatpush1.msra.mxu0 %v3410
      %3412 = vmatprep.subr.mxu0 0.0
      %v3413 = vand.u32 %v1696, 4294901760
      %3414 = vmatpush1.msra.mxu0 %v3413
      %3415 = vmatprep.subr.mxu0 0.0
      %v3416 = vand.u32 %v1695, 4294901760
      %3417 = vmatpush1.msra.mxu0 %v3416
      %3418 = vmatprep.subr.mxu0 0.0
      %v3419 = vand.u32 %v1694, 4294901760
      %3420 = vmatpush1.msra.mxu0 %v3419
      %3421 = vmatprep.subr.mxu0 0.0
      %v3422 = vand.u32 %v1693, 4294901760
      %3423 = vmatpush1.msra.mxu0 %v3422
      %3424 = vmatprep.subr.mxu0 0.0
      %v3425 = vand.u32 %v1692, 4294901760
      %3426 = vmatpush1.msra.mxu0 %v3425
      %3427 = vmatprep.subr.mxu0 0.0
      %v3428 = vand.u32 %v1691, 4294901760
      %3429 = vmatpush1.msra.mxu0 %v3428
      %3430 = vmatprep.subr.mxu0 0.0
      %v3431 = vand.u32 %v1690, 4294901760
      %3432 = vmatpush1.msra.mxu0 %v3431
      %3433 = vmatprep.subr.mxu0 0.0
      %v3434 = vand.u32 %v1689, 4294901760
      %3435 = vmatpush1.msra.mxu0 %v3434
      %3436 = vmatprep.subr.mxu0 0.0
      %v3437 = vand.u32 %v1688, 4294901760
      %3438 = vmatpush1.msra.mxu0 %v3437
      %3439 = vmatprep.subr.mxu0 0.0
      %v3440 = vand.u32 %v1687, 4294901760
      %3441 = vmatpush1.msra.mxu0 %v3440
      %3442 = vmatprep.subr.mxu0 0.0
      %v3443 = vand.u32 %v1686, 4294901760
      %3444 = vmatpush1.msra.mxu0 %v3443
      %3445 = vmatprep.subr.mxu0 0.0
      %v3446 = vand.u32 %v1717, 4294901760
      %3447 = vmatpush2.msra.mxu0 %v3446
      %3448 = vmatprep.subr.mxu0 0.0
      %v3449 = vand.u32 %v1716, 4294901760
      %3450 = vmatpush2.msra.mxu0 %v3449
      %3451 = vmatprep.subr.mxu0 0.0
      %v3452 = vand.u32 %v1715, 4294901760
      %3453 = vmatpush2.msra.mxu0 %v3452
      %3454 = vmatprep.subr.mxu0 0.0
      %v3455 = vand.u32 %v1714, 4294901760
      %3456 = vmatpush2.msra.mxu0 %v3455
      %3457 = vmatprep.subr.mxu0 0.0
      %v3458 = vand.u32 %v1713, 4294901760
      %3459 = vmatpush2.msra.mxu0 %v3458
      %3460 = vmatprep.subr.mxu0 0.0
      %v3461 = vand.u32 %v1712, 4294901760
      %3462 = vmatpush2.msra.mxu0 %v3461
      %3463 = vmatprep.subr.mxu0 0.0
      %v3464 = vand.u32 %v1711, 4294901760
      %3465 = vmatpush2.msra.mxu0 %v3464
      %3466 = vmatprep.subr.mxu0 0.0
      %v3467 = vand.u32 %v1710, 4294901760
      %3468 = vmatpush2.msra.mxu0 %v3467
      %3469 = vmatprep.subr.mxu0 0.0
      %v3470 = vand.u32 %v1709, 4294901760
      %3471 = vmatpush2.msra.mxu0 %v3470
      %3472 = vmatprep.subr.mxu0 0.0
      %v3473 = vand.u32 %v1708, 4294901760
      %3474 = vmatpush2.msra.mxu0 %v3473
      %3475 = vmatprep.subr.mxu0 0.0
      %v3476 = vand.u32 %v1707, 4294901760
      %3477 = vmatpush2.msra.mxu0 %v3476
      %3478 = vmatprep.subr.mxu0 0.0
      %v3479 = vand.u32 %v1706, 4294901760
      %3480 = vmatpush2.msra.mxu0 %v3479
      %3481 = vmatprep.subr.mxu0 0.0
      %v3482 = vand.u32 %v1705, 4294901760
      %3483 = vmatpush2.msra.mxu0 %v3482
      %3484 = vmatprep.subr.mxu0 0.0
      %v3485 = vand.u32 %v1704, 4294901760
      %3486 = vmatpush2.msra.mxu0 %v3485
      %3487 = vmatprep.subr.mxu0 0.0
      %v3488 = vand.u32 %v1703, 4294901760
      %3489 = vmatpush2.msra.mxu0 %v3488
      %3490 = vmatprep.subr.mxu0 0.0
      %v3491 = vand.u32 %v1702, 4294901760
      %3492 = vmatpush2.msra.mxu0 %v3491
      %v3493 = vand.u32 %v1679, 4294901760
      %v3494 = vsub.f32 %v1679, %v3493
      %v3495 = vand.u32 %v3494, 4294901760
      %3496 = vmatprep.mubr.f32.mxu0 %v3495
      %v3497 = vand.u32 %v1678, 4294901760
      %v3498 = vsub.f32 %v1678, %v3497
      %v3499 = vand.u32 %v3498, 4294901760
      %3500 = vmatmul.mubr.f32.gmra.mxu0 %v3499
      %v3501 = vpop.f32.mrf.mxu0
      %v3502 = vadd.f32 %v3367, %v3501
      %v3503 = vpop.f32.mrf.mxu0
      %v3504 = vand.u32 %v1681, 4294901760
      %v3505 = vsub.f32 %v1681, %v3504
      %v3506 = vand.u32 %v3505, 4294901760
      %3507 = vmatprep.mubr.f32.mxu0 %v3506
      %v3508 = vand.u32 %v1680, 4294901760
      %v3509 = vsub.f32 %v1680, %v3508
      %v3510 = vand.u32 %v3509, 4294901760
      %3511 = vmatmul.mubr.f32.gmra.mxu0 %v3510
      %v3512 = vpop.f32.mrf.mxu0
      %v3513 = vadd.f32 %v3376, %v3512
      %v3514 = vpop.f32.mrf.mxu0
      %v3515 = vand.u32 %v1683, 4294901760
      %v3516 = vsub.f32 %v1683, %v3515
      %v3517 = vand.u32 %v3516, 4294901760
      %3518 = vmatprep.mubr.f32.mxu0 %v3517
      %v3519 = vand.u32 %v1682, 4294901760
      %v3520 = vsub.f32 %v1682, %v3519
      %v3521 = vand.u32 %v3520, 4294901760
      %3522 = vmatmul.mubr.f32.gmra.mxu0 %v3521
      %v3523 = vpop.f32.mrf.mxu0
      %v3524 = vadd.f32 %v3385, %v3523
      %v3525 = vpop.f32.mrf.mxu0
      %v3526 = vand.u32 %v1685, 4294901760
      %v3527 = vsub.f32 %v1685, %v3526
      %v3528 = vand.u32 %v3527, 4294901760
      %3529 = vmatprep.mubr.f32.mxu0 %v3528
      %v3530 = vand.u32 %v1684, 4294901760
      %v3531 = vsub.f32 %v1684, %v3530
      %v3532 = vand.u32 %v3531, 4294901760
      %3533 = vmatmul.mubr.f32.gmra.mxu0 %v3532
      %v3534 = vpop.f32.mrf.mxu0
      %v3535 = vadd.f32 %v3394, %v3534
      %v3536 = vpop.f32.mrf.mxu0
      %3537 = vdwg.mxu0
      %3538 = vmatprep.subr.mxu0 0.0
      %v3539 = vand.u32 %v1701, 4294901760
      %v3540 = vsub.f32 %v1701, %v3539
      %v3541 = vand.u32 %v3540, 4294901760
      %3542 = vmatpush1.msra.mxu0 %v3541
      %3543 = vmatprep.subr.mxu0 0.0
      %v3544 = vand.u32 %v1700, 4294901760
      %v3545 = vsub.f32 %v1700, %v3544
      %v3546 = vand.u32 %v3545, 4294901760
      %3547 = vmatpush1.msra.mxu0 %v3546
      %3548 = vmatprep.subr.mxu0 0.0
      %v3549 = vand.u32 %v1699, 4294901760
      %v3550 = vsub.f32 %v1699, %v3549
      %v3551 = vand.u32 %v3550, 4294901760
      %3552 = vmatpush1.msra.mxu0 %v3551
      %3553 = vmatprep.subr.mxu0 0.0
      %v3554 = vand.u32 %v1698, 4294901760
      %v3555 = vsub.f32 %v1698, %v3554
      %v3556 = vand.u32 %v3555, 4294901760
      %3557 = vmatpush1.msra.mxu0 %v3556
      %3558 = vmatprep.subr.mxu0 0.0
      %v3559 = vand.u32 %v1697, 4294901760
      %v3560 = vsub.f32 %v1697, %v3559
      %v3561 = vand.u32 %v3560, 4294901760
      %3562 = vmatpush1.msra.mxu0 %v3561
      %3563 = vmatprep.subr.mxu0 0.0
      %v3564 = vand.u32 %v1696, 4294901760
      %v3565 = vsub.f32 %v1696, %v3564
      %v3566 = vand.u32 %v3565, 4294901760
      %3567 = vmatpush1.msra.mxu0 %v3566
      %3568 = vmatprep.subr.mxu0 0.0
      %v3569 = vand.u32 %v1695, 4294901760
      %v3570 = vsub.f32 %v1695, %v3569
      %v3571 = vand.u32 %v3570, 4294901760
      %3572 = vmatpush1.msra.mxu0 %v3571
      %3573 = vmatprep.subr.mxu0 0.0
      %v3574 = vand.u32 %v1694, 4294901760
      %v3575 = vsub.f32 %v1694, %v3574
      %v3576 = vand.u32 %v3575, 4294901760
      %3577 = vmatpush1.msra.mxu0 %v3576
      %3578 = vmatprep.subr.mxu0 0.0
      %v3579 = vand.u32 %v1693, 4294901760
      %v3580 = vsub.f32 %v1693, %v3579
      %v3581 = vand.u32 %v3580, 4294901760
      %3582 = vmatpush1.msra.mxu0 %v3581
      %3583 = vmatprep.subr.mxu0 0.0
      %v3584 = vand.u32 %v1692, 4294901760
      %v3585 = vsub.f32 %v1692, %v3584
      %v3586 = vand.u32 %v3585, 4294901760
      %3587 = vmatpush1.msra.mxu0 %v3586
      %3588 = vmatprep.subr.mxu0 0.0
      %v3589 = vand.u32 %v1691, 4294901760
      %v3590 = vsub.f32 %v1691, %v3589
      %v3591 = vand.u32 %v3590, 4294901760
      %3592 = vmatpush1.msra.mxu0 %v3591
      %3593 = vmatprep.subr.mxu0 0.0
      %v3594 = vand.u32 %v1690, 4294901760
      %v3595 = vsub.f32 %v1690, %v3594
      %v3596 = vand.u32 %v3595, 4294901760
      %3597 = vmatpush1.msra.mxu0 %v3596
      %3598 = vmatprep.subr.mxu0 0.0
      %v3599 = vand.u32 %v1689, 4294901760
      %v3600 = vsub.f32 %v1689, %v3599
      %v3601 = vand.u32 %v3600, 4294901760
      %3602 = vmatpush1.msra.mxu0 %v3601
      %3603 = vmatprep.subr.mxu0 0.0
      %v3604 = vand.u32 %v1688, 4294901760
      %v3605 = vsub.f32 %v1688, %v3604
      %v3606 = vand.u32 %v3605, 4294901760
      %3607 = vmatpush1.msra.mxu0 %v3606
      %3608 = vmatprep.subr.mxu0 0.0
      %v3609 = vand.u32 %v1687, 4294901760
      %v3610 = vsub.f32 %v1687, %v3609
      %v3611 = vand.u32 %v3610, 4294901760
      %3612 = vmatpush1.msra.mxu0 %v3611
      %3613 = vmatprep.subr.mxu0 0.0
      %v3614 = vand.u32 %v1686, 4294901760
      %v3615 = vsub.f32 %v1686, %v3614
      %v3616 = vand.u32 %v3615, 4294901760
      %3617 = vmatpush1.msra.mxu0 %v3616
      %3618 = vmatprep.subr.mxu0 0.0
      %v3619 = vand.u32 %v1717, 4294901760
      %v3620 = vsub.f32 %v1717, %v3619
      %v3621 = vand.u32 %v3620, 4294901760
      %3622 = vmatpush2.msra.mxu0 %v3621
      %3623 = vmatprep.subr.mxu0 0.0
      %v3624 = vand.u32 %v1716, 4294901760
      %v3625 = vsub.f32 %v1716, %v3624
      %v3626 = vand.u32 %v3625, 4294901760
      %3627 = vmatpush2.msra.mxu0 %v3626
      %3628 = vmatprep.subr.mxu0 0.0
      %v3629 = vand.u32 %v1715, 4294901760
      %v3630 = vsub.f32 %v1715, %v3629
      %v3631 = vand.u32 %v3630, 4294901760
      %3632 = vmatpush2.msra.mxu0 %v3631
      %3633 = vmatprep.subr.mxu0 0.0
      %v3634 = vand.u32 %v1714, 4294901760
      %v3635 = vsub.f32 %v1714, %v3634
      %v3636 = vand.u32 %v3635, 4294901760
      %3637 = vmatpush2.msra.mxu0 %v3636
      %3638 = vmatprep.subr.mxu0 0.0
      %v3639 = vand.u32 %v1713, 4294901760
      %v3640 = vsub.f32 %v1713, %v3639
      %v3641 = vand.u32 %v3640, 4294901760
      %3642 = vmatpush2.msra.mxu0 %v3641
      %3643 = vmatprep.subr.mxu0 0.0
      %v3644 = vand.u32 %v1712, 4294901760
      %v3645 = vsub.f32 %v1712, %v3644
      %v3646 = vand.u32 %v3645, 4294901760
      %3647 = vmatpush2.msra.mxu0 %v3646
      %3648 = vmatprep.subr.mxu0 0.0
      %v3649 = vand.u32 %v1711, 4294901760
      %v3650 = vsub.f32 %v1711, %v3649
      %v3651 = vand.u32 %v3650, 4294901760
      %3652 = vmatpush2.msra.mxu0 %v3651
      %3653 = vmatprep.subr.mxu0 0.0
      %v3654 = vand.u32 %v1710, 4294901760
      %v3655 = vsub.f32 %v1710, %v3654
      %v3656 = vand.u32 %v3655, 4294901760
      %3657 = vmatpush2.msra.mxu0 %v3656
      %3658 = vmatprep.subr.mxu0 0.0
      %v3659 = vand.u32 %v1709, 4294901760
      %v3660 = vsub.f32 %v1709, %v3659
      %v3661 = vand.u32 %v3660, 4294901760
      %3662 = vmatpush2.msra.mxu0 %v3661
      %3663 = vmatprep.subr.mxu0 0.0
      %v3664 = vand.u32 %v1708, 4294901760
      %v3665 = vsub.f32 %v1708, %v3664
      %v3666 = vand.u32 %v3665, 4294901760
      %3667 = vmatpush2.msra.mxu0 %v3666
      %3668 = vmatprep.subr.mxu0 0.0
      %v3669 = vand.u32 %v1707, 4294901760
      %v3670 = vsub.f32 %v1707, %v3669
      %v3671 = vand.u32 %v3670, 4294901760
      %3672 = vmatpush2.msra.mxu0 %v3671
      %3673 = vmatprep.subr.mxu0 0.0
      %v3674 = vand.u32 %v1706, 4294901760
      %v3675 = vsub.f32 %v1706, %v3674
      %v3676 = vand.u32 %v3675, 4294901760
      %3677 = vmatpush2.msra.mxu0 %v3676
      %3678 = vmatprep.subr.mxu0 0.0
      %v3679 = vand.u32 %v1705, 4294901760
      %v3680 = vsub.f32 %v1705, %v3679
      %v3681 = vand.u32 %v3680, 4294901760
      %3682 = vmatpush2.msra.mxu0 %v3681
      %3683 = vmatprep.subr.mxu0 0.0
      %v3684 = vand.u32 %v1704, 4294901760
      %v3685 = vsub.f32 %v1704, %v3684
      %v3686 = vand.u32 %v3685, 4294901760
      %3687 = vmatpush2.msra.mxu0 %v3686
      %3688 = vmatprep.subr.mxu0 0.0
      %v3689 = vand.u32 %v1703, 4294901760
      %v3690 = vsub.f32 %v1703, %v3689
      %v3691 = vand.u32 %v3690, 4294901760
      %3692 = vmatpush2.msra.mxu0 %v3691
      %3693 = vmatprep.subr.mxu0 0.0
      %v3694 = vand.u32 %v1702, 4294901760
      %v3695 = vsub.f32 %v1702, %v3694
      %v3696 = vand.u32 %v3695, 4294901760
      %3697 = vmatpush2.msra.mxu0 %v3696
      %v3698 = vand.u32 %v1679, 4294901760
      %3699 = vmatprep.mubr.f32.mxu0 %v3698
      %v3700 = vand.u32 %v1678, 4294901760
      %3701 = vmatmul.mubr.f32.gmra.mxu0 %v3700
      %v3702 = vpop.f32.mrf.mxu0
      %v3703 = vadd.f32 %v3502, %v3702
      %v3704 = vpop.f32.mrf.mxu0
      %v3705 = vand.u32 %v1681, 4294901760
      %3706 = vmatprep.mubr.f32.mxu0 %v3705
      %v3707 = vand.u32 %v1680, 4294901760
      %3708 = vmatmul.mubr.f32.gmra.mxu0 %v3707
      %v3709 = vpop.f32.mrf.mxu0
      %v3710 = vadd.f32 %v3513, %v3709
      %v3711 = vpop.f32.mrf.mxu0
      %v3712 = vand.u32 %v1683, 4294901760
      %3713 = vmatprep.mubr.f32.mxu0 %v3712
      %v3714 = vand.u32 %v1682, 4294901760
      %3715 = vmatmul.mubr.f32.gmra.mxu0 %v3714
      %v3716 = vpop.f32.mrf.mxu0
      %v3717 = vadd.f32 %v3524, %v3716
      %v3718 = vpop.f32.mrf.mxu0
      %v3719 = vand.u32 %v1685, 4294901760
      %3720 = vmatprep.mubr.f32.mxu0 %v3719
      %v3721 = vand.u32 %v1684, 4294901760
      %3722 = vmatmul.mubr.f32.gmra.mxu0 %v3721
      %v3723 = vpop.f32.mrf.mxu0
      %v3724 = vadd.f32 %v3535, %v3723
      %v3725 = vpop.f32.mrf.mxu0
      %3726 = vdwg.mxu0
      %3727 = vmatprep.subr.mxu0 0.0
      %v3728 = vand.u32 %v1701, 4294901760
      %3729 = vmatpush1.msra.mxu0 %v3728
      %3730 = vmatprep.subr.mxu0 0.0
      %v3731 = vand.u32 %v1700, 4294901760
      %3732 = vmatpush1.msra.mxu0 %v3731
      %3733 = vmatprep.subr.mxu0 0.0
      %v3734 = vand.u32 %v1699, 4294901760
      %3735 = vmatpush1.msra.mxu0 %v3734
      %3736 = vmatprep.subr.mxu0 0.0
      %v3737 = vand.u32 %v1698, 4294901760
      %3738 = vmatpush1.msra.mxu0 %v3737
      %3739 = vmatprep.subr.mxu0 0.0
      %v3740 = vand.u32 %v1697, 4294901760
      %3741 = vmatpush1.msra.mxu0 %v3740
      %3742 = vmatprep.subr.mxu0 0.0
      %v3743 = vand.u32 %v1696, 4294901760
      %3744 = vmatpush1.msra.mxu0 %v3743
      %3745 = vmatprep.subr.mxu0 0.0
      %v3746 = vand.u32 %v1695, 4294901760
      %3747 = vmatpush1.msra.mxu0 %v3746
      %3748 = vmatprep.subr.mxu0 0.0
      %v3749 = vand.u32 %v1694, 4294901760
      %3750 = vmatpush1.msra.mxu0 %v3749
      %3751 = vmatprep.subr.mxu0 0.0
      %v3752 = vand.u32 %v1693, 4294901760
      %3753 = vmatpush1.msra.mxu0 %v3752
      %3754 = vmatprep.subr.mxu0 0.0
      %v3755 = vand.u32 %v1692, 4294901760
      %3756 = vmatpush1.msra.mxu0 %v3755
      %3757 = vmatprep.subr.mxu0 0.0
      %v3758 = vand.u32 %v1691, 4294901760
      %3759 = vmatpush1.msra.mxu0 %v3758
      %3760 = vmatprep.subr.mxu0 0.0
      %v3761 = vand.u32 %v1690, 4294901760
      %3762 = vmatpush1.msra.mxu0 %v3761
      %3763 = vmatprep.subr.mxu0 0.0
      %v3764 = vand.u32 %v1689, 4294901760
      %3765 = vmatpush1.msra.mxu0 %v3764
      %3766 = vmatprep.subr.mxu0 0.0
      %v3767 = vand.u32 %v1688, 4294901760
      %3768 = vmatpush1.msra.mxu0 %v3767
      %3769 = vmatprep.subr.mxu0 0.0
      %v3770 = vand.u32 %v1687, 4294901760
      %3771 = vmatpush1.msra.mxu0 %v3770
      %3772 = vmatprep.subr.mxu0 0.0
      %v3773 = vand.u32 %v1686, 4294901760
      %3774 = vmatpush1.msra.mxu0 %v3773
      %3775 = vmatprep.subr.mxu0 0.0
      %v3776 = vand.u32 %v1717, 4294901760
      %3777 = vmatpush2.msra.mxu0 %v3776
      %3778 = vmatprep.subr.mxu0 0.0
      %v3779 = vand.u32 %v1716, 4294901760
      %3780 = vmatpush2.msra.mxu0 %v3779
      %3781 = vmatprep.subr.mxu0 0.0
      %v3782 = vand.u32 %v1715, 4294901760
      %3783 = vmatpush2.msra.mxu0 %v3782
      %3784 = vmatprep.subr.mxu0 0.0
      %v3785 = vand.u32 %v1714, 4294901760
      %3786 = vmatpush2.msra.mxu0 %v3785
      %3787 = vmatprep.subr.mxu0 0.0
      %v3788 = vand.u32 %v1713, 4294901760
      %3789 = vmatpush2.msra.mxu0 %v3788
      %3790 = vmatprep.subr.mxu0 0.0
      %v3791 = vand.u32 %v1712, 4294901760
      %3792 = vmatpush2.msra.mxu0 %v3791
      %3793 = vmatprep.subr.mxu0 0.0
      %v3794 = vand.u32 %v1711, 4294901760
      %3795 = vmatpush2.msra.mxu0 %v3794
      %3796 = vmatprep.subr.mxu0 0.0
      %v3797 = vand.u32 %v1710, 4294901760
      %3798 = vmatpush2.msra.mxu0 %v3797
      %3799 = vmatprep.subr.mxu0 0.0
      %v3800 = vand.u32 %v1709, 4294901760
      %3801 = vmatpush2.msra.mxu0 %v3800
      %3802 = vmatprep.subr.mxu0 0.0
      %v3803 = vand.u32 %v1708, 4294901760
      %3804 = vmatpush2.msra.mxu0 %v3803
      %3805 = vmatprep.subr.mxu0 0.0
      %v3806 = vand.u32 %v1707, 4294901760
      %3807 = vmatpush2.msra.mxu0 %v3806
      %3808 = vmatprep.subr.mxu0 0.0
      %v3809 = vand.u32 %v1706, 4294901760
      %3810 = vmatpush2.msra.mxu0 %v3809
      %3811 = vmatprep.subr.mxu0 0.0
      %v3812 = vand.u32 %v1705, 4294901760
      %3813 = vmatpush2.msra.mxu0 %v3812
      %3814 = vmatprep.subr.mxu0 0.0
      %v3815 = vand.u32 %v1704, 4294901760
      %3816 = vmatpush2.msra.mxu0 %v3815
      %3817 = vmatprep.subr.mxu0 0.0
      %v3818 = vand.u32 %v1703, 4294901760
      %3819 = vmatpush2.msra.mxu0 %v3818
      %3820 = vmatprep.subr.mxu0 0.0
      %v3821 = vand.u32 %v1702, 4294901760
      %3822 = vmatpush2.msra.mxu0 %v3821
      %v3823 = vand.u32 %v1679, 4294901760
      %3824 = vmatprep.mubr.f32.mxu0 %v3823
      %v3825 = vand.u32 %v1678, 4294901760
      %3826 = vmatmul.mubr.f32.gmra.mxu0 %v3825
      %v3827 = vpop.f32.mrf.mxu0
      %v3828 = vadd.f32 %v3703, %v3827
      %v3829 = vpop.f32.mrf.mxu0
      %v3830 = vand.u32 %v1681, 4294901760
      %3831 = vmatprep.mubr.f32.mxu0 %v3830
      %v3832 = vand.u32 %v1680, 4294901760
      %3833 = vmatmul.mubr.f32.gmra.mxu0 %v3832
      %v3834 = vpop.f32.mrf.mxu0
      %v3835 = vadd.f32 %v3710, %v3834
      %v3836 = vpop.f32.mrf.mxu0
      %v3837 = vand.u32 %v1683, 4294901760
      %3838 = vmatprep.mubr.f32.mxu0 %v3837
      %v3839 = vand.u32 %v1682, 4294901760
      %3840 = vmatmul.mubr.f32.gmra.mxu0 %v3839
      %v3841 = vpop.f32.mrf.mxu0
      %v3842 = vadd.f32 %v3717, %v3841
      %v3843 = vpop.f32.mrf.mxu0
      %v3844 = vand.u32 %v1685, 4294901760
      %3845 = vmatprep.mubr.f32.mxu0 %v3844
      %v3846 = vand.u32 %v1684, 4294901760
      %3847 = vmatmul.mubr.f32.gmra.mxu0 %v3846
      %v3848 = vpop.f32.mrf.mxu0
      %v3849 = vadd.f32 %v3724, %v3848
      %v3850 = vpop.f32.mrf.mxu0
      %3851 = vdwg.mxu0
      %v3852 = vld [vmem:[#allocation2] sm:$0xfc]
      %v3853 = vld [vmem:[#allocation2 + $0x8] sm:$0xfc]
      %v3854 = vld [vmem:[#allocation2 + $0x40] sm:$0x3]
      %v3855 = vld [vmem:[#allocation2 + $0x48] sm:$0x3]
      %s3856 = scalar_lea.vmem %s4, 512
      %v3857 = vld [vmem:[%s3856] sm:$0xff]
      %v3858 = vld [vmem:[%s3856 + $0x8] sm:$0xff]
      %v3859 = vld [vmem:[%s3856 + $0x10] sm:$0xff]
      %v3860 = vld [vmem:[%s3856 + $0x18] sm:$0xff]
      %v3861 = vld [vmem:[%s3856 + $0x20] sm:$0xff]
      %v3862 = vld [vmem:[%s3856 + $0x28] sm:$0xff]
      %v3863 = vld [vmem:[%s3856 + $0x30] sm:$0xff]
      %v3864 = vld [vmem:[%s3856 + $0x38] sm:$0xff]
      %v3865 = vld [vmem:[%s3856 + $0x40] sm:$0xff]
      %v3866 = vld [vmem:[%s3856 + $0x48] sm:$0xff]
      %v3867 = vld [vmem:[%s3856 + $0x50] sm:$0xff]
      %v3868 = vld [vmem:[%s3856 + $0x58] sm:$0xff]
      %v3869 = vld [vmem:[%s3856 + $0x60] sm:$0xff]
      %v3870 = vld [vmem:[%s3856 + $0x68] sm:$0xff]
      %v3871 = vld [vmem:[%s3856 + $0x70] sm:$0xff]
      %v3872 = vld [vmem:[%s3856 + $0x78] sm:$0xff]
      %v3873 = vld [vmem:[%s3856 + $0x80] sm:$0xff]
      %v3874 = vld [vmem:[%s3856 + $0x88] sm:$0xff]
      %v3875 = vld [vmem:[%s3856 + $0x90] sm:$0xff]
      %v3876 = vld [vmem:[%s3856 + $0x98] sm:$0xff]
      %v3877 = vld [vmem:[%s3856 + $0xa0] sm:$0xff]
      %v3878 = vld [vmem:[%s3856 + $0xa8] sm:$0xff]
      %v3879 = vld [vmem:[%s3856 + $0xb0] sm:$0xff]
      %v3880 = vld [vmem:[%s3856 + $0xb8] sm:$0xff]
      %v3881 = vld [vmem:[%s3856 + $0xc0] sm:$0xff]
      %v3882 = vld [vmem:[%s3856 + $0xc8] sm:$0xff]
      %v3883 = vld [vmem:[%s3856 + $0xd0] sm:$0xff]
      %v3884 = vld [vmem:[%s3856 + $0xd8] sm:$0xff]
      %v3885 = vld [vmem:[%s3856 + $0xe0] sm:$0xff]
      %v3886 = vld [vmem:[%s3856 + $0xe8] sm:$0xff]
      %v3887 = vld [vmem:[%s3856 + $0xf0] sm:$0xff]
      %v3888 = vld [vmem:[%s3856 + $0xf8] sm:$0xff]
      %vm3893 = vcmask 1045504
      %v3894 = vrot.slane %v3852, 2
      %v3895 = vrot.slane %v1680, 2
      %v3896 = vsel %vm3893, %v3894, %v3895
      %v3897 = vrot.slane %v3853, 2
      %v3898 = vrot.slane %v1681, 2
      %v3899 = vsel %vm3893, %v3897, %v3898
      %v3900 = vrot.slane %v1682, 2
      %v3901 = vsel %vm3893, %v3895, %v3900
      %v3902 = vrot.slane %v1683, 2
      %v3903 = vsel %vm3893, %v3898, %v3902
      %v3904 = vrot.slane %v1684, 2
      %v3905 = vsel %vm3893, %v3900, %v3904
      %v3906 = vrot.slane %v1685, 2
      %v3907 = vsel %vm3893, %v3902, %v3906
      %v3908 = vrot.slane %v3854, 2
      %v3909 = vsel %vm3893, %v3904, %v3908
      %v3910 = vrot.slane %v3855, 2
      %v3911 = vsel %vm3893, %v3906, %v3910
      %3920 = vmatprep.subr.mxu0 0.0
      %v3921 = vand.u32 %v3872, 4294901760
      %3922 = vmatpush1.msra.mxu0 %v3921
      %3923 = vmatprep.subr.mxu0 0.0
      %v3924 = vand.u32 %v3871, 4294901760
      %3925 = vmatpush1.msra.mxu0 %v3924
      %3926 = vmatprep.subr.mxu0 0.0
      %v3927 = vand.u32 %v3870, 4294901760
      %3928 = vmatpush1.msra.mxu0 %v3927
      %3929 = vmatprep.subr.mxu0 0.0
      %v3930 = vand.u32 %v3869, 4294901760
      %3931 = vmatpush1.msra.mxu0 %v3930
      %3932 = vmatprep.subr.mxu0 0.0
      %v3933 = vand.u32 %v3868, 4294901760
      %3934 = vmatpush1.msra.mxu0 %v3933
      %3935 = vmatprep.subr.mxu0 0.0
      %v3936 = vand.u32 %v3867, 4294901760
      %3937 = vmatpush1.msra.mxu0 %v3936
      %3938 = vmatprep.subr.mxu0 0.0
      %v3939 = vand.u32 %v3866, 4294901760
      %3940 = vmatpush1.msra.mxu0 %v3939
      %3941 = vmatprep.subr.mxu0 0.0
      %v3942 = vand.u32 %v3865, 4294901760
      %3943 = vmatpush1.msra.mxu0 %v3942
      %3944 = vmatprep.subr.mxu0 0.0
      %v3945 = vand.u32 %v3864, 4294901760
      %3946 = vmatpush1.msra.mxu0 %v3945
      %3947 = vmatprep.subr.mxu0 0.0
      %v3948 = vand.u32 %v3863, 4294901760
      %3949 = vmatpush1.msra.mxu0 %v3948
      %3950 = vmatprep.subr.mxu0 0.0
      %v3951 = vand.u32 %v3862, 4294901760
      %3952 = vmatpush1.msra.mxu0 %v3951
      %3953 = vmatprep.subr.mxu0 0.0
      %v3954 = vand.u32 %v3861, 4294901760
      %3955 = vmatpush1.msra.mxu0 %v3954
      %3956 = vmatprep.subr.mxu0 0.0
      %v3957 = vand.u32 %v3860, 4294901760
      %3958 = vmatpush1.msra.mxu0 %v3957
      %3959 = vmatprep.subr.mxu0 0.0
      %v3960 = vand.u32 %v3859, 4294901760
      %3961 = vmatpush1.msra.mxu0 %v3960
      %3962 = vmatprep.subr.mxu0 0.0
      %v3963 = vand.u32 %v3858, 4294901760
      %3964 = vmatpush1.msra.mxu0 %v3963
      %3965 = vmatprep.subr.mxu0 0.0
      %v3966 = vand.u32 %v3857, 4294901760
      %3967 = vmatpush1.msra.mxu0 %v3966
      %3968 = vmatprep.subr.mxu0 0.0
      %v3969 = vand.u32 %v3888, 4294901760
      %3970 = vmatpush2.msra.mxu0 %v3969
      %3971 = vmatprep.subr.mxu0 0.0
      %v3972 = vand.u32 %v3887, 4294901760
      %3973 = vmatpush2.msra.mxu0 %v3972
      %3974 = vmatprep.subr.mxu0 0.0
      %v3975 = vand.u32 %v3886, 4294901760
      %3976 = vmatpush2.msra.mxu0 %v3975
      %3977 = vmatprep.subr.mxu0 0.0
      %v3978 = vand.u32 %v3885, 4294901760
      %3979 = vmatpush2.msra.mxu0 %v3978
      %3980 = vmatprep.subr.mxu0 0.0
      %v3981 = vand.u32 %v3884, 4294901760
      %3982 = vmatpush2.msra.mxu0 %v3981
      %3983 = vmatprep.subr.mxu0 0.0
      %v3984 = vand.u32 %v3883, 4294901760
      %3985 = vmatpush2.msra.mxu0 %v3984
      %3986 = vmatprep.subr.mxu0 0.0
      %v3987 = vand.u32 %v3882, 4294901760
      %3988 = vmatpush2.msra.mxu0 %v3987
      %3989 = vmatprep.subr.mxu0 0.0
      %v3990 = vand.u32 %v3881, 4294901760
      %3991 = vmatpush2.msra.mxu0 %v3990
      %3992 = vmatprep.subr.mxu0 0.0
      %v3993 = vand.u32 %v3880, 4294901760
      %3994 = vmatpush2.msra.mxu0 %v3993
      %3995 = vmatprep.subr.mxu0 0.0
      %v3996 = vand.u32 %v3879, 4294901760
      %3997 = vmatpush2.msra.mxu0 %v3996
      %3998 = vmatprep.subr.mxu0 0.0
      %v3999 = vand.u32 %v3878, 4294901760
      %4000 = vmatpush2.msra.mxu0 %v3999
      %4001 = vmatprep.subr.mxu0 0.0
      %v4002 = vand.u32 %v3877, 4294901760
      %4003 = vmatpush2.msra.mxu0 %v4002
      %4004 = vmatprep.subr.mxu0 0.0
      %v4005 = vand.u32 %v3876, 4294901760
      %4006 = vmatpush2.msra.mxu0 %v4005
      %4007 = vmatprep.subr.mxu0 0.0
      %v4008 = vand.u32 %v3875, 4294901760
      %4009 = vmatpush2.msra.mxu0 %v4008
      %4010 = vmatprep.subr.mxu0 0.0
      %v4011 = vand.u32 %v3874, 4294901760
      %4012 = vmatpush2.msra.mxu0 %v4011
      %4013 = vmatprep.subr.mxu0 0.0
      %v4014 = vand.u32 %v3873, 4294901760
      %4015 = vmatpush2.msra.mxu0 %v4014
      %v4016 = vand.u32 %v3899, 4294901760
      %v4017 = vsub.f32 %v3899, %v4016
      %v4018 = vand.u32 %v4017, 4294901760
      %v4019 = vsub.f32 %v4017, %v4018
      %v4020 = vand.u32 %v4019, 4294901760
      %4021 = vmatprep.mubr.f32.mxu0 %v4020
      %v4022 = vand.u32 %v3896, 4294901760
      %v4023 = vsub.f32 %v3896, %v4022
      %v4024 = vand.u32 %v4023, 4294901760
      %v4025 = vsub.f32 %v4023, %v4024
      %v4026 = vand.u32 %v4025, 4294901760
      %4027 = vmatmul.mubr.f32.gmra.mxu0 %v4026
      %v4028 = vpop.f32.mrf.mxu0
      %v4029 = vadd.f32 0.0, %v4028
      %v4030 = vpop.f32.mrf.mxu0
      %v4031 = vand.u32 %v3903, 4294901760
      %v4032 = vsub.f32 %v3903, %v4031
      %v4033 = vand.u32 %v4032, 4294901760
      %v4034 = vsub.f32 %v4032, %v4033
      %v4035 = vand.u32 %v4034, 4294901760
      %4036 = vmatprep.mubr.f32.mxu0 %v4035
      %v4037 = vand.u32 %v3901, 4294901760
      %v4038 = vsub.f32 %v3901, %v4037
      %v4039 = vand.u32 %v4038, 4294901760
      %v4040 = vsub.f32 %v4038, %v4039
      %v4041 = vand.u32 %v4040, 4294901760
      %4042 = vmatmul.mubr.f32.gmra.mxu0 %v4041
      %v4043 = vpop.f32.mrf.mxu0
      %v4044 = vadd.f32 0.0, %v4043
      %v4045 = vpop.f32.mrf.mxu0
      %v4046 = vand.u32 %v3907, 4294901760
      %v4047 = vsub.f32 %v3907, %v4046
      %v4048 = vand.u32 %v4047, 4294901760
      %v4049 = vsub.f32 %v4047, %v4048
      %v4050 = vand.u32 %v4049, 4294901760
      %4051 = vmatprep.mubr.f32.mxu0 %v4050
      %v4052 = vand.u32 %v3905, 4294901760
      %v4053 = vsub.f32 %v3905, %v4052
      %v4054 = vand.u32 %v4053, 4294901760
      %v4055 = vsub.f32 %v4053, %v4054
      %v4056 = vand.u32 %v4055, 4294901760
      %4057 = vmatmul.mubr.f32.gmra.mxu0 %v4056
      %v4058 = vpop.f32.mrf.mxu0
      %v4059 = vadd.f32 0.0, %v4058
      %v4060 = vpop.f32.mrf.mxu0
      %v4061 = vand.u32 %v3911, 4294901760
      %v4062 = vsub.f32 %v3911, %v4061
      %v4063 = vand.u32 %v4062, 4294901760
      %v4064 = vsub.f32 %v4062, %v4063
      %v4065 = vand.u32 %v4064, 4294901760
      %4066 = vmatprep.mubr.f32.mxu0 %v4065
      %v4067 = vand.u32 %v3909, 4294901760
      %v4068 = vsub.f32 %v3909, %v4067
      %v4069 = vand.u32 %v4068, 4294901760
      %v4070 = vsub.f32 %v4068, %v4069
      %v4071 = vand.u32 %v4070, 4294901760
      %4072 = vmatmul.mubr.f32.gmra.mxu0 %v4071
      %v4073 = vpop.f32.mrf.mxu0
      %v4074 = vadd.f32 0.0, %v4073
      %v4075 = vpop.f32.mrf.mxu0
      %4076 = vdwg.mxu0
      %4077 = vmatprep.subr.mxu0 0.0
      %v4078 = vand.u32 %v3872, 4294901760
      %v4079 = vsub.f32 %v3872, %v4078
      %v4080 = vand.u32 %v4079, 4294901760
      %v4081 = vsub.f32 %v4079, %v4080
      %v4082 = vand.u32 %v4081, 4294901760
      %4083 = vmatpush1.msra.mxu0 %v4082
      %4084 = vmatprep.subr.mxu0 0.0
      %v4085 = vand.u32 %v3871, 4294901760
      %v4086 = vsub.f32 %v3871, %v4085
      %v4087 = vand.u32 %v4086, 4294901760
      %v4088 = vsub.f32 %v4086, %v4087
      %v4089 = vand.u32 %v4088, 4294901760
      %4090 = vmatpush1.msra.mxu0 %v4089
      %4091 = vmatprep.subr.mxu0 0.0
      %v4092 = vand.u32 %v3870, 4294901760
      %v4093 = vsub.f32 %v3870, %v4092
      %v4094 = vand.u32 %v4093, 4294901760
      %v4095 = vsub.f32 %v4093, %v4094
      %v4096 = vand.u32 %v4095, 4294901760
      %4097 = vmatpush1.msra.mxu0 %v4096
      %4098 = vmatprep.subr.mxu0 0.0
      %v4099 = vand.u32 %v3869, 4294901760
      %v4100 = vsub.f32 %v3869, %v4099
      %v4101 = vand.u32 %v4100, 4294901760
      %v4102 = vsub.f32 %v4100, %v4101
      %v4103 = vand.u32 %v4102, 4294901760
      %4104 = vmatpush1.msra.mxu0 %v4103
      %4105 = vmatprep.subr.mxu0 0.0
      %v4106 = vand.u32 %v3868, 4294901760
      %v4107 = vsub.f32 %v3868, %v4106
      %v4108 = vand.u32 %v4107, 4294901760
      %v4109 = vsub.f32 %v4107, %v4108
      %v4110 = vand.u32 %v4109, 4294901760
      %4111 = vmatpush1.msra.mxu0 %v4110
      %4112 = vmatprep.subr.mxu0 0.0
      %v4113 = vand.u32 %v3867, 4294901760
      %v4114 = vsub.f32 %v3867, %v4113
      %v4115 = vand.u32 %v4114, 4294901760
      %v4116 = vsub.f32 %v4114, %v4115
      %v4117 = vand.u32 %v4116, 4294901760
      %4118 = vmatpush1.msra.mxu0 %v4117
      %4119 = vmatprep.subr.mxu0 0.0
      %v4120 = vand.u32 %v3866, 4294901760
      %v4121 = vsub.f32 %v3866, %v4120
      %v4122 = vand.u32 %v4121, 4294901760
      %v4123 = vsub.f32 %v4121, %v4122
      %v4124 = vand.u32 %v4123, 4294901760
      %4125 = vmatpush1.msra.mxu0 %v4124
      %4126 = vmatprep.subr.mxu0 0.0
      %v4127 = vand.u32 %v3865, 4294901760
      %v4128 = vsub.f32 %v3865, %v4127
      %v4129 = vand.u32 %v4128, 4294901760
      %v4130 = vsub.f32 %v4128, %v4129
      %v4131 = vand.u32 %v4130, 4294901760
      %4132 = vmatpush1.msra.mxu0 %v4131
      %4133 = vmatprep.subr.mxu0 0.0
      %v4134 = vand.u32 %v3864, 4294901760
      %v4135 = vsub.f32 %v3864, %v4134
      %v4136 = vand.u32 %v4135, 4294901760
      %v4137 = vsub.f32 %v4135, %v4136
      %v4138 = vand.u32 %v4137, 4294901760
      %4139 = vmatpush1.msra.mxu0 %v4138
      %4140 = vmatprep.subr.mxu0 0.0
      %v4141 = vand.u32 %v3863, 4294901760
      %v4142 = vsub.f32 %v3863, %v4141
      %v4143 = vand.u32 %v4142, 4294901760
      %v4144 = vsub.f32 %v4142, %v4143
      %v4145 = vand.u32 %v4144, 4294901760
      %4146 = vmatpush1.msra.mxu0 %v4145
      %4147 = vmatprep.subr.mxu0 0.0
      %v4148 = vand.u32 %v3862, 4294901760
      %v4149 = vsub.f32 %v3862, %v4148
      %v4150 = vand.u32 %v4149, 4294901760
      %v4151 = vsub.f32 %v4149, %v4150
      %v4152 = vand.u32 %v4151, 4294901760
      %4153 = vmatpush1.msra.mxu0 %v4152
      %4154 = vmatprep.subr.mxu0 0.0
      %v4155 = vand.u32 %v3861, 4294901760
      %v4156 = vsub.f32 %v3861, %v4155
      %v4157 = vand.u32 %v4156, 4294901760
      %v4158 = vsub.f32 %v4156, %v4157
      %v4159 = vand.u32 %v4158, 4294901760
      %4160 = vmatpush1.msra.mxu0 %v4159
      %4161 = vmatprep.subr.mxu0 0.0
      %v4162 = vand.u32 %v3860, 4294901760
      %v4163 = vsub.f32 %v3860, %v4162
      %v4164 = vand.u32 %v4163, 4294901760
      %v4165 = vsub.f32 %v4163, %v4164
      %v4166 = vand.u32 %v4165, 4294901760
      %4167 = vmatpush1.msra.mxu0 %v4166
      %4168 = vmatprep.subr.mxu0 0.0
      %v4169 = vand.u32 %v3859, 4294901760
      %v4170 = vsub.f32 %v3859, %v4169
      %v4171 = vand.u32 %v4170, 4294901760
      %v4172 = vsub.f32 %v4170, %v4171
      %v4173 = vand.u32 %v4172, 4294901760
      %4174 = vmatpush1.msra.mxu0 %v4173
      %4175 = vmatprep.subr.mxu0 0.0
      %v4176 = vand.u32 %v3858, 4294901760
      %v4177 = vsub.f32 %v3858, %v4176
      %v4178 = vand.u32 %v4177, 4294901760
      %v4179 = vsub.f32 %v4177, %v4178
      %v4180 = vand.u32 %v4179, 4294901760
      %4181 = vmatpush1.msra.mxu0 %v4180
      %4182 = vmatprep.subr.mxu0 0.0
      %v4183 = vand.u32 %v3857, 4294901760
      %v4184 = vsub.f32 %v3857, %v4183
      %v4185 = vand.u32 %v4184, 4294901760
      %v4186 = vsub.f32 %v4184, %v4185
      %v4187 = vand.u32 %v4186, 4294901760
      %4188 = vmatpush1.msra.mxu0 %v4187
      %4189 = vmatprep.subr.mxu0 0.0
      %v4190 = vand.u32 %v3888, 4294901760
      %v4191 = vsub.f32 %v3888, %v4190
      %v4192 = vand.u32 %v4191, 4294901760
      %v4193 = vsub.f32 %v4191, %v4192
      %v4194 = vand.u32 %v4193, 4294901760
      %4195 = vmatpush2.msra.mxu0 %v4194
      %4196 = vmatprep.subr.mxu0 0.0
      %v4197 = vand.u32 %v3887, 4294901760
      %v4198 = vsub.f32 %v3887, %v4197
      %v4199 = vand.u32 %v4198, 4294901760
      %v4200 = vsub.f32 %v4198, %v4199
      %v4201 = vand.u32 %v4200, 4294901760
      %4202 = vmatpush2.msra.mxu0 %v4201
      %4203 = vmatprep.subr.mxu0 0.0
      %v4204 = vand.u32 %v3886, 4294901760
      %v4205 = vsub.f32 %v3886, %v4204
      %v4206 = vand.u32 %v4205, 4294901760
      %v4207 = vsub.f32 %v4205, %v4206
      %v4208 = vand.u32 %v4207, 4294901760
      %4209 = vmatpush2.msra.mxu0 %v4208
      %4210 = vmatprep.subr.mxu0 0.0
      %v4211 = vand.u32 %v3885, 4294901760
      %v4212 = vsub.f32 %v3885, %v4211
      %v4213 = vand.u32 %v4212, 4294901760
      %v4214 = vsub.f32 %v4212, %v4213
      %v4215 = vand.u32 %v4214, 4294901760
      %4216 = vmatpush2.msra.mxu0 %v4215
      %4217 = vmatprep.subr.mxu0 0.0
      %v4218 = vand.u32 %v3884, 4294901760
      %v4219 = vsub.f32 %v3884, %v4218
      %v4220 = vand.u32 %v4219, 4294901760
      %v4221 = vsub.f32 %v4219, %v4220
      %v4222 = vand.u32 %v4221, 4294901760
      %4223 = vmatpush2.msra.mxu0 %v4222
      %4224 = vmatprep.subr.mxu0 0.0
      %v4225 = vand.u32 %v3883, 4294901760
      %v4226 = vsub.f32 %v3883, %v4225
      %v4227 = vand.u32 %v4226, 4294901760
      %v4228 = vsub.f32 %v4226, %v4227
      %v4229 = vand.u32 %v4228, 4294901760
      %4230 = vmatpush2.msra.mxu0 %v4229
      %4231 = vmatprep.subr.mxu0 0.0
      %v4232 = vand.u32 %v3882, 4294901760
      %v4233 = vsub.f32 %v3882, %v4232
      %v4234 = vand.u32 %v4233, 4294901760
      %v4235 = vsub.f32 %v4233, %v4234
      %v4236 = vand.u32 %v4235, 4294901760
      %4237 = vmatpush2.msra.mxu0 %v4236
      %4238 = vmatprep.subr.mxu0 0.0
      %v4239 = vand.u32 %v3881, 4294901760
      %v4240 = vsub.f32 %v3881, %v4239
      %v4241 = vand.u32 %v4240, 4294901760
      %v4242 = vsub.f32 %v4240, %v4241
      %v4243 = vand.u32 %v4242, 4294901760
      %4244 = vmatpush2.msra.mxu0 %v4243
      %4245 = vmatprep.subr.mxu0 0.0
      %v4246 = vand.u32 %v3880, 4294901760
      %v4247 = vsub.f32 %v3880, %v4246
      %v4248 = vand.u32 %v4247, 4294901760
      %v4249 = vsub.f32 %v4247, %v4248
      %v4250 = vand.u32 %v4249, 4294901760
      %4251 = vmatpush2.msra.mxu0 %v4250
      %4252 = vmatprep.subr.mxu0 0.0
      %v4253 = vand.u32 %v3879, 4294901760
      %v4254 = vsub.f32 %v3879, %v4253
      %v4255 = vand.u32 %v4254, 4294901760
      %v4256 = vsub.f32 %v4254, %v4255
      %v4257 = vand.u32 %v4256, 4294901760
      %4258 = vmatpush2.msra.mxu0 %v4257
      %4259 = vmatprep.subr.mxu0 0.0
      %v4260 = vand.u32 %v3878, 4294901760
      %v4261 = vsub.f32 %v3878, %v4260
      %v4262 = vand.u32 %v4261, 4294901760
      %v4263 = vsub.f32 %v4261, %v4262
      %v4264 = vand.u32 %v4263, 4294901760
      %4265 = vmatpush2.msra.mxu0 %v4264
      %4266 = vmatprep.subr.mxu0 0.0
      %v4267 = vand.u32 %v3877, 4294901760
      %v4268 = vsub.f32 %v3877, %v4267
      %v4269 = vand.u32 %v4268, 4294901760
      %v4270 = vsub.f32 %v4268, %v4269
      %v4271 = vand.u32 %v4270, 4294901760
      %4272 = vmatpush2.msra.mxu0 %v4271
      %4273 = vmatprep.subr.mxu0 0.0
      %v4274 = vand.u32 %v3876, 4294901760
      %v4275 = vsub.f32 %v3876, %v4274
      %v4276 = vand.u32 %v4275, 4294901760
      %v4277 = vsub.f32 %v4275, %v4276
      %v4278 = vand.u32 %v4277, 4294901760
      %4279 = vmatpush2.msra.mxu0 %v4278
      %4280 = vmatprep.subr.mxu0 0.0
      %v4281 = vand.u32 %v3875, 4294901760
      %v4282 = vsub.f32 %v3875, %v4281
      %v4283 = vand.u32 %v4282, 4294901760
      %v4284 = vsub.f32 %v4282, %v4283
      %v4285 = vand.u32 %v4284, 4294901760
      %4286 = vmatpush2.msra.mxu0 %v4285
      %4287 = vmatprep.subr.mxu0 0.0
      %v4288 = vand.u32 %v3874, 4294901760
      %v4289 = vsub.f32 %v3874, %v4288
      %v4290 = vand.u32 %v4289, 4294901760
      %v4291 = vsub.f32 %v4289, %v4290
      %v4292 = vand.u32 %v4291, 4294901760
      %4293 = vmatpush2.msra.mxu0 %v4292
      %4294 = vmatprep.subr.mxu0 0.0
      %v4295 = vand.u32 %v3873, 4294901760
      %v4296 = vsub.f32 %v3873, %v4295
      %v4297 = vand.u32 %v4296, 4294901760
      %v4298 = vsub.f32 %v4296, %v4297
      %v4299 = vand.u32 %v4298, 4294901760
      %4300 = vmatpush2.msra.mxu0 %v4299
      %v4301 = vand.u32 %v3899, 4294901760
      %4302 = vmatprep.mubr.f32.mxu0 %v4301
      %v4303 = vand.u32 %v3896, 4294901760
      %4304 = vmatmul.mubr.f32.gmra.mxu0 %v4303
      %v4305 = vpop.f32.mrf.mxu0
      %v4306 = vadd.f32 %v4029, %v4305
      %v4307 = vpop.f32.mrf.mxu0
      %v4308 = vand.u32 %v3903, 4294901760
      %4309 = vmatprep.mubr.f32.mxu0 %v4308
      %v4310 = vand.u32 %v3901, 4294901760
      %4311 = vmatmul.mubr.f32.gmra.mxu0 %v4310
      %v4312 = vpop.f32.mrf.mxu0
      %v4313 = vadd.f32 %v4044, %v4312
      %v4314 = vpop.f32.mrf.mxu0
      %v4315 = vand.u32 %v3907, 4294901760
      %4316 = vmatprep.mubr.f32.mxu0 %v4315
      %v4317 = vand.u32 %v3905, 4294901760
      %4318 = vmatmul.mubr.f32.gmra.mxu0 %v4317
      %v4319 = vpop.f32.mrf.mxu0
      %v4320 = vadd.f32 %v4059, %v4319
      %v4321 = vpop.f32.mrf.mxu0
      %v4322 = vand.u32 %v3911, 4294901760
      %4323 = vmatprep.mubr.f32.mxu0 %v4322
      %v4324 = vand.u32 %v3909, 4294901760
      %4325 = vmatmul.mubr.f32.gmra.mxu0 %v4324
      %v4326 = vpop.f32.mrf.mxu0
      %v4327 = vadd.f32 %v4074, %v4326
      %v4328 = vpop.f32.mrf.mxu0
      %4329 = vdwg.mxu0
      %4330 = vmatprep.subr.mxu0 0.0
      %v4331 = vand.u32 %v3872, 4294901760
      %v4332 = vsub.f32 %v3872, %v4331
      %4333 = vmatpush1.msra.mxu0 %v4332
      %4334 = vmatprep.subr.mxu0 0.0
      %v4335 = vand.u32 %v3871, 4294901760
      %v4336 = vsub.f32 %v3871, %v4335
      %4337 = vmatpush1.msra.mxu0 %v4336
      %4338 = vmatprep.subr.mxu0 0.0
      %v4339 = vand.u32 %v3870, 4294901760
      %v4340 = vsub.f32 %v3870, %v4339
      %4341 = vmatpush1.msra.mxu0 %v4340
      %4342 = vmatprep.subr.mxu0 0.0
      %v4343 = vand.u32 %v3869, 4294901760
      %v4344 = vsub.f32 %v3869, %v4343
      %4345 = vmatpush1.msra.mxu0 %v4344
      %4346 = vmatprep.subr.mxu0 0.0
      %v4347 = vand.u32 %v3868, 4294901760
      %v4348 = vsub.f32 %v3868, %v4347
      %4349 = vmatpush1.msra.mxu0 %v4348
      %4350 = vmatprep.subr.mxu0 0.0
      %v4351 = vand.u32 %v3867, 4294901760
      %v4352 = vsub.f32 %v3867, %v4351
      %4353 = vmatpush1.msra.mxu0 %v4352
      %4354 = vmatprep.subr.mxu0 0.0
      %v4355 = vand.u32 %v3866, 4294901760
      %v4356 = vsub.f32 %v3866, %v4355
      %4357 = vmatpush1.msra.mxu0 %v4356
      %4358 = vmatprep.subr.mxu0 0.0
      %v4359 = vand.u32 %v3865, 4294901760
      %v4360 = vsub.f32 %v3865, %v4359
      %4361 = vmatpush1.msra.mxu0 %v4360
      %4362 = vmatprep.subr.mxu0 0.0
      %v4363 = vand.u32 %v3864, 4294901760
      %v4364 = vsub.f32 %v3864, %v4363
      %4365 = vmatpush1.msra.mxu0 %v4364
      %4366 = vmatprep.subr.mxu0 0.0
      %v4367 = vand.u32 %v3863, 4294901760
      %v4368 = vsub.f32 %v3863, %v4367
      %4369 = vmatpush1.msra.mxu0 %v4368
      %4370 = vmatprep.subr.mxu0 0.0
      %v4371 = vand.u32 %v3862, 4294901760
      %v4372 = vsub.f32 %v3862, %v4371
      %4373 = vmatpush1.msra.mxu0 %v4372
      %4374 = vmatprep.subr.mxu0 0.0
      %v4375 = vand.u32 %v3861, 4294901760
      %v4376 = vsub.f32 %v3861, %v4375
      %4377 = vmatpush1.msra.mxu0 %v4376
      %4378 = vmatprep.subr.mxu0 0.0
      %v4379 = vand.u32 %v3860, 4294901760
      %v4380 = vsub.f32 %v3860, %v4379
      %4381 = vmatpush1.msra.mxu0 %v4380
      %4382 = vmatprep.subr.mxu0 0.0
      %v4383 = vand.u32 %v3859, 4294901760
      %v4384 = vsub.f32 %v3859, %v4383
      %4385 = vmatpush1.msra.mxu0 %v4384
      %4386 = vmatprep.subr.mxu0 0.0
      %v4387 = vand.u32 %v3858, 4294901760
      %v4388 = vsub.f32 %v3858, %v4387
      %4389 = vmatpush1.msra.mxu0 %v4388
      %4390 = vmatprep.subr.mxu0 0.0
      %v4391 = vand.u32 %v3857, 4294901760
      %v4392 = vsub.f32 %v3857, %v4391
      %4393 = vmatpush1.msra.mxu0 %v4392
      %4394 = vmatprep.subr.mxu0 0.0
      %v4395 = vand.u32 %v3888, 4294901760
      %v4396 = vsub.f32 %v3888, %v4395
      %4397 = vmatpush2.msra.mxu0 %v4396
      %4398 = vmatprep.subr.mxu0 0.0
      %v4399 = vand.u32 %v3887, 4294901760
      %v4400 = vsub.f32 %v3887, %v4399
      %4401 = vmatpush2.msra.mxu0 %v4400
      %4402 = vmatprep.subr.mxu0 0.0
      %v4403 = vand.u32 %v3886, 4294901760
      %v4404 = vsub.f32 %v3886, %v4403
      %4405 = vmatpush2.msra.mxu0 %v4404
      %4406 = vmatprep.subr.mxu0 0.0
      %v4407 = vand.u32 %v3885, 4294901760
      %v4408 = vsub.f32 %v3885, %v4407
      %4409 = vmatpush2.msra.mxu0 %v4408
      %4410 = vmatprep.subr.mxu0 0.0
      %v4411 = vand.u32 %v3884, 4294901760
      %v4412 = vsub.f32 %v3884, %v4411
      %4413 = vmatpush2.msra.mxu0 %v4412
      %4414 = vmatprep.subr.mxu0 0.0
      %v4415 = vand.u32 %v3883, 4294901760
      %v4416 = vsub.f32 %v3883, %v4415
      %4417 = vmatpush2.msra.mxu0 %v4416
      %4418 = vmatprep.subr.mxu0 0.0
      %v4419 = vand.u32 %v3882, 4294901760
      %v4420 = vsub.f32 %v3882, %v4419
      %4421 = vmatpush2.msra.mxu0 %v4420
      %4422 = vmatprep.subr.mxu0 0.0
      %v4423 = vand.u32 %v3881, 4294901760
      %v4424 = vsub.f32 %v3881, %v4423
      %4425 = vmatpush2.msra.mxu0 %v4424
      %4426 = vmatprep.subr.mxu0 0.0
      %v4427 = vand.u32 %v3880, 4294901760
      %v4428 = vsub.f32 %v3880, %v4427
      %4429 = vmatpush2.msra.mxu0 %v4428
      %4430 = vmatprep.subr.mxu0 0.0
      %v4431 = vand.u32 %v3879, 4294901760
      %v4432 = vsub.f32 %v3879, %v4431
      %4433 = vmatpush2.msra.mxu0 %v4432
      %4434 = vmatprep.subr.mxu0 0.0
      %v4435 = vand.u32 %v3878, 4294901760
      %v4436 = vsub.f32 %v3878, %v4435
      %4437 = vmatpush2.msra.mxu0 %v4436
      %4438 = vmatprep.subr.mxu0 0.0
      %v4439 = vand.u32 %v3877, 4294901760
      %v4440 = vsub.f32 %v3877, %v4439
      %4441 = vmatpush2.msra.mxu0 %v4440
      %4442 = vmatprep.subr.mxu0 0.0
      %v4443 = vand.u32 %v3876, 4294901760
      %v4444 = vsub.f32 %v3876, %v4443
      %4445 = vmatpush2.msra.mxu0 %v4444
      %4446 = vmatprep.subr.mxu0 0.0
      %v4447 = vand.u32 %v3875, 4294901760
      %v4448 = vsub.f32 %v3875, %v4447
      %4449 = vmatpush2.msra.mxu0 %v4448
      %4450 = vmatprep.subr.mxu0 0.0
      %v4451 = vand.u32 %v3874, 4294901760
      %v4452 = vsub.f32 %v3874, %v4451
      %4453 = vmatpush2.msra.mxu0 %v4452
      %4454 = vmatprep.subr.mxu0 0.0
      %v4455 = vand.u32 %v3873, 4294901760
      %v4456 = vsub.f32 %v3873, %v4455
      %4457 = vmatpush2.msra.mxu0 %v4456
      %v4458 = vand.u32 %v3899, 4294901760
      %v4459 = vsub.f32 %v3899, %v4458
      %4460 = vmatprep.mubr.f32.mxu0 %v4459
      %v4461 = vand.u32 %v3896, 4294901760
      %v4462 = vsub.f32 %v3896, %v4461
      %4463 = vmatmul.mubr.f32.gmra.mxu0 %v4462
      %v4464 = vpop.f32.mrf.mxu0
      %v4465 = vadd.f32 %v4306, %v4464
      %v4466 = vpop.f32.mrf.mxu0
      %v4467 = vand.u32 %v3903, 4294901760
      %v4468 = vsub.f32 %v3903, %v4467
      %4469 = vmatprep.mubr.f32.mxu0 %v4468
      %v4470 = vand.u32 %v3901, 4294901760
      %v4471 = vsub.f32 %v3901, %v4470
      %4472 = vmatmul.mubr.f32.gmra.mxu0 %v4471
      %v4473 = vpop.f32.mrf.mxu0
      %v4474 = vadd.f32 %v4313, %v4473
      %v4475 = vpop.f32.mrf.mxu0
      %v4476 = vand.u32 %v3907, 4294901760
      %v4477 = vsub.f32 %v3907, %v4476
      %4478 = vmatprep.mubr.f32.mxu0 %v4477
      %v4479 = vand.u32 %v3905, 4294901760
      %v4480 = vsub.f32 %v3905, %v4479
      %4481 = vmatmul.mubr.f32.gmra.mxu0 %v4480
      %v4482 = vpop.f32.mrf.mxu0
      %v4483 = vadd.f32 %v4320, %v4482
      %v4484 = vpop.f32.mrf.mxu0
      %v4485 = vand.u32 %v3911, 4294901760
      %v4486 = vsub.f32 %v3911, %v4485
      %4487 = vmatprep.mubr.f32.mxu0 %v4486
      %v4488 = vand.u32 %v3909, 4294901760
      %v4489 = vsub.f32 %v3909, %v4488
      %4490 = vmatmul.mubr.f32.gmra.mxu0 %v4489
      %v4491 = vpop.f32.mrf.mxu0
      %v4492 = vadd.f32 %v4327, %v4491
      %v4493 = vpop.f32.mrf.mxu0
      %4494 = vdwg.mxu0
      %4495 = vmatprep.subr.mxu0 0.0
      %v4496 = vand.u32 %v3872, 4294901760
      %4497 = vmatpush1.msra.mxu0 %v4496
      %4498 = vmatprep.subr.mxu0 0.0
      %v4499 = vand.u32 %v3871, 4294901760
      %4500 = vmatpush1.msra.mxu0 %v4499
      %4501 = vmatprep.subr.mxu0 0.0
      %v4502 = vand.u32 %v3870, 4294901760
      %4503 = vmatpush1.msra.mxu0 %v4502
      %4504 = vmatprep.subr.mxu0 0.0
      %v4505 = vand.u32 %v3869, 4294901760
      %4506 = vmatpush1.msra.mxu0 %v4505
      %4507 = vmatprep.subr.mxu0 0.0
      %v4508 = vand.u32 %v3868, 4294901760
      %4509 = vmatpush1.msra.mxu0 %v4508
      %4510 = vmatprep.subr.mxu0 0.0
      %v4511 = vand.u32 %v3867, 4294901760
      %4512 = vmatpush1.msra.mxu0 %v4511
      %4513 = vmatprep.subr.mxu0 0.0
      %v4514 = vand.u32 %v3866, 4294901760
      %4515 = vmatpush1.msra.mxu0 %v4514
      %4516 = vmatprep.subr.mxu0 0.0
      %v4517 = vand.u32 %v3865, 4294901760
      %4518 = vmatpush1.msra.mxu0 %v4517
      %4519 = vmatprep.subr.mxu0 0.0
      %v4520 = vand.u32 %v3864, 4294901760
      %4521 = vmatpush1.msra.mxu0 %v4520
      %4522 = vmatprep.subr.mxu0 0.0
      %v4523 = vand.u32 %v3863, 4294901760
      %4524 = vmatpush1.msra.mxu0 %v4523
      %4525 = vmatprep.subr.mxu0 0.0
      %v4526 = vand.u32 %v3862, 4294901760
      %4527 = vmatpush1.msra.mxu0 %v4526
      %4528 = vmatprep.subr.mxu0 0.0
      %v4529 = vand.u32 %v3861, 4294901760
      %4530 = vmatpush1.msra.mxu0 %v4529
      %4531 = vmatprep.subr.mxu0 0.0
      %v4532 = vand.u32 %v3860, 4294901760
      %4533 = vmatpush1.msra.mxu0 %v4532
      %4534 = vmatprep.subr.mxu0 0.0
      %v4535 = vand.u32 %v3859, 4294901760
      %4536 = vmatpush1.msra.mxu0 %v4535
      %4537 = vmatprep.subr.mxu0 0.0
      %v4538 = vand.u32 %v3858, 4294901760
      %4539 = vmatpush1.msra.mxu0 %v4538
      %4540 = vmatprep.subr.mxu0 0.0
      %v4541 = vand.u32 %v3857, 4294901760
      %4542 = vmatpush1.msra.mxu0 %v4541
      %4543 = vmatprep.subr.mxu0 0.0
      %v4544 = vand.u32 %v3888, 4294901760
      %4545 = vmatpush2.msra.mxu0 %v4544
      %4546 = vmatprep.subr.mxu0 0.0
      %v4547 = vand.u32 %v3887, 4294901760
      %4548 = vmatpush2.msra.mxu0 %v4547
      %4549 = vmatprep.subr.mxu0 0.0
      %v4550 = vand.u32 %v3886, 4294901760
      %4551 = vmatpush2.msra.mxu0 %v4550
      %4552 = vmatprep.subr.mxu0 0.0
      %v4553 = vand.u32 %v3885, 4294901760
      %4554 = vmatpush2.msra.mxu0 %v4553
      %4555 = vmatprep.subr.mxu0 0.0
      %v4556 = vand.u32 %v3884, 4294901760
      %4557 = vmatpush2.msra.mxu0 %v4556
      %4558 = vmatprep.subr.mxu0 0.0
      %v4559 = vand.u32 %v3883, 4294901760
      %4560 = vmatpush2.msra.mxu0 %v4559
      %4561 = vmatprep.subr.mxu0 0.0
      %v4562 = vand.u32 %v3882, 4294901760
      %4563 = vmatpush2.msra.mxu0 %v4562
      %4564 = vmatprep.subr.mxu0 0.0
      %v4565 = vand.u32 %v3881, 4294901760
      %4566 = vmatpush2.msra.mxu0 %v4565
      %4567 = vmatprep.subr.mxu0 0.0
      %v4568 = vand.u32 %v3880, 4294901760
      %4569 = vmatpush2.msra.mxu0 %v4568
      %4570 = vmatprep.subr.mxu0 0.0
      %v4571 = vand.u32 %v3879, 4294901760
      %4572 = vmatpush2.msra.mxu0 %v4571
      %4573 = vmatprep.subr.mxu0 0.0
      %v4574 = vand.u32 %v3878, 4294901760
      %4575 = vmatpush2.msra.mxu0 %v4574
      %4576 = vmatprep.subr.mxu0 0.0
      %v4577 = vand.u32 %v3877, 4294901760
      %4578 = vmatpush2.msra.mxu0 %v4577
      %4579 = vmatprep.subr.mxu0 0.0
      %v4580 = vand.u32 %v3876, 4294901760
      %4581 = vmatpush2.msra.mxu0 %v4580
      %4582 = vmatprep.subr.mxu0 0.0
      %v4583 = vand.u32 %v3875, 4294901760
      %4584 = vmatpush2.msra.mxu0 %v4583
      %4585 = vmatprep.subr.mxu0 0.0
      %v4586 = vand.u32 %v3874, 4294901760
      %4587 = vmatpush2.msra.mxu0 %v4586
      %4588 = vmatprep.subr.mxu0 0.0
      %v4589 = vand.u32 %v3873, 4294901760
      %4590 = vmatpush2.msra.mxu0 %v4589
      %v4591 = vand.u32 %v3899, 4294901760
      %v4592 = vsub.f32 %v3899, %v4591
      %v4593 = vand.u32 %v4592, 4294901760
      %4594 = vmatprep.mubr.f32.mxu0 %v4593
      %v4595 = vand.u32 %v3896, 4294901760
      %v4596 = vsub.f32 %v3896, %v4595
      %v4597 = vand.u32 %v4596, 4294901760
      %4598 = vmatmul.mubr.f32.gmra.mxu0 %v4597
      %v4599 = vpop.f32.mrf.mxu0
      %v4600 = vadd.f32 %v4465, %v4599
      %v4601 = vpop.f32.mrf.mxu0
      %v4602 = vand.u32 %v3903, 4294901760
      %v4603 = vsub.f32 %v3903, %v4602
      %v4604 = vand.u32 %v4603, 4294901760
      %4605 = vmatprep.mubr.f32.mxu0 %v4604
      %v4606 = vand.u32 %v3901, 4294901760
      %v4607 = vsub.f32 %v3901, %v4606
      %v4608 = vand.u32 %v4607, 4294901760
      %4609 = vmatmul.mubr.f32.gmra.mxu0 %v4608
      %v4610 = vpop.f32.mrf.mxu0
      %v4611 = vadd.f32 %v4474, %v4610
      %v4612 = vpop.f32.mrf.mxu0
      %v4613 = vand.u32 %v3907, 4294901760
      %v4614 = vsub.f32 %v3907, %v4613
      %v4615 = vand.u32 %v4614, 4294901760
      %4616 = vmatprep.mubr.f32.mxu0 %v4615
      %v4617 = vand.u32 %v3905, 4294901760
      %v4618 = vsub.f32 %v3905, %v4617
      %v4619 = vand.u32 %v4618, 4294901760
      %4620 = vmatmul.mubr.f32.gmra.mxu0 %v4619
      %v4621 = vpop.f32.mrf.mxu0
      %v4622 = vadd.f32 %v4483, %v4621
      %v4623 = vpop.f32.mrf.mxu0
      %v4624 = vand.u32 %v3911, 4294901760
      %v4625 = vsub.f32 %v3911, %v4624
      %v4626 = vand.u32 %v4625, 4294901760
      %4627 = vmatprep.mubr.f32.mxu0 %v4626
      %v4628 = vand.u32 %v3909, 4294901760
      %v4629 = vsub.f32 %v3909, %v4628
      %v4630 = vand.u32 %v4629, 4294901760
      %4631 = vmatmul.mubr.f32.gmra.mxu0 %v4630
      %v4632 = vpop.f32.mrf.mxu0
      %v4633 = vadd.f32 %v4492, %v4632
      %v4634 = vpop.f32.mrf.mxu0
      %4635 = vdwg.mxu0
      %4636 = vmatprep.subr.mxu0 0.0
      %v4637 = vand.u32 %v3872, 4294901760
      %v4638 = vsub.f32 %v3872, %v4637
      %v4639 = vand.u32 %v4638, 4294901760
      %4640 = vmatpush1.msra.mxu0 %v4639
      %4641 = vmatprep.subr.mxu0 0.0
      %v4642 = vand.u32 %v3871, 4294901760
      %v4643 = vsub.f32 %v3871, %v4642
      %v4644 = vand.u32 %v4643, 4294901760
      %4645 = vmatpush1.msra.mxu0 %v4644
      %4646 = vmatprep.subr.mxu0 0.0
      %v4647 = vand.u32 %v3870, 4294901760
      %v4648 = vsub.f32 %v3870, %v4647
      %v4649 = vand.u32 %v4648, 4294901760
      %4650 = vmatpush1.msra.mxu0 %v4649
      %4651 = vmatprep.subr.mxu0 0.0
      %v4652 = vand.u32 %v3869, 4294901760
      %v4653 = vsub.f32 %v3869, %v4652
      %v4654 = vand.u32 %v4653, 4294901760
      %4655 = vmatpush1.msra.mxu0 %v4654
      %4656 = vmatprep.subr.mxu0 0.0
      %v4657 = vand.u32 %v3868, 4294901760
      %v4658 = vsub.f32 %v3868, %v4657
      %v4659 = vand.u32 %v4658, 4294901760
      %4660 = vmatpush1.msra.mxu0 %v4659
      %4661 = vmatprep.subr.mxu0 0.0
      %v4662 = vand.u32 %v3867, 4294901760
      %v4663 = vsub.f32 %v3867, %v4662
      %v4664 = vand.u32 %v4663, 4294901760
      %4665 = vmatpush1.msra.mxu0 %v4664
      %4666 = vmatprep.subr.mxu0 0.0
      %v4667 = vand.u32 %v3866, 4294901760
      %v4668 = vsub.f32 %v3866, %v4667
      %v4669 = vand.u32 %v4668, 4294901760
      %4670 = vmatpush1.msra.mxu0 %v4669
      %4671 = vmatprep.subr.mxu0 0.0
      %v4672 = vand.u32 %v3865, 4294901760
      %v4673 = vsub.f32 %v3865, %v4672
      %v4674 = vand.u32 %v4673, 4294901760
      %4675 = vmatpush1.msra.mxu0 %v4674
      %4676 = vmatprep.subr.mxu0 0.0
      %v4677 = vand.u32 %v3864, 4294901760
      %v4678 = vsub.f32 %v3864, %v4677
      %v4679 = vand.u32 %v4678, 4294901760
      %4680 = vmatpush1.msra.mxu0 %v4679
      %4681 = vmatprep.subr.mxu0 0.0
      %v4682 = vand.u32 %v3863, 4294901760
      %v4683 = vsub.f32 %v3863, %v4682
      %v4684 = vand.u32 %v4683, 4294901760
      %4685 = vmatpush1.msra.mxu0 %v4684
      %4686 = vmatprep.subr.mxu0 0.0
      %v4687 = vand.u32 %v3862, 4294901760
      %v4688 = vsub.f32 %v3862, %v4687
      %v4689 = vand.u32 %v4688, 4294901760
      %4690 = vmatpush1.msra.mxu0 %v4689
      %4691 = vmatprep.subr.mxu0 0.0
      %v4692 = vand.u32 %v3861, 4294901760
      %v4693 = vsub.f32 %v3861, %v4692
      %v4694 = vand.u32 %v4693, 4294901760
      %4695 = vmatpush1.msra.mxu0 %v4694
      %4696 = vmatprep.subr.mxu0 0.0
      %v4697 = vand.u32 %v3860, 4294901760
      %v4698 = vsub.f32 %v3860, %v4697
      %v4699 = vand.u32 %v4698, 4294901760
      %4700 = vmatpush1.msra.mxu0 %v4699
      %4701 = vmatprep.subr.mxu0 0.0
      %v4702 = vand.u32 %v3859, 4294901760
      %v4703 = vsub.f32 %v3859, %v4702
      %v4704 = vand.u32 %v4703, 4294901760
      %4705 = vmatpush1.msra.mxu0 %v4704
      %4706 = vmatprep.subr.mxu0 0.0
      %v4707 = vand.u32 %v3858, 4294901760
      %v4708 = vsub.f32 %v3858, %v4707
      %v4709 = vand.u32 %v4708, 4294901760
      %4710 = vmatpush1.msra.mxu0 %v4709
      %4711 = vmatprep.subr.mxu0 0.0
      %v4712 = vand.u32 %v3857, 4294901760
      %v4713 = vsub.f32 %v3857, %v4712
      %v4714 = vand.u32 %v4713, 4294901760
      %4715 = vmatpush1.msra.mxu0 %v4714
      %4716 = vmatprep.subr.mxu0 0.0
      %v4717 = vand.u32 %v3888, 4294901760
      %v4718 = vsub.f32 %v3888, %v4717
      %v4719 = vand.u32 %v4718, 4294901760
      %4720 = vmatpush2.msra.mxu0 %v4719
      %4721 = vmatprep.subr.mxu0 0.0
      %v4722 = vand.u32 %v3887, 4294901760
      %v4723 = vsub.f32 %v3887, %v4722
      %v4724 = vand.u32 %v4723, 4294901760
      %4725 = vmatpush2.msra.mxu0 %v4724
      %4726 = vmatprep.subr.mxu0 0.0
      %v4727 = vand.u32 %v3886, 4294901760
      %v4728 = vsub.f32 %v3886, %v4727
      %v4729 = vand.u32 %v4728, 4294901760
      %4730 = vmatpush2.msra.mxu0 %v4729
      %4731 = vmatprep.subr.mxu0 0.0
      %v4732 = vand.u32 %v3885, 4294901760
      %v4733 = vsub.f32 %v3885, %v4732
      %v4734 = vand.u32 %v4733, 4294901760
      %4735 = vmatpush2.msra.mxu0 %v4734
      %4736 = vmatprep.subr.mxu0 0.0
      %v4737 = vand.u32 %v3884, 4294901760
      %v4738 = vsub.f32 %v3884, %v4737
      %v4739 = vand.u32 %v4738, 4294901760
      %4740 = vmatpush2.msra.mxu0 %v4739
      %4741 = vmatprep.subr.mxu0 0.0
      %v4742 = vand.u32 %v3883, 4294901760
      %v4743 = vsub.f32 %v3883, %v4742
      %v4744 = vand.u32 %v4743, 4294901760
      %4745 = vmatpush2.msra.mxu0 %v4744
      %4746 = vmatprep.subr.mxu0 0.0
      %v4747 = vand.u32 %v3882, 4294901760
      %v4748 = vsub.f32 %v3882, %v4747
      %v4749 = vand.u32 %v4748, 4294901760
      %4750 = vmatpush2.msra.mxu0 %v4749
      %4751 = vmatprep.subr.mxu0 0.0
      %v4752 = vand.u32 %v3881, 4294901760
      %v4753 = vsub.f32 %v3881, %v4752
      %v4754 = vand.u32 %v4753, 4294901760
      %4755 = vmatpush2.msra.mxu0 %v4754
      %4756 = vmatprep.subr.mxu0 0.0
      %v4757 = vand.u32 %v3880, 4294901760
      %v4758 = vsub.f32 %v3880, %v4757
      %v4759 = vand.u32 %v4758, 4294901760
      %4760 = vmatpush2.msra.mxu0 %v4759
      %4761 = vmatprep.subr.mxu0 0.0
      %v4762 = vand.u32 %v3879, 4294901760
      %v4763 = vsub.f32 %v3879, %v4762
      %v4764 = vand.u32 %v4763, 4294901760
      %4765 = vmatpush2.msra.mxu0 %v4764
      %4766 = vmatprep.subr.mxu0 0.0
      %v4767 = vand.u32 %v3878, 4294901760
      %v4768 = vsub.f32 %v3878, %v4767
      %v4769 = vand.u32 %v4768, 4294901760
      %4770 = vmatpush2.msra.mxu0 %v4769
      %4771 = vmatprep.subr.mxu0 0.0
      %v4772 = vand.u32 %v3877, 4294901760
      %v4773 = vsub.f32 %v3877, %v4772
      %v4774 = vand.u32 %v4773, 4294901760
      %4775 = vmatpush2.msra.mxu0 %v4774
      %4776 = vmatprep.subr.mxu0 0.0
      %v4777 = vand.u32 %v3876, 4294901760
      %v4778 = vsub.f32 %v3876, %v4777
      %v4779 = vand.u32 %v4778, 4294901760
      %4780 = vmatpush2.msra.mxu0 %v4779
      %4781 = vmatprep.subr.mxu0 0.0
      %v4782 = vand.u32 %v3875, 4294901760
      %v4783 = vsub.f32 %v3875, %v4782
      %v4784 = vand.u32 %v4783, 4294901760
      %4785 = vmatpush2.msra.mxu0 %v4784
      %4786 = vmatprep.subr.mxu0 0.0
      %v4787 = vand.u32 %v3874, 4294901760
      %v4788 = vsub.f32 %v3874, %v4787
      %v4789 = vand.u32 %v4788, 4294901760
      %4790 = vmatpush2.msra.mxu0 %v4789
      %4791 = vmatprep.subr.mxu0 0.0
      %v4792 = vand.u32 %v3873, 4294901760
      %v4793 = vsub.f32 %v3873, %v4792
      %v4794 = vand.u32 %v4793, 4294901760
      %4795 = vmatpush2.msra.mxu0 %v4794
      %v4796 = vand.u32 %v3899, 4294901760
      %4797 = vmatprep.mubr.f32.mxu0 %v4796
      %v4798 = vand.u32 %v3896, 4294901760
      %4799 = vmatmul.mubr.f32.gmra.mxu0 %v4798
      %v4800 = vpop.f32.mrf.mxu0
      %v4801 = vadd.f32 %v4600, %v4800
      %v4802 = vpop.f32.mrf.mxu0
      %v4803 = vand.u32 %v3903, 4294901760
      %4804 = vmatprep.mubr.f32.mxu0 %v4803
      %v4805 = vand.u32 %v3901, 4294901760
      %4806 = vmatmul.mubr.f32.gmra.mxu0 %v4805
      %v4807 = vpop.f32.mrf.mxu0
      %v4808 = vadd.f32 %v4611, %v4807
      %v4809 = vpop.f32.mrf.mxu0
      %v4810 = vand.u32 %v3907, 4294901760
      %4811 = vmatprep.mubr.f32.mxu0 %v4810
      %v4812 = vand.u32 %v3905, 4294901760
      %4813 = vmatmul.mubr.f32.gmra.mxu0 %v4812
      %v4814 = vpop.f32.mrf.mxu0
      %v4815 = vadd.f32 %v4622, %v4814
      %v4816 = vpop.f32.mrf.mxu0
      %v4817 = vand.u32 %v3911, 4294901760
      %4818 = vmatprep.mubr.f32.mxu0 %v4817
      %v4819 = vand.u32 %v3909, 4294901760
      %4820 = vmatmul.mubr.f32.gmra.mxu0 %v4819
      %v4821 = vpop.f32.mrf.mxu0
      %v4822 = vadd.f32 %v4633, %v4821
      %v4823 = vpop.f32.mrf.mxu0
      %4824 = vdwg.mxu0
      %4825 = vmatprep.subr.mxu0 0.0
      %v4826 = vand.u32 %v3872, 4294901760
      %4827 = vmatpush1.msra.mxu0 %v4826
      %4828 = vmatprep.subr.mxu0 0.0
      %v4829 = vand.u32 %v3871, 4294901760
      %4830 = vmatpush1.msra.mxu0 %v4829
      %4831 = vmatprep.subr.mxu0 0.0
      %v4832 = vand.u32 %v3870, 4294901760
      %4833 = vmatpush1.msra.mxu0 %v4832
      %4834 = vmatprep.subr.mxu0 0.0
      %v4835 = vand.u32 %v3869, 4294901760
      %4836 = vmatpush1.msra.mxu0 %v4835
      %4837 = vmatprep.subr.mxu0 0.0
      %v4838 = vand.u32 %v3868, 4294901760
      %4839 = vmatpush1.msra.mxu0 %v4838
      %4840 = vmatprep.subr.mxu0 0.0
      %v4841 = vand.u32 %v3867, 4294901760
      %4842 = vmatpush1.msra.mxu0 %v4841
      %4843 = vmatprep.subr.mxu0 0.0
      %v4844 = vand.u32 %v3866, 4294901760
      %4845 = vmatpush1.msra.mxu0 %v4844
      %4846 = vmatprep.subr.mxu0 0.0
      %v4847 = vand.u32 %v3865, 4294901760
      %4848 = vmatpush1.msra.mxu0 %v4847
      %4849 = vmatprep.subr.mxu0 0.0
      %v4850 = vand.u32 %v3864, 4294901760
      %4851 = vmatpush1.msra.mxu0 %v4850
      %4852 = vmatprep.subr.mxu0 0.0
      %v4853 = vand.u32 %v3863, 4294901760
      %4854 = vmatpush1.msra.mxu0 %v4853
      %4855 = vmatprep.subr.mxu0 0.0
      %v4856 = vand.u32 %v3862, 4294901760
      %4857 = vmatpush1.msra.mxu0 %v4856
      %4858 = vmatprep.subr.mxu0 0.0
      %v4859 = vand.u32 %v3861, 4294901760
      %4860 = vmatpush1.msra.mxu0 %v4859
      %4861 = vmatprep.subr.mxu0 0.0
      %v4862 = vand.u32 %v3860, 4294901760
      %4863 = vmatpush1.msra.mxu0 %v4862
      %4864 = vmatprep.subr.mxu0 0.0
      %v4865 = vand.u32 %v3859, 4294901760
      %4866 = vmatpush1.msra.mxu0 %v4865
      %4867 = vmatprep.subr.mxu0 0.0
      %v4868 = vand.u32 %v3858, 4294901760
      %4869 = vmatpush1.msra.mxu0 %v4868
      %4870 = vmatprep.subr.mxu0 0.0
      %v4871 = vand.u32 %v3857, 4294901760
      %4872 = vmatpush1.msra.mxu0 %v4871
      %4873 = vmatprep.subr.mxu0 0.0
      %v4874 = vand.u32 %v3888, 4294901760
      %4875 = vmatpush2.msra.mxu0 %v4874
      %4876 = vmatprep.subr.mxu0 0.0
      %v4877 = vand.u32 %v3887, 4294901760
      %4878 = vmatpush2.msra.mxu0 %v4877
      %4879 = vmatprep.subr.mxu0 0.0
      %v4880 = vand.u32 %v3886, 4294901760
      %4881 = vmatpush2.msra.mxu0 %v4880
      %4882 = vmatprep.subr.mxu0 0.0
      %v4883 = vand.u32 %v3885, 4294901760
      %4884 = vmatpush2.msra.mxu0 %v4883
      %4885 = vmatprep.subr.mxu0 0.0
      %v4886 = vand.u32 %v3884, 4294901760
      %4887 = vmatpush2.msra.mxu0 %v4886
      %4888 = vmatprep.subr.mxu0 0.0
      %v4889 = vand.u32 %v3883, 4294901760
      %4890 = vmatpush2.msra.mxu0 %v4889
      %4891 = vmatprep.subr.mxu0 0.0
      %v4892 = vand.u32 %v3882, 4294901760
      %4893 = vmatpush2.msra.mxu0 %v4892
      %4894 = vmatprep.subr.mxu0 0.0
      %v4895 = vand.u32 %v3881, 4294901760
      %4896 = vmatpush2.msra.mxu0 %v4895
      %4897 = vmatprep.subr.mxu0 0.0
      %v4898 = vand.u32 %v3880, 4294901760
      %4899 = vmatpush2.msra.mxu0 %v4898
      %4900 = vmatprep.subr.mxu0 0.0
      %v4901 = vand.u32 %v3879, 4294901760
      %4902 = vmatpush2.msra.mxu0 %v4901
      %4903 = vmatprep.subr.mxu0 0.0
      %v4904 = vand.u32 %v3878, 4294901760
      %4905 = vmatpush2.msra.mxu0 %v4904
      %4906 = vmatprep.subr.mxu0 0.0
      %v4907 = vand.u32 %v3877, 4294901760
      %4908 = vmatpush2.msra.mxu0 %v4907
      %4909 = vmatprep.subr.mxu0 0.0
      %v4910 = vand.u32 %v3876, 4294901760
      %4911 = vmatpush2.msra.mxu0 %v4910
      %4912 = vmatprep.subr.mxu0 0.0
      %v4913 = vand.u32 %v3875, 4294901760
      %4914 = vmatpush2.msra.mxu0 %v4913
      %4915 = vmatprep.subr.mxu0 0.0
      %v4916 = vand.u32 %v3874, 4294901760
      %4917 = vmatpush2.msra.mxu0 %v4916
      %4918 = vmatprep.subr.mxu0 0.0
      %v4919 = vand.u32 %v3873, 4294901760
      %4920 = vmatpush2.msra.mxu0 %v4919
      %v4921 = vand.u32 %v3899, 4294901760
      %4922 = vmatprep.mubr.f32.mxu0 %v4921
      %v4923 = vand.u32 %v3896, 4294901760
      %4924 = vmatmul.mubr.f32.gmra.mxu0 %v4923
      %v4925 = vpop.f32.mrf.mxu0
      %v4926 = vadd.f32 %v4801, %v4925
      %v4927 = vpop.f32.mrf.mxu0
      %v4928 = vand.u32 %v3903, 4294901760
      %4929 = vmatprep.mubr.f32.mxu0 %v4928
      %v4930 = vand.u32 %v3901, 4294901760
      %4931 = vmatmul.mubr.f32.gmra.mxu0 %v4930
      %v4932 = vpop.f32.mrf.mxu0
      %v4933 = vadd.f32 %v4808, %v4932
      %v4934 = vpop.f32.mrf.mxu0
      %v4935 = vand.u32 %v3907, 4294901760
      %4936 = vmatprep.mubr.f32.mxu0 %v4935
      %v4937 = vand.u32 %v3905, 4294901760
      %4938 = vmatmul.mubr.f32.gmra.mxu0 %v4937
      %v4939 = vpop.f32.mrf.mxu0
      %v4940 = vadd.f32 %v4815, %v4939
      %v4941 = vpop.f32.mrf.mxu0
      %v4942 = vand.u32 %v3911, 4294901760
      %4943 = vmatprep.mubr.f32.mxu0 %v4942
      %v4944 = vand.u32 %v3909, 4294901760
      %4945 = vmatmul.mubr.f32.gmra.mxu0 %v4944
      %v4946 = vpop.f32.mrf.mxu0
      %v4947 = vadd.f32 %v4822, %v4946
      %v4948 = vpop.f32.mrf.mxu0
      %4949 = vdwg.mxu0
      %v4950 = vadd.f32 %v3828, %v4926
      %v4951 = vadd.f32 %v3835, %v4933
      %v4952 = vadd.f32 %v3842, %v4940
      %v4953 = vadd.f32 %v3849, %v4947
      %v4954 = vld [vmem:[%s6] sm:$0x1]
      %v4956 = vlaneseq
      %v4957 = vshrl.u32 %v4956, 7
      %v4958 = vsub.s32 0, %v4957
      %v4959 = vrot.slane %v4954, %v4958
      %v4961 = vadd.f32 %v4950, %v4959
      %v4962 = vadd.f32 %v4951, %v4959
      %v4963 = vadd.f32 %v4952, %v4959
      %v4964 = vadd.f32 %v4953, %v4959
      %v4965 = vmax.f32 %v4961, 0.0
      %v4966 = vmax.f32 %v4962, 0.0
      %v4967 = vmax.f32 %v4963, 0.0
      %v4968 = vmax.f32 %v4964, 0.0
      %4969 = vst [vmem:[#allocation3 + $0x1] sm:$0xff] %v4965
      %4970 = vst [vmem:[#allocation3 + $0x9] sm:$0xff] %v4966
      %4971 = vst [vmem:[#allocation3 + $0x11] sm:$0xff] %v4967
      %4972 = vst [vmem:[#allocation3 + $0x19] sm:$0xff] %v4968
      %v4973 = vld [vmem:[#allocation3] sm:$0xff]
      %v4974 = vld [vmem:[#allocation3 + $0x8] sm:$0xff]
      %v4975 = vld [vmem:[#allocation3 + $0x10] sm:$0xff]
      %v4976 = vld [vmem:[#allocation3 + $0x18] sm:$0xff]
      %v4977 = vld [vmem:[%s5] sm:$0xff]
      %v4978 = vld [vmem:[%s5 + $0x8] sm:$0xff]
      %v4979 = vld [vmem:[%s5 + $0x10] sm:$0xff]
      %v4980 = vld [vmem:[%s5 + $0x18] sm:$0xff]
      %v4981 = vld [vmem:[%s5 + $0x20] sm:$0xff]
      %v4982 = vld [vmem:[%s5 + $0x28] sm:$0xff]
      %v4983 = vld [vmem:[%s5 + $0x30] sm:$0xff]
      %v4984 = vld [vmem:[%s5 + $0x38] sm:$0xff]
      %v4985 = vld [vmem:[%s5 + $0x40] sm:$0xff]
      %v4986 = vld [vmem:[%s5 + $0x48] sm:$0xff]
      %v4987 = vld [vmem:[%s5 + $0x50] sm:$0xff]
      %v4988 = vld [vmem:[%s5 + $0x58] sm:$0xff]
      %v4989 = vld [vmem:[%s5 + $0x60] sm:$0xff]
      %v4990 = vld [vmem:[%s5 + $0x68] sm:$0xff]
      %v4991 = vld [vmem:[%s5 + $0x70] sm:$0xff]
      %v4992 = vld [vmem:[%s5 + $0x78] sm:$0xff]
      %v4993 = vld [vmem:[#allocation3 + $0x1] sm:$0xff]
      %v4994 = vld [vmem:[#allocation3 + $0x9] sm:$0xff]
      %v4995 = vld [vmem:[#allocation3 + $0x11] sm:$0xff]
      %v4996 = vld [vmem:[#allocation3 + $0x19] sm:$0xff]
      %s4997 = scalar_lea.vmem %s5, 128
      %v4998 = vld [vmem:[%s4997] sm:$0xff]
      %v4999 = vld [vmem:[%s4997 + $0x8] sm:$0xff]
      %v5000 = vld [vmem:[%s4997 + $0x10] sm:$0xff]
      %v5001 = vld [vmem:[%s4997 + $0x18] sm:$0xff]
      %v5002 = vld [vmem:[%s4997 + $0x20] sm:$0xff]
      %v5003 = vld [vmem:[%s4997 + $0x28] sm:$0xff]
      %v5004 = vld [vmem:[%s4997 + $0x30] sm:$0xff]
      %v5005 = vld [vmem:[%s4997 + $0x38] sm:$0xff]
      %v5006 = vld [vmem:[%s4997 + $0x40] sm:$0xff]
      %v5007 = vld [vmem:[%s4997 + $0x48] sm:$0xff]
      %v5008 = vld [vmem:[%s4997 + $0x50] sm:$0xff]
      %v5009 = vld [vmem:[%s4997 + $0x58] sm:$0xff]
      %v5010 = vld [vmem:[%s4997 + $0x60] sm:$0xff]
      %v5011 = vld [vmem:[%s4997 + $0x68] sm:$0xff]
      %v5012 = vld [vmem:[%s4997 + $0x70] sm:$0xff]
      %v5013 = vld [vmem:[%s4997 + $0x78] sm:$0xff]
      %5014 = vmatprep.subr.mxu0 0.0
      %v5015 = vand.u32 %v5013, 4294901760
      %5016 = vmatpush1.msra.mxu0 %v5015
      %5017 = vmatprep.subr.mxu0 0.0
      %v5018 = vand.u32 %v5012, 4294901760
      %5019 = vmatpush1.msra.mxu0 %v5018
      %5020 = vmatprep.subr.mxu0 0.0
      %v5021 = vand.u32 %v5011, 4294901760
      %5022 = vmatpush1.msra.mxu0 %v5021
      %5023 = vmatprep.subr.mxu0 0.0
      %v5024 = vand.u32 %v5010, 4294901760
      %5025 = vmatpush1.msra.mxu0 %v5024
      %5026 = vmatprep.subr.mxu0 0.0
      %v5027 = vand.u32 %v5009, 4294901760
      %5028 = vmatpush1.msra.mxu0 %v5027
      %5029 = vmatprep.subr.mxu0 0.0
      %v5030 = vand.u32 %v5008, 4294901760
      %5031 = vmatpush1.msra.mxu0 %v5030
      %5032 = vmatprep.subr.mxu0 0.0
      %v5033 = vand.u32 %v5007, 4294901760
      %5034 = vmatpush1.msra.mxu0 %v5033
      %5035 = vmatprep.subr.mxu0 0.0
      %v5036 = vand.u32 %v5006, 4294901760
      %5037 = vmatpush1.msra.mxu0 %v5036
      %5038 = vmatprep.subr.mxu0 0.0
      %v5039 = vand.u32 %v5005, 4294901760
      %5040 = vmatpush1.msra.mxu0 %v5039
      %5041 = vmatprep.subr.mxu0 0.0
      %v5042 = vand.u32 %v5004, 4294901760
      %5043 = vmatpush1.msra.mxu0 %v5042
      %5044 = vmatprep.subr.mxu0 0.0
      %v5045 = vand.u32 %v5003, 4294901760
      %5046 = vmatpush1.msra.mxu0 %v5045
      %5047 = vmatprep.subr.mxu0 0.0
      %v5048 = vand.u32 %v5002, 4294901760
      %5049 = vmatpush1.msra.mxu0 %v5048
      %5050 = vmatprep.subr.mxu0 0.0
      %v5051 = vand.u32 %v5001, 4294901760
      %5052 = vmatpush1.msra.mxu0 %v5051
      %5053 = vmatprep.subr.mxu0 0.0
      %v5054 = vand.u32 %v5000, 4294901760
      %5055 = vmatpush1.msra.mxu0 %v5054
      %5056 = vmatprep.subr.mxu0 0.0
      %v5057 = vand.u32 %v4999, 4294901760
      %5058 = vmatpush1.msra.mxu0 %v5057
      %5059 = vmatprep.subr.mxu0 0.0
      %v5060 = vand.u32 %v4998, 4294901760
      %5061 = vmatpush1.msra.mxu0 %v5060
      %5062 = vmatprep.subr.mxu0 0.0
      %5063 = vmatpush2.msra.mxu0 0.0
      %5064 = vmatprep.subr.mxu0 0.0
      %5065 = vmatpush2.msra.mxu0 0.0
      %5066 = vmatprep.subr.mxu0 0.0
      %5067 = vmatpush2.msra.mxu0 0.0
      %5068 = vmatprep.subr.mxu0 0.0
      %5069 = vmatpush2.msra.mxu0 0.0
      %5070 = vmatprep.subr.mxu0 0.0
      %5071 = vmatpush2.msra.mxu0 0.0
      %5072 = vmatprep.subr.mxu0 0.0
      %5073 = vmatpush2.msra.mxu0 0.0
      %5074 = vmatprep.subr.mxu0 0.0
      %5075 = vmatpush2.msra.mxu0 0.0
      %5076 = vmatprep.subr.mxu0 0.0
      %5077 = vmatpush2.msra.mxu0 0.0
      %5078 = vmatprep.subr.mxu0 0.0
      %5079 = vmatpush2.msra.mxu0 0.0
      %5080 = vmatprep.subr.mxu0 0.0
      %5081 = vmatpush2.msra.mxu0 0.0
      %5082 = vmatprep.subr.mxu0 0.0
      %5083 = vmatpush2.msra.mxu0 0.0
      %5084 = vmatprep.subr.mxu0 0.0
      %5085 = vmatpush2.msra.mxu0 0.0
      %5086 = vmatprep.subr.mxu0 0.0
      %5087 = vmatpush2.msra.mxu0 0.0
      %5088 = vmatprep.subr.mxu0 0.0
      %5089 = vmatpush2.msra.mxu0 0.0
      %5090 = vmatprep.subr.mxu0 0.0
      %5091 = vmatpush2.msra.mxu0 0.0
      %5092 = vmatprep.subr.mxu0 0.0
      %5093 = vmatpush2.msra.mxu0 0.0
      %5094 = vmatprep.mubr.f32.mxu0 0.0
      %v5095 = vand.u32 %v4993, 4294901760
      %v5096 = vsub.f32 %v4993, %v5095
      %v5097 = vand.u32 %v5096, 4294901760
      %v5098 = vsub.f32 %v5096, %v5097
      %v5099 = vand.u32 %v5098, 4294901760
      %5100 = vmatmul.mubr.f32.gmra.mxu0 %v5099
      %v5101 = vpop.f32.mrf.mxu0
      %v5102 = vadd.f32 0.0, %v5101
      %v5103 = vpop.f32.mrf.mxu0
      %5104 = vmatprep.mubr.f32.mxu0 0.0
      %v5105 = vand.u32 %v4994, 4294901760
      %v5106 = vsub.f32 %v4994, %v5105
      %v5107 = vand.u32 %v5106, 4294901760
      %v5108 = vsub.f32 %v5106, %v5107
      %v5109 = vand.u32 %v5108, 4294901760
      %5110 = vmatmul.mubr.f32.gmra.mxu0 %v5109
      %v5111 = vpop.f32.mrf.mxu0
      %v5112 = vadd.f32 0.0, %v5111
      %v5113 = vpop.f32.mrf.mxu0
      %5114 = vmatprep.mubr.f32.mxu0 0.0
      %v5115 = vand.u32 %v4995, 4294901760
      %v5116 = vsub.f32 %v4995, %v5115
      %v5117 = vand.u32 %v5116, 4294901760
      %v5118 = vsub.f32 %v5116, %v5117
      %v5119 = vand.u32 %v5118, 4294901760
      %5120 = vmatmul.mubr.f32.gmra.mxu0 %v5119
      %v5121 = vpop.f32.mrf.mxu0
      %v5122 = vadd.f32 0.0, %v5121
      %v5123 = vpop.f32.mrf.mxu0
      %5124 = vmatprep.mubr.f32.mxu0 0.0
      %v5125 = vand.u32 %v4996, 4294901760
      %v5126 = vsub.f32 %v4996, %v5125
      %v5127 = vand.u32 %v5126, 4294901760
      %v5128 = vsub.f32 %v5126, %v5127
      %v5129 = vand.u32 %v5128, 4294901760
      %5130 = vmatmul.mubr.f32.gmra.mxu0 %v5129
      %v5131 = vpop.f32.mrf.mxu0
      %v5132 = vadd.f32 0.0, %v5131
      %v5133 = vpop.f32.mrf.mxu0
      %5134 = vdwg.mxu0
      %5135 = vmatprep.subr.mxu0 0.0
      %v5136 = vand.u32 %v5013, 4294901760
      %v5137 = vsub.f32 %v5013, %v5136
      %v5138 = vand.u32 %v5137, 4294901760
      %v5139 = vsub.f32 %v5137, %v5138
      %v5140 = vand.u32 %v5139, 4294901760
      %5141 = vmatpush1.msra.mxu0 %v5140
      %5142 = vmatprep.subr.mxu0 0.0
      %v5143 = vand.u32 %v5012, 4294901760
      %v5144 = vsub.f32 %v5012, %v5143
      %v5145 = vand.u32 %v5144, 4294901760
      %v5146 = vsub.f32 %v5144, %v5145
      %v5147 = vand.u32 %v5146, 4294901760
      %5148 = vmatpush1.msra.mxu0 %v5147
      %5149 = vmatprep.subr.mxu0 0.0
      %v5150 = vand.u32 %v5011, 4294901760
      %v5151 = vsub.f32 %v5011, %v5150
      %v5152 = vand.u32 %v5151, 4294901760
      %v5153 = vsub.f32 %v5151, %v5152
      %v5154 = vand.u32 %v5153, 4294901760
      %5155 = vmatpush1.msra.mxu0 %v5154
      %5156 = vmatprep.subr.mxu0 0.0
      %v5157 = vand.u32 %v5010, 4294901760
      %v5158 = vsub.f32 %v5010, %v5157
      %v5159 = vand.u32 %v5158, 4294901760
      %v5160 = vsub.f32 %v5158, %v5159
      %v5161 = vand.u32 %v5160, 4294901760
      %5162 = vmatpush1.msra.mxu0 %v5161
      %5163 = vmatprep.subr.mxu0 0.0
      %v5164 = vand.u32 %v5009, 4294901760
      %v5165 = vsub.f32 %v5009, %v5164
      %v5166 = vand.u32 %v5165, 4294901760
      %v5167 = vsub.f32 %v5165, %v5166
      %v5168 = vand.u32 %v5167, 4294901760
      %5169 = vmatpush1.msra.mxu0 %v5168
      %5170 = vmatprep.subr.mxu0 0.0
      %v5171 = vand.u32 %v5008, 4294901760
      %v5172 = vsub.f32 %v5008, %v5171
      %v5173 = vand.u32 %v5172, 4294901760
      %v5174 = vsub.f32 %v5172, %v5173
      %v5175 = vand.u32 %v5174, 4294901760
      %5176 = vmatpush1.msra.mxu0 %v5175
      %5177 = vmatprep.subr.mxu0 0.0
      %v5178 = vand.u32 %v5007, 4294901760
      %v5179 = vsub.f32 %v5007, %v5178
      %v5180 = vand.u32 %v5179, 4294901760
      %v5181 = vsub.f32 %v5179, %v5180
      %v5182 = vand.u32 %v5181, 4294901760
      %5183 = vmatpush1.msra.mxu0 %v5182
      %5184 = vmatprep.subr.mxu0 0.0
      %v5185 = vand.u32 %v5006, 4294901760
      %v5186 = vsub.f32 %v5006, %v5185
      %v5187 = vand.u32 %v5186, 4294901760
      %v5188 = vsub.f32 %v5186, %v5187
      %v5189 = vand.u32 %v5188, 4294901760
      %5190 = vmatpush1.msra.mxu0 %v5189
      %5191 = vmatprep.subr.mxu0 0.0
      %v5192 = vand.u32 %v5005, 4294901760
      %v5193 = vsub.f32 %v5005, %v5192
      %v5194 = vand.u32 %v5193, 4294901760
      %v5195 = vsub.f32 %v5193, %v5194
      %v5196 = vand.u32 %v5195, 4294901760
      %5197 = vmatpush1.msra.mxu0 %v5196
      %5198 = vmatprep.subr.mxu0 0.0
      %v5199 = vand.u32 %v5004, 4294901760
      %v5200 = vsub.f32 %v5004, %v5199
      %v5201 = vand.u32 %v5200, 4294901760
      %v5202 = vsub.f32 %v5200, %v5201
      %v5203 = vand.u32 %v5202, 4294901760
      %5204 = vmatpush1.msra.mxu0 %v5203
      %5205 = vmatprep.subr.mxu0 0.0
      %v5206 = vand.u32 %v5003, 4294901760
      %v5207 = vsub.f32 %v5003, %v5206
      %v5208 = vand.u32 %v5207, 4294901760
      %v5209 = vsub.f32 %v5207, %v5208
      %v5210 = vand.u32 %v5209, 4294901760
      %5211 = vmatpush1.msra.mxu0 %v5210
      %5212 = vmatprep.subr.mxu0 0.0
      %v5213 = vand.u32 %v5002, 4294901760
      %v5214 = vsub.f32 %v5002, %v5213
      %v5215 = vand.u32 %v5214, 4294901760
      %v5216 = vsub.f32 %v5214, %v5215
      %v5217 = vand.u32 %v5216, 4294901760
      %5218 = vmatpush1.msra.mxu0 %v5217
      %5219 = vmatprep.subr.mxu0 0.0
      %v5220 = vand.u32 %v5001, 4294901760
      %v5221 = vsub.f32 %v5001, %v5220
      %v5222 = vand.u32 %v5221, 4294901760
      %v5223 = vsub.f32 %v5221, %v5222
      %v5224 = vand.u32 %v5223, 4294901760
      %5225 = vmatpush1.msra.mxu0 %v5224
      %5226 = vmatprep.subr.mxu0 0.0
      %v5227 = vand.u32 %v5000, 4294901760
      %v5228 = vsub.f32 %v5000, %v5227
      %v5229 = vand.u32 %v5228, 4294901760
      %v5230 = vsub.f32 %v5228, %v5229
      %v5231 = vand.u32 %v5230, 4294901760
      %5232 = vmatpush1.msra.mxu0 %v5231
      %5233 = vmatprep.subr.mxu0 0.0
      %v5234 = vand.u32 %v4999, 4294901760
      %v5235 = vsub.f32 %v4999, %v5234
      %v5236 = vand.u32 %v5235, 4294901760
      %v5237 = vsub.f32 %v5235, %v5236
      %v5238 = vand.u32 %v5237, 4294901760
      %5239 = vmatpush1.msra.mxu0 %v5238
      %5240 = vmatprep.subr.mxu0 0.0
      %v5241 = vand.u32 %v4998, 4294901760
      %v5242 = vsub.f32 %v4998, %v5241
      %v5243 = vand.u32 %v5242, 4294901760
      %v5244 = vsub.f32 %v5242, %v5243
      %v5245 = vand.u32 %v5244, 4294901760
      %5246 = vmatpush1.msra.mxu0 %v5245
      %5247 = vmatprep.subr.mxu0 0.0
      %5248 = vmatpush2.msra.mxu0 0.0
      %5249 = vmatprep.subr.mxu0 0.0
      %5250 = vmatpush2.msra.mxu0 0.0
      %5251 = vmatprep.subr.mxu0 0.0
      %5252 = vmatpush2.msra.mxu0 0.0
      %5253 = vmatprep.subr.mxu0 0.0
      %5254 = vmatpush2.msra.mxu0 0.0
      %5255 = vmatprep.subr.mxu0 0.0
      %5256 = vmatpush2.msra.mxu0 0.0
      %5257 = vmatprep.subr.mxu0 0.0
      %5258 = vmatpush2.msra.mxu0 0.0
      %5259 = vmatprep.subr.mxu0 0.0
      %5260 = vmatpush2.msra.mxu0 0.0
      %5261 = vmatprep.subr.mxu0 0.0
      %5262 = vmatpush2.msra.mxu0 0.0
      %5263 = vmatprep.subr.mxu0 0.0
      %5264 = vmatpush2.msra.mxu0 0.0
      %5265 = vmatprep.subr.mxu0 0.0
      %5266 = vmatpush2.msra.mxu0 0.0
      %5267 = vmatprep.subr.mxu0 0.0
      %5268 = vmatpush2.msra.mxu0 0.0
      %5269 = vmatprep.subr.mxu0 0.0
      %5270 = vmatpush2.msra.mxu0 0.0
      %5271 = vmatprep.subr.mxu0 0.0
      %5272 = vmatpush2.msra.mxu0 0.0
      %5273 = vmatprep.subr.mxu0 0.0
      %5274 = vmatpush2.msra.mxu0 0.0
      %5275 = vmatprep.subr.mxu0 0.0
      %5276 = vmatpush2.msra.mxu0 0.0
      %5277 = vmatprep.subr.mxu0 0.0
      %5278 = vmatpush2.msra.mxu0 0.0
      %5279 = vmatprep.mubr.f32.mxu0 0.0
      %v5280 = vand.u32 %v4993, 4294901760
      %5281 = vmatmul.mubr.f32.gmra.mxu0 %v5280
      %v5282 = vpop.f32.mrf.mxu0
      %v5283 = vadd.f32 %v5102, %v5282
      %v5284 = vpop.f32.mrf.mxu0
      %5285 = vmatprep.mubr.f32.mxu0 0.0
      %v5286 = vand.u32 %v4994, 4294901760
      %5287 = vmatmul.mubr.f32.gmra.mxu0 %v5286
      %v5288 = vpop.f32.mrf.mxu0
      %v5289 = vadd.f32 %v5112, %v5288
      %v5290 = vpop.f32.mrf.mxu0
      %5291 = vmatprep.mubr.f32.mxu0 0.0
      %v5292 = vand.u32 %v4995, 4294901760
      %5293 = vmatmul.mubr.f32.gmra.mxu0 %v5292
      %v5294 = vpop.f32.mrf.mxu0
      %v5295 = vadd.f32 %v5122, %v5294
      %v5296 = vpop.f32.mrf.mxu0
      %5297 = vmatprep.mubr.f32.mxu0 0.0
      %v5298 = vand.u32 %v4996, 4294901760
      %5299 = vmatmul.mubr.f32.gmra.mxu0 %v5298
      %v5300 = vpop.f32.mrf.mxu0
      %v5301 = vadd.f32 %v5132, %v5300
      %v5302 = vpop.f32.mrf.mxu0
      %5303 = vdwg.mxu0
      %5304 = vmatprep.subr.mxu0 0.0
      %v5305 = vand.u32 %v5013, 4294901760
      %v5306 = vsub.f32 %v5013, %v5305
      %5307 = vmatpush1.msra.mxu0 %v5306
      %5308 = vmatprep.subr.mxu0 0.0
      %v5309 = vand.u32 %v5012, 4294901760
      %v5310 = vsub.f32 %v5012, %v5309
      %5311 = vmatpush1.msra.mxu0 %v5310
      %5312 = vmatprep.subr.mxu0 0.0
      %v5313 = vand.u32 %v5011, 4294901760
      %v5314 = vsub.f32 %v5011, %v5313
      %5315 = vmatpush1.msra.mxu0 %v5314
      %5316 = vmatprep.subr.mxu0 0.0
      %v5317 = vand.u32 %v5010, 4294901760
      %v5318 = vsub.f32 %v5010, %v5317
      %5319 = vmatpush1.msra.mxu0 %v5318
      %5320 = vmatprep.subr.mxu0 0.0
      %v5321 = vand.u32 %v5009, 4294901760
      %v5322 = vsub.f32 %v5009, %v5321
      %5323 = vmatpush1.msra.mxu0 %v5322
      %5324 = vmatprep.subr.mxu0 0.0
      %v5325 = vand.u32 %v5008, 4294901760
      %v5326 = vsub.f32 %v5008, %v5325
      %5327 = vmatpush1.msra.mxu0 %v5326
      %5328 = vmatprep.subr.mxu0 0.0
      %v5329 = vand.u32 %v5007, 4294901760
      %v5330 = vsub.f32 %v5007, %v5329
      %5331 = vmatpush1.msra.mxu0 %v5330
      %5332 = vmatprep.subr.mxu0 0.0
      %v5333 = vand.u32 %v5006, 4294901760
      %v5334 = vsub.f32 %v5006, %v5333
      %5335 = vmatpush1.msra.mxu0 %v5334
      %5336 = vmatprep.subr.mxu0 0.0
      %v5337 = vand.u32 %v5005, 4294901760
      %v5338 = vsub.f32 %v5005, %v5337
      %5339 = vmatpush1.msra.mxu0 %v5338
      %5340 = vmatprep.subr.mxu0 0.0
      %v5341 = vand.u32 %v5004, 4294901760
      %v5342 = vsub.f32 %v5004, %v5341
      %5343 = vmatpush1.msra.mxu0 %v5342
      %5344 = vmatprep.subr.mxu0 0.0
      %v5345 = vand.u32 %v5003, 4294901760
      %v5346 = vsub.f32 %v5003, %v5345
      %5347 = vmatpush1.msra.mxu0 %v5346
      %5348 = vmatprep.subr.mxu0 0.0
      %v5349 = vand.u32 %v5002, 4294901760
      %v5350 = vsub.f32 %v5002, %v5349
      %5351 = vmatpush1.msra.mxu0 %v5350
      %5352 = vmatprep.subr.mxu0 0.0
      %v5353 = vand.u32 %v5001, 4294901760
      %v5354 = vsub.f32 %v5001, %v5353
      %5355 = vmatpush1.msra.mxu0 %v5354
      %5356 = vmatprep.subr.mxu0 0.0
      %v5357 = vand.u32 %v5000, 4294901760
      %v5358 = vsub.f32 %v5000, %v5357
      %5359 = vmatpush1.msra.mxu0 %v5358
      %5360 = vmatprep.subr.mxu0 0.0
      %v5361 = vand.u32 %v4999, 4294901760
      %v5362 = vsub.f32 %v4999, %v5361
      %5363 = vmatpush1.msra.mxu0 %v5362
      %5364 = vmatprep.subr.mxu0 0.0
      %v5365 = vand.u32 %v4998, 4294901760
      %v5366 = vsub.f32 %v4998, %v5365
      %5367 = vmatpush1.msra.mxu0 %v5366
      %5368 = vmatprep.subr.mxu0 0.0
      %5369 = vmatpush2.msra.mxu0 0.0
      %5370 = vmatprep.subr.mxu0 0.0
      %5371 = vmatpush2.msra.mxu0 0.0
      %5372 = vmatprep.subr.mxu0 0.0
      %5373 = vmatpush2.msra.mxu0 0.0
      %5374 = vmatprep.subr.mxu0 0.0
      %5375 = vmatpush2.msra.mxu0 0.0
      %5376 = vmatprep.subr.mxu0 0.0
      %5377 = vmatpush2.msra.mxu0 0.0
      %5378 = vmatprep.subr.mxu0 0.0
      %5379 = vmatpush2.msra.mxu0 0.0
      %5380 = vmatprep.subr.mxu0 0.0
      %5381 = vmatpush2.msra.mxu0 0.0
      %5382 = vmatprep.subr.mxu0 0.0
      %5383 = vmatpush2.msra.mxu0 0.0
      %5384 = vmatprep.subr.mxu0 0.0
      %5385 = vmatpush2.msra.mxu0 0.0
      %5386 = vmatprep.subr.mxu0 0.0
      %5387 = vmatpush2.msra.mxu0 0.0
      %5388 = vmatprep.subr.mxu0 0.0
      %5389 = vmatpush2.msra.mxu0 0.0
      %5390 = vmatprep.subr.mxu0 0.0
      %5391 = vmatpush2.msra.mxu0 0.0
      %5392 = vmatprep.subr.mxu0 0.0
      %5393 = vmatpush2.msra.mxu0 0.0
      %5394 = vmatprep.subr.mxu0 0.0
      %5395 = vmatpush2.msra.mxu0 0.0
      %5396 = vmatprep.subr.mxu0 0.0
      %5397 = vmatpush2.msra.mxu0 0.0
      %5398 = vmatprep.subr.mxu0 0.0
      %5399 = vmatpush2.msra.mxu0 0.0
      %5400 = vmatprep.mubr.f32.mxu0 0.0
      %v5401 = vand.u32 %v4993, 4294901760
      %v5402 = vsub.f32 %v4993, %v5401
      %5403 = vmatmul.mubr.f32.gmra.mxu0 %v5402
      %v5404 = vpop.f32.mrf.mxu0
      %v5405 = vadd.f32 %v5283, %v5404
      %v5406 = vpop.f32.mrf.mxu0
      %5407 = vmatprep.mubr.f32.mxu0 0.0
      %v5408 = vand.u32 %v4994, 4294901760
      %v5409 = vsub.f32 %v4994, %v5408
      %5410 = vmatmul.mubr.f32.gmra.mxu0 %v5409
      %v5411 = vpop.f32.mrf.mxu0
      %v5412 = vadd.f32 %v5289, %v5411
      %v5413 = vpop.f32.mrf.mxu0
      %5414 = vmatprep.mubr.f32.mxu0 0.0
      %v5415 = vand.u32 %v4995, 4294901760
      %v5416 = vsub.f32 %v4995, %v5415
      %5417 = vmatmul.mubr.f32.gmra.mxu0 %v5416
      %v5418 = vpop.f32.mrf.mxu0
      %v5419 = vadd.f32 %v5295, %v5418
      %v5420 = vpop.f32.mrf.mxu0
      %5421 = vmatprep.mubr.f32.mxu0 0.0
      %v5422 = vand.u32 %v4996, 4294901760
      %v5423 = vsub.f32 %v4996, %v5422
      %5424 = vmatmul.mubr.f32.gmra.mxu0 %v5423
      %v5425 = vpop.f32.mrf.mxu0
      %v5426 = vadd.f32 %v5301, %v5425
      %v5427 = vpop.f32.mrf.mxu0
      %5428 = vdwg.mxu0
      %5429 = vmatprep.subr.mxu0 0.0
      %v5430 = vand.u32 %v5013, 4294901760
      %5431 = vmatpush1.msra.mxu0 %v5430
      %5432 = vmatprep.subr.mxu0 0.0
      %v5433 = vand.u32 %v5012, 4294901760
      %5434 = vmatpush1.msra.mxu0 %v5433
      %5435 = vmatprep.subr.mxu0 0.0
      %v5436 = vand.u32 %v5011, 4294901760
      %5437 = vmatpush1.msra.mxu0 %v5436
      %5438 = vmatprep.subr.mxu0 0.0
      %v5439 = vand.u32 %v5010, 4294901760
      %5440 = vmatpush1.msra.mxu0 %v5439
      %5441 = vmatprep.subr.mxu0 0.0
      %v5442 = vand.u32 %v5009, 4294901760
      %5443 = vmatpush1.msra.mxu0 %v5442
      %5444 = vmatprep.subr.mxu0 0.0
      %v5445 = vand.u32 %v5008, 4294901760
      %5446 = vmatpush1.msra.mxu0 %v5445
      %5447 = vmatprep.subr.mxu0 0.0
      %v5448 = vand.u32 %v5007, 4294901760
      %5449 = vmatpush1.msra.mxu0 %v5448
      %5450 = vmatprep.subr.mxu0 0.0
      %v5451 = vand.u32 %v5006, 4294901760
      %5452 = vmatpush1.msra.mxu0 %v5451
      %5453 = vmatprep.subr.mxu0 0.0
      %v5454 = vand.u32 %v5005, 4294901760
      %5455 = vmatpush1.msra.mxu0 %v5454
      %5456 = vmatprep.subr.mxu0 0.0
      %v5457 = vand.u32 %v5004, 4294901760
      %5458 = vmatpush1.msra.mxu0 %v5457
      %5459 = vmatprep.subr.mxu0 0.0
      %v5460 = vand.u32 %v5003, 4294901760
      %5461 = vmatpush1.msra.mxu0 %v5460
      %5462 = vmatprep.subr.mxu0 0.0
      %v5463 = vand.u32 %v5002, 4294901760
      %5464 = vmatpush1.msra.mxu0 %v5463
      %5465 = vmatprep.subr.mxu0 0.0
      %v5466 = vand.u32 %v5001, 4294901760
      %5467 = vmatpush1.msra.mxu0 %v5466
      %5468 = vmatprep.subr.mxu0 0.0
      %v5469 = vand.u32 %v5000, 4294901760
      %5470 = vmatpush1.msra.mxu0 %v5469
      %5471 = vmatprep.subr.mxu0 0.0
      %v5472 = vand.u32 %v4999, 4294901760
      %5473 = vmatpush1.msra.mxu0 %v5472
      %5474 = vmatprep.subr.mxu0 0.0
      %v5475 = vand.u32 %v4998, 4294901760
      %5476 = vmatpush1.msra.mxu0 %v5475
      %5477 = vmatprep.subr.mxu0 0.0
      %5478 = vmatpush2.msra.mxu0 0.0
      %5479 = vmatprep.subr.mxu0 0.0
      %5480 = vmatpush2.msra.mxu0 0.0
      %5481 = vmatprep.subr.mxu0 0.0
      %5482 = vmatpush2.msra.mxu0 0.0
      %5483 = vmatprep.subr.mxu0 0.0
      %5484 = vmatpush2.msra.mxu0 0.0
      %5485 = vmatprep.subr.mxu0 0.0
      %5486 = vmatpush2.msra.mxu0 0.0
      %5487 = vmatprep.subr.mxu0 0.0
      %5488 = vmatpush2.msra.mxu0 0.0
      %5489 = vmatprep.subr.mxu0 0.0
      %5490 = vmatpush2.msra.mxu0 0.0
      %5491 = vmatprep.subr.mxu0 0.0
      %5492 = vmatpush2.msra.mxu0 0.0
      %5493 = vmatprep.subr.mxu0 0.0
      %5494 = vmatpush2.msra.mxu0 0.0
      %5495 = vmatprep.subr.mxu0 0.0
      %5496 = vmatpush2.msra.mxu0 0.0
      %5497 = vmatprep.subr.mxu0 0.0
      %5498 = vmatpush2.msra.mxu0 0.0
      %5499 = vmatprep.subr.mxu0 0.0
      %5500 = vmatpush2.msra.mxu0 0.0
      %5501 = vmatprep.subr.mxu0 0.0
      %5502 = vmatpush2.msra.mxu0 0.0
      %5503 = vmatprep.subr.mxu0 0.0
      %5504 = vmatpush2.msra.mxu0 0.0
      %5505 = vmatprep.subr.mxu0 0.0
      %5506 = vmatpush2.msra.mxu0 0.0
      %5507 = vmatprep.subr.mxu0 0.0
      %5508 = vmatpush2.msra.mxu0 0.0
      %5509 = vmatprep.mubr.f32.mxu0 0.0
      %v5510 = vand.u32 %v4993, 4294901760
      %v5511 = vsub.f32 %v4993, %v5510
      %v5512 = vand.u32 %v5511, 4294901760
      %5513 = vmatmul.mubr.f32.gmra.mxu0 %v5512
      %v5514 = vpop.f32.mrf.mxu0
      %v5515 = vadd.f32 %v5405, %v5514
      %v5516 = vpop.f32.mrf.mxu0
      %5517 = vmatprep.mubr.f32.mxu0 0.0
      %v5518 = vand.u32 %v4994, 4294901760
      %v5519 = vsub.f32 %v4994, %v5518
      %v5520 = vand.u32 %v5519, 4294901760
      %5521 = vmatmul.mubr.f32.gmra.mxu0 %v5520
      %v5522 = vpop.f32.mrf.mxu0
      %v5523 = vadd.f32 %v5412, %v5522
      %v5524 = vpop.f32.mrf.mxu0
      %5525 = vmatprep.mubr.f32.mxu0 0.0
      %v5526 = vand.u32 %v4995, 4294901760
      %v5527 = vsub.f32 %v4995, %v5526
      %v5528 = vand.u32 %v5527, 4294901760
      %5529 = vmatmul.mubr.f32.gmra.mxu0 %v5528
      %v5530 = vpop.f32.mrf.mxu0
      %v5531 = vadd.f32 %v5419, %v5530
      %v5532 = vpop.f32.mrf.mxu0
      %5533 = vmatprep.mubr.f32.mxu0 0.0
      %v5534 = vand.u32 %v4996, 4294901760
      %v5535 = vsub.f32 %v4996, %v5534
      %v5536 = vand.u32 %v5535, 4294901760
      %5537 = vmatmul.mubr.f32.gmra.mxu0 %v5536
      %v5538 = vpop.f32.mrf.mxu0
      %v5539 = vadd.f32 %v5426, %v5538
      %v5540 = vpop.f32.mrf.mxu0
      %5541 = vdwg.mxu0
      %5542 = vmatprep.subr.mxu0 0.0
      %v5543 = vand.u32 %v5013, 4294901760
      %v5544 = vsub.f32 %v5013, %v5543
      %v5545 = vand.u32 %v5544, 4294901760
      %5546 = vmatpush1.msra.mxu0 %v5545
      %5547 = vmatprep.subr.mxu0 0.0
      %v5548 = vand.u32 %v5012, 4294901760
      %v5549 = vsub.f32 %v5012, %v5548
      %v5550 = vand.u32 %v5549, 4294901760
      %5551 = vmatpush1.msra.mxu0 %v5550
      %5552 = vmatprep.subr.mxu0 0.0
      %v5553 = vand.u32 %v5011, 4294901760
      %v5554 = vsub.f32 %v5011, %v5553
      %v5555 = vand.u32 %v5554, 4294901760
      %5556 = vmatpush1.msra.mxu0 %v5555
      %5557 = vmatprep.subr.mxu0 0.0
      %v5558 = vand.u32 %v5010, 4294901760
      %v5559 = vsub.f32 %v5010, %v5558
      %v5560 = vand.u32 %v5559, 4294901760
      %5561 = vmatpush1.msra.mxu0 %v5560
      %5562 = vmatprep.subr.mxu0 0.0
      %v5563 = vand.u32 %v5009, 4294901760
      %v5564 = vsub.f32 %v5009, %v5563
      %v5565 = vand.u32 %v5564, 4294901760
      %5566 = vmatpush1.msra.mxu0 %v5565
      %5567 = vmatprep.subr.mxu0 0.0
      %v5568 = vand.u32 %v5008, 4294901760
      %v5569 = vsub.f32 %v5008, %v5568
      %v5570 = vand.u32 %v5569, 4294901760
      %5571 = vmatpush1.msra.mxu0 %v5570
      %5572 = vmatprep.subr.mxu0 0.0
      %v5573 = vand.u32 %v5007, 4294901760
      %v5574 = vsub.f32 %v5007, %v5573
      %v5575 = vand.u32 %v5574, 4294901760
      %5576 = vmatpush1.msra.mxu0 %v5575
      %5577 = vmatprep.subr.mxu0 0.0
      %v5578 = vand.u32 %v5006, 4294901760
      %v5579 = vsub.f32 %v5006, %v5578
      %v5580 = vand.u32 %v5579, 4294901760
      %5581 = vmatpush1.msra.mxu0 %v5580
      %5582 = vmatprep.subr.mxu0 0.0
      %v5583 = vand.u32 %v5005, 4294901760
      %v5584 = vsub.f32 %v5005, %v5583
      %v5585 = vand.u32 %v5584, 4294901760
      %5586 = vmatpush1.msra.mxu0 %v5585
      %5587 = vmatprep.subr.mxu0 0.0
      %v5588 = vand.u32 %v5004, 4294901760
      %v5589 = vsub.f32 %v5004, %v5588
      %v5590 = vand.u32 %v5589, 4294901760
      %5591 = vmatpush1.msra.mxu0 %v5590
      %5592 = vmatprep.subr.mxu0 0.0
      %v5593 = vand.u32 %v5003, 4294901760
      %v5594 = vsub.f32 %v5003, %v5593
      %v5595 = vand.u32 %v5594, 4294901760
      %5596 = vmatpush1.msra.mxu0 %v5595
      %5597 = vmatprep.subr.mxu0 0.0
      %v5598 = vand.u32 %v5002, 4294901760
      %v5599 = vsub.f32 %v5002, %v5598
      %v5600 = vand.u32 %v5599, 4294901760
      %5601 = vmatpush1.msra.mxu0 %v5600
      %5602 = vmatprep.subr.mxu0 0.0
      %v5603 = vand.u32 %v5001, 4294901760
      %v5604 = vsub.f32 %v5001, %v5603
      %v5605 = vand.u32 %v5604, 4294901760
      %5606 = vmatpush1.msra.mxu0 %v5605
      %5607 = vmatprep.subr.mxu0 0.0
      %v5608 = vand.u32 %v5000, 4294901760
      %v5609 = vsub.f32 %v5000, %v5608
      %v5610 = vand.u32 %v5609, 4294901760
      %5611 = vmatpush1.msra.mxu0 %v5610
      %5612 = vmatprep.subr.mxu0 0.0
      %v5613 = vand.u32 %v4999, 4294901760
      %v5614 = vsub.f32 %v4999, %v5613
      %v5615 = vand.u32 %v5614, 4294901760
      %5616 = vmatpush1.msra.mxu0 %v5615
      %5617 = vmatprep.subr.mxu0 0.0
      %v5618 = vand.u32 %v4998, 4294901760
      %v5619 = vsub.f32 %v4998, %v5618
      %v5620 = vand.u32 %v5619, 4294901760
      %5621 = vmatpush1.msra.mxu0 %v5620
      %5622 = vmatprep.subr.mxu0 0.0
      %5623 = vmatpush2.msra.mxu0 0.0
      %5624 = vmatprep.subr.mxu0 0.0
      %5625 = vmatpush2.msra.mxu0 0.0
      %5626 = vmatprep.subr.mxu0 0.0
      %5627 = vmatpush2.msra.mxu0 0.0
      %5628 = vmatprep.subr.mxu0 0.0
      %5629 = vmatpush2.msra.mxu0 0.0
      %5630 = vmatprep.subr.mxu0 0.0
      %5631 = vmatpush2.msra.mxu0 0.0
      %5632 = vmatprep.subr.mxu0 0.0
      %5633 = vmatpush2.msra.mxu0 0.0
      %5634 = vmatprep.subr.mxu0 0.0
      %5635 = vmatpush2.msra.mxu0 0.0
      %5636 = vmatprep.subr.mxu0 0.0
      %5637 = vmatpush2.msra.mxu0 0.0
      %5638 = vmatprep.subr.mxu0 0.0
      %5639 = vmatpush2.msra.mxu0 0.0
      %5640 = vmatprep.subr.mxu0 0.0
      %5641 = vmatpush2.msra.mxu0 0.0
      %5642 = vmatprep.subr.mxu0 0.0
      %5643 = vmatpush2.msra.mxu0 0.0
      %5644 = vmatprep.subr.mxu0 0.0
      %5645 = vmatpush2.msra.mxu0 0.0
      %5646 = vmatprep.subr.mxu0 0.0
      %5647 = vmatpush2.msra.mxu0 0.0
      %5648 = vmatprep.subr.mxu0 0.0
      %5649 = vmatpush2.msra.mxu0 0.0
      %5650 = vmatprep.subr.mxu0 0.0
      %5651 = vmatpush2.msra.mxu0 0.0
      %5652 = vmatprep.subr.mxu0 0.0
      %5653 = vmatpush2.msra.mxu0 0.0
      %5654 = vmatprep.mubr.f32.mxu0 0.0
      %v5655 = vand.u32 %v4993, 4294901760
      %5656 = vmatmul.mubr.f32.gmra.mxu0 %v5655
      %v5657 = vpop.f32.mrf.mxu0
      %v5658 = vadd.f32 %v5515, %v5657
      %v5659 = vpop.f32.mrf.mxu0
      %5660 = vmatprep.mubr.f32.mxu0 0.0
      %v5661 = vand.u32 %v4994, 4294901760
      %5662 = vmatmul.mubr.f32.gmra.mxu0 %v5661
      %v5663 = vpop.f32.mrf.mxu0
      %v5664 = vadd.f32 %v5523, %v5663
      %v5665 = vpop.f32.mrf.mxu0
      %5666 = vmatprep.mubr.f32.mxu0 0.0
      %v5667 = vand.u32 %v4995, 4294901760
      %5668 = vmatmul.mubr.f32.gmra.mxu0 %v5667
      %v5669 = vpop.f32.mrf.mxu0
      %v5670 = vadd.f32 %v5531, %v5669
      %v5671 = vpop.f32.mrf.mxu0
      %5672 = vmatprep.mubr.f32.mxu0 0.0
      %v5673 = vand.u32 %v4996, 4294901760
      %5674 = vmatmul.mubr.f32.gmra.mxu0 %v5673
      %v5675 = vpop.f32.mrf.mxu0
      %v5676 = vadd.f32 %v5539, %v5675
      %v5677 = vpop.f32.mrf.mxu0
      %5678 = vdwg.mxu0
      %5679 = vmatprep.subr.mxu0 0.0
      %v5680 = vand.u32 %v5013, 4294901760
      %5681 = vmatpush1.msra.mxu0 %v5680
      %5682 = vmatprep.subr.mxu0 0.0
      %v5683 = vand.u32 %v5012, 4294901760
      %5684 = vmatpush1.msra.mxu0 %v5683
      %5685 = vmatprep.subr.mxu0 0.0
      %v5686 = vand.u32 %v5011, 4294901760
      %5687 = vmatpush1.msra.mxu0 %v5686
      %5688 = vmatprep.subr.mxu0 0.0
      %v5689 = vand.u32 %v5010, 4294901760
      %5690 = vmatpush1.msra.mxu0 %v5689
      %5691 = vmatprep.subr.mxu0 0.0
      %v5692 = vand.u32 %v5009, 4294901760
      %5693 = vmatpush1.msra.mxu0 %v5692
      %5694 = vmatprep.subr.mxu0 0.0
      %v5695 = vand.u32 %v5008, 4294901760
      %5696 = vmatpush1.msra.mxu0 %v5695
      %5697 = vmatprep.subr.mxu0 0.0
      %v5698 = vand.u32 %v5007, 4294901760
      %5699 = vmatpush1.msra.mxu0 %v5698
      %5700 = vmatprep.subr.mxu0 0.0
      %v5701 = vand.u32 %v5006, 4294901760
      %5702 = vmatpush1.msra.mxu0 %v5701
      %5703 = vmatprep.subr.mxu0 0.0
      %v5704 = vand.u32 %v5005, 4294901760
      %5705 = vmatpush1.msra.mxu0 %v5704
      %5706 = vmatprep.subr.mxu0 0.0
      %v5707 = vand.u32 %v5004, 4294901760
      %5708 = vmatpush1.msra.mxu0 %v5707
      %5709 = vmatprep.subr.mxu0 0.0
      %v5710 = vand.u32 %v5003, 4294901760
      %5711 = vmatpush1.msra.mxu0 %v5710
      %5712 = vmatprep.subr.mxu0 0.0
      %v5713 = vand.u32 %v5002, 4294901760
      %5714 = vmatpush1.msra.mxu0 %v5713
      %5715 = vmatprep.subr.mxu0 0.0
      %v5716 = vand.u32 %v5001, 4294901760
      %5717 = vmatpush1.msra.mxu0 %v5716
      %5718 = vmatprep.subr.mxu0 0.0
      %v5719 = vand.u32 %v5000, 4294901760
      %5720 = vmatpush1.msra.mxu0 %v5719
      %5721 = vmatprep.subr.mxu0 0.0
      %v5722 = vand.u32 %v4999, 4294901760
      %5723 = vmatpush1.msra.mxu0 %v5722
      %5724 = vmatprep.subr.mxu0 0.0
      %v5725 = vand.u32 %v4998, 4294901760
      %5726 = vmatpush1.msra.mxu0 %v5725
      %5727 = vmatprep.subr.mxu0 0.0
      %5728 = vmatpush2.msra.mxu0 0.0
      %5729 = vmatprep.subr.mxu0 0.0
      %5730 = vmatpush2.msra.mxu0 0.0
      %5731 = vmatprep.subr.mxu0 0.0
      %5732 = vmatpush2.msra.mxu0 0.0
      %5733 = vmatprep.subr.mxu0 0.0
      %5734 = vmatpush2.msra.mxu0 0.0
      %5735 = vmatprep.subr.mxu0 0.0
      %5736 = vmatpush2.msra.mxu0 0.0
      %5737 = vmatprep.subr.mxu0 0.0
      %5738 = vmatpush2.msra.mxu0 0.0
      %5739 = vmatprep.subr.mxu0 0.0
      %5740 = vmatpush2.msra.mxu0 0.0
      %5741 = vmatprep.subr.mxu0 0.0
      %5742 = vmatpush2.msra.mxu0 0.0
      %5743 = vmatprep.subr.mxu0 0.0
      %5744 = vmatpush2.msra.mxu0 0.0
      %5745 = vmatprep.subr.mxu0 0.0
      %5746 = vmatpush2.msra.mxu0 0.0
      %5747 = vmatprep.subr.mxu0 0.0
      %5748 = vmatpush2.msra.mxu0 0.0
      %5749 = vmatprep.subr.mxu0 0.0
      %5750 = vmatpush2.msra.mxu0 0.0
      %5751 = vmatprep.subr.mxu0 0.0
      %5752 = vmatpush2.msra.mxu0 0.0
      %5753 = vmatprep.subr.mxu0 0.0
      %5754 = vmatpush2.msra.mxu0 0.0
      %5755 = vmatprep.subr.mxu0 0.0
      %5756 = vmatpush2.msra.mxu0 0.0
      %5757 = vmatprep.subr.mxu0 0.0
      %5758 = vmatpush2.msra.mxu0 0.0
      %5759 = vmatprep.mubr.f32.mxu0 0.0
      %v5760 = vand.u32 %v4993, 4294901760
      %5761 = vmatmul.mubr.f32.gmra.mxu0 %v5760
      %v5762 = vpop.f32.mrf.mxu0
      %v5763 = vadd.f32 %v5658, %v5762
      %v5764 = vpop.f32.mrf.mxu0
      %5765 = vmatprep.mubr.f32.mxu0 0.0
      %v5766 = vand.u32 %v4994, 4294901760
      %5767 = vmatmul.mubr.f32.gmra.mxu0 %v5766
      %v5768 = vpop.f32.mrf.mxu0
      %v5769 = vadd.f32 %v5664, %v5768
      %v5770 = vpop.f32.mrf.mxu0
      %5771 = vmatprep.mubr.f32.mxu0 0.0
      %v5772 = vand.u32 %v4995, 4294901760
      %5773 = vmatmul.mubr.f32.gmra.mxu0 %v5772
      %v5774 = vpop.f32.mrf.mxu0
      %v5775 = vadd.f32 %v5670, %v5774
      %v5776 = vpop.f32.mrf.mxu0
      %5777 = vmatprep.mubr.f32.mxu0 0.0
      %v5778 = vand.u32 %v4996, 4294901760
      %5779 = vmatmul.mubr.f32.gmra.mxu0 %v5778
      %v5780 = vpop.f32.mrf.mxu0
      %v5781 = vadd.f32 %v5676, %v5780
      %v5782 = vpop.f32.mrf.mxu0
      %5783 = vdwg.mxu0
      %5784 = vmatprep.subr.mxu0 0.0
      %v5785 = vand.u32 %v4992, 4294901760
      %5786 = vmatpush1.msra.mxu0 %v5785
      %5787 = vmatprep.subr.mxu0 0.0
      %v5788 = vand.u32 %v4991, 4294901760
      %5789 = vmatpush1.msra.mxu0 %v5788
      %5790 = vmatprep.subr.mxu0 0.0
      %v5791 = vand.u32 %v4990, 4294901760
      %5792 = vmatpush1.msra.mxu0 %v5791
      %5793 = vmatprep.subr.mxu0 0.0
      %v5794 = vand.u32 %v4989, 4294901760
      %5795 = vmatpush1.msra.mxu0 %v5794
      %5796 = vmatprep.subr.mxu0 0.0
      %v5797 = vand.u32 %v4988, 4294901760
      %5798 = vmatpush1.msra.mxu0 %v5797
      %5799 = vmatprep.subr.mxu0 0.0
      %v5800 = vand.u32 %v4987, 4294901760
      %5801 = vmatpush1.msra.mxu0 %v5800
      %5802 = vmatprep.subr.mxu0 0.0
      %v5803 = vand.u32 %v4986, 4294901760
      %5804 = vmatpush1.msra.mxu0 %v5803
      %5805 = vmatprep.subr.mxu0 0.0
      %v5806 = vand.u32 %v4985, 4294901760
      %5807 = vmatpush1.msra.mxu0 %v5806
      %5808 = vmatprep.subr.mxu0 0.0
      %v5809 = vand.u32 %v4984, 4294901760
      %5810 = vmatpush1.msra.mxu0 %v5809
      %5811 = vmatprep.subr.mxu0 0.0
      %v5812 = vand.u32 %v4983, 4294901760
      %5813 = vmatpush1.msra.mxu0 %v5812
      %5814 = vmatprep.subr.mxu0 0.0
      %v5815 = vand.u32 %v4982, 4294901760
      %5816 = vmatpush1.msra.mxu0 %v5815
      %5817 = vmatprep.subr.mxu0 0.0
      %v5818 = vand.u32 %v4981, 4294901760
      %5819 = vmatpush1.msra.mxu0 %v5818
      %5820 = vmatprep.subr.mxu0 0.0
      %v5821 = vand.u32 %v4980, 4294901760
      %5822 = vmatpush1.msra.mxu0 %v5821
      %5823 = vmatprep.subr.mxu0 0.0
      %v5824 = vand.u32 %v4979, 4294901760
      %5825 = vmatpush1.msra.mxu0 %v5824
      %5826 = vmatprep.subr.mxu0 0.0
      %v5827 = vand.u32 %v4978, 4294901760
      %5828 = vmatpush1.msra.mxu0 %v5827
      %5829 = vmatprep.subr.mxu0 0.0
      %v5830 = vand.u32 %v4977, 4294901760
      %5831 = vmatpush1.msra.mxu0 %v5830
      %5832 = vmatprep.subr.mxu0 0.0
      %5833 = vmatpush2.msra.mxu0 0.0
      %5834 = vmatprep.subr.mxu0 0.0
      %5835 = vmatpush2.msra.mxu0 0.0
      %5836 = vmatprep.subr.mxu0 0.0
      %5837 = vmatpush2.msra.mxu0 0.0
      %5838 = vmatprep.subr.mxu0 0.0
      %5839 = vmatpush2.msra.mxu0 0.0
      %5840 = vmatprep.subr.mxu0 0.0
      %5841 = vmatpush2.msra.mxu0 0.0
      %5842 = vmatprep.subr.mxu0 0.0
      %5843 = vmatpush2.msra.mxu0 0.0
      %5844 = vmatprep.subr.mxu0 0.0
      %5845 = vmatpush2.msra.mxu0 0.0
      %5846 = vmatprep.subr.mxu0 0.0
      %5847 = vmatpush2.msra.mxu0 0.0
      %5848 = vmatprep.subr.mxu0 0.0
      %5849 = vmatpush2.msra.mxu0 0.0
      %5850 = vmatprep.subr.mxu0 0.0
      %5851 = vmatpush2.msra.mxu0 0.0
      %5852 = vmatprep.subr.mxu0 0.0
      %5853 = vmatpush2.msra.mxu0 0.0
      %5854 = vmatprep.subr.mxu0 0.0
      %5855 = vmatpush2.msra.mxu0 0.0
      %5856 = vmatprep.subr.mxu0 0.0
      %5857 = vmatpush2.msra.mxu0 0.0
      %5858 = vmatprep.subr.mxu0 0.0
      %5859 = vmatpush2.msra.mxu0 0.0
      %5860 = vmatprep.subr.mxu0 0.0
      %5861 = vmatpush2.msra.mxu0 0.0
      %5862 = vmatprep.subr.mxu0 0.0
      %5863 = vmatpush2.msra.mxu0 0.0
      %5864 = vmatprep.mubr.f32.mxu0 0.0
      %v5865 = vand.u32 %v4973, 4294901760
      %v5866 = vsub.f32 %v4973, %v5865
      %v5867 = vand.u32 %v5866, 4294901760
      %v5868 = vsub.f32 %v5866, %v5867
      %v5869 = vand.u32 %v5868, 4294901760
      %5870 = vmatmul.mubr.f32.gmra.mxu0 %v5869
      %v5871 = vpop.f32.mrf.mxu0
      %v5872 = vadd.f32 %v5763, %v5871
      %v5873 = vpop.f32.mrf.mxu0
      %5874 = vmatprep.mubr.f32.mxu0 0.0
      %v5875 = vand.u32 %v4974, 4294901760
      %v5876 = vsub.f32 %v4974, %v5875
      %v5877 = vand.u32 %v5876, 4294901760
      %v5878 = vsub.f32 %v5876, %v5877
      %v5879 = vand.u32 %v5878, 4294901760
      %5880 = vmatmul.mubr.f32.gmra.mxu0 %v5879
      %v5881 = vpop.f32.mrf.mxu0
      %v5882 = vadd.f32 %v5769, %v5881
      %v5883 = vpop.f32.mrf.mxu0
      %5884 = vmatprep.mubr.f32.mxu0 0.0
      %v5885 = vand.u32 %v4975, 4294901760
      %v5886 = vsub.f32 %v4975, %v5885
      %v5887 = vand.u32 %v5886, 4294901760
      %v5888 = vsub.f32 %v5886, %v5887
      %v5889 = vand.u32 %v5888, 4294901760
      %5890 = vmatmul.mubr.f32.gmra.mxu0 %v5889
      %v5891 = vpop.f32.mrf.mxu0
      %v5892 = vadd.f32 %v5775, %v5891
      %v5893 = vpop.f32.mrf.mxu0
      %5894 = vmatprep.mubr.f32.mxu0 0.0
      %v5895 = vand.u32 %v4976, 4294901760
      %v5896 = vsub.f32 %v4976, %v5895
      %v5897 = vand.u32 %v5896, 4294901760
      %v5898 = vsub.f32 %v5896, %v5897
      %v5899 = vand.u32 %v5898, 4294901760
      %5900 = vmatmul.mubr.f32.gmra.mxu0 %v5899
      %v5901 = vpop.f32.mrf.mxu0
      %v5902 = vadd.f32 %v5781, %v5901
      %v5903 = vpop.f32.mrf.mxu0
      %5904 = vdwg.mxu0
      %5905 = vmatprep.subr.mxu0 0.0
      %v5906 = vand.u32 %v4992, 4294901760
      %v5907 = vsub.f32 %v4992, %v5906
      %v5908 = vand.u32 %v5907, 4294901760
      %v5909 = vsub.f32 %v5907, %v5908
      %v5910 = vand.u32 %v5909, 4294901760
      %5911 = vmatpush1.msra.mxu0 %v5910
      %5912 = vmatprep.subr.mxu0 0.0
      %v5913 = vand.u32 %v4991, 4294901760
      %v5914 = vsub.f32 %v4991, %v5913
      %v5915 = vand.u32 %v5914, 4294901760
      %v5916 = vsub.f32 %v5914, %v5915
      %v5917 = vand.u32 %v5916, 4294901760
      %5918 = vmatpush1.msra.mxu0 %v5917
      %5919 = vmatprep.subr.mxu0 0.0
      %v5920 = vand.u32 %v4990, 4294901760
      %v5921 = vsub.f32 %v4990, %v5920
      %v5922 = vand.u32 %v5921, 4294901760
      %v5923 = vsub.f32 %v5921, %v5922
      %v5924 = vand.u32 %v5923, 4294901760
      %5925 = vmatpush1.msra.mxu0 %v5924
      %5926 = vmatprep.subr.mxu0 0.0
      %v5927 = vand.u32 %v4989, 4294901760
      %v5928 = vsub.f32 %v4989, %v5927
      %v5929 = vand.u32 %v5928, 4294901760
      %v5930 = vsub.f32 %v5928, %v5929
      %v5931 = vand.u32 %v5930, 4294901760
      %5932 = vmatpush1.msra.mxu0 %v5931
      %5933 = vmatprep.subr.mxu0 0.0
      %v5934 = vand.u32 %v4988, 4294901760
      %v5935 = vsub.f32 %v4988, %v5934
      %v5936 = vand.u32 %v5935, 4294901760
      %v5937 = vsub.f32 %v5935, %v5936
      %v5938 = vand.u32 %v5937, 4294901760
      %5939 = vmatpush1.msra.mxu0 %v5938
      %5940 = vmatprep.subr.mxu0 0.0
      %v5941 = vand.u32 %v4987, 4294901760
      %v5942 = vsub.f32 %v4987, %v5941
      %v5943 = vand.u32 %v5942, 4294901760
      %v5944 = vsub.f32 %v5942, %v5943
      %v5945 = vand.u32 %v5944, 4294901760
      %5946 = vmatpush1.msra.mxu0 %v5945
      %5947 = vmatprep.subr.mxu0 0.0
      %v5948 = vand.u32 %v4986, 4294901760
      %v5949 = vsub.f32 %v4986, %v5948
      %v5950 = vand.u32 %v5949, 4294901760
      %v5951 = vsub.f32 %v5949, %v5950
      %v5952 = vand.u32 %v5951, 4294901760
      %5953 = vmatpush1.msra.mxu0 %v5952
      %5954 = vmatprep.subr.mxu0 0.0
      %v5955 = vand.u32 %v4985, 4294901760
      %v5956 = vsub.f32 %v4985, %v5955
      %v5957 = vand.u32 %v5956, 4294901760
      %v5958 = vsub.f32 %v5956, %v5957
      %v5959 = vand.u32 %v5958, 4294901760
      %5960 = vmatpush1.msra.mxu0 %v5959
      %5961 = vmatprep.subr.mxu0 0.0
      %v5962 = vand.u32 %v4984, 4294901760
      %v5963 = vsub.f32 %v4984, %v5962
      %v5964 = vand.u32 %v5963, 4294901760
      %v5965 = vsub.f32 %v5963, %v5964
      %v5966 = vand.u32 %v5965, 4294901760
      %5967 = vmatpush1.msra.mxu0 %v5966
      %5968 = vmatprep.subr.mxu0 0.0
      %v5969 = vand.u32 %v4983, 4294901760
      %v5970 = vsub.f32 %v4983, %v5969
      %v5971 = vand.u32 %v5970, 4294901760
      %v5972 = vsub.f32 %v5970, %v5971
      %v5973 = vand.u32 %v5972, 4294901760
      %5974 = vmatpush1.msra.mxu0 %v5973
      %5975 = vmatprep.subr.mxu0 0.0
      %v5976 = vand.u32 %v4982, 4294901760
      %v5977 = vsub.f32 %v4982, %v5976
      %v5978 = vand.u32 %v5977, 4294901760
      %v5979 = vsub.f32 %v5977, %v5978
      %v5980 = vand.u32 %v5979, 4294901760
      %5981 = vmatpush1.msra.mxu0 %v5980
      %5982 = vmatprep.subr.mxu0 0.0
      %v5983 = vand.u32 %v4981, 4294901760
      %v5984 = vsub.f32 %v4981, %v5983
      %v5985 = vand.u32 %v5984, 4294901760
      %v5986 = vsub.f32 %v5984, %v5985
      %v5987 = vand.u32 %v5986, 4294901760
      %5988 = vmatpush1.msra.mxu0 %v5987
      %5989 = vmatprep.subr.mxu0 0.0
      %v5990 = vand.u32 %v4980, 4294901760
      %v5991 = vsub.f32 %v4980, %v5990
      %v5992 = vand.u32 %v5991, 4294901760
      %v5993 = vsub.f32 %v5991, %v5992
      %v5994 = vand.u32 %v5993, 4294901760
      %5995 = vmatpush1.msra.mxu0 %v5994
      %5996 = vmatprep.subr.mxu0 0.0
      %v5997 = vand.u32 %v4979, 4294901760
      %v5998 = vsub.f32 %v4979, %v5997
      %v5999 = vand.u32 %v5998, 4294901760
      %v6000 = vsub.f32 %v5998, %v5999
      %v6001 = vand.u32 %v6000, 4294901760
      %6002 = vmatpush1.msra.mxu0 %v6001
      %6003 = vmatprep.subr.mxu0 0.0
      %v6004 = vand.u32 %v4978, 4294901760
      %v6005 = vsub.f32 %v4978, %v6004
      %v6006 = vand.u32 %v6005, 4294901760
      %v6007 = vsub.f32 %v6005, %v6006
      %v6008 = vand.u32 %v6007, 4294901760
      %6009 = vmatpush1.msra.mxu0 %v6008
      %6010 = vmatprep.subr.mxu0 0.0
      %v6011 = vand.u32 %v4977, 4294901760
      %v6012 = vsub.f32 %v4977, %v6011
      %v6013 = vand.u32 %v6012, 4294901760
      %v6014 = vsub.f32 %v6012, %v6013
      %v6015 = vand.u32 %v6014, 4294901760
      %6016 = vmatpush1.msra.mxu0 %v6015
      %6017 = vmatprep.subr.mxu0 0.0
      %6018 = vmatpush2.msra.mxu0 0.0
      %6019 = vmatprep.subr.mxu0 0.0
      %6020 = vmatpush2.msra.mxu0 0.0
      %6021 = vmatprep.subr.mxu0 0.0
      %6022 = vmatpush2.msra.mxu0 0.0
      %6023 = vmatprep.subr.mxu0 0.0
      %6024 = vmatpush2.msra.mxu0 0.0
      %6025 = vmatprep.subr.mxu0 0.0
      %6026 = vmatpush2.msra.mxu0 0.0
      %6027 = vmatprep.subr.mxu0 0.0
      %6028 = vmatpush2.msra.mxu0 0.0
      %6029 = vmatprep.subr.mxu0 0.0
      %6030 = vmatpush2.msra.mxu0 0.0
      %6031 = vmatprep.subr.mxu0 0.0
      %6032 = vmatpush2.msra.mxu0 0.0
      %6033 = vmatprep.subr.mxu0 0.0
      %6034 = vmatpush2.msra.mxu0 0.0
      %6035 = vmatprep.subr.mxu0 0.0
      %6036 = vmatpush2.msra.mxu0 0.0
      %6037 = vmatprep.subr.mxu0 0.0
      %6038 = vmatpush2.msra.mxu0 0.0
      %6039 = vmatprep.subr.mxu0 0.0
      %6040 = vmatpush2.msra.mxu0 0.0
      %6041 = vmatprep.subr.mxu0 0.0
      %6042 = vmatpush2.msra.mxu0 0.0
      %6043 = vmatprep.subr.mxu0 0.0
      %6044 = vmatpush2.msra.mxu0 0.0
      %6045 = vmatprep.subr.mxu0 0.0
      %6046 = vmatpush2.msra.mxu0 0.0
      %6047 = vmatprep.subr.mxu0 0.0
      %6048 = vmatpush2.msra.mxu0 0.0
      %6049 = vmatprep.mubr.f32.mxu0 0.0
      %v6050 = vand.u32 %v4973, 4294901760
      %6051 = vmatmul.mubr.f32.gmra.mxu0 %v6050
      %v6052 = vpop.f32.mrf.mxu0
      %v6053 = vadd.f32 %v5872, %v6052
      %v6054 = vpop.f32.mrf.mxu0
      %6055 = vmatprep.mubr.f32.mxu0 0.0
      %v6056 = vand.u32 %v4974, 4294901760
      %6057 = vmatmul.mubr.f32.gmra.mxu0 %v6056
      %v6058 = vpop.f32.mrf.mxu0
      %v6059 = vadd.f32 %v5882, %v6058
      %v6060 = vpop.f32.mrf.mxu0
      %6061 = vmatprep.mubr.f32.mxu0 0.0
      %v6062 = vand.u32 %v4975, 4294901760
      %6063 = vmatmul.mubr.f32.gmra.mxu0 %v6062
      %v6064 = vpop.f32.mrf.mxu0
      %v6065 = vadd.f32 %v5892, %v6064
      %v6066 = vpop.f32.mrf.mxu0
      %6067 = vmatprep.mubr.f32.mxu0 0.0
      %v6068 = vand.u32 %v4976, 4294901760
      %6069 = vmatmul.mubr.f32.gmra.mxu0 %v6068
      %v6070 = vpop.f32.mrf.mxu0
      %v6071 = vadd.f32 %v5902, %v6070
      %v6072 = vpop.f32.mrf.mxu0
      %6073 = vdwg.mxu0
      %6074 = vmatprep.subr.mxu0 0.0
      %v6075 = vand.u32 %v4992, 4294901760
      %v6076 = vsub.f32 %v4992, %v6075
      %6077 = vmatpush1.msra.mxu0 %v6076
      %6078 = vmatprep.subr.mxu0 0.0
      %v6079 = vand.u32 %v4991, 4294901760
      %v6080 = vsub.f32 %v4991, %v6079
      %6081 = vmatpush1.msra.mxu0 %v6080
      %6082 = vmatprep.subr.mxu0 0.0
      %v6083 = vand.u32 %v4990, 4294901760
      %v6084 = vsub.f32 %v4990, %v6083
      %6085 = vmatpush1.msra.mxu0 %v6084
      %6086 = vmatprep.subr.mxu0 0.0
      %v6087 = vand.u32 %v4989, 4294901760
      %v6088 = vsub.f32 %v4989, %v6087
      %6089 = vmatpush1.msra.mxu0 %v6088
      %6090 = vmatprep.subr.mxu0 0.0
      %v6091 = vand.u32 %v4988, 4294901760
      %v6092 = vsub.f32 %v4988, %v6091
      %6093 = vmatpush1.msra.mxu0 %v6092
      %6094 = vmatprep.subr.mxu0 0.0
      %v6095 = vand.u32 %v4987, 4294901760
      %v6096 = vsub.f32 %v4987, %v6095
      %6097 = vmatpush1.msra.mxu0 %v6096
      %6098 = vmatprep.subr.mxu0 0.0
      %v6099 = vand.u32 %v4986, 4294901760
      %v6100 = vsub.f32 %v4986, %v6099
      %6101 = vmatpush1.msra.mxu0 %v6100
      %6102 = vmatprep.subr.mxu0 0.0
      %v6103 = vand.u32 %v4985, 4294901760
      %v6104 = vsub.f32 %v4985, %v6103
      %6105 = vmatpush1.msra.mxu0 %v6104
      %6106 = vmatprep.subr.mxu0 0.0
      %v6107 = vand.u32 %v4984, 4294901760
      %v6108 = vsub.f32 %v4984, %v6107
      %6109 = vmatpush1.msra.mxu0 %v6108
      %6110 = vmatprep.subr.mxu0 0.0
      %v6111 = vand.u32 %v4983, 4294901760
      %v6112 = vsub.f32 %v4983, %v6111
      %6113 = vmatpush1.msra.mxu0 %v6112
      %6114 = vmatprep.subr.mxu0 0.0
      %v6115 = vand.u32 %v4982, 4294901760
      %v6116 = vsub.f32 %v4982, %v6115
      %6117 = vmatpush1.msra.mxu0 %v6116
      %6118 = vmatprep.subr.mxu0 0.0
      %v6119 = vand.u32 %v4981, 4294901760
      %v6120 = vsub.f32 %v4981, %v6119
      %6121 = vmatpush1.msra.mxu0 %v6120
      %6122 = vmatprep.subr.mxu0 0.0
      %v6123 = vand.u32 %v4980, 4294901760
      %v6124 = vsub.f32 %v4980, %v6123
      %6125 = vmatpush1.msra.mxu0 %v6124
      %6126 = vmatprep.subr.mxu0 0.0
      %v6127 = vand.u32 %v4979, 4294901760
      %v6128 = vsub.f32 %v4979, %v6127
      %6129 = vmatpush1.msra.mxu0 %v6128
      %6130 = vmatprep.subr.mxu0 0.0
      %v6131 = vand.u32 %v4978, 4294901760
      %v6132 = vsub.f32 %v4978, %v6131
      %6133 = vmatpush1.msra.mxu0 %v6132
      %6134 = vmatprep.subr.mxu0 0.0
      %v6135 = vand.u32 %v4977, 4294901760
      %v6136 = vsub.f32 %v4977, %v6135
      %6137 = vmatpush1.msra.mxu0 %v6136
      %6138 = vmatprep.subr.mxu0 0.0
      %6139 = vmatpush2.msra.mxu0 0.0
      %6140 = vmatprep.subr.mxu0 0.0
      %6141 = vmatpush2.msra.mxu0 0.0
      %6142 = vmatprep.subr.mxu0 0.0
      %6143 = vmatpush2.msra.mxu0 0.0
      %6144 = vmatprep.subr.mxu0 0.0
      %6145 = vmatpush2.msra.mxu0 0.0
      %6146 = vmatprep.subr.mxu0 0.0
      %6147 = vmatpush2.msra.mxu0 0.0
      %6148 = vmatprep.subr.mxu0 0.0
      %6149 = vmatpush2.msra.mxu0 0.0
      %6150 = vmatprep.subr.mxu0 0.0
      %6151 = vmatpush2.msra.mxu0 0.0
      %6152 = vmatprep.subr.mxu0 0.0
      %6153 = vmatpush2.msra.mxu0 0.0
      %6154 = vmatprep.subr.mxu0 0.0
      %6155 = vmatpush2.msra.mxu0 0.0
      %6156 = vmatprep.subr.mxu0 0.0
      %6157 = vmatpush2.msra.mxu0 0.0
      %6158 = vmatprep.subr.mxu0 0.0
      %6159 = vmatpush2.msra.mxu0 0.0
      %6160 = vmatprep.subr.mxu0 0.0
      %6161 = vmatpush2.msra.mxu0 0.0
      %6162 = vmatprep.subr.mxu0 0.0
      %6163 = vmatpush2.msra.mxu0 0.0
      %6164 = vmatprep.subr.mxu0 0.0
      %6165 = vmatpush2.msra.mxu0 0.0
      %6166 = vmatprep.subr.mxu0 0.0
      %6167 = vmatpush2.msra.mxu0 0.0
      %6168 = vmatprep.subr.mxu0 0.0
      %6169 = vmatpush2.msra.mxu0 0.0
      %6170 = vmatprep.mubr.f32.mxu0 0.0
      %v6171 = vand.u32 %v4973, 4294901760
      %v6172 = vsub.f32 %v4973, %v6171
      %6173 = vmatmul.mubr.f32.gmra.mxu0 %v6172
      %v6174 = vpop.f32.mrf.mxu0
      %v6175 = vadd.f32 %v6053, %v6174
      %v6176 = vpop.f32.mrf.mxu0
      %6177 = vmatprep.mubr.f32.mxu0 0.0
      %v6178 = vand.u32 %v4974, 4294901760
      %v6179 = vsub.f32 %v4974, %v6178
      %6180 = vmatmul.mubr.f32.gmra.mxu0 %v6179
      %v6181 = vpop.f32.mrf.mxu0
      %v6182 = vadd.f32 %v6059, %v6181
      %v6183 = vpop.f32.mrf.mxu0
      %6184 = vmatprep.mubr.f32.mxu0 0.0
      %v6185 = vand.u32 %v4975, 4294901760
      %v6186 = vsub.f32 %v4975, %v6185
      %6187 = vmatmul.mubr.f32.gmra.mxu0 %v6186
      %v6188 = vpop.f32.mrf.mxu0
      %v6189 = vadd.f32 %v6065, %v6188
      %v6190 = vpop.f32.mrf.mxu0
      %6191 = vmatprep.mubr.f32.mxu0 0.0
      %v6192 = vand.u32 %v4976, 4294901760
      %v6193 = vsub.f32 %v4976, %v6192
      %6194 = vmatmul.mubr.f32.gmra.mxu0 %v6193
      %v6195 = vpop.f32.mrf.mxu0
      %v6196 = vadd.f32 %v6071, %v6195
      %v6197 = vpop.f32.mrf.mxu0
      %6198 = vdwg.mxu0
      %6199 = vmatprep.subr.mxu0 0.0
      %v6200 = vand.u32 %v4992, 4294901760
      %6201 = vmatpush1.msra.mxu0 %v6200
      %6202 = vmatprep.subr.mxu0 0.0
      %v6203 = vand.u32 %v4991, 4294901760
      %6204 = vmatpush1.msra.mxu0 %v6203
      %6205 = vmatprep.subr.mxu0 0.0
      %v6206 = vand.u32 %v4990, 4294901760
      %6207 = vmatpush1.msra.mxu0 %v6206
      %6208 = vmatprep.subr.mxu0 0.0
      %v6209 = vand.u32 %v4989, 4294901760
      %6210 = vmatpush1.msra.mxu0 %v6209
      %6211 = vmatprep.subr.mxu0 0.0
      %v6212 = vand.u32 %v4988, 4294901760
      %6213 = vmatpush1.msra.mxu0 %v6212
      %6214 = vmatprep.subr.mxu0 0.0
      %v6215 = vand.u32 %v4987, 4294901760
      %6216 = vmatpush1.msra.mxu0 %v6215
      %6217 = vmatprep.subr.mxu0 0.0
      %v6218 = vand.u32 %v4986, 4294901760
      %6219 = vmatpush1.msra.mxu0 %v6218
      %6220 = vmatprep.subr.mxu0 0.0
      %v6221 = vand.u32 %v4985, 4294901760
      %6222 = vmatpush1.msra.mxu0 %v6221
      %6223 = vmatprep.subr.mxu0 0.0
      %v6224 = vand.u32 %v4984, 4294901760
      %6225 = vmatpush1.msra.mxu0 %v6224
      %6226 = vmatprep.subr.mxu0 0.0
      %v6227 = vand.u32 %v4983, 4294901760
      %6228 = vmatpush1.msra.mxu0 %v6227
      %6229 = vmatprep.subr.mxu0 0.0
      %v6230 = vand.u32 %v4982, 4294901760
      %6231 = vmatpush1.msra.mxu0 %v6230
      %6232 = vmatprep.subr.mxu0 0.0
      %v6233 = vand.u32 %v4981, 4294901760
      %6234 = vmatpush1.msra.mxu0 %v6233
      %6235 = vmatprep.subr.mxu0 0.0
      %v6236 = vand.u32 %v4980, 4294901760
      %6237 = vmatpush1.msra.mxu0 %v6236
      %6238 = vmatprep.subr.mxu0 0.0
      %v6239 = vand.u32 %v4979, 4294901760
      %6240 = vmatpush1.msra.mxu0 %v6239
      %6241 = vmatprep.subr.mxu0 0.0
      %v6242 = vand.u32 %v4978, 4294901760
      %6243 = vmatpush1.msra.mxu0 %v6242
      %6244 = vmatprep.subr.mxu0 0.0
      %v6245 = vand.u32 %v4977, 4294901760
      %6246 = vmatpush1.msra.mxu0 %v6245
      %6247 = vmatprep.subr.mxu0 0.0
      %6248 = vmatpush2.msra.mxu0 0.0
      %6249 = vmatprep.subr.mxu0 0.0
      %6250 = vmatpush2.msra.mxu0 0.0
      %6251 = vmatprep.subr.mxu0 0.0
      %6252 = vmatpush2.msra.mxu0 0.0
      %6253 = vmatprep.subr.mxu0 0.0
      %6254 = vmatpush2.msra.mxu0 0.0
      %6255 = vmatprep.subr.mxu0 0.0
      %6256 = vmatpush2.msra.mxu0 0.0
      %6257 = vmatprep.subr.mxu0 0.0
      %6258 = vmatpush2.msra.mxu0 0.0
      %6259 = vmatprep.subr.mxu0 0.0
      %6260 = vmatpush2.msra.mxu0 0.0
      %6261 = vmatprep.subr.mxu0 0.0
      %6262 = vmatpush2.msra.mxu0 0.0
      %6263 = vmatprep.subr.mxu0 0.0
      %6264 = vmatpush2.msra.mxu0 0.0
      %6265 = vmatprep.subr.mxu0 0.0
      %6266 = vmatpush2.msra.mxu0 0.0
      %6267 = vmatprep.subr.mxu0 0.0
      %6268 = vmatpush2.msra.mxu0 0.0
      %6269 = vmatprep.subr.mxu0 0.0
      %6270 = vmatpush2.msra.mxu0 0.0
      %6271 = vmatprep.subr.mxu0 0.0
      %6272 = vmatpush2.msra.mxu0 0.0
      %6273 = vmatprep.subr.mxu0 0.0
      %6274 = vmatpush2.msra.mxu0 0.0
      %6275 = vmatprep.subr.mxu0 0.0
      %6276 = vmatpush2.msra.mxu0 0.0
      %6277 = vmatprep.subr.mxu0 0.0
      %6278 = vmatpush2.msra.mxu0 0.0
      %6279 = vmatprep.mubr.f32.mxu0 0.0
      %v6280 = vand.u32 %v4973, 4294901760
      %v6281 = vsub.f32 %v4973, %v6280
      %v6282 = vand.u32 %v6281, 4294901760
      %6283 = vmatmul.mubr.f32.gmra.mxu0 %v6282
      %v6284 = vpop.f32.mrf.mxu0
      %v6285 = vadd.f32 %v6175, %v6284
      %v6286 = vpop.f32.mrf.mxu0
      %6287 = vmatprep.mubr.f32.mxu0 0.0
      %v6288 = vand.u32 %v4974, 4294901760
      %v6289 = vsub.f32 %v4974, %v6288
      %v6290 = vand.u32 %v6289, 4294901760
      %6291 = vmatmul.mubr.f32.gmra.mxu0 %v6290
      %v6292 = vpop.f32.mrf.mxu0
      %v6293 = vadd.f32 %v6182, %v6292
      %v6294 = vpop.f32.mrf.mxu0
      %6295 = vmatprep.mubr.f32.mxu0 0.0
      %v6296 = vand.u32 %v4975, 4294901760
      %v6297 = vsub.f32 %v4975, %v6296
      %v6298 = vand.u32 %v6297, 4294901760
      %6299 = vmatmul.mubr.f32.gmra.mxu0 %v6298
      %v6300 = vpop.f32.mrf.mxu0
      %v6301 = vadd.f32 %v6189, %v6300
      %v6302 = vpop.f32.mrf.mxu0
      %6303 = vmatprep.mubr.f32.mxu0 0.0
      %v6304 = vand.u32 %v4976, 4294901760
      %v6305 = vsub.f32 %v4976, %v6304
      %v6306 = vand.u32 %v6305, 4294901760
      %6307 = vmatmul.mubr.f32.gmra.mxu0 %v6306
      %v6308 = vpop.f32.mrf.mxu0
      %v6309 = vadd.f32 %v6196, %v6308
      %v6310 = vpop.f32.mrf.mxu0
      %6311 = vdwg.mxu0
      %6312 = vmatprep.subr.mxu0 0.0
      %v6313 = vand.u32 %v4992, 4294901760
      %v6314 = vsub.f32 %v4992, %v6313
      %v6315 = vand.u32 %v6314, 4294901760
      %6316 = vmatpush1.msra.mxu0 %v6315
      %6317 = vmatprep.subr.mxu0 0.0
      %v6318 = vand.u32 %v4991, 4294901760
      %v6319 = vsub.f32 %v4991, %v6318
      %v6320 = vand.u32 %v6319, 4294901760
      %6321 = vmatpush1.msra.mxu0 %v6320
      %6322 = vmatprep.subr.mxu0 0.0
      %v6323 = vand.u32 %v4990, 4294901760
      %v6324 = vsub.f32 %v4990, %v6323
      %v6325 = vand.u32 %v6324, 4294901760
      %6326 = vmatpush1.msra.mxu0 %v6325
      %6327 = vmatprep.subr.mxu0 0.0
      %v6328 = vand.u32 %v4989, 4294901760
      %v6329 = vsub.f32 %v4989, %v6328
      %v6330 = vand.u32 %v6329, 4294901760
      %6331 = vmatpush1.msra.mxu0 %v6330
      %6332 = vmatprep.subr.mxu0 0.0
      %v6333 = vand.u32 %v4988, 4294901760
      %v6334 = vsub.f32 %v4988, %v6333
      %v6335 = vand.u32 %v6334, 4294901760
      %6336 = vmatpush1.msra.mxu0 %v6335
      %6337 = vmatprep.subr.mxu0 0.0
      %v6338 = vand.u32 %v4987, 4294901760
      %v6339 = vsub.f32 %v4987, %v6338
      %v6340 = vand.u32 %v6339, 4294901760
      %6341 = vmatpush1.msra.mxu0 %v6340
      %6342 = vmatprep.subr.mxu0 0.0
      %v6343 = vand.u32 %v4986, 4294901760
      %v6344 = vsub.f32 %v4986, %v6343
      %v6345 = vand.u32 %v6344, 4294901760
      %6346 = vmatpush1.msra.mxu0 %v6345
      %6347 = vmatprep.subr.mxu0 0.0
      %v6348 = vand.u32 %v4985, 4294901760
      %v6349 = vsub.f32 %v4985, %v6348
      %v6350 = vand.u32 %v6349, 4294901760
      %6351 = vmatpush1.msra.mxu0 %v6350
      %6352 = vmatprep.subr.mxu0 0.0
      %v6353 = vand.u32 %v4984, 4294901760
      %v6354 = vsub.f32 %v4984, %v6353
      %v6355 = vand.u32 %v6354, 4294901760
      %6356 = vmatpush1.msra.mxu0 %v6355
      %6357 = vmatprep.subr.mxu0 0.0
      %v6358 = vand.u32 %v4983, 4294901760
      %v6359 = vsub.f32 %v4983, %v6358
      %v6360 = vand.u32 %v6359, 4294901760
      %6361 = vmatpush1.msra.mxu0 %v6360
      %6362 = vmatprep.subr.mxu0 0.0
      %v6363 = vand.u32 %v4982, 4294901760
      %v6364 = vsub.f32 %v4982, %v6363
      %v6365 = vand.u32 %v6364, 4294901760
      %6366 = vmatpush1.msra.mxu0 %v6365
      %6367 = vmatprep.subr.mxu0 0.0
      %v6368 = vand.u32 %v4981, 4294901760
      %v6369 = vsub.f32 %v4981, %v6368
      %v6370 = vand.u32 %v6369, 4294901760
      %6371 = vmatpush1.msra.mxu0 %v6370
      %6372 = vmatprep.subr.mxu0 0.0
      %v6373 = vand.u32 %v4980, 4294901760
      %v6374 = vsub.f32 %v4980, %v6373
      %v6375 = vand.u32 %v6374, 4294901760
      %6376 = vmatpush1.msra.mxu0 %v6375
      %6377 = vmatprep.subr.mxu0 0.0
      %v6378 = vand.u32 %v4979, 4294901760
      %v6379 = vsub.f32 %v4979, %v6378
      %v6380 = vand.u32 %v6379, 4294901760
      %6381 = vmatpush1.msra.mxu0 %v6380
      %6382 = vmatprep.subr.mxu0 0.0
      %v6383 = vand.u32 %v4978, 4294901760
      %v6384 = vsub.f32 %v4978, %v6383
      %v6385 = vand.u32 %v6384, 4294901760
      %6386 = vmatpush1.msra.mxu0 %v6385
      %6387 = vmatprep.subr.mxu0 0.0
      %v6388 = vand.u32 %v4977, 4294901760
      %v6389 = vsub.f32 %v4977, %v6388
      %v6390 = vand.u32 %v6389, 4294901760
      %6391 = vmatpush1.msra.mxu0 %v6390
      %6392 = vmatprep.subr.mxu0 0.0
      %6393 = vmatpush2.msra.mxu0 0.0
      %6394 = vmatprep.subr.mxu0 0.0
      %6395 = vmatpush2.msra.mxu0 0.0
      %6396 = vmatprep.subr.mxu0 0.0
      %6397 = vmatpush2.msra.mxu0 0.0
      %6398 = vmatprep.subr.mxu0 0.0
      %6399 = vmatpush2.msra.mxu0 0.0
      %6400 = vmatprep.subr.mxu0 0.0
      %6401 = vmatpush2.msra.mxu0 0.0
      %6402 = vmatprep.subr.mxu0 0.0
      %6403 = vmatpush2.msra.mxu0 0.0
      %6404 = vmatprep.subr.mxu0 0.0
      %6405 = vmatpush2.msra.mxu0 0.0
      %6406 = vmatprep.subr.mxu0 0.0
      %6407 = vmatpush2.msra.mxu0 0.0
      %6408 = vmatprep.subr.mxu0 0.0
      %6409 = vmatpush2.msra.mxu0 0.0
      %6410 = vmatprep.subr.mxu0 0.0
      %6411 = vmatpush2.msra.mxu0 0.0
      %6412 = vmatprep.subr.mxu0 0.0
      %6413 = vmatpush2.msra.mxu0 0.0
      %6414 = vmatprep.subr.mxu0 0.0
      %6415 = vmatpush2.msra.mxu0 0.0
      %6416 = vmatprep.subr.mxu0 0.0
      %6417 = vmatpush2.msra.mxu0 0.0
      %6418 = vmatprep.subr.mxu0 0.0
      %6419 = vmatpush2.msra.mxu0 0.0
      %6420 = vmatprep.subr.mxu0 0.0
      %6421 = vmatpush2.msra.mxu0 0.0
      %6422 = vmatprep.subr.mxu0 0.0
      %6423 = vmatpush2.msra.mxu0 0.0
      %6424 = vmatprep.mubr.f32.mxu0 0.0
      %v6425 = vand.u32 %v4973, 4294901760
      %6426 = vmatmul.mubr.f32.gmra.mxu0 %v6425
      %v6427 = vpop.f32.mrf.mxu0
      %v6428 = vadd.f32 %v6285, %v6427
      %v6429 = vpop.f32.mrf.mxu0
      %6430 = vmatprep.mubr.f32.mxu0 0.0
      %v6431 = vand.u32 %v4974, 4294901760
      %6432 = vmatmul.mubr.f32.gmra.mxu0 %v6431
      %v6433 = vpop.f32.mrf.mxu0
      %v6434 = vadd.f32 %v6293, %v6433
      %v6435 = vpop.f32.mrf.mxu0
      %6436 = vmatprep.mubr.f32.mxu0 0.0
      %v6437 = vand.u32 %v4975, 4294901760
      %6438 = vmatmul.mubr.f32.gmra.mxu0 %v6437
      %v6439 = vpop.f32.mrf.mxu0
      %v6440 = vadd.f32 %v6301, %v6439
      %v6441 = vpop.f32.mrf.mxu0
      %6442 = vmatprep.mubr.f32.mxu0 0.0
      %v6443 = vand.u32 %v4976, 4294901760
      %6444 = vmatmul.mubr.f32.gmra.mxu0 %v6443
      %v6445 = vpop.f32.mrf.mxu0
      %v6446 = vadd.f32 %v6309, %v6445
      %v6447 = vpop.f32.mrf.mxu0
      %6448 = vdwg.mxu0
      %6449 = vmatprep.subr.mxu0 0.0
      %v6450 = vand.u32 %v4992, 4294901760
      %6451 = vmatpush1.msra.mxu0 %v6450
      %6452 = vmatprep.subr.mxu0 0.0
      %v6453 = vand.u32 %v4991, 4294901760
      %6454 = vmatpush1.msra.mxu0 %v6453
      %6455 = vmatprep.subr.mxu0 0.0
      %v6456 = vand.u32 %v4990, 4294901760
      %6457 = vmatpush1.msra.mxu0 %v6456
      %6458 = vmatprep.subr.mxu0 0.0
      %v6459 = vand.u32 %v4989, 4294901760
      %6460 = vmatpush1.msra.mxu0 %v6459
      %6461 = vmatprep.subr.mxu0 0.0
      %v6462 = vand.u32 %v4988, 4294901760
      %6463 = vmatpush1.msra.mxu0 %v6462
      %6464 = vmatprep.subr.mxu0 0.0
      %v6465 = vand.u32 %v4987, 4294901760
      %6466 = vmatpush1.msra.mxu0 %v6465
      %6467 = vmatprep.subr.mxu0 0.0
      %v6468 = vand.u32 %v4986, 4294901760
      %6469 = vmatpush1.msra.mxu0 %v6468
      %6470 = vmatprep.subr.mxu0 0.0
      %v6471 = vand.u32 %v4985, 4294901760
      %6472 = vmatpush1.msra.mxu0 %v6471
      %6473 = vmatprep.subr.mxu0 0.0
      %v6474 = vand.u32 %v4984, 4294901760
      %6475 = vmatpush1.msra.mxu0 %v6474
      %6476 = vmatprep.subr.mxu0 0.0
      %v6477 = vand.u32 %v4983, 4294901760
      %6478 = vmatpush1.msra.mxu0 %v6477
      %6479 = vmatprep.subr.mxu0 0.0
      %v6480 = vand.u32 %v4982, 4294901760
      %6481 = vmatpush1.msra.mxu0 %v6480
      %6482 = vmatprep.subr.mxu0 0.0
      %v6483 = vand.u32 %v4981, 4294901760
      %6484 = vmatpush1.msra.mxu0 %v6483
      %6485 = vmatprep.subr.mxu0 0.0
      %v6486 = vand.u32 %v4980, 4294901760
      %6487 = vmatpush1.msra.mxu0 %v6486
      %6488 = vmatprep.subr.mxu0 0.0
      %v6489 = vand.u32 %v4979, 4294901760
      %6490 = vmatpush1.msra.mxu0 %v6489
      %6491 = vmatprep.subr.mxu0 0.0
      %v6492 = vand.u32 %v4978, 4294901760
      %6493 = vmatpush1.msra.mxu0 %v6492
      %6494 = vmatprep.subr.mxu0 0.0
      %v6495 = vand.u32 %v4977, 4294901760
      %6496 = vmatpush1.msra.mxu0 %v6495
      %6497 = vmatprep.subr.mxu0 0.0
      %6498 = vmatpush2.msra.mxu0 0.0
      %6499 = vmatprep.subr.mxu0 0.0
      %6500 = vmatpush2.msra.mxu0 0.0
      %6501 = vmatprep.subr.mxu0 0.0
      %6502 = vmatpush2.msra.mxu0 0.0
      %6503 = vmatprep.subr.mxu0 0.0
      %6504 = vmatpush2.msra.mxu0 0.0
      %6505 = vmatprep.subr.mxu0 0.0
      %6506 = vmatpush2.msra.mxu0 0.0
      %6507 = vmatprep.subr.mxu0 0.0
      %6508 = vmatpush2.msra.mxu0 0.0
      %6509 = vmatprep.subr.mxu0 0.0
      %6510 = vmatpush2.msra.mxu0 0.0
      %6511 = vmatprep.subr.mxu0 0.0
      %6512 = vmatpush2.msra.mxu0 0.0
      %6513 = vmatprep.subr.mxu0 0.0
      %6514 = vmatpush2.msra.mxu0 0.0
      %6515 = vmatprep.subr.mxu0 0.0
      %6516 = vmatpush2.msra.mxu0 0.0
      %6517 = vmatprep.subr.mxu0 0.0
      %6518 = vmatpush2.msra.mxu0 0.0
      %6519 = vmatprep.subr.mxu0 0.0
      %6520 = vmatpush2.msra.mxu0 0.0
      %6521 = vmatprep.subr.mxu0 0.0
      %6522 = vmatpush2.msra.mxu0 0.0
      %6523 = vmatprep.subr.mxu0 0.0
      %6524 = vmatpush2.msra.mxu0 0.0
      %6525 = vmatprep.subr.mxu0 0.0
      %6526 = vmatpush2.msra.mxu0 0.0
      %6527 = vmatprep.subr.mxu0 0.0
      %6528 = vmatpush2.msra.mxu0 0.0
      %6529 = vmatprep.mubr.f32.mxu0 0.0
      %v6530 = vand.u32 %v4973, 4294901760
      %6531 = vmatmul.mubr.f32.gmra.mxu0 %v6530
      %v6532 = vpop.f32.mrf.mxu0
      %v6533 = vadd.f32 %v6428, %v6532
      %v6534 = vpop.f32.mrf.mxu0
      %6535 = vmatprep.mubr.f32.mxu0 0.0
      %v6536 = vand.u32 %v4974, 4294901760
      %6537 = vmatmul.mubr.f32.gmra.mxu0 %v6536
      %v6538 = vpop.f32.mrf.mxu0
      %v6539 = vadd.f32 %v6434, %v6538
      %v6540 = vpop.f32.mrf.mxu0
      %6541 = vmatprep.mubr.f32.mxu0 0.0
      %v6542 = vand.u32 %v4975, 4294901760
      %6543 = vmatmul.mubr.f32.gmra.mxu0 %v6542
      %v6544 = vpop.f32.mrf.mxu0
      %v6545 = vadd.f32 %v6440, %v6544
      %v6546 = vpop.f32.mrf.mxu0
      %6547 = vmatprep.mubr.f32.mxu0 0.0
      %v6548 = vand.u32 %v4976, 4294901760
      %6549 = vmatmul.mubr.f32.gmra.mxu0 %v6548
      %v6550 = vpop.f32.mrf.mxu0
      %v6551 = vadd.f32 %v6446, %v6550
      %v6552 = vpop.f32.mrf.mxu0
      %6553 = vdwg.mxu0
      %v6554 = vld [vmem:[#allocation3 + $0x2] sm:$0xff]
      %v6555 = vld [vmem:[#allocation3 + $0xa] sm:$0xff]
      %v6556 = vld [vmem:[#allocation3 + $0x12] sm:$0xff]
      %v6557 = vld [vmem:[#allocation3 + $0x1a] sm:$0xff]
      %s6558 = scalar_lea.vmem %s5, 256
      %v6559 = vld [vmem:[%s6558] sm:$0xff]
      %v6560 = vld [vmem:[%s6558 + $0x8] sm:$0xff]
      %v6561 = vld [vmem:[%s6558 + $0x10] sm:$0xff]
      %v6562 = vld [vmem:[%s6558 + $0x18] sm:$0xff]
      %v6563 = vld [vmem:[%s6558 + $0x20] sm:$0xff]
      %v6564 = vld [vmem:[%s6558 + $0x28] sm:$0xff]
      %v6565 = vld [vmem:[%s6558 + $0x30] sm:$0xff]
      %v6566 = vld [vmem:[%s6558 + $0x38] sm:$0xff]
      %v6567 = vld [vmem:[%s6558 + $0x40] sm:$0xff]
      %v6568 = vld [vmem:[%s6558 + $0x48] sm:$0xff]
      %v6569 = vld [vmem:[%s6558 + $0x50] sm:$0xff]
      %v6570 = vld [vmem:[%s6558 + $0x58] sm:$0xff]
      %v6571 = vld [vmem:[%s6558 + $0x60] sm:$0xff]
      %v6572 = vld [vmem:[%s6558 + $0x68] sm:$0xff]
      %v6573 = vld [vmem:[%s6558 + $0x70] sm:$0xff]
      %v6574 = vld [vmem:[%s6558 + $0x78] sm:$0xff]
      %6575 = vmatprep.subr.mxu0 0.0
      %v6576 = vand.u32 %v6574, 4294901760
      %6577 = vmatpush1.msra.mxu0 %v6576
      %6578 = vmatprep.subr.mxu0 0.0
      %v6579 = vand.u32 %v6573, 4294901760
      %6580 = vmatpush1.msra.mxu0 %v6579
      %6581 = vmatprep.subr.mxu0 0.0
      %v6582 = vand.u32 %v6572, 4294901760
      %6583 = vmatpush1.msra.mxu0 %v6582
      %6584 = vmatprep.subr.mxu0 0.0
      %v6585 = vand.u32 %v6571, 4294901760
      %6586 = vmatpush1.msra.mxu0 %v6585
      %6587 = vmatprep.subr.mxu0 0.0
      %v6588 = vand.u32 %v6570, 4294901760
      %6589 = vmatpush1.msra.mxu0 %v6588
      %6590 = vmatprep.subr.mxu0 0.0
      %v6591 = vand.u32 %v6569, 4294901760
      %6592 = vmatpush1.msra.mxu0 %v6591
      %6593 = vmatprep.subr.mxu0 0.0
      %v6594 = vand.u32 %v6568, 4294901760
      %6595 = vmatpush1.msra.mxu0 %v6594
      %6596 = vmatprep.subr.mxu0 0.0
      %v6597 = vand.u32 %v6567, 4294901760
      %6598 = vmatpush1.msra.mxu0 %v6597
      %6599 = vmatprep.subr.mxu0 0.0
      %v6600 = vand.u32 %v6566, 4294901760
      %6601 = vmatpush1.msra.mxu0 %v6600
      %6602 = vmatprep.subr.mxu0 0.0
      %v6603 = vand.u32 %v6565, 4294901760
      %6604 = vmatpush1.msra.mxu0 %v6603
      %6605 = vmatprep.subr.mxu0 0.0
      %v6606 = vand.u32 %v6564, 4294901760
      %6607 = vmatpush1.msra.mxu0 %v6606
      %6608 = vmatprep.subr.mxu0 0.0
      %v6609 = vand.u32 %v6563, 4294901760
      %6610 = vmatpush1.msra.mxu0 %v6609
      %6611 = vmatprep.subr.mxu0 0.0
      %v6612 = vand.u32 %v6562, 4294901760
      %6613 = vmatpush1.msra.mxu0 %v6612
      %6614 = vmatprep.subr.mxu0 0.0
      %v6615 = vand.u32 %v6561, 4294901760
      %6616 = vmatpush1.msra.mxu0 %v6615
      %6617 = vmatprep.subr.mxu0 0.0
      %v6618 = vand.u32 %v6560, 4294901760
      %6619 = vmatpush1.msra.mxu0 %v6618
      %6620 = vmatprep.subr.mxu0 0.0
      %v6621 = vand.u32 %v6559, 4294901760
      %6622 = vmatpush1.msra.mxu0 %v6621
      %6623 = vmatprep.subr.mxu0 0.0
      %6624 = vmatpush2.msra.mxu0 0.0
      %6625 = vmatprep.subr.mxu0 0.0
      %6626 = vmatpush2.msra.mxu0 0.0
      %6627 = vmatprep.subr.mxu0 0.0
      %6628 = vmatpush2.msra.mxu0 0.0
      %6629 = vmatprep.subr.mxu0 0.0
      %6630 = vmatpush2.msra.mxu0 0.0
      %6631 = vmatprep.subr.mxu0 0.0
      %6632 = vmatpush2.msra.mxu0 0.0
      %6633 = vmatprep.subr.mxu0 0.0
      %6634 = vmatpush2.msra.mxu0 0.0
      %6635 = vmatprep.subr.mxu0 0.0
      %6636 = vmatpush2.msra.mxu0 0.0
      %6637 = vmatprep.subr.mxu0 0.0
      %6638 = vmatpush2.msra.mxu0 0.0
      %6639 = vmatprep.subr.mxu0 0.0
      %6640 = vmatpush2.msra.mxu0 0.0
      %6641 = vmatprep.subr.mxu0 0.0
      %6642 = vmatpush2.msra.mxu0 0.0
      %6643 = vmatprep.subr.mxu0 0.0
      %6644 = vmatpush2.msra.mxu0 0.0
      %6645 = vmatprep.subr.mxu0 0.0
      %6646 = vmatpush2.msra.mxu0 0.0
      %6647 = vmatprep.subr.mxu0 0.0
      %6648 = vmatpush2.msra.mxu0 0.0
      %6649 = vmatprep.subr.mxu0 0.0
      %6650 = vmatpush2.msra.mxu0 0.0
      %6651 = vmatprep.subr.mxu0 0.0
      %6652 = vmatpush2.msra.mxu0 0.0
      %6653 = vmatprep.subr.mxu0 0.0
      %6654 = vmatpush2.msra.mxu0 0.0
      %6655 = vmatprep.mubr.f32.mxu0 0.0
      %v6656 = vand.u32 %v6554, 4294901760
      %v6657 = vsub.f32 %v6554, %v6656
      %v6658 = vand.u32 %v6657, 4294901760
      %v6659 = vsub.f32 %v6657, %v6658
      %v6660 = vand.u32 %v6659, 4294901760
      %6661 = vmatmul.mubr.f32.gmra.mxu0 %v6660
      %v6662 = vpop.f32.mrf.mxu0
      %v6663 = vadd.f32 0.0, %v6662
      %v6664 = vpop.f32.mrf.mxu0
      %6665 = vmatprep.mubr.f32.mxu0 0.0
      %v6666 = vand.u32 %v6555, 4294901760
      %v6667 = vsub.f32 %v6555, %v6666
      %v6668 = vand.u32 %v6667, 4294901760
      %v6669 = vsub.f32 %v6667, %v6668
      %v6670 = vand.u32 %v6669, 4294901760
      %6671 = vmatmul.mubr.f32.gmra.mxu0 %v6670
      %v6672 = vpop.f32.mrf.mxu0
      %v6673 = vadd.f32 0.0, %v6672
      %v6674 = vpop.f32.mrf.mxu0
      %6675 = vmatprep.mubr.f32.mxu0 0.0
      %v6676 = vand.u32 %v6556, 4294901760
      %v6677 = vsub.f32 %v6556, %v6676
      %v6678 = vand.u32 %v6677, 4294901760
      %v6679 = vsub.f32 %v6677, %v6678
      %v6680 = vand.u32 %v6679, 4294901760
      %6681 = vmatmul.mubr.f32.gmra.mxu0 %v6680
      %v6682 = vpop.f32.mrf.mxu0
      %v6683 = vadd.f32 0.0, %v6682
      %v6684 = vpop.f32.mrf.mxu0
      %6685 = vmatprep.mubr.f32.mxu0 0.0
      %v6686 = vand.u32 %v6557, 4294901760
      %v6687 = vsub.f32 %v6557, %v6686
      %v6688 = vand.u32 %v6687, 4294901760
      %v6689 = vsub.f32 %v6687, %v6688
      %v6690 = vand.u32 %v6689, 4294901760
      %6691 = vmatmul.mubr.f32.gmra.mxu0 %v6690
      %v6692 = vpop.f32.mrf.mxu0
      %v6693 = vadd.f32 0.0, %v6692
      %v6694 = vpop.f32.mrf.mxu0
      %6695 = vdwg.mxu0
      %6696 = vmatprep.subr.mxu0 0.0
      %v6697 = vand.u32 %v6574, 4294901760
      %v6698 = vsub.f32 %v6574, %v6697
      %v6699 = vand.u32 %v6698, 4294901760
      %v6700 = vsub.f32 %v6698, %v6699
      %v6701 = vand.u32 %v6700, 4294901760
      %6702 = vmatpush1.msra.mxu0 %v6701
      %6703 = vmatprep.subr.mxu0 0.0
      %v6704 = vand.u32 %v6573, 4294901760
      %v6705 = vsub.f32 %v6573, %v6704
      %v6706 = vand.u32 %v6705, 4294901760
      %v6707 = vsub.f32 %v6705, %v6706
      %v6708 = vand.u32 %v6707, 4294901760
      %6709 = vmatpush1.msra.mxu0 %v6708
      %6710 = vmatprep.subr.mxu0 0.0
      %v6711 = vand.u32 %v6572, 4294901760
      %v6712 = vsub.f32 %v6572, %v6711
      %v6713 = vand.u32 %v6712, 4294901760
      %v6714 = vsub.f32 %v6712, %v6713
      %v6715 = vand.u32 %v6714, 4294901760
      %6716 = vmatpush1.msra.mxu0 %v6715
      %6717 = vmatprep.subr.mxu0 0.0
      %v6718 = vand.u32 %v6571, 4294901760
      %v6719 = vsub.f32 %v6571, %v6718
      %v6720 = vand.u32 %v6719, 4294901760
      %v6721 = vsub.f32 %v6719, %v6720
      %v6722 = vand.u32 %v6721, 4294901760
      %6723 = vmatpush1.msra.mxu0 %v6722
      %6724 = vmatprep.subr.mxu0 0.0
      %v6725 = vand.u32 %v6570, 4294901760
      %v6726 = vsub.f32 %v6570, %v6725
      %v6727 = vand.u32 %v6726, 4294901760
      %v6728 = vsub.f32 %v6726, %v6727
      %v6729 = vand.u32 %v6728, 4294901760
      %6730 = vmatpush1.msra.mxu0 %v6729
      %6731 = vmatprep.subr.mxu0 0.0
      %v6732 = vand.u32 %v6569, 4294901760
      %v6733 = vsub.f32 %v6569, %v6732
      %v6734 = vand.u32 %v6733, 4294901760
      %v6735 = vsub.f32 %v6733, %v6734
      %v6736 = vand.u32 %v6735, 4294901760
      %6737 = vmatpush1.msra.mxu0 %v6736
      %6738 = vmatprep.subr.mxu0 0.0
      %v6739 = vand.u32 %v6568, 4294901760
      %v6740 = vsub.f32 %v6568, %v6739
      %v6741 = vand.u32 %v6740, 4294901760
      %v6742 = vsub.f32 %v6740, %v6741
      %v6743 = vand.u32 %v6742, 4294901760
      %6744 = vmatpush1.msra.mxu0 %v6743
      %6745 = vmatprep.subr.mxu0 0.0
      %v6746 = vand.u32 %v6567, 4294901760
      %v6747 = vsub.f32 %v6567, %v6746
      %v6748 = vand.u32 %v6747, 4294901760
      %v6749 = vsub.f32 %v6747, %v6748
      %v6750 = vand.u32 %v6749, 4294901760
      %6751 = vmatpush1.msra.mxu0 %v6750
      %6752 = vmatprep.subr.mxu0 0.0
      %v6753 = vand.u32 %v6566, 4294901760
      %v6754 = vsub.f32 %v6566, %v6753
      %v6755 = vand.u32 %v6754, 4294901760
      %v6756 = vsub.f32 %v6754, %v6755
      %v6757 = vand.u32 %v6756, 4294901760
      %6758 = vmatpush1.msra.mxu0 %v6757
      %6759 = vmatprep.subr.mxu0 0.0
      %v6760 = vand.u32 %v6565, 4294901760
      %v6761 = vsub.f32 %v6565, %v6760
      %v6762 = vand.u32 %v6761, 4294901760
      %v6763 = vsub.f32 %v6761, %v6762
      %v6764 = vand.u32 %v6763, 4294901760
      %6765 = vmatpush1.msra.mxu0 %v6764
      %6766 = vmatprep.subr.mxu0 0.0
      %v6767 = vand.u32 %v6564, 4294901760
      %v6768 = vsub.f32 %v6564, %v6767
      %v6769 = vand.u32 %v6768, 4294901760
      %v6770 = vsub.f32 %v6768, %v6769
      %v6771 = vand.u32 %v6770, 4294901760
      %6772 = vmatpush1.msra.mxu0 %v6771
      %6773 = vmatprep.subr.mxu0 0.0
      %v6774 = vand.u32 %v6563, 4294901760
      %v6775 = vsub.f32 %v6563, %v6774
      %v6776 = vand.u32 %v6775, 4294901760
      %v6777 = vsub.f32 %v6775, %v6776
      %v6778 = vand.u32 %v6777, 4294901760
      %6779 = vmatpush1.msra.mxu0 %v6778
      %6780 = vmatprep.subr.mxu0 0.0
      %v6781 = vand.u32 %v6562, 4294901760
      %v6782 = vsub.f32 %v6562, %v6781
      %v6783 = vand.u32 %v6782, 4294901760
      %v6784 = vsub.f32 %v6782, %v6783
      %v6785 = vand.u32 %v6784, 4294901760
      %6786 = vmatpush1.msra.mxu0 %v6785
      %6787 = vmatprep.subr.mxu0 0.0
      %v6788 = vand.u32 %v6561, 4294901760
      %v6789 = vsub.f32 %v6561, %v6788
      %v6790 = vand.u32 %v6789, 4294901760
      %v6791 = vsub.f32 %v6789, %v6790
      %v6792 = vand.u32 %v6791, 4294901760
      %6793 = vmatpush1.msra.mxu0 %v6792
      %6794 = vmatprep.subr.mxu0 0.0
      %v6795 = vand.u32 %v6560, 4294901760
      %v6796 = vsub.f32 %v6560, %v6795
      %v6797 = vand.u32 %v6796, 4294901760
      %v6798 = vsub.f32 %v6796, %v6797
      %v6799 = vand.u32 %v6798, 4294901760
      %6800 = vmatpush1.msra.mxu0 %v6799
      %6801 = vmatprep.subr.mxu0 0.0
      %v6802 = vand.u32 %v6559, 4294901760
      %v6803 = vsub.f32 %v6559, %v6802
      %v6804 = vand.u32 %v6803, 4294901760
      %v6805 = vsub.f32 %v6803, %v6804
      %v6806 = vand.u32 %v6805, 4294901760
      %6807 = vmatpush1.msra.mxu0 %v6806
      %6808 = vmatprep.subr.mxu0 0.0
      %6809 = vmatpush2.msra.mxu0 0.0
      %6810 = vmatprep.subr.mxu0 0.0
      %6811 = vmatpush2.msra.mxu0 0.0
      %6812 = vmatprep.subr.mxu0 0.0
      %6813 = vmatpush2.msra.mxu0 0.0
      %6814 = vmatprep.subr.mxu0 0.0
      %6815 = vmatpush2.msra.mxu0 0.0
      %6816 = vmatprep.subr.mxu0 0.0
      %6817 = vmatpush2.msra.mxu0 0.0
      %6818 = vmatprep.subr.mxu0 0.0
      %6819 = vmatpush2.msra.mxu0 0.0
      %6820 = vmatprep.subr.mxu0 0.0
      %6821 = vmatpush2.msra.mxu0 0.0
      %6822 = vmatprep.subr.mxu0 0.0
      %6823 = vmatpush2.msra.mxu0 0.0
      %6824 = vmatprep.subr.mxu0 0.0
      %6825 = vmatpush2.msra.mxu0 0.0
      %6826 = vmatprep.subr.mxu0 0.0
      %6827 = vmatpush2.msra.mxu0 0.0
      %6828 = vmatprep.subr.mxu0 0.0
      %6829 = vmatpush2.msra.mxu0 0.0
      %6830 = vmatprep.subr.mxu0 0.0
      %6831 = vmatpush2.msra.mxu0 0.0
      %6832 = vmatprep.subr.mxu0 0.0
      %6833 = vmatpush2.msra.mxu0 0.0
      %6834 = vmatprep.subr.mxu0 0.0
      %6835 = vmatpush2.msra.mxu0 0.0
      %6836 = vmatprep.subr.mxu0 0.0
      %6837 = vmatpush2.msra.mxu0 0.0
      %6838 = vmatprep.subr.mxu0 0.0
      %6839 = vmatpush2.msra.mxu0 0.0
      %6840 = vmatprep.mubr.f32.mxu0 0.0
      %v6841 = vand.u32 %v6554, 4294901760
      %6842 = vmatmul.mubr.f32.gmra.mxu0 %v6841
      %v6843 = vpop.f32.mrf.mxu0
      %v6844 = vadd.f32 %v6663, %v6843
      %v6845 = vpop.f32.mrf.mxu0
      %6846 = vmatprep.mubr.f32.mxu0 0.0
      %v6847 = vand.u32 %v6555, 4294901760
      %6848 = vmatmul.mubr.f32.gmra.mxu0 %v6847
      %v6849 = vpop.f32.mrf.mxu0
      %v6850 = vadd.f32 %v6673, %v6849
      %v6851 = vpop.f32.mrf.mxu0
      %6852 = vmatprep.mubr.f32.mxu0 0.0
      %v6853 = vand.u32 %v6556, 4294901760
      %6854 = vmatmul.mubr.f32.gmra.mxu0 %v6853
      %v6855 = vpop.f32.mrf.mxu0
      %v6856 = vadd.f32 %v6683, %v6855
      %v6857 = vpop.f32.mrf.mxu0
      %6858 = vmatprep.mubr.f32.mxu0 0.0
      %v6859 = vand.u32 %v6557, 4294901760
      %6860 = vmatmul.mubr.f32.gmra.mxu0 %v6859
      %v6861 = vpop.f32.mrf.mxu0
      %v6862 = vadd.f32 %v6693, %v6861
      %v6863 = vpop.f32.mrf.mxu0
      %6864 = vdwg.mxu0
      %6865 = vmatprep.subr.mxu0 0.0
      %v6866 = vand.u32 %v6574, 4294901760
      %v6867 = vsub.f32 %v6574, %v6866
      %6868 = vmatpush1.msra.mxu0 %v6867
      %6869 = vmatprep.subr.mxu0 0.0
      %v6870 = vand.u32 %v6573, 4294901760
      %v6871 = vsub.f32 %v6573, %v6870
      %6872 = vmatpush1.msra.mxu0 %v6871
      %6873 = vmatprep.subr.mxu0 0.0
      %v6874 = vand.u32 %v6572, 4294901760
      %v6875 = vsub.f32 %v6572, %v6874
      %6876 = vmatpush1.msra.mxu0 %v6875
      %6877 = vmatprep.subr.mxu0 0.0
      %v6878 = vand.u32 %v6571, 4294901760
      %v6879 = vsub.f32 %v6571, %v6878
      %6880 = vmatpush1.msra.mxu0 %v6879
      %6881 = vmatprep.subr.mxu0 0.0
      %v6882 = vand.u32 %v6570, 4294901760
      %v6883 = vsub.f32 %v6570, %v6882
      %6884 = vmatpush1.msra.mxu0 %v6883
      %6885 = vmatprep.subr.mxu0 0.0
      %v6886 = vand.u32 %v6569, 4294901760
      %v6887 = vsub.f32 %v6569, %v6886
      %6888 = vmatpush1.msra.mxu0 %v6887
      %6889 = vmatprep.subr.mxu0 0.0
      %v6890 = vand.u32 %v6568, 4294901760
      %v6891 = vsub.f32 %v6568, %v6890
      %6892 = vmatpush1.msra.mxu0 %v6891
      %6893 = vmatprep.subr.mxu0 0.0
      %v6894 = vand.u32 %v6567, 4294901760
      %v6895 = vsub.f32 %v6567, %v6894
      %6896 = vmatpush1.msra.mxu0 %v6895
      %6897 = vmatprep.subr.mxu0 0.0
      %v6898 = vand.u32 %v6566, 4294901760
      %v6899 = vsub.f32 %v6566, %v6898
      %6900 = vmatpush1.msra.mxu0 %v6899
      %6901 = vmatprep.subr.mxu0 0.0
      %v6902 = vand.u32 %v6565, 4294901760
      %v6903 = vsub.f32 %v6565, %v6902
      %6904 = vmatpush1.msra.mxu0 %v6903
      %6905 = vmatprep.subr.mxu0 0.0
      %v6906 = vand.u32 %v6564, 4294901760
      %v6907 = vsub.f32 %v6564, %v6906
      %6908 = vmatpush1.msra.mxu0 %v6907
      %6909 = vmatprep.subr.mxu0 0.0
      %v6910 = vand.u32 %v6563, 4294901760
      %v6911 = vsub.f32 %v6563, %v6910
      %6912 = vmatpush1.msra.mxu0 %v6911
      %6913 = vmatprep.subr.mxu0 0.0
      %v6914 = vand.u32 %v6562, 4294901760
      %v6915 = vsub.f32 %v6562, %v6914
      %6916 = vmatpush1.msra.mxu0 %v6915
      %6917 = vmatprep.subr.mxu0 0.0
      %v6918 = vand.u32 %v6561, 4294901760
      %v6919 = vsub.f32 %v6561, %v6918
      %6920 = vmatpush1.msra.mxu0 %v6919
      %6921 = vmatprep.subr.mxu0 0.0
      %v6922 = vand.u32 %v6560, 4294901760
      %v6923 = vsub.f32 %v6560, %v6922
      %6924 = vmatpush1.msra.mxu0 %v6923
      %6925 = vmatprep.subr.mxu0 0.0
      %v6926 = vand.u32 %v6559, 4294901760
      %v6927 = vsub.f32 %v6559, %v6926
      %6928 = vmatpush1.msra.mxu0 %v6927
      %6929 = vmatprep.subr.mxu0 0.0
      %6930 = vmatpush2.msra.mxu0 0.0
      %6931 = vmatprep.subr.mxu0 0.0
      %6932 = vmatpush2.msra.mxu0 0.0
      %6933 = vmatprep.subr.mxu0 0.0
      %6934 = vmatpush2.msra.mxu0 0.0
      %6935 = vmatprep.subr.mxu0 0.0
      %6936 = vmatpush2.msra.mxu0 0.0
      %6937 = vmatprep.subr.mxu0 0.0
      %6938 = vmatpush2.msra.mxu0 0.0
      %6939 = vmatprep.subr.mxu0 0.0
      %6940 = vmatpush2.msra.mxu0 0.0
      %6941 = vmatprep.subr.mxu0 0.0
      %6942 = vmatpush2.msra.mxu0 0.0
      %6943 = vmatprep.subr.mxu0 0.0
      %6944 = vmatpush2.msra.mxu0 0.0
      %6945 = vmatprep.subr.mxu0 0.0
      %6946 = vmatpush2.msra.mxu0 0.0
      %6947 = vmatprep.subr.mxu0 0.0
      %6948 = vmatpush2.msra.mxu0 0.0
      %6949 = vmatprep.subr.mxu0 0.0
      %6950 = vmatpush2.msra.mxu0 0.0
      %6951 = vmatprep.subr.mxu0 0.0
      %6952 = vmatpush2.msra.mxu0 0.0
      %6953 = vmatprep.subr.mxu0 0.0
      %6954 = vmatpush2.msra.mxu0 0.0
      %6955 = vmatprep.subr.mxu0 0.0
      %6956 = vmatpush2.msra.mxu0 0.0
      %6957 = vmatprep.subr.mxu0 0.0
      %6958 = vmatpush2.msra.mxu0 0.0
      %6959 = vmatprep.subr.mxu0 0.0
      %6960 = vmatpush2.msra.mxu0 0.0
      %6961 = vmatprep.mubr.f32.mxu0 0.0
      %v6962 = vand.u32 %v6554, 4294901760
      %v6963 = vsub.f32 %v6554, %v6962
      %6964 = vmatmul.mubr.f32.gmra.mxu0 %v6963
      %v6965 = vpop.f32.mrf.mxu0
      %v6966 = vadd.f32 %v6844, %v6965
      %v6967 = vpop.f32.mrf.mxu0
      %6968 = vmatprep.mubr.f32.mxu0 0.0
      %v6969 = vand.u32 %v6555, 4294901760
      %v6970 = vsub.f32 %v6555, %v6969
      %6971 = vmatmul.mubr.f32.gmra.mxu0 %v6970
      %v6972 = vpop.f32.mrf.mxu0
      %v6973 = vadd.f32 %v6850, %v6972
      %v6974 = vpop.f32.mrf.mxu0
      %6975 = vmatprep.mubr.f32.mxu0 0.0
      %v6976 = vand.u32 %v6556, 4294901760
      %v6977 = vsub.f32 %v6556, %v6976
      %6978 = vmatmul.mubr.f32.gmra.mxu0 %v6977
      %v6979 = vpop.f32.mrf.mxu0
      %v6980 = vadd.f32 %v6856, %v6979
      %v6981 = vpop.f32.mrf.mxu0
      %6982 = vmatprep.mubr.f32.mxu0 0.0
      %v6983 = vand.u32 %v6557, 4294901760
      %v6984 = vsub.f32 %v6557, %v6983
      %6985 = vmatmul.mubr.f32.gmra.mxu0 %v6984
      %v6986 = vpop.f32.mrf.mxu0
      %v6987 = vadd.f32 %v6862, %v6986
      %v6988 = vpop.f32.mrf.mxu0
      %6989 = vdwg.mxu0
      %6990 = vmatprep.subr.mxu0 0.0
      %v6991 = vand.u32 %v6574, 4294901760
      %6992 = vmatpush1.msra.mxu0 %v6991
      %6993 = vmatprep.subr.mxu0 0.0
      %v6994 = vand.u32 %v6573, 4294901760
      %6995 = vmatpush1.msra.mxu0 %v6994
      %6996 = vmatprep.subr.mxu0 0.0
      %v6997 = vand.u32 %v6572, 4294901760
      %6998 = vmatpush1.msra.mxu0 %v6997
      %6999 = vmatprep.subr.mxu0 0.0
      %v7000 = vand.u32 %v6571, 4294901760
      %7001 = vmatpush1.msra.mxu0 %v7000
      %7002 = vmatprep.subr.mxu0 0.0
      %v7003 = vand.u32 %v6570, 4294901760
      %7004 = vmatpush1.msra.mxu0 %v7003
      %7005 = vmatprep.subr.mxu0 0.0
      %v7006 = vand.u32 %v6569, 4294901760
      %7007 = vmatpush1.msra.mxu0 %v7006
      %7008 = vmatprep.subr.mxu0 0.0
      %v7009 = vand.u32 %v6568, 4294901760
      %7010 = vmatpush1.msra.mxu0 %v7009
      %7011 = vmatprep.subr.mxu0 0.0
      %v7012 = vand.u32 %v6567, 4294901760
      %7013 = vmatpush1.msra.mxu0 %v7012
      %7014 = vmatprep.subr.mxu0 0.0
      %v7015 = vand.u32 %v6566, 4294901760
      %7016 = vmatpush1.msra.mxu0 %v7015
      %7017 = vmatprep.subr.mxu0 0.0
      %v7018 = vand.u32 %v6565, 4294901760
      %7019 = vmatpush1.msra.mxu0 %v7018
      %7020 = vmatprep.subr.mxu0 0.0
      %v7021 = vand.u32 %v6564, 4294901760
      %7022 = vmatpush1.msra.mxu0 %v7021
      %7023 = vmatprep.subr.mxu0 0.0
      %v7024 = vand.u32 %v6563, 4294901760
      %7025 = vmatpush1.msra.mxu0 %v7024
      %7026 = vmatprep.subr.mxu0 0.0
      %v7027 = vand.u32 %v6562, 4294901760
      %7028 = vmatpush1.msra.mxu0 %v7027
      %7029 = vmatprep.subr.mxu0 0.0
      %v7030 = vand.u32 %v6561, 4294901760
      %7031 = vmatpush1.msra.mxu0 %v7030
      %7032 = vmatprep.subr.mxu0 0.0
      %v7033 = vand.u32 %v6560, 4294901760
      %7034 = vmatpush1.msra.mxu0 %v7033
      %7035 = vmatprep.subr.mxu0 0.0
      %v7036 = vand.u32 %v6559, 4294901760
      %7037 = vmatpush1.msra.mxu0 %v7036
      %7038 = vmatprep.subr.mxu0 0.0
      %7039 = vmatpush2.msra.mxu0 0.0
      %7040 = vmatprep.subr.mxu0 0.0
      %7041 = vmatpush2.msra.mxu0 0.0
      %7042 = vmatprep.subr.mxu0 0.0
      %7043 = vmatpush2.msra.mxu0 0.0
      %7044 = vmatprep.subr.mxu0 0.0
      %7045 = vmatpush2.msra.mxu0 0.0
      %7046 = vmatprep.subr.mxu0 0.0
      %7047 = vmatpush2.msra.mxu0 0.0
      %7048 = vmatprep.subr.mxu0 0.0
      %7049 = vmatpush2.msra.mxu0 0.0
      %7050 = vmatprep.subr.mxu0 0.0
      %7051 = vmatpush2.msra.mxu0 0.0
      %7052 = vmatprep.subr.mxu0 0.0
      %7053 = vmatpush2.msra.mxu0 0.0
      %7054 = vmatprep.subr.mxu0 0.0
      %7055 = vmatpush2.msra.mxu0 0.0
      %7056 = vmatprep.subr.mxu0 0.0
      %7057 = vmatpush2.msra.mxu0 0.0
      %7058 = vmatprep.subr.mxu0 0.0
      %7059 = vmatpush2.msra.mxu0 0.0
      %7060 = vmatprep.subr.mxu0 0.0
      %7061 = vmatpush2.msra.mxu0 0.0
      %7062 = vmatprep.subr.mxu0 0.0
      %7063 = vmatpush2.msra.mxu0 0.0
      %7064 = vmatprep.subr.mxu0 0.0
      %7065 = vmatpush2.msra.mxu0 0.0
      %7066 = vmatprep.subr.mxu0 0.0
      %7067 = vmatpush2.msra.mxu0 0.0
      %7068 = vmatprep.subr.mxu0 0.0
      %7069 = vmatpush2.msra.mxu0 0.0
      %7070 = vmatprep.mubr.f32.mxu0 0.0
      %v7071 = vand.u32 %v6554, 4294901760
      %v7072 = vsub.f32 %v6554, %v7071
      %v7073 = vand.u32 %v7072, 4294901760
      %7074 = vmatmul.mubr.f32.gmra.mxu0 %v7073
      %v7075 = vpop.f32.mrf.mxu0
      %v7076 = vadd.f32 %v6966, %v7075
      %v7077 = vpop.f32.mrf.mxu0
      %7078 = vmatprep.mubr.f32.mxu0 0.0
      %v7079 = vand.u32 %v6555, 4294901760
      %v7080 = vsub.f32 %v6555, %v7079
      %v7081 = vand.u32 %v7080, 4294901760
      %7082 = vmatmul.mubr.f32.gmra.mxu0 %v7081
      %v7083 = vpop.f32.mrf.mxu0
      %v7084 = vadd.f32 %v6973, %v7083
      %v7085 = vpop.f32.mrf.mxu0
      %7086 = vmatprep.mubr.f32.mxu0 0.0
      %v7087 = vand.u32 %v6556, 4294901760
      %v7088 = vsub.f32 %v6556, %v7087
      %v7089 = vand.u32 %v7088, 4294901760
      %7090 = vmatmul.mubr.f32.gmra.mxu0 %v7089
      %v7091 = vpop.f32.mrf.mxu0
      %v7092 = vadd.f32 %v6980, %v7091
      %v7093 = vpop.f32.mrf.mxu0
      %7094 = vmatprep.mubr.f32.mxu0 0.0
      %v7095 = vand.u32 %v6557, 4294901760
      %v7096 = vsub.f32 %v6557, %v7095
      %v7097 = vand.u32 %v7096, 4294901760
      %7098 = vmatmul.mubr.f32.gmra.mxu0 %v7097
      %v7099 = vpop.f32.mrf.mxu0
      %v7100 = vadd.f32 %v6987, %v7099
      %v7101 = vpop.f32.mrf.mxu0
      %7102 = vdwg.mxu0
      %7103 = vmatprep.subr.mxu0 0.0
      %v7104 = vand.u32 %v6574, 4294901760
      %v7105 = vsub.f32 %v6574, %v7104
      %v7106 = vand.u32 %v7105, 4294901760
      %7107 = vmatpush1.msra.mxu0 %v7106
      %7108 = vmatprep.subr.mxu0 0.0
      %v7109 = vand.u32 %v6573, 4294901760
      %v7110 = vsub.f32 %v6573, %v7109
      %v7111 = vand.u32 %v7110, 4294901760
      %7112 = vmatpush1.msra.mxu0 %v7111
      %7113 = vmatprep.subr.mxu0 0.0
      %v7114 = vand.u32 %v6572, 4294901760
      %v7115 = vsub.f32 %v6572, %v7114
      %v7116 = vand.u32 %v7115, 4294901760
      %7117 = vmatpush1.msra.mxu0 %v7116
      %7118 = vmatprep.subr.mxu0 0.0
      %v7119 = vand.u32 %v6571, 4294901760
      %v7120 = vsub.f32 %v6571, %v7119
      %v7121 = vand.u32 %v7120, 4294901760
      %7122 = vmatpush1.msra.mxu0 %v7121
      %7123 = vmatprep.subr.mxu0 0.0
      %v7124 = vand.u32 %v6570, 4294901760
      %v7125 = vsub.f32 %v6570, %v7124
      %v7126 = vand.u32 %v7125, 4294901760
      %7127 = vmatpush1.msra.mxu0 %v7126
      %7128 = vmatprep.subr.mxu0 0.0
      %v7129 = vand.u32 %v6569, 4294901760
      %v7130 = vsub.f32 %v6569, %v7129
      %v7131 = vand.u32 %v7130, 4294901760
      %7132 = vmatpush1.msra.mxu0 %v7131
      %7133 = vmatprep.subr.mxu0 0.0
      %v7134 = vand.u32 %v6568, 4294901760
      %v7135 = vsub.f32 %v6568, %v7134
      %v7136 = vand.u32 %v7135, 4294901760
      %7137 = vmatpush1.msra.mxu0 %v7136
      %7138 = vmatprep.subr.mxu0 0.0
      %v7139 = vand.u32 %v6567, 4294901760
      %v7140 = vsub.f32 %v6567, %v7139
      %v7141 = vand.u32 %v7140, 4294901760
      %7142 = vmatpush1.msra.mxu0 %v7141
      %7143 = vmatprep.subr.mxu0 0.0
      %v7144 = vand.u32 %v6566, 4294901760
      %v7145 = vsub.f32 %v6566, %v7144
      %v7146 = vand.u32 %v7145, 4294901760
      %7147 = vmatpush1.msra.mxu0 %v7146
      %7148 = vmatprep.subr.mxu0 0.0
      %v7149 = vand.u32 %v6565, 4294901760
      %v7150 = vsub.f32 %v6565, %v7149
      %v7151 = vand.u32 %v7150, 4294901760
      %7152 = vmatpush1.msra.mxu0 %v7151
      %7153 = vmatprep.subr.mxu0 0.0
      %v7154 = vand.u32 %v6564, 4294901760
      %v7155 = vsub.f32 %v6564, %v7154
      %v7156 = vand.u32 %v7155, 4294901760
      %7157 = vmatpush1.msra.mxu0 %v7156
      %7158 = vmatprep.subr.mxu0 0.0
      %v7159 = vand.u32 %v6563, 4294901760
      %v7160 = vsub.f32 %v6563, %v7159
      %v7161 = vand.u32 %v7160, 4294901760
      %7162 = vmatpush1.msra.mxu0 %v7161
      %7163 = vmatprep.subr.mxu0 0.0
      %v7164 = vand.u32 %v6562, 4294901760
      %v7165 = vsub.f32 %v6562, %v7164
      %v7166 = vand.u32 %v7165, 4294901760
      %7167 = vmatpush1.msra.mxu0 %v7166
      %7168 = vmatprep.subr.mxu0 0.0
      %v7169 = vand.u32 %v6561, 4294901760
      %v7170 = vsub.f32 %v6561, %v7169
      %v7171 = vand.u32 %v7170, 4294901760
      %7172 = vmatpush1.msra.mxu0 %v7171
      %7173 = vmatprep.subr.mxu0 0.0
      %v7174 = vand.u32 %v6560, 4294901760
      %v7175 = vsub.f32 %v6560, %v7174
      %v7176 = vand.u32 %v7175, 4294901760
      %7177 = vmatpush1.msra.mxu0 %v7176
      %7178 = vmatprep.subr.mxu0 0.0
      %v7179 = vand.u32 %v6559, 4294901760
      %v7180 = vsub.f32 %v6559, %v7179
      %v7181 = vand.u32 %v7180, 4294901760
      %7182 = vmatpush1.msra.mxu0 %v7181
      %7183 = vmatprep.subr.mxu0 0.0
      %7184 = vmatpush2.msra.mxu0 0.0
      %7185 = vmatprep.subr.mxu0 0.0
      %7186 = vmatpush2.msra.mxu0 0.0
      %7187 = vmatprep.subr.mxu0 0.0
      %7188 = vmatpush2.msra.mxu0 0.0
      %7189 = vmatprep.subr.mxu0 0.0
      %7190 = vmatpush2.msra.mxu0 0.0
      %7191 = vmatprep.subr.mxu0 0.0
      %7192 = vmatpush2.msra.mxu0 0.0
      %7193 = vmatprep.subr.mxu0 0.0
      %7194 = vmatpush2.msra.mxu0 0.0
      %7195 = vmatprep.subr.mxu0 0.0
      %7196 = vmatpush2.msra.mxu0 0.0
      %7197 = vmatprep.subr.mxu0 0.0
      %7198 = vmatpush2.msra.mxu0 0.0
      %7199 = vmatprep.subr.mxu0 0.0
      %7200 = vmatpush2.msra.mxu0 0.0
      %7201 = vmatprep.subr.mxu0 0.0
      %7202 = vmatpush2.msra.mxu0 0.0
      %7203 = vmatprep.subr.mxu0 0.0
      %7204 = vmatpush2.msra.mxu0 0.0
      %7205 = vmatprep.subr.mxu0 0.0
      %7206 = vmatpush2.msra.mxu0 0.0
      %7207 = vmatprep.subr.mxu0 0.0
      %7208 = vmatpush2.msra.mxu0 0.0
      %7209 = vmatprep.subr.mxu0 0.0
      %7210 = vmatpush2.msra.mxu0 0.0
      %7211 = vmatprep.subr.mxu0 0.0
      %7212 = vmatpush2.msra.mxu0 0.0
      %7213 = vmatprep.subr.mxu0 0.0
      %7214 = vmatpush2.msra.mxu0 0.0
      %7215 = vmatprep.mubr.f32.mxu0 0.0
      %v7216 = vand.u32 %v6554, 4294901760
      %7217 = vmatmul.mubr.f32.gmra.mxu0 %v7216
      %v7218 = vpop.f32.mrf.mxu0
      %v7219 = vadd.f32 %v7076, %v7218
      %v7220 = vpop.f32.mrf.mxu0
      %7221 = vmatprep.mubr.f32.mxu0 0.0
      %v7222 = vand.u32 %v6555, 4294901760
      %7223 = vmatmul.mubr.f32.gmra.mxu0 %v7222
      %v7224 = vpop.f32.mrf.mxu0
      %v7225 = vadd.f32 %v7084, %v7224
      %v7226 = vpop.f32.mrf.mxu0
      %7227 = vmatprep.mubr.f32.mxu0 0.0
      %v7228 = vand.u32 %v6556, 4294901760
      %7229 = vmatmul.mubr.f32.gmra.mxu0 %v7228
      %v7230 = vpop.f32.mrf.mxu0
      %v7231 = vadd.f32 %v7092, %v7230
      %v7232 = vpop.f32.mrf.mxu0
      %7233 = vmatprep.mubr.f32.mxu0 0.0
      %v7234 = vand.u32 %v6557, 4294901760
      %7235 = vmatmul.mubr.f32.gmra.mxu0 %v7234
      %v7236 = vpop.f32.mrf.mxu0
      %v7237 = vadd.f32 %v7100, %v7236
      %v7238 = vpop.f32.mrf.mxu0
      %7239 = vdwg.mxu0
      %7240 = vmatprep.subr.mxu0 0.0
      %v7241 = vand.u32 %v6574, 4294901760
      %7242 = vmatpush1.msra.mxu0 %v7241
      %7243 = vmatprep.subr.mxu0 0.0
      %v7244 = vand.u32 %v6573, 4294901760
      %7245 = vmatpush1.msra.mxu0 %v7244
      %7246 = vmatprep.subr.mxu0 0.0
      %v7247 = vand.u32 %v6572, 4294901760
      %7248 = vmatpush1.msra.mxu0 %v7247
      %7249 = vmatprep.subr.mxu0 0.0
      %v7250 = vand.u32 %v6571, 4294901760
      %7251 = vmatpush1.msra.mxu0 %v7250
      %7252 = vmatprep.subr.mxu0 0.0
      %v7253 = vand.u32 %v6570, 4294901760
      %7254 = vmatpush1.msra.mxu0 %v7253
      %7255 = vmatprep.subr.mxu0 0.0
      %v7256 = vand.u32 %v6569, 4294901760
      %7257 = vmatpush1.msra.mxu0 %v7256
      %7258 = vmatprep.subr.mxu0 0.0
      %v7259 = vand.u32 %v6568, 4294901760
      %7260 = vmatpush1.msra.mxu0 %v7259
      %7261 = vmatprep.subr.mxu0 0.0
      %v7262 = vand.u32 %v6567, 4294901760
      %7263 = vmatpush1.msra.mxu0 %v7262
      %7264 = vmatprep.subr.mxu0 0.0
      %v7265 = vand.u32 %v6566, 4294901760
      %7266 = vmatpush1.msra.mxu0 %v7265
      %7267 = vmatprep.subr.mxu0 0.0
      %v7268 = vand.u32 %v6565, 4294901760
      %7269 = vmatpush1.msra.mxu0 %v7268
      %7270 = vmatprep.subr.mxu0 0.0
      %v7271 = vand.u32 %v6564, 4294901760
      %7272 = vmatpush1.msra.mxu0 %v7271
      %7273 = vmatprep.subr.mxu0 0.0
      %v7274 = vand.u32 %v6563, 4294901760
      %7275 = vmatpush1.msra.mxu0 %v7274
      %7276 = vmatprep.subr.mxu0 0.0
      %v7277 = vand.u32 %v6562, 4294901760
      %7278 = vmatpush1.msra.mxu0 %v7277
      %7279 = vmatprep.subr.mxu0 0.0
      %v7280 = vand.u32 %v6561, 4294901760
      %7281 = vmatpush1.msra.mxu0 %v7280
      %7282 = vmatprep.subr.mxu0 0.0
      %v7283 = vand.u32 %v6560, 4294901760
      %7284 = vmatpush1.msra.mxu0 %v7283
      %7285 = vmatprep.subr.mxu0 0.0
      %v7286 = vand.u32 %v6559, 4294901760
      %7287 = vmatpush1.msra.mxu0 %v7286
      %7288 = vmatprep.subr.mxu0 0.0
      %7289 = vmatpush2.msra.mxu0 0.0
      %7290 = vmatprep.subr.mxu0 0.0
      %7291 = vmatpush2.msra.mxu0 0.0
      %7292 = vmatprep.subr.mxu0 0.0
      %7293 = vmatpush2.msra.mxu0 0.0
      %7294 = vmatprep.subr.mxu0 0.0
      %7295 = vmatpush2.msra.mxu0 0.0
      %7296 = vmatprep.subr.mxu0 0.0
      %7297 = vmatpush2.msra.mxu0 0.0
      %7298 = vmatprep.subr.mxu0 0.0
      %7299 = vmatpush2.msra.mxu0 0.0
      %7300 = vmatprep.subr.mxu0 0.0
      %7301 = vmatpush2.msra.mxu0 0.0
      %7302 = vmatprep.subr.mxu0 0.0
      %7303 = vmatpush2.msra.mxu0 0.0
      %7304 = vmatprep.subr.mxu0 0.0
      %7305 = vmatpush2.msra.mxu0 0.0
      %7306 = vmatprep.subr.mxu0 0.0
      %7307 = vmatpush2.msra.mxu0 0.0
      %7308 = vmatprep.subr.mxu0 0.0
      %7309 = vmatpush2.msra.mxu0 0.0
      %7310 = vmatprep.subr.mxu0 0.0
      %7311 = vmatpush2.msra.mxu0 0.0
      %7312 = vmatprep.subr.mxu0 0.0
      %7313 = vmatpush2.msra.mxu0 0.0
      %7314 = vmatprep.subr.mxu0 0.0
      %7315 = vmatpush2.msra.mxu0 0.0
      %7316 = vmatprep.subr.mxu0 0.0
      %7317 = vmatpush2.msra.mxu0 0.0
      %7318 = vmatprep.subr.mxu0 0.0
      %7319 = vmatpush2.msra.mxu0 0.0
      %7320 = vmatprep.mubr.f32.mxu0 0.0
      %v7321 = vand.u32 %v6554, 4294901760
      %7322 = vmatmul.mubr.f32.gmra.mxu0 %v7321
      %v7323 = vpop.f32.mrf.mxu0
      %v7324 = vadd.f32 %v7219, %v7323
      %v7325 = vpop.f32.mrf.mxu0
      %7326 = vmatprep.mubr.f32.mxu0 0.0
      %v7327 = vand.u32 %v6555, 4294901760
      %7328 = vmatmul.mubr.f32.gmra.mxu0 %v7327
      %v7329 = vpop.f32.mrf.mxu0
      %v7330 = vadd.f32 %v7225, %v7329
      %v7331 = vpop.f32.mrf.mxu0
      %7332 = vmatprep.mubr.f32.mxu0 0.0
      %v7333 = vand.u32 %v6556, 4294901760
      %7334 = vmatmul.mubr.f32.gmra.mxu0 %v7333
      %v7335 = vpop.f32.mrf.mxu0
      %v7336 = vadd.f32 %v7231, %v7335
      %v7337 = vpop.f32.mrf.mxu0
      %7338 = vmatprep.mubr.f32.mxu0 0.0
      %v7339 = vand.u32 %v6557, 4294901760
      %7340 = vmatmul.mubr.f32.gmra.mxu0 %v7339
      %v7341 = vpop.f32.mrf.mxu0
      %v7342 = vadd.f32 %v7237, %v7341
      %v7343 = vpop.f32.mrf.mxu0
      %7344 = vdwg.mxu0
      %v7345 = vadd.f32 %v6533, %v7324
      %v7346 = vadd.f32 %v6539, %v7330
      %v7347 = vadd.f32 %v6545, %v7336
      %v7348 = vadd.f32 %v6551, %v7342
      %v7349 = vld [vmem:[%s7] sm:$0x1]
      %v7351 = vlaneseq
      %v7352 = vshrl.u32 %v7351, 7
      %v7353 = vsub.s32 0, %v7352
      %v7354 = vrot.slane %v7349, %v7353
      %v7356 = vadd.f32 %v7345, %v7354
      %v7357 = vadd.f32 %v7346, %v7354
      %v7358 = vadd.f32 %v7347, %v7354
      %v7359 = vadd.f32 %v7348, %v7354
      %v7360 = vmax.f32 %v7356, 0.0
      %v7361 = vmax.f32 %v7357, 0.0
      %v7362 = vmax.f32 %v7358, 0.0
      %v7363 = vmax.f32 %v7359, 0.0
      %7364 = vst [vmem:[%s325] sm:$0xff] %v7360
      %7365 = vst [vmem:[%s325 + $0x8] sm:$0xff] %v7361
      %7366 = vst [vmem:[%s325 + $0x10] sm:$0xff] %v7362
      %7367 = vst [vmem:[%s325 + $0x18] sm:$0xff] %v7363
      %p7368 = scmp.lt.s32.totalorder %s19, 1
      %s7369 = scalar_select %p7368, %s19, 1
      %s7370 = smul.addr %s7369, 4
      %s7371 = smul.addr %s7370, 8
      %s7372 = scalar_lea.vmem %s8, %s7371
      // Predicated region
      $region53: #{upsample_block_forward.1} parent=51 // pred_check
        %p7373 = pneg %p215
      $region54: #{upsample_block_forward.1} parent=51 // pred_check_branch
        %7375 = sbr.rel (%p7373) target = $region56
      $region55: #{upsample_block_forward.1} parent=51 // pred_region
        _
      $region56: #{upsample_block_forward.1} parent=51 // pred_fallthru
        _
    $region52: #{upsample_block_forward.1} parent=5 // pred_fallthru
      _
    %p7376 = scmp.le.s32.totalorder 2, %s14
    // Predicated region
    $region57: #{upsample_block_forward.1} parent=5 // pred_check
      %p7377 = pneg %p7376
    $region58: #{upsample_block_forward.1} parent=5 // pred_check_branch
      %7379 = sbr.rel (%p7377) target = $region60
    $region59: #{upsample_block_forward.1} parent=5 // pred_region
      %s7380 = ssub.s32 %s14, 2
      // Predicated region
      $region61: #{upsample_block_forward.1} parent=59 // pred_check
        %p7381 = pneg %p221
      $region62: #{upsample_block_forward.1} parent=59 // pred_check_branch
        %7383 = sbr.rel (%p7381) target = $region64
      $region63: #{upsample_block_forward.1} parent=59 // pred_region
        %p7384 = scmp.lt.s32.totalorder %s20, 1
        %s7385 = scalar_select %p7384, %s20, 1
        %s7386 = smul.addr %s7385, 4
        %s7387 = smul.addr %s7386, 8
        %s7388 = scalar_lea.vmem %s8, %s7387
      $region64: #{upsample_block_forward.1} parent=59 // pred_fallthru
        _
    $region60: #{upsample_block_forward.1} parent=5 // pred_fallthru
      _
  $region6: #{upsample_block_forward.1} parent=0 // loop_footer
    %s18 = sadd.s32 1, %s14
  $region7: #{upsample_block_forward.1} parent=0 // loop_footer_branch
    %13 = sbr.rel target = $region3
  $region8: #{upsample_block_forward.1} parent=0 // loop_exit
    _

</llo_original>
